<compile_context>
chip_gen: v7x
topology: tpu7x:2x2x1
jax: 0.10.0
libtpu: 0.0.40
codegen_flags: <defaults>
</compile_context>

<pallas_src>
import functools
import math

import jax
import jax.numpy as jnp
from jax.experimental import pallas as pl
from jax.experimental.pallas import tpu as pltpu

NEG_INF = -1e9                     # finite "-inf" keeps softmax NaN-free
LN_EPS = 1e-5
VMEM_LIMIT = 32 * 1024 * 1024      # safe on v5e / v6e / v7x


# ----------------------------------------------------------------------------
# in-kernel helpers (traced inside kernel bodies)
# ----------------------------------------------------------------------------
def _layer_norm(x, g, b):
    mu = jnp.mean(x, axis=-1, keepdims=True)
    xc = x - mu
    var = jnp.mean(xc * xc, axis=-1, keepdims=True)
    return xc * jax.lax.rsqrt(var + LN_EPS) * g + b


def _mha_heads(x_q, x_kv, wq, bq, wk, bk, wv, bv, wo, bo, mask, nhead, scale):
    """Multi-head attention on one batch element (fully inside VMEM).

    x_q: (Lq, E) f32, x_kv: (Lk, E) f32.
    wq/wk/wv refs: (H, E, Dh) bf16, bq/bk/bv refs: (H, 1, Dh) f32,
    wo ref: (H, Dh, E) bf16, bo ref: (1, E) f32.
    mask: additive, broadcastable to (Lq, Lk).
    Returns (Lq, E) f32 (already through the output projection).
    """
    Lq, E = x_q.shape
    xq = x_q.astype(jnp.bfloat16)
    xkv = x_kv.astype(jnp.bfloat16)
    out = jnp.zeros((Lq, E), jnp.float32)
    for h in range(nhead):                       # static unroll over heads
        qh = jnp.dot(xq, wq[h], preferred_element_type=jnp.float32) + bq[h]
        kh = jnp.dot(xkv, wk[h], preferred_element_type=jnp.float32) + bk[h]
        vh = jnp.dot(xkv, wv[h], preferred_element_type=jnp.float32) + bv[h]
        s = jnp.dot(qh, kh.T, preferred_element_type=jnp.float32) * scale + mask
        s = s - jnp.max(s, axis=-1, keepdims=True)
        p = jnp.exp(s)
        p = p * pl.reciprocal(jnp.sum(p, axis=-1, keepdims=True), approx=True)
        oh = jnp.dot(p, vh, preferred_element_type=jnp.float32)       # (Lq, Dh)
        # concat-over-heads followed by out-proj  ==  sum_h  oh @ Wo[h]
        out = out + jnp.dot(oh.astype(jnp.bfloat16), wo[h],
                            preferred_element_type=jnp.float32)
    return out + bo[...]


def _ffn(x, w1, b1, w2, b2):
    h = jnp.dot(x.astype(jnp.bfloat16), w1[...],
                preferred_element_type=jnp.float32) + b1[...]
    h = jnp.maximum(h, 0.0)                                           # relu
    return jnp.dot(h.astype(jnp.bfloat16), w2[...],
                   preferred_element_type=jnp.float32) + b2[...]


# ----------------------------------------------------------------------------
# Pallas kernels
# ----------------------------------------------------------------------------
def _encoder_layer_kernel(x_ref, am_ref, kpm_ref,
                          wq, bq, wk, bk, wv, bv, wo, bo,
                          ln1g, ln1b, w1, b1, w2, b2, ln2g, ln2b,
                          o_ref, *, nhead, scale):
    x = x_ref[0]                                  # (S, E) f32
    mask = am_ref[...] + kpm_ref[0]               # (S, S) + (1, S)
    a = _mha_heads(x, x, wq, bq, wk, bk, wv, bv, wo, bo, mask, nhead, scale)
    x2 = _layer_norm(x + a, ln1g[...], ln1b[...])              # post-LN
    x3 = _layer_norm(x2 + _ffn(x2, w1, b1, w2, b2), ln2g[...], ln2b[...])
    o_ref[0] = x3


def _decoder_layer_kernel(x_ref, mem_ref, tm_ref, tkpm_ref, mkpm_ref,
                          s_wq, s_bq, s_wk, s_bk, s_wv, s_bv, s_wo, s_bo,
                          ln1g, ln1b,
                          c_wq, c_bq, c_wk, c_bk, c_wv, c_bv, c_wo, c_bo,
                          ln2g, ln2b,
                          w1, b1, w2, b2, ln3g, ln3b,
                          o_ref, *, nhead, scale):
    x = x_ref[0]                                  # (T, E)
    mem = mem_ref[0]                              # (S, E)
    self_mask = tm_ref[...] + tkpm_ref[0]         # (T, T) + (1, T)
    a = _mha_heads(x, x, s_wq, s_bq, s_wk, s_bk, s_wv, s_bv, s_wo, s_bo,
                   self_mask, nhead, scale)
    x2 = _layer_norm(x + a, ln1g[...], ln1b[...])
    cross_mask = mkpm_ref[0]                      # (1, S) broadcasts to (T, S)
    c = _mha_heads(x2, mem, c_wq, c_bq, c_wk, c_bk, c_wv, c_bv, c_wo, c_bo,
                   cross_mask, nhead, scale)
    x3 = _layer_norm(x2 + c, ln2g[...], ln2b[...])
    x4 = _layer_norm(x3 + _ffn(x3, w1, b1, w2, b2), ln3g[...], ln3b[...])
    o_ref[0] = x4


def _ln_kernel(x_ref, g_ref, b_ref, o_ref):
    o_ref[...] = _layer_norm(x_ref[...], g_ref[...], b_ref[...])


def _linear_kernel(x_ref, w_ref, b_ref, o_ref):
    o_ref[...] = jnp.dot(x_ref[...].astype(jnp.bfloat16), w_ref[...],
                         preferred_element_type=jnp.float32) + b_ref[...]


# ----------------------------------------------------------------------------
# pallas_call wrappers
# ----------------------------------------------------------------------------
def _full_spec(a):
    """Whole-array block at constant block index (for a 1-D grid)."""
    zeros = (0,) * a.ndim
    return pl.BlockSpec(a.shape, lambda b, _z=zeros: _z)


def encoder_layer(x, p, nhead, attn_mask, kpm):
    """x: (B, S, E) f32; attn_mask: (S, S) additive; kpm: (B, 1, S) additive."""
    B, S, E = x.shape
    scale = 1.0 / math.sqrt(E // nhead)
    weights = (p["sa_wq"], p["sa_bq"], p["sa_wk"], p["sa_bk"],
               p["sa_wv"], p["sa_bv"], p["sa_wo"], p["sa_bo"],
               p["ln1_g"], p["ln1_b"],
               p["ff1_w"], p["ff1_b"], p["ff2_w"], p["ff2_b"],
               p["ln2_g"], p["ln2_b"])
    in_specs = [pl.BlockSpec((1, S, E), lambda b: (b, 0, 0)),
                _full_spec(attn_mask),
                pl.BlockSpec((1, 1, S), lambda b: (b, 0, 0))]
    in_specs += [_full_spec(w) for w in weights]
    return pl.pallas_call(
        functools.partial(_encoder_layer_kernel, nhead=nhead, scale=scale),
        out_shape=jax.ShapeDtypeStruct((B, S, E), jnp.float32),
        grid=(B,),
        in_specs=in_specs,
        out_specs=pl.BlockSpec((1, S, E), lambda b: (b, 0, 0)),
        compiler_params=pltpu.CompilerParams(
            dimension_semantics=("parallel",),
            vmem_limit_bytes=VMEM_LIMIT),
    )(x, attn_mask, kpm, *weights)


def decoder_layer(x, mem, p, nhead, tgt_mask, tgt_kpm, mem_kpm):
    """x: (B, T, E); mem: (B, S, E); masks additive."""
    B, T, E = x.shape
    S = mem.shape[1]
    scale = 1.0 / math.sqrt(E // nhead)
    weights = (p["sa_wq"], p["sa_bq"], p["sa_wk"], p["sa_bk"],
               p["sa_wv"], p["sa_bv"], p["sa_wo"], p["sa_bo"],
               p["ln1_g"], p["ln1_b"],
               p["ca_wq"], p["ca_bq"], p["ca_wk"], p["ca_bk"],
               p["ca_wv"], p["ca_bv"], p["ca_wo"], p["ca_bo"],
               p["ln2_g"], p["ln2_b"],
               p["ff1_w"], p["ff1_b"], p["ff2_w"], p["ff2_b"],
               p["ln3_g"], p["ln3_b"])
    in_specs = [pl.BlockSpec((1, T, E), lambda b: (b, 0, 0)),
                pl.BlockSpec((1, S, E), lambda b: (b, 0, 0)),
                _full_spec(tgt_mask),
                pl.BlockSpec((1, 1, T), lambda b: (b, 0, 0)),
                pl.BlockSpec((1, 1, S), lambda b: (b, 0, 0))]
    in_specs += [_full_spec(w) for w in weights]
    return pl.pallas_call(
        functools.partial(_decoder_layer_kernel, nhead=nhead, scale=scale),
        out_shape=jax.ShapeDtypeStruct((B, T, E), jnp.float32),
        grid=(B,),
        in_specs=in_specs,
        out_specs=pl.BlockSpec((1, T, E), lambda b: (b, 0, 0)),
        compiler_params=pltpu.CompilerParams(
            dimension_semantics=("parallel",),
            vmem_limit_bytes=VMEM_LIMIT),
    )(x, mem, tgt_mask, tgt_kpm, mem_kpm, *weights)


def layernorm(x, g, b):
    """Pure LayerNorm over the last dim.  x: (M, E); g, b: (1, E)."""
    M, E = x.shape
    return pl.pallas_call(
        _ln_kernel,
        out_shape=jax.ShapeDtypeStruct((M, E), jnp.float32),
        grid=(1,),
        in_specs=[pl.BlockSpec((M, E), lambda i: (0, 0)),
                  pl.BlockSpec((1, E), lambda i: (0, 0)),
                  pl.BlockSpec((1, E), lambda i: (0, 0))],
        out_specs=pl.BlockSpec((M, E), lambda i: (0, 0)),
        compiler_params=pltpu.CompilerParams(
            vmem_limit_bytes=VMEM_LIMIT),
    )(x, g, b)


def linear(x, w, b, tm=512, tn=512):
    """Tiled x @ w + b.  x: (M, K) f32, w: (K, N) bf16, b: (1, N) f32."""
    M, K = x.shape
    N = w.shape[1]
    tm = min(tm, M)
    tn = min(tn, N)
    return pl.pallas_call(
        _linear_kernel,
        out_shape=jax.ShapeDtypeStruct((M, N), jnp.float32),
        grid=(pl.cdiv(M, tm), pl.cdiv(N, tn)),
        in_specs=[pl.BlockSpec((tm, K), lambda i, j: (i, 0)),
                  pl.BlockSpec((K, tn), lambda i, j: (0, j)),
                  pl.BlockSpec((1, tn), lambda i, j: (0, j))],
        out_specs=pl.BlockSpec((tm, tn), lambda i, j: (i, j)),
        compiler_params=pltpu.CompilerParams(
            dimension_semantics=("parallel", "parallel"),
            vmem_limit_bytes=VMEM_LIMIT),
    )(x, w, b)


# ----------------------------------------------------------------------------
# Transformer forward (glue in plain JAX, compute in Pallas kernels)
# ----------------------------------------------------------------------------
def make_pos_embedding(maxlen, emb_size):
    den = jnp.exp(-jnp.arange(0, emb_size, 2, dtype=jnp.float32)
                  * math.log(10000.0) / emb_size)
    pos = jnp.arange(0, maxlen, dtype=jnp.float32).reshape(maxlen, 1)
    pe = jnp.zeros((maxlen, emb_size), jnp.float32)
    pe = pe.at[:, 0::2].set(jnp.sin(pos * den))
    pe = pe.at[:, 1::2].set(jnp.cos(pos * den))
    return pe


def seq2seq_forward(params, src, trg, src_mask, tgt_mask,
                    src_padding_mask, tgt_padding_mask,
                    memory_key_padding_mask, *, nhead, tgt_vocab):
    E = params["src_emb"].shape[1]
    S, B = src.shape
    T, _ = trg.shape
    pe = params["pos_embedding"]

    # Token embedding (gather = XLA glue) * sqrt(E) + positional encoding,
    # built directly batch-major (B, L, E) so layers need no transposes.
    src_x = params["src_emb"][src.T] * math.sqrt(E) + pe[None, :S, :]
    tgt_x = params["tgt_emb"][trg.T] * math.sqrt(E) + pe[None, :T, :]
    # TODO(synk): dropout (train mode) not implemented; eval-mode identity used.

    # Small additive per-batch key-padding rows (no (B*H, L, L) mask in HBM).
    src_kpm = jnp.where(src_padding_mask, NEG_INF, 0.0).astype(jnp.float32)[:, None, :]
    tgt_kpm = jnp.where(tgt_padding_mask, NEG_INF, 0.0).astype(jnp.float32)[:, None, :]
    mem_kpm = jnp.where(memory_key_padding_mask, NEG_INF, 0.0).astype(jnp.float32)[:, None, :]
    src_mask = src_mask.astype(jnp.float32)
    tgt_mask = tgt_mask.astype(jnp.float32)

    mem = src_x
    for lp in params["enc_layers"]:
        mem = encoder_layer(mem, lp, nhead, src_mask, src_kpm)
    mem = layernorm(mem.reshape(B * S, E),
                    params["enc_norm_g"], params["enc_norm_b"]).reshape(B, S, E)

    x = tgt_x
    for lp in params["dec_layers"]:
        x = decoder_layer(x, mem, lp, nhead, tgt_mask, tgt_kpm, mem_kpm)
    x = layernorm(x.reshape(B * T, E),
                  params["dec_norm_g"], params["dec_norm_b"]).reshape(B, T, E)

    # Generator: output dim padded to a multiple of 128 (lane-dense stores).
    logits = linear(x.reshape(B * T, E), params["gen_w"], params["gen_b"])
    logits = logits[:, :tgt_vocab].reshape(B, T, tgt_vocab)
    return jnp.transpose(logits, (1, 0, 2))     # (T, B, V) — PyTorch seq-first


# ----------------------------------------------------------------------------
# Deterministic parameter init (synthetic weights, bf16 matmul weights)
# ----------------------------------------------------------------------------
def _dense(key, shape, scale=0.1):
    return scale * jax.random.normal(key, shape, dtype=jnp.float32)


def _init_attn(key, E, H):
    Dh = E // H
    ks = jax.random.split(key, 4)

    def head_major_in(w):  # (E, E) -> (H, E, Dh);  wq[h] == W[:, h*Dh:(h+1)*Dh]
        return jnp.transpose(w.reshape(E, H, Dh), (1, 0, 2)).astype(jnp.bfloat16)

    return dict(
        wq=head_major_in(_dense(ks[0], (E, E))),
        wk=head_major_in(_dense(ks[1], (E, E))),
        wv=head_major_in(_dense(ks[2], (E, E))),
        bq=jnp.zeros((H, 1, Dh), jnp.float32),
        bk=jnp.zeros((H, 1, Dh), jnp.float32),
        bv=jnp.zeros((H, 1, Dh), jnp.float32),
        # (E, E) out-proj -> (H, Dh, E): wo[h] == Wo[h*Dh:(h+1)*Dh, :]
        wo=_dense(ks[3], (E, E)).reshape(H, Dh, E).astype(jnp.bfloat16),
        bo=jnp.zeros((1, E), jnp.float32),
    )


def _ln_pair(E):
    return jnp.ones((1, E), jnp.float32), jnp.zeros((1, E), jnp.float32)


def _init_enc_layer(key, E, H, FF):
    k1, k2, k3 = jax.random.split(key, 3)
    ln1_g, ln1_b = _ln_pair(E)
    ln2_g, ln2_b = _ln_pair(E)
    d = dict(
        ln1_g=ln1_g, ln1_b=ln1_b, ln2_g=ln2_g, ln2_b=ln2_b,
        ff1_w=_dense(k2, (E, FF)).astype(jnp.bfloat16),
        ff1_b=jnp.zeros((1, FF), jnp.float32),
        ff2_w=_dense(k3, (FF, E)).astype(jnp.bfloat16),
        ff2_b=jnp.zeros((1, E), jnp.float32),
    )
    d.update({f"sa_{k}": v for k, v in _init_attn(k1, E, H).items()})
    return d


def _init_dec_layer(key, E, H, FF):
    k1, k2, k3, k4 = jax.random.split(key, 4)
    ln1_g, ln1_b = _ln_pair(E)
    ln2_g, ln2_b = _ln_pair(E)
    ln3_g, ln3_b = _ln_pair(E)
    d = dict(
        ln1_g=ln1_g, ln1_b=ln1_b, ln2_g=ln2_g, ln2_b=ln2_b,
        ln3_g=ln3_g, ln3_b=ln3_b,
        ff1_w=_dense(k3, (E, FF)).astype(jnp.bfloat16),
        ff1_b=jnp.zeros((1, FF), jnp.float32),
        ff2_w=_dense(k4, (FF, E)).astype(jnp.bfloat16),
        ff2_b=jnp.zeros((1, E), jnp.float32),
    )
    d.update({f"sa_{k}": v for k, v in _init_attn(k1, E, H).items()})
    d.update({f"ca_{k}": v for k, v in _init_attn(k2, E, H).items()})
    return d


def init_params(key, num_enc, num_dec, E, H, FF, src_vocab, tgt_vocab, maxlen=128):
    keys = jax.random.split(key, num_enc + num_dec + 3)
    enc_layers = [_init_enc_layer(keys[i], E, H, FF) for i in range(num_enc)]
    dec_layers = [_init_dec_layer(keys[num_enc + i], E, H, FF) for i in range(num_dec)]
    k_src, k_tgt, k_gen = keys[-3], keys[-2], keys[-1]
    enc_g, enc_b = _ln_pair(E)
    dec_g, dec_b = _ln_pair(E)
    vpad = ((tgt_vocab + 127) // 128) * 128        # lane-dense generator output
    gen_w = jnp.zeros((E, vpad), jnp.float32)
    gen_w = gen_w.at[:, :tgt_vocab].set(_dense(k_gen, (E, tgt_vocab)))
    return dict(
        pos_embedding=make_pos_embedding(maxlen, E),
        src_emb=_dense(k_src, (src_vocab, E), 1.0),
        tgt_emb=_dense(k_tgt, (tgt_vocab, E), 1.0),
        enc_layers=enc_layers, dec_layers=dec_layers,
        enc_norm_g=enc_g, enc_norm_b=enc_b,
        dec_norm_g=dec_g, dec_norm_b=dec_b,
        gen_w=gen_w.astype(jnp.bfloat16),
        gen_b=jnp.zeros((1, vpad), jnp.float32),
    )


# ----------------------------------------------------------------------------
if __name__ == "__main__":
    NUM_ENC, NUM_DEC = 2, 2
    EMB, NHEAD, FF = 32, 4, 64
    SRC_VOCAB, TGT_VOCAB = 50, 60
    S, T, B = 8, 8, 2

    key = jax.random.PRNGKey(0)
    kp, ks, kt = jax.random.split(key, 3)
    params = init_params(kp, NUM_ENC, NUM_DEC, EMB, NHEAD, FF,
                         SRC_VOCAB, TGT_VOCAB)

    src = jax.random.randint(ks, (S, B), 0, SRC_VOCAB)      # (S, B) tokens
    trg = jax.random.randint(kt, (T, B), 0, TGT_VOCAB)      # (T, B) tokens

    src_mask = jnp.zeros((S, S), jnp.float32)
    tgt_mask = jnp.where(jnp.triu(jnp.ones((T, T), bool), k=1),
                         NEG_INF, 0.0).astype(jnp.float32)  # causal mask
    src_padding_mask = jnp.zeros((B, S), bool).at[:, -1].set(True)
    tgt_padding_mask = jnp.zeros((B, T), bool).at[:, -1].set(True)
    memory_key_padding_mask = src_padding_mask

    fwd = jax.jit(functools.partial(seq2seq_forward,
                                    nhead=NHEAD, tgt_vocab=TGT_VOCAB))
    out = fwd(params, src, trg, src_mask, tgt_mask,
              src_padding_mask, tgt_padding_mask, memory_key_padding_mask)
    jax.block_until_ready(out)
    assert out.shape == (T, B, TGT_VOCAB), out.shape
    assert bool(jnp.all(jnp.isfinite(out)))
    print("KERNEL_OK")
</pallas_src>

<mosaic_0001>
module attributes {stable_mosaic.version = 11 : i64} {
  func.func @_ln_kernel(%arg0: i32, %arg1: memref<16x32xf32, #tpu.memory_space<vmem>>, %arg2: memref<1x32xf32, #tpu.memory_space<vmem>>, %arg3: memref<1x32xf32, #tpu.memory_space<vmem>>, %arg4: memref<16x32xf32, #tpu.memory_space<vmem>>) attributes {dimension_semantics = [#tpu.dimension_semantics<arbitrary>], iteration_bounds = array<i64: 1>, scalar_prefetch = 0 : i64, scratch_operands = 0 : i64, tpu.core_type = #tpu.core_type<tc>, window_params = [{pipeline_mode = #tpu.pipeline_mode<synchronous>, transform_indices = @transform_0, window_bounds = array<i64: 16, 32>}, {pipeline_mode = #tpu.pipeline_mode<synchronous>, transform_indices = @transform_1, window_bounds = array<i64: 1, 32>}, {pipeline_mode = #tpu.pipeline_mode<synchronous>, transform_indices = @transform_2, window_bounds = array<i64: 1, 32>}, {pipeline_mode = #tpu.pipeline_mode<synchronous>, transform_indices = @transform_3, window_bounds = array<i64: 16, 32>}]} {
    %c0 = arith.constant 0 : index
    %c0_0 = arith.constant 0 : index
    %0 = vector.load %arg1[%c0, %c0_0] : memref<16x32xf32, #tpu.memory_space<vmem>>, vector<16x32xf32>
    %c0_1 = arith.constant 0 : index
    %c0_2 = arith.constant 0 : index
    %1 = vector.load %arg2[%c0_1, %c0_2] : memref<1x32xf32, #tpu.memory_space<vmem>>, vector<1x32xf32>
    %c0_3 = arith.constant 0 : index
    %c0_4 = arith.constant 0 : index
    %2 = vector.load %arg3[%c0_3, %c0_4] : memref<1x32xf32, #tpu.memory_space<vmem>>, vector<1x32xf32>
    %cst = arith.constant dense<0.000000e+00> : vector<16xf32>
    %3 = vector.multi_reduction <add>, %0, %cst [1] : vector<16x32xf32> to vector<16xf32>
    %4 = vector.shape_cast %3 : vector<16xf32> to vector<16x1xf32>
    %cst_5 = arith.constant 3.200000e+01 : f32
    %5 = vector.broadcast %cst_5 : f32 to vector<16x1xf32>
    %6 = arith.divf %4, %5 : vector<16x1xf32>
    %7 = vector.broadcast %6 : vector<16x1xf32> to vector<16x32xf32>
    %8 = arith.subf %0, %7 : vector<16x32xf32>
    %9 = arith.mulf %8, %8 : vector<16x32xf32>
    %cst_6 = arith.constant dense<0.000000e+00> : vector<16xf32>
    %10 = vector.multi_reduction <add>, %9, %cst_6 [1] : vector<16x32xf32> to vector<16xf32>
    %11 = vector.shape_cast %10 : vector<16xf32> to vector<16x1xf32>
    %cst_7 = arith.constant 3.200000e+01 : f32
    %12 = vector.broadcast %cst_7 : f32 to vector<16x1xf32>
    %13 = arith.divf %11, %12 : vector<16x1xf32>
    %cst_8 = arith.constant 9.99999974E-6 : f32
    %14 = vector.broadcast %cst_8 : f32 to vector<16x1xf32>
    %15 = arith.addf %13, %14 : vector<16x1xf32>
    %16 = math.rsqrt %15 : vector<16x1xf32>
    %17 = vector.broadcast %16 : vector<16x1xf32> to vector<16x32xf32>
    %18 = arith.mulf %8, %17 : vector<16x32xf32>
    %19 = vector.broadcast %1 : vector<1x32xf32> to vector<16x32xf32>
    %20 = arith.mulf %18, %19 : vector<16x32xf32>
    %21 = vector.broadcast %2 : vector<1x32xf32> to vector<16x32xf32>
    %22 = arith.addf %20, %21 : vector<16x32xf32>
    %c0_9 = arith.constant 0 : index
    %c0_10 = arith.constant 0 : index
    %23 = vector.load %arg4[%c0_9, %c0_10] : memref<16x32xf32, #tpu.memory_space<vmem>>, vector<16x32xf32>
    tpu.vector_store %arg4[%c0_9, %c0_10], %22 {strides = array<i32>} : memref<16x32xf32, #tpu.memory_space<vmem>>, vector<16x32xf32>,
    return
  }
  func.func @transform_0(%arg0: i32) -> (i32, i32) {
    %c0_i32 = arith.constant 0 : i32
    %c0_i32_0 = arith.constant 0 : i32
    %c0_i32_1 = arith.constant 0 : i32
    return %c0_i32, %c0_i32_0 : i32, i32
  }
  func.func @transform_1(%arg0: i32) -> (i32, i32) {
    %c0_i32 = arith.constant 0 : i32
    %c0_i32_0 = arith.constant 0 : i32
    %c0_i32_1 = arith.constant 0 : i32
    return %c0_i32, %c0_i32_0 : i32, i32
  }
  func.func @transform_2(%arg0: i32) -> (i32, i32) {
    %c0_i32 = arith.constant 0 : i32
    %c0_i32_0 = arith.constant 0 : i32
    %c0_i32_1 = arith.constant 0 : i32
    return %c0_i32, %c0_i32_0 : i32, i32
  }
  func.func @transform_3(%arg0: i32) -> (i32, i32) {
    %c0_i32 = arith.constant 0 : i32
    %c0_i32_0 = arith.constant 0 : i32
    %c0_i32_1 = arith.constant 0 : i32
    return %c0_i32, %c0_i32_0 : i32, i32
  }
}

module attributes {stable_mosaic.version = 11 : i64} {
  func.func @_encoder_layer_kernel(%arg0: i32, %arg1: memref<1x8x32xf32, #tpu.memory_space<vmem>>, %arg2: memref<8x8xf32, #tpu.memory_space<vmem>>, %arg3: memref<1x1x8xf32, #tpu.memory_space<vmem>>, %arg4: memref<4x32x8xbf16, #tpu.memory_space<vmem>>, %arg5: memref<4x1x8xf32, #tpu.memory_space<vmem>>, %arg6: memref<4x32x8xbf16, #tpu.memory_space<vmem>>, %arg7: memref<4x1x8xf32, #tpu.memory_space<vmem>>, %arg8: memref<4x32x8xbf16, #tpu.memory_space<vmem>>, %arg9: memref<4x1x8xf32, #tpu.memory_space<vmem>>, %arg10: memref<4x8x32xbf16, #tpu.memory_space<vmem>>, %arg11: memref<1x32xf32, #tpu.memory_space<vmem>>, %arg12: memref<1x32xf32, #tpu.memory_space<vmem>>, %arg13: memref<1x32xf32, #tpu.memory_space<vmem>>, %arg14: memref<32x64xbf16, #tpu.memory_space<vmem>>, %arg15: memref<1x64xf32, #tpu.memory_space<vmem>>, %arg16: memref<64x32xbf16, #tpu.memory_space<vmem>>, %arg17: memref<1x32xf32, #tpu.memory_space<vmem>>, %arg18: memref<1x32xf32, #tpu.memory_space<vmem>>, %arg19: memref<1x32xf32, #tpu.memory_space<vmem>>, %arg20: memref<1x8x32xf32, #tpu.memory_space<vmem>>) attributes {dimension_semantics = [#tpu.dimension_semantics<parallel>], iteration_bounds = array<i64: 2>, scalar_prefetch = 0 : i64, scratch_operands = 0 : i64, tpu.core_type = #tpu.core_type<tc>, window_params = [{transform_indices = @transform_0, window_bounds = array<i64: 1, 8, 32>}, {pipeline_mode = #tpu.pipeline_mode<synchronous>, transform_indices = @transform_1, window_bounds = array<i64: 8, 8>}, {transform_indices = @transform_2, window_bounds = array<i64: 1, 1, 8>}, {pipeline_mode = #tpu.pipeline_mode<synchronous>, transform_indices = @transform_3, window_bounds = array<i64: 4, 32, 8>}, {pipeline_mode = #tpu.pipeline_mode<synchronous>, transform_indices = @transform_4, window_bounds = array<i64: 4, 1, 8>}, {pipeline_mode = #tpu.pipeline_mode<synchronous>, transform_indices = @transform_5, window_bounds = array<i64: 4, 32, 8>}, {pipeline_mode = #tpu.pipeline_mode<synchronous>, transform_indices = @transform_6, window_bounds = array<i64: 4, 1, 8>}, {pipeline_mode = #tpu.pipeline_mode<synchronous>, transform_indices = @transform_7, window_bounds = array<i64: 4, 32, 8>}, {pipeline_mode = #tpu.pipeline_mode<synchronous>, transform_indices = @transform_8, window_bounds = array<i64: 4, 1, 8>}, {pipeline_mode = #tpu.pipeline_mode<synchronous>, transform_indices = @transform_9, window_bounds = array<i64: 4, 8, 32>}, {pipeline_mode = #tpu.pipeline_mode<synchronous>, transform_indices = @transform_10, window_bounds = array<i64: 1, 32>}, {pipeline_mode = #tpu.pipeline_mode<synchronous>, transform_indices = @transform_11, window_bounds = array<i64: 1, 32>}, {pipeline_mode = #tpu.pipeline_mode<synchronous>, transform_indices = @transform_12, window_bounds = array<i64: 1, 32>}, {pipeline_mode = #tpu.pipeline_mode<synchronous>, transform_indices = @transform_13, window_bounds = array<i64: 32, 64>}, {pipeline_mode = #tpu.pipeline_mode<synchronous>, transform_indices = @transform_14, window_bounds = array<i64: 1, 64>}, {pipeline_mode = #tpu.pipeline_mode<synchronous>, transform_indices = @transform_15, window_bounds = array<i64: 64, 32>}, {pipeline_mode = #tpu.pipeline_mode<synchronous>, transform_indices = @transform_16, window_bounds = array<i64: 1, 32>}, {pipeline_mode = #tpu.pipeline_mode<synchronous>, transform_indices = @transform_17, window_bounds = array<i64: 1, 32>}, {pipeline_mode = #tpu.pipeline_mode<synchronous>, transform_indices = @transform_18, window_bounds = array<i64: 1, 32>}, {transform_indices = @transform_19, window_bounds = array<i64: 1, 8, 32>}]} {
    %c0 = arith.constant 0 : index
    %c0_0 = arith.constant 0 : index
    %c0_1 = arith.constant 0 : index
    %0 = vector.load %arg1[%c0, %c0_0, %c0_1] : memref<1x8x32xf32, #tpu.memory_space<vmem>>, vector<1x8x32xf32>
    %1 = vector.shape_cast %0 : vector<1x8x32xf32> to vector<8x32xf32>
    %c0_2 = arith.constant 0 : index
    %c0_3 = arith.constant 0 : index
    %2 = vector.load %arg2[%c0_2, %c0_3] : memref<8x8xf32, #tpu.memory_space<vmem>>, vector<8x8xf32>
    %c0_4 = arith.constant 0 : index
    %c0_5 = arith.constant 0 : index
    %c0_6 = arith.constant 0 : index
    %3 = vector.load %arg3[%c0_4, %c0_5, %c0_6] : memref<1x1x8xf32, #tpu.memory_space<vmem>>, vector<1x1x8xf32>
    %4 = vector.shape_cast %3 : vector<1x1x8xf32> to vector<1x8xf32>
    %5 = vector.broadcast %4 : vector<1x8xf32> to vector<8x8xf32>
    %6 = arith.addf %2, %5 : vector<8x8xf32>
    %7 = arith.truncf %1 : vector<8x32xf32> to vector<8x32xbf16>
    %8 = arith.truncf %1 : vector<8x32xf32> to vector<8x32xbf16>
    %cst = arith.constant 0.000000e+00 : f32
    %9 = vector.broadcast %cst : f32 to vector<8x32xf32>
    %c0_7 = arith.constant 0 : index
    %c0_8 = arith.constant 0 : index
    %c0_9 = arith.constant 0 : index
    %10 = vector.load %arg4[%c0_7, %c0_8, %c0_9] : memref<4x32x8xbf16, #tpu.memory_space<vmem>>, vector<1x32x8xbf16>
    %11 = vector.shape_cast %10 : vector<1x32x8xbf16> to vector<32x8xbf16>
    %cst_10 = arith.constant dense<0.000000e+00> : vector<8x8xf32>
    %12 = tpu.matmul %7, %11, %cst_10 {dimension_numbers = #tpu.dot_dimension_numbers<[1], [0], [0], [1], [0, 0, 1, 1], [], []>} : vector<8x32xbf16>, vector<32x8xbf16>, vector<8x8xf32> -> vector<8x8xf32>
    %c0_11 = arith.constant 0 : index
    %c0_12 = arith.constant 0 : index
    %c0_13 = arith.constant 0 : index
    %13 = vector.load %arg5[%c0_11, %c0_12, %c0_13] : memref<4x1x8xf32, #tpu.memory_space<vmem>>, vector<1x1x8xf32>
    %14 = vector.shape_cast %13 : vector<1x1x8xf32> to vector<1x8xf32>
    %15 = vector.broadcast %14 : vector<1x8xf32> to vector<8x8xf32>
    %16 = arith.addf %12, %15 : vector<8x8xf32>
    %c0_14 = arith.constant 0 : index
    %c0_15 = arith.constant 0 : index
    %c0_16 = arith.constant 0 : index
    %17 = vector.load %arg6[%c0_14, %c0_15, %c0_16] : memref<4x32x8xbf16, #tpu.memory_space<vmem>>, vector<1x32x8xbf16>
    %18 = vector.shape_cast %17 : vector<1x32x8xbf16> to vector<32x8xbf16>
    %cst_17 = arith.constant dense<0.000000e+00> : vector<8x8xf32>
    %19 = tpu.matmul %8, %18, %cst_17 {dimension_numbers = #tpu.dot_dimension_numbers<[1], [0], [0], [1], [0, 0, 1, 1], [], []>} : vector<8x32xbf16>, vector<32x8xbf16>, vector<8x8xf32> -> vector<8x8xf32>
    %c0_18 = arith.constant 0 : index
    %c0_19 = arith.constant 0 : index
    %c0_20 = arith.constant 0 : index
    %20 = vector.load %arg7[%c0_18, %c0_19, %c0_20] : memref<4x1x8xf32, #tpu.memory_space<vmem>>, vector<1x1x8xf32>
    %21 = vector.shape_cast %20 : vector<1x1x8xf32> to vector<1x8xf32>
    %22 = vector.broadcast %21 : vector<1x8xf32> to vector<8x8xf32>
    %23 = arith.addf %19, %22 : vector<8x8xf32>
    %c0_21 = arith.constant 0 : index
    %c0_22 = arith.constant 0 : index
    %c0_23 = arith.constant 0 : index
    %24 = vector.load %arg8[%c0_21, %c0_22, %c0_23] : memref<4x32x8xbf16, #tpu.memory_space<vmem>>, vector<1x32x8xbf16>
    %25 = vector.shape_cast %24 : vector<1x32x8xbf16> to vector<32x8xbf16>
    %cst_24 = arith.constant dense<0.000000e+00> : vector<8x8xf32>
    %26 = tpu.matmul %8, %25, %cst_24 {dimension_numbers = #tpu.dot_dimension_numbers<[1], [0], [0], [1], [0, 0, 1, 1], [], []>} : vector<8x32xbf16>, vector<32x8xbf16>, vector<8x8xf32> -> vector<8x8xf32>
    %c0_25 = arith.constant 0 : index
    %c0_26 = arith.constant 0 : index
    %c0_27 = arith.constant 0 : index
    %27 = vector.load %arg9[%c0_25, %c0_26, %c0_27] : memref<4x1x8xf32, #tpu.memory_space<vmem>>, vector<1x1x8xf32>
    %28 = vector.shape_cast %27 : vector<1x1x8xf32> to vector<1x8xf32>
    %29 = vector.broadcast %28 : vector<1x8xf32> to vector<8x8xf32>
    %30 = arith.addf %26, %29 : vector<8x8xf32>
    %31 = tpu.transpose %23, [1, 0] : vector<8x8xf32> -> vector<8x8xf32>
    %cst_28 = arith.constant dense<0.000000e+00> : vector<8x8xf32>
    %32 = tpu.matmul %16, %31, %cst_28 {dimension_numbers = #tpu.dot_dimension_numbers<[1], [0], [0], [1], [0, 0, 1, 1], [], []>} : vector<8x8xf32>, vector<8x8xf32>, vector<8x8xf32> -> vector<8x8xf32>
    %cst_29 = arith.constant 0.353553385 : f32
    %33 = vector.broadcast %cst_29 : f32 to vector<8x8xf32>
    %34 = arith.mulf %32, %33 : vector<8x8xf32>
    %35 = arith.addf %34, %6 : vector<8x8xf32>
    %cst_30 = arith.constant dense<0xFF800000> : vector<8xf32>
    %36 = vector.multi_reduction <maximumf>, %35, %cst_30 [1] : vector<8x8xf32> to vector<8xf32>
    %37 = vector.shape_cast %36 : vector<8xf32> to vector<8x1xf32>
    %38 = vector.broadcast %37 : vector<8x1xf32> to vector<8x8xf32>
    %39 = arith.subf %35, %38 : vector<8x8xf32>
    %40 = math.exp %39 : vector<8x8xf32>
    %cst_31 = arith.constant dense<0.000000e+00> : vector<8xf32>
    %41 = vector.multi_reduction <add>, %40, %cst_31 [1] : vector<8x8xf32> to vector<8xf32>
    %42 = vector.shape_cast %41 : vector<8xf32> to vector<8x1xf32>
    %43 = tpu.reciprocal %42 {approx = true} : vector<8x1xf32> -> vector<8x1xf32>
    %44 = vector.broadcast %43 : vector<8x1xf32> to vector<8x8xf32>
    %45 = arith.mulf %40, %44 : vector<8x8xf32>
    %cst_32 = arith.constant dense<0.000000e+00> : vector<8x8xf32>
    %46 = tpu.matmul %45, %30, %cst_32 {dimension_numbers = #tpu.dot_dimension_numbers<[1], [0], [0], [1], [0, 0, 1, 1], [], []>} : vector<8x8xf32>, vector<8x8xf32>, vector<8x8xf32> -> vector<8x8xf32>
    %47 = arith.truncf %46 : vector<8x8xf32> to vector<8x8xbf16>
    %c0_33 = arith.constant 0 : index
    %c0_34 = arith.constant 0 : index
    %c0_35 = arith.constant 0 : index
    %48 = vector.load %arg10[%c0_33, %c0_34, %c0_35] : memref<4x8x32xbf16, #tpu.memory_space<vmem>>, vector<1x8x32xbf16>
    %49 = vector.shape_cast %48 : vector<1x8x32xbf16> to vector<8x32xbf16>
    %cst_36 = arith.constant dense<0.000000e+00> : vector<8x32xf32>
    %50 = tpu.matmul %47, %49, %cst_36 {dimension_numbers = #tpu.dot_dimension_numbers<[1], [0], [0], [1], [0, 0, 1, 1], [], []>} : vector<8x8xbf16>, vector<8x32xbf16>, vector<8x32xf32> -> vector<8x32xf32>
    %51 = arith.addf %9, %50 : vector<8x32xf32>
    %c1 = arith.constant 1 : index
    %c0_37 = arith.constant 0 : index
    %c0_38 = arith.constant 0 : index
    %52 = vector.load %arg4[%c1, %c0_37, %c0_38] : memref<4x32x8xbf16, #tpu.memory_space<vmem>>, vector<1x32x8xbf16>
    %53 = vector.shape_cast %52 : vector<1x32x8xbf16> to vector<32x8xbf16>
    %cst_39 = arith.constant dense<0.000000e+00> : vector<8x8xf32>
    %54 = tpu.matmul %7, %53, %cst_39 {dimension_numbers = #tpu.dot_dimension_numbers<[1], [0], [0], [1], [0, 0, 1, 1], [], []>} : vector<8x32xbf16>, vector<32x8xbf16>, vector<8x8xf32> -> vector<8x8xf32>
    %c1_40 = arith.constant 1 : index
    %c0_41 = arith.constant 0 : index
    %c0_42 = arith.constant 0 : index
    %55 = vector.load %arg5[%c1_40, %c0_41, %c0_42] : memref<4x1x8xf32, #tpu.memory_space<vmem>>, vector<1x1x8xf32>
    %56 = vector.shape_cast %55 : vector<1x1x8xf32> to vector<1x8xf32>
    %57 = vector.broadcast %56 : vector<1x8xf32> to vector<8x8xf32>
    %58 = arith.addf %54, %57 : vector<8x8xf32>
    %c1_43 = arith.constant 1 : index
    %c0_44 = arith.constant 0 : index
    %c0_45 = arith.constant 0 : index
    %59 = vector.load %arg6[%c1_43, %c0_44, %c0_45] : memref<4x32x8xbf16, #tpu.memory_space<vmem>>, vector<1x32x8xbf16>
    %60 = vector.shape_cast %59 : vector<1x32x8xbf16> to vector<32x8xbf16>
    %cst_46 = arith.constant dense<0.000000e+00> : vector<8x8xf32>
    %61 = tpu.matmul %8, %60, %cst_46 {dimension_numbers = #tpu.dot_dimension_numbers<[1], [0], [0], [1], [0, 0, 1, 1], [], []>} : vector<8x32xbf16>, vector<32x8xbf16>, vector<8x8xf32> -> vector<8x8xf32>
    %c1_47 = arith.constant 1 : index
    %c0_48 = arith.constant 0 : index
    %c0_49 = arith.constant 0 : index
    %62 = vector.load %arg7[%c1_47, %c0_48, %c0_49] : memref<4x1x8xf32, #tpu.memory_space<vmem>>, vector<1x1x8xf32>
    %63 = vector.shape_cast %62 : vector<1x1x8xf32> to vector<1x8xf32>
    %64 = vector.broadcast %63 : vector<1x8xf32> to vector<8x8xf32>
    %65 = arith.addf %61, %64 : vector<8x8xf32>
    %c1_50 = arith.constant 1 : index
    %c0_51 = arith.constant 0 : index
    %c0_52 = arith.constant 0 : index
    %66 = vector.load %arg8[%c1_50, %c0_51, %c0_52] : memref<4x32x8xbf16, #tpu.memory_space<vmem>>, vector<1x32x8xbf16>
    %67 = vector.shape_cast %66 : vector<1x32x8xbf16> to vector<32x8xbf16>
    %cst_53 = arith.constant dense<0.000000e+00> : vector<8x8xf32>
    %68 = tpu.matmul %8, %67, %cst_53 {dimension_numbers = #tpu.dot_dimension_numbers<[1], [0], [0], [1], [0, 0, 1, 1], [], []>} : vector<8x32xbf16>, vector<32x8xbf16>, vector<8x8xf32> -> vector<8x8xf32>
    %c1_54 = arith.constant 1 : index
    %c0_55 = arith.constant 0 : index
    %c0_56 = arith.constant 0 : index
    %69 = vector.load %arg9[%c1_54, %c0_55, %c0_56] : memref<4x1x8xf32, #tpu.memory_space<vmem>>, vector<1x1x8xf32>
    %70 = vector.shape_cast %69 : vector<1x1x8xf32> to vector<1x8xf32>
    %71 = vector.broadcast %70 : vector<1x8xf32> to vector<8x8xf32>
    %72 = arith.addf %68, %71 : vector<8x8xf32>
    %73 = tpu.transpose %65, [1, 0] : vector<8x8xf32> -> vector<8x8xf32>
    %cst_57 = arith.constant dense<0.000000e+00> : vector<8x8xf32>
    %74 = tpu.matmul %58, %73, %cst_57 {dimension_numbers = #tpu.dot_dimension_numbers<[1], [0], [0], [1], [0, 0, 1, 1], [], []>} : vector<8x8xf32>, vector<8x8xf32>, vector<8x8xf32> -> vector<8x8xf32>
    %cst_58 = arith.constant 0.353553385 : f32
    %75 = vector.broadcast %cst_58 : f32 to vector<8x8xf32>
    %76 = arith.mulf %74, %75 : vector<8x8xf32>
    %77 = arith.addf %76, %6 : vector<8x8xf32>
    %cst_59 = arith.constant dense<0xFF800000> : vector<8xf32>
    %78 = vector.multi_reduction <maximumf>, %77, %cst_59 [1] : vector<8x8xf32> to vector<8xf32>
    %79 = vector.shape_cast %78 : vector<8xf32> to vector<8x1xf32>
    %80 = vector.broadcast %79 : vector<8x1xf32> to vector<8x8xf32>
    %81 = arith.subf %77, %80 : vector<8x8xf32>
    %82 = math.exp %81 : vector<8x8xf32>
    %cst_60 = arith.constant dense<0.000000e+00> : vector<8xf32>
    %83 = vector.multi_reduction <add>, %82, %cst_60 [1] : vector<8x8xf32> to vector<8xf32>
    %84 = vector.shape_cast %83 : vector<8xf32> to vector<8x1xf32>
    %85 = tpu.reciprocal %84 {approx = true} : vector<8x1xf32> -> vector<8x1xf32>
    %86 = vector.broadcast %85 : vector<8x1xf32> to vector<8x8xf32>
    %87 = arith.mulf %82, %86 : vector<8x8xf32>
    %cst_61 = arith.constant dense<0.000000e+00> : vector<8x8xf32>
    %88 = tpu.matmul %87, %72, %cst_61 {dimension_numbers = #tpu.dot_dimension_numbers<[1], [0], [0], [1], [0, 0, 1, 1], [], []>} : vector<8x8xf32>, vector<8x8xf32>, vector<8x8xf32> -> vector<8x8xf32>
    %89 = arith.truncf %88 : vector<8x8xf32> to vector<8x8xbf16>
    %c1_62 = arith.constant 1 : index
    %c0_63 = arith.constant 0 : index
    %c0_64 = arith.constant 0 : index
    %90 = vector.load %arg10[%c1_62, %c0_63, %c0_64] : memref<4x8x32xbf16, #tpu.memory_space<vmem>>, vector<1x8x32xbf16>
    %91 = vector.shape_cast %90 : vector<1x8x32xbf16> to vector<8x32xbf16>
    %cst_65 = arith.constant dense<0.000000e+00> : vector<8x32xf32>
    %92 = tpu.matmul %89, %91, %cst_65 {dimension_numbers = #tpu.dot_dimension_numbers<[1], [0], [0], [1], [0, 0, 1, 1], [], []>} : vector<8x8xbf16>, vector<8x32xbf16>, vector<8x32xf32> -> vector<8x32xf32>
    %93 = arith.addf %51, %92 : vector<8x32xf32>
    %c2 = arith.constant 2 : index
    %c0_66 = arith.constant 0 : index
    %c0_67 = arith.constant 0 : index
    %94 = vector.load %arg4[%c2, %c0_66, %c0_67] : memref<4x32x8xbf16, #tpu.memory_space<vmem>>, vector<1x32x8xbf16>
    %95 = vector.shape_cast %94 : vector<1x32x8xbf16> to vector<32x8xbf16>
    %cst_68 = arith.constant dense<0.000000e+00> : vector<8x8xf32>
    %96 = tpu.matmul %7, %95, %cst_68 {dimension_numbers = #tpu.dot_dimension_numbers<[1], [0], [0], [1], [0, 0, 1, 1], [], []>} : vector<8x32xbf16>, vector<32x8xbf16>, vector<8x8xf32> -> vector<8x8xf32>
    %c2_69 = arith.constant 2 : index
    %c0_70 = arith.constant 0 : index
    %c0_71 = arith.constant 0 : index
    %97 = vector.load %arg5[%c2_69, %c0_70, %c0_71] : memref<4x1x8xf32, #tpu.memory_space<vmem>>, vector<1x1x8xf32>
    %98 = vector.shape_cast %97 : vector<1x1x8xf32> to vector<1x8xf32>
    %99 = vector.broadcast %98 : vector<1x8xf32> to vector<8x8xf32>
    %100 = arith.addf %96, %99 : vector<8x8xf32>
    %c2_72 = arith.constant 2 : index
    %c0_73 = arith.constant 0 : index
    %c0_74 = arith.constant 0 : index
    %101 = vector.load %arg6[%c2_72, %c0_73, %c0_74] : memref<4x32x8xbf16, #tpu.memory_space<vmem>>, vector<1x32x8xbf16>
    %102 = vector.shape_cast %101 : vector<1x32x8xbf16> to vector<32x8xbf16>
    %cst_75 = arith.constant dense<0.000000e+00> : vector<8x8xf32>
    %103 = tpu.matmul %8, %102, %cst_75 {dimension_numbers = #tpu.dot_dimension_numbers<[1], [0], [0], [1], [0, 0, 1, 1], [], []>} : vector<8x32xbf16>, vector<32x8xbf16>, vector<8x8xf32> -> vector<8x8xf32>
    %c2_76 = arith.constant 2 : index
    %c0_77 = arith.constant 0 : index
    %c0_78 = arith.constant 0 : index
    %104 = vector.load %arg7[%c2_76, %c0_77, %c0_78] : memref<4x1x8xf32, #tpu.memory_space<vmem>>, vector<1x1x8xf32>
    %105 = vector.shape_cast %104 : vector<1x1x8xf32> to vector<1x8xf32>
    %106 = vector.broadcast %105 : vector<1x8xf32> to vector<8x8xf32>
    %107 = arith.addf %103, %106 : vector<8x8xf32>
    %c2_79 = arith.constant 2 : index
    %c0_80 = arith.constant 0 : index
    %c0_81 = arith.constant 0 : index
    %108 = vector.load %arg8[%c2_79, %c0_80, %c0_81] : memref<4x32x8xbf16, #tpu.memory_space<vmem>>, vector<1x32x8xbf16>
    %109 = vector.shape_cast %108 : vector<1x32x8xbf16> to vector<32x8xbf16>
    %cst_82 = arith.constant dense<0.000000e+00> : vector<8x8xf32>
    %110 = tpu.matmul %8, %109, %cst_82 {dimension_numbers = #tpu.dot_dimension_numbers<[1], [0], [0], [1], [0, 0, 1, 1], [], []>} : vector<8x32xbf16>, vector<32x8xbf16>, vector<8x8xf32> -> vector<8x8xf32>
    %c2_83 = arith.constant 2 : index
    %c0_84 = arith.constant 0 : index
    %c0_85 = arith.constant 0 : index
    %111 = vector.load %arg9[%c2_83, %c0_84, %c0_85] : memref<4x1x8xf32, #tpu.memory_space<vmem>>, vector<1x1x8xf32>
    %112 = vector.shape_cast %111 : vector<1x1x8xf32> to vector<1x8xf32>
    %113 = vector.broadcast %112 : vector<1x8xf32> to vector<8x8xf32>
    %114 = arith.addf %110, %113 : vector<8x8xf32>
    %115 = tpu.transpose %107, [1, 0] : vector<8x8xf32> -> vector<8x8xf32>
    %cst_86 = arith.constant dense<0.000000e+00> : vector<8x8xf32>
    %116 = tpu.matmul %100, %115, %cst_86 {dimension_numbers = #tpu.dot_dimension_numbers<[1], [0], [0], [1], [0, 0, 1, 1], [], []>} : vector<8x8xf32>, vector<8x8xf32>, vector<8x8xf32> -> vector<8x8xf32>
    %cst_87 = arith.constant 0.353553385 : f32
    %117 = vector.broadcast %cst_87 : f32 to vector<8x8xf32>
    %118 = arith.mulf %116, %117 : vector<8x8xf32>
    %119 = arith.addf %118, %6 : vector<8x8xf32>
    %cst_88 = arith.constant dense<0xFF800000> : vector<8xf32>
    %120 = vector.multi_reduction <maximumf>, %119, %cst_88 [1] : vector<8x8xf32> to vector<8xf32>
    %121 = vector.shape_cast %120 : vector<8xf32> to vector<8x1xf32>
    %122 = vector.broadcast %121 : vector<8x1xf32> to vector<8x8xf32>
    %123 = arith.subf %119, %122 : vector<8x8xf32>
    %124 = math.exp %123 : vector<8x8xf32>
    %cst_89 = arith.constant dense<0.000000e+00> : vector<8xf32>
    %125 = vector.multi_reduction <add>, %124, %cst_89 [1] : vector<8x8xf32> to vector<8xf32>
    %126 = vector.shape_cast %125 : vector<8xf32> to vector<8x1xf32>
    %127 = tpu.reciprocal %126 {approx = true} : vector<8x1xf32> -> vector<8x1xf32>
    %128 = vector.broadcast %127 : vector<8x1xf32> to vector<8x8xf32>
    %129 = arith.mulf %124, %128 : vector<8x8xf32>
    %cst_90 = arith.constant dense<0.000000e+00> : vector<8x8xf32>
    %130 = tpu.matmul %129, %114, %cst_90 {dimension_numbers = #tpu.dot_dimension_numbers<[1], [0], [0], [1], [0, 0, 1, 1], [], []>} : vector<8x8xf32>, vector<8x8xf32>, vector<8x8xf32> -> vector<8x8xf32>
    %131 = arith.truncf %130 : vector<8x8xf32> to vector<8x8xbf16>
    %c2_91 = arith.constant 2 : index
    %c0_92 = arith.constant 0 : index
    %c0_93 = arith.constant 0 : index
    %132 = vector.load %arg10[%c2_91, %c0_92, %c0_93] : memref<4x8x32xbf16, #tpu.memory_space<vmem>>, vector<1x8x32xbf16>
    %133 = vector.shape_cast %132 : vector<1x8x32xbf16> to vector<8x32xbf16>
    %cst_94 = arith.constant dense<0.000000e+00> : vector<8x32xf32>
    %134 = tpu.matmul %131, %133, %cst_94 {dimension_numbers = #tpu.dot_dimension_numbers<[1], [0], [0], [1], [0, 0, 1, 1], [], []>} : vector<8x8xbf16>, vector<8x32xbf16>, vector<8x32xf32> -> vector<8x32xf32>
    %135 = arith.addf %93, %134 : vector<8x32xf32>
    %c3 = arith.constant 3 : index
    %c0_95 = arith.constant 0 : index
    %c0_96 = arith.constant 0 : index
    %136 = vector.load %arg4[%c3, %c0_95, %c0_96] : memref<4x32x8xbf16, #tpu.memory_space<vmem>>, vector<1x32x8xbf16>
    %137 = vector.shape_cast %136 : vector<1x32x8xbf16> to vector<32x8xbf16>
    %cst_97 = arith.constant dense<0.000000e+00> : vector<8x8xf32>
    %138 = tpu.matmul %7, %137, %cst_97 {dimension_numbers = #tpu.dot_dimension_numbers<[1], [0], [0], [1], [0, 0, 1, 1], [], []>} : vector<8x32xbf16>, vector<32x8xbf16>, vector<8x8xf32> -> vector<8x8xf32>
    %c3_98 = arith.constant 3 : index
    %c0_99 = arith.constant 0 : index
    %c0_100 = arith.constant 0 : index
    %139 = vector.load %arg5[%c3_98, %c0_99, %c0_100] : memref<4x1x8xf32, #tpu.memory_space<vmem>>, vector<1x1x8xf32>
    %140 = vector.shape_cast %139 : vector<1x1x8xf32> to vector<1x8xf32>
    %141 = vector.broadcast %140 : vector<1x8xf32> to vector<8x8xf32>
    %142 = arith.addf %138, %141 : vector<8x8xf32>
    %c3_101 = arith.constant 3 : index
    %c0_102 = arith.constant 0 : index
    %c0_103 = arith.constant 0 : index
    %143 = vector.load %arg6[%c3_101, %c0_102, %c0_103] : memref<4x32x8xbf16, #tpu.memory_space<vmem>>, vector<1x32x8xbf16>
    %144 = vector.shape_cast %143 : vector<1x32x8xbf16> to vector<32x8xbf16>
    %cst_104 = arith.constant dense<0.000000e+00> : vector<8x8xf32>
    %145 = tpu.matmul %8, %144, %cst_104 {dimension_numbers = #tpu.dot_dimension_numbers<[1], [0], [0], [1], [0, 0, 1, 1], [], []>} : vector<8x32xbf16>, vector<32x8xbf16>, vector<8x8xf32> -> vector<8x8xf32>
    %c3_105 = arith.constant 3 : index
    %c0_106 = arith.constant 0 : index
    %c0_107 = arith.constant 0 : index
    %146 = vector.load %arg7[%c3_105, %c0_106, %c0_107] : memref<4x1x8xf32, #tpu.memory_space<vmem>>, vector<1x1x8xf32>
    %147 = vector.shape_cast %146 : vector<1x1x8xf32> to vector<1x8xf32>
    %148 = vector.broadcast %147 : vector<1x8xf32> to vector<8x8xf32>
    %149 = arith.addf %145, %148 : vector<8x8xf32>
    %c3_108 = arith.constant 3 : index
    %c0_109 = arith.constant 0 : index
    %c0_110 = arith.constant 0 : index
    %150 = vector.load %arg8[%c3_108, %c0_109, %c0_110] : memref<4x32x8xbf16, #tpu.memory_space<vmem>>, vector<1x32x8xbf16>
    %151 = vector.shape_cast %150 : vector<1x32x8xbf16> to vector<32x8xbf16>
    %cst_111 = arith.constant dense<0.000000e+00> : vector<8x8xf32>
    %152 = tpu.matmul %8, %151, %cst_111 {dimension_numbers = #tpu.dot_dimension_numbers<[1], [0], [0], [1], [0, 0, 1, 1], [], []>} : vector<8x32xbf16>, vector<32x8xbf16>, vector<8x8xf32> -> vector<8x8xf32>
    %c3_112 = arith.constant 3 : index
    %c0_113 = arith.constant 0 : index
    %c0_114 = arith.constant 0 : index
    %153 = vector.load %arg9[%c3_112, %c0_113, %c0_114] : memref<4x1x8xf32, #tpu.memory_space<vmem>>, vector<1x1x8xf32>
    %154 = vector.shape_cast %153 : vector<1x1x8xf32> to vector<1x8xf32>
    %155 = vector.broadcast %154 : vector<1x8xf32> to vector<8x8xf32>
    %156 = arith.addf %152, %155 : vector<8x8xf32>
    %157 = tpu.transpose %149, [1, 0] : vector<8x8xf32> -> vector<8x8xf32>
    %cst_115 = arith.constant dense<0.000000e+00> : vector<8x8xf32>
    %158 = tpu.matmul %142, %157, %cst_115 {dimension_numbers = #tpu.dot_dimension_numbers<[1], [0], [0], [1], [0, 0, 1, 1], [], []>} : vector<8x8xf32>, vector<8x8xf32>, vector<8x8xf32> -> vector<8x8xf32>
    %cst_116 = arith.constant 0.353553385 : f32
    %159 = vector.broadcast %cst_116 : f32 to vector<8x8xf32>
    %160 = arith.mulf %158, %159 : vector<8x8xf32>
    %161 = arith.addf %160, %6 : vector<8x8xf32>
    %cst_117 = arith.constant dense<0xFF800000> : vector<8xf32>
    %162 = vector.multi_reduction <maximumf>, %161, %cst_117 [1] : vector<8x8xf32> to vector<8xf32>
    %163 = vector.shape_cast %162 : vector<8xf32> to vector<8x1xf32>
    %164 = vector.broadcast %163 : vector<8x1xf32> to vector<8x8xf32>
    %165 = arith.subf %161, %164 : vector<8x8xf32>
    %166 = math.exp %165 : vector<8x8xf32>
    %cst_118 = arith.constant dense<0.000000e+00> : vector<8xf32>
    %167 = vector.multi_reduction <add>, %166, %cst_118 [1] : vector<8x8xf32> to vector<8xf32>
    %168 = vector.shape_cast %167 : vector<8xf32> to vector<8x1xf32>
    %169 = tpu.reciprocal %168 {approx = true} : vector<8x1xf32> -> vector<8x1xf32>
    %170 = vector.broadcast %169 : vector<8x1xf32> to vector<8x8xf32>
    %171 = arith.mulf %166, %170 : vector<8x8xf32>
    %cst_119 = arith.constant dense<0.000000e+00> : vector<8x8xf32>
    %172 = tpu.matmul %171, %156, %cst_119 {dimension_numbers = #tpu.dot_dimension_numbers<[1], [0], [0], [1], [0, 0, 1, 1], [], []>} : vector<8x8xf32>, vector<8x8xf32>, vector<8x8xf32> -> vector<8x8xf32>
    %173 = arith.truncf %172 : vector<8x8xf32> to vector<8x8xbf16>
    %c3_120 = arith.constant 3 : index
    %c0_121 = arith.constant 0 : index
    %c0_122 = arith.constant 0 : index
    %174 = vector.load %arg10[%c3_120, %c0_121, %c0_122] : memref<4x8x32xbf16, #tpu.memory_space<vmem>>, vector<1x8x32xbf16>
    %175 = vector.shape_cast %174 : vector<1x8x32xbf16> to vector<8x32xbf16>
    %cst_123 = arith.constant dense<0.000000e+00> : vector<8x32xf32>
    %176 = tpu.matmul %173, %175, %cst_123 {dimension_numbers = #tpu.dot_dimension_numbers<[1], [0], [0], [1], [0, 0, 1, 1], [], []>} : vector<8x8xbf16>, vector<8x32xbf16>, vector<8x32xf32> -> vector<8x32xf32>
    %177 = arith.addf %135, %176 : vector<8x32xf32>
    %c0_124 = arith.constant 0 : index
    %c0_125 = arith.constant 0 : index
    %178 = vector.load %arg11[%c0_124, %c0_125] : memref<1x32xf32, #tpu.memory_space<vmem>>, vector<1x32xf32>
    %179 = vector.broadcast %178 : vector<1x32xf32> to vector<8x32xf32>
    %180 = arith.addf %177, %179 : vector<8x32xf32>
    %181 = arith.addf %1, %180 : vector<8x32xf32>
    %c0_126 = arith.constant 0 : index
    %c0_127 = arith.constant 0 : index
    %182 = vector.load %arg12[%c0_126, %c0_127] : memref<1x32xf32, #tpu.memory_space<vmem>>, vector<1x32xf32>
    %c0_128 = arith.constant 0 : index
    %c0_129 = arith.constant 0 : index
    %183 = vector.load %arg13[%c0_128, %c0_129] : memref<1x32xf32, #tpu.memory_space<vmem>>, vector<1x32xf32>
    %cst_130 = arith.constant dense<0.000000e+00> : vector<8xf32>
    %184 = vector.multi_reduction <add>, %181, %cst_130 [1] : vector<8x32xf32> to vector<8xf32>
    %185 = vector.shape_cast %184 : vector<8xf32> to vector<8x1xf32>
    %cst_131 = arith.constant 3.200000e+01 : f32
    %186 = vector.broadcast %cst_131 : f32 to vector<8x1xf32>
    %187 = arith.divf %185, %186 : vector<8x1xf32>
    %188 = vector.broadcast %187 : vector<8x1xf32> to vector<8x32xf32>
    %189 = arith.subf %181, %188 : vector<8x32xf32>
    %190 = arith.mulf %189, %189 : vector<8x32xf32>
    %cst_132 = arith.constant dense<0.000000e+00> : vector<8xf32>
    %191 = vector.multi_reduction <add>, %190, %cst_132 [1] : vector<8x32xf32> to vector<8xf32>
    %192 = vector.shape_cast %191 : vector<8xf32> to vector<8x1xf32>
    %cst_133 = arith.constant 3.200000e+01 : f32
    %193 = vector.broadcast %cst_133 : f32 to vector<8x1xf32>
    %194 = arith.divf %192, %193 : vector<8x1xf32>
    %cst_134 = arith.constant 9.99999974E-6 : f32
    %195 = vector.broadcast %cst_134 : f32 to vector<8x1xf32>
    %196 = arith.addf %194, %195 : vector<8x1xf32>
    %197 = math.rsqrt %196 : vector<8x1xf32>
    %198 = vector.broadcast %197 : vector<8x1xf32> to vector<8x32xf32>
    %199 = arith.mulf %189, %198 : vector<8x32xf32>
    %200 = vector.broadcast %182 : vector<1x32xf32> to vector<8x32xf32>
    %201 = arith.mulf %199, %200 : vector<8x32xf32>
    %202 = vector.broadcast %183 : vector<1x32xf32> to vector<8x32xf32>
    %203 = arith.addf %201, %202 : vector<8x32xf32>
    %204 = arith.truncf %203 : vector<8x32xf32> to vector<8x32xbf16>
    %c0_135 = arith.constant 0 : index
    %c0_136 = arith.constant 0 : index
    %205 = vector.load %arg14[%c0_135, %c0_136] : memref<32x64xbf16, #tpu.memory_space<vmem>>, vector<32x64xbf16>
    %cst_137 = arith.constant dense<0.000000e+00> : vector<8x64xf32>
    %206 = tpu.matmul %204, %205, %cst_137 {dimension_numbers = #tpu.dot_dimension_numbers<[1], [0], [0], [1], [0, 0, 1, 1], [], []>} : vector<8x32xbf16>, vector<32x64xbf16>, vector<8x64xf32> -> vector<8x64xf32>
    %c0_138 = arith.constant 0 : index
    %c0_139 = arith.constant 0 : index
    %207 = vector.load %arg15[%c0_138, %c0_139] : memref<1x64xf32, #tpu.memory_space<vmem>>, vector<1x64xf32>
    %208 = vector.broadcast %207 : vector<1x64xf32> to vector<8x64xf32>
    %209 = arith.addf %206, %208 : vector<8x64xf32>
    %cst_140 = arith.constant 0.000000e+00 : f32
    %210 = vector.broadcast %cst_140 : f32 to vector<8x64xf32>
    %211 = arith.maximumf %209, %210 : vector<8x64xf32>
    %212 = arith.truncf %211 : vector<8x64xf32> to vector<8x64xbf16>
    %c0_141 = arith.constant 0 : index
    %c0_142 = arith.constant 0 : index
    %213 = vector.load %arg16[%c0_141, %c0_142] : memref<64x32xbf16, #tpu.memory_space<vmem>>, vector<64x32xbf16>
    %cst_143 = arith.constant dense<0.000000e+00> : vector<8x32xf32>
    %214 = tpu.matmul %212, %213, %cst_143 {dimension_numbers = #tpu.dot_dimension_numbers<[1], [0], [0], [1], [0, 0, 1, 1], [], []>} : vector<8x64xbf16>, vector<64x32xbf16>, vector<8x32xf32> -> vector<8x32xf32>
    %c0_144 = arith.constant 0 : index
    %c0_145 = arith.constant 0 : index
    %215 = vector.load %arg17[%c0_144, %c0_145] : memref<1x32xf32, #tpu.memory_space<vmem>>, vector<1x32xf32>
    %216 = vector.broadcast %215 : vector<1x32xf32> to vector<8x32xf32>
    %217 = arith.addf %214, %216 : vector<8x32xf32>
    %218 = arith.addf %203, %217 : vector<8x32xf32>
    %c0_146 = arith.constant 0 : index
    %c0_147 = arith.constant 0 : index
    %219 = vector.load %arg18[%c0_146, %c0_147] : memref<1x32xf32, #tpu.memory_space<vmem>>, vector<1x32xf32>
    %c0_148 = arith.constant 0 : index
    %c0_149 = arith.constant 0 : index
    %220 = vector.load %arg19[%c0_148, %c0_149] : memref<1x32xf32, #tpu.memory_space<vmem>>, vector<1x32xf32>
    %cst_150 = arith.constant dense<0.000000e+00> : vector<8xf32>
    %221 = vector.multi_reduction <add>, %218, %cst_150 [1] : vector<8x32xf32> to vector<8xf32>
    %222 = vector.shape_cast %221 : vector<8xf32> to vector<8x1xf32>
    %cst_151 = arith.constant 3.200000e+01 : f32
    %223 = vector.broadcast %cst_151 : f32 to vector<8x1xf32>
    %224 = arith.divf %222, %223 : vector<8x1xf32>
    %225 = vector.broadcast %224 : vector<8x1xf32> to vector<8x32xf32>
    %226 = arith.subf %218, %225 : vector<8x32xf32>
    %227 = arith.mulf %226, %226 : vector<8x32xf32>
    %cst_152 = arith.constant dense<0.000000e+00> : vector<8xf32>
    %228 = vector.multi_reduction <add>, %227, %cst_152 [1] : vector<8x32xf32> to vector<8xf32>
    %229 = vector.shape_cast %228 : vector<8xf32> to vector<8x1xf32>
    %cst_153 = arith.constant 3.200000e+01 : f32
    %230 = vector.broadcast %cst_153 : f32 to vector<8x1xf32>
    %231 = arith.divf %229, %230 : vector<8x1xf32>
    %cst_154 = arith.constant 9.99999974E-6 : f32
    %232 = vector.broadcast %cst_154 : f32 to vector<8x1xf32>
    %233 = arith.addf %231, %232 : vector<8x1xf32>
    %234 = math.rsqrt %233 : vector<8x1xf32>
    %235 = vector.broadcast %234 : vector<8x1xf32> to vector<8x32xf32>
    %236 = arith.mulf %226, %235 : vector<8x32xf32>
    %237 = vector.broadcast %219 : vector<1x32xf32> to vector<8x32xf32>
    %238 = arith.mulf %236, %237 : vector<8x32xf32>
    %239 = vector.broadcast %220 : vector<1x32xf32> to vector<8x32xf32>
    %240 = arith.addf %238, %239 : vector<8x32xf32>
    %c0_155 = arith.constant 0 : index
    %c0_156 = arith.constant 0 : index
    %c0_157 = arith.constant 0 : index
    %241 = vector.load %arg20[%c0_155, %c0_156, %c0_157] : memref<1x8x32xf32, #tpu.memory_space<vmem>>, vector<1x8x32xf32>
    %242 = vector.shape_cast %241 : vector<1x8x32xf32> to vector<8x32xf32>
    %243 = vector.shape_cast %240 : vector<8x32xf32> to vector<1x8x32xf32>
    tpu.vector_store %arg20[%c0_155, %c0_156, %c0_157], %243 {strides = array<i32>} : memref<1x8x32xf32, #tpu.memory_space<vmem>>, vector<1x8x32xf32>,
    return
  }
  func.func @transform_0(%arg0: i32) -> (i32, i32, i32) {
    %c0_i32 = arith.constant 0 : i32
    %c0_i32_0 = arith.constant 0 : i32
    %c0_i32_1 = arith.constant 0 : i32
    return %arg0, %c0_i32, %c0_i32_0 : i32, i32, i32
  }
  func.func @transform_1(%arg0: i32) -> (i32, i32) {
    %c0_i32 = arith.constant 0 : i32
    %c0_i32_0 = arith.constant 0 : i32
    %c0_i32_1 = arith.constant 0 : i32
    return %c0_i32, %c0_i32_0 : i32, i32
  }
  func.func @transform_2(%arg0: i32) -> (i32, i32, i32) {
    %c0_i32 = arith.constant 0 : i32
    %c0_i32_0 = arith.constant 0 : i32
    %c0_i32_1 = arith.constant 0 : i32
    return %arg0, %c0_i32, %c0_i32_0 : i32, i32, i32
  }
  func.func @transform_3(%arg0: i32) -> (i32, i32, i32) {
    %c0_i32 = arith.constant 0 : i32
    %c0_i32_0 = arith.constant 0 : i32
    %c0_i32_1 = arith.constant 0 : i32
    %c0_i32_2 = arith.constant 0 : i32
    return %c0_i32, %c0_i32_0, %c0_i32_1 : i32, i32, i32
  }
  func.func @transform_4(%arg0: i32) -> (i32, i32, i32) {
    %c0_i32 = arith.constant 0 : i32
    %c0_i32_0 = arith.constant 0 : i32
    %c0_i32_1 = arith.constant 0 : i32
    %c0_i32_2 = arith.constant 0 : i32
    return %c0_i32, %c0_i32_0, %c0_i32_1 : i32, i32, i32
  }
  func.func @transform_5(%arg0: i32) -> (i32, i32, i32) {
    %c0_i32 = arith.constant 0 : i32
    %c0_i32_0 = arith.constant 0 : i32
    %c0_i32_1 = arith.constant 0 : i32
    %c0_i32_2 = arith.constant 0 : i32
    return %c0_i32, %c0_i32_0, %c0_i32_1 : i32, i32, i32
  }
  func.func @transform_6(%arg0: i32) -> (i32, i32, i32) {
    %c0_i32 = arith.constant 0 : i32
    %c0_i32_0 = arith.constant 0 : i32
    %c0_i32_1 = arith.constant 0 : i32
    %c0_i32_2 = arith.constant 0 : i32
    return %c0_i32, %c0_i32_0, %c0_i32_1 : i32, i32, i32
  }
  func.func @transform_7(%arg0: i32) -> (i32, i32, i32) {
    %c0_i32 = arith.constant 0 : i32
    %c0_i32_0 = arith.constant 0 : i32
    %c0_i32_1 = arith.constant 0 : i32
    %c0_i32_2 = arith.constant 0 : i32
    return %c0_i32, %c0_i32_0, %c0_i32_1 : i32, i32, i32
  }
  func.func @transform_8(%arg0: i32) -> (i32, i32, i32) {
    %c0_i32 = arith.constant 0 : i32
    %c0_i32_0 = arith.constant 0 : i32
    %c0_i32_1 = arith.constant 0 : i32
    %c0_i32_2 = arith.constant 0 : i32
    return %c0_i32, %c0_i32_0, %c0_i32_1 : i32, i32, i32
  }
  func.func @transform_9(%arg0: i32) -> (i32, i32, i32) {
    %c0_i32 = arith.constant 0 : i32
    %c0_i32_0 = arith.constant 0 : i32
    %c0_i32_1 = arith.constant 0 : i32
    %c0_i32_2 = arith.constant 0 : i32
    return %c0_i32, %c0_i32_0, %c0_i32_1 : i32, i32, i32
  }
  func.func @transform_10(%arg0: i32) -> (i32, i32) {
    %c0_i32 = arith.constant 0 : i32
    %c0_i32_0 = arith.constant 0 : i32
    %c0_i32_1 = arith.constant 0 : i32
    return %c0_i32, %c0_i32_0 : i32, i32
  }
  func.func @transform_11(%arg0: i32) -> (i32, i32) {
    %c0_i32 = arith.constant 0 : i32
    %c0_i32_0 = arith.constant 0 : i32
    %c0_i32_1 = arith.constant 0 : i32
    return %c0_i32, %c0_i32_0 : i32, i32
  }
  func.func @transform_12(%arg0: i32) -> (i32, i32) {
    %c0_i32 = arith.constant 0 : i32
    %c0_i32_0 = arith.constant 0 : i32
    %c0_i32_1 = arith.constant 0 : i32
    return %c0_i32, %c0_i32_0 : i32, i32
  }
  func.func @transform_13(%arg0: i32) -> (i32, i32) {
    %c0_i32 = arith.constant 0 : i32
    %c0_i32_0 = arith.constant 0 : i32
    %c0_i32_1 = arith.constant 0 : i32
    return %c0_i32, %c0_i32_0 : i32, i32
  }
  func.func @transform_14(%arg0: i32) -> (i32, i32) {
    %c0_i32 = arith.constant 0 : i32
    %c0_i32_0 = arith.constant 0 : i32
    %c0_i32_1 = arith.constant 0 : i32
    return %c0_i32, %c0_i32_0 : i32, i32
  }
  func.func @transform_15(%arg0: i32) -> (i32, i32) {
    %c0_i32 = arith.constant 0 : i32
    %c0_i32_0 = arith.constant 0 : i32
    %c0_i32_1 = arith.constant 0 : i32
    return %c0_i32, %c0_i32_0 : i32, i32
  }
  func.func @transform_16(%arg0: i32) -> (i32, i32) {
    %c0_i32 = arith.constant 0 : i32
    %c0_i32_0 = arith.constant 0 : i32
    %c0_i32_1 = arith.constant 0 : i32
    return %c0_i32, %c0_i32_0 : i32, i32
  }
  func.func @transform_17(%arg0: i32) -> (i32, i32) {
    %c0_i32 = arith.constant 0 : i32
    %c0_i32_0 = arith.constant 0 : i32
    %c0_i32_1 = arith.constant 0 : i32
    return %c0_i32, %c0_i32_0 : i32, i32
  }
  func.func @transform_18(%arg0: i32) -> (i32, i32) {
    %c0_i32 = arith.constant 0 : i32
    %c0_i32_0 = arith.constant 0 : i32
    %c0_i32_1 = arith.constant 0 : i32
    return %c0_i32, %c0_i32_0 : i32, i32
  }
  func.func @transform_19(%arg0: i32) -> (i32, i32, i32) {
    %c0_i32 = arith.constant 0 : i32
    %c0_i32_0 = arith.constant 0 : i32
    %c0_i32_1 = arith.constant 0 : i32
    return %arg0, %c0_i32, %c0_i32_0 : i32, i32, i32
  }
}

module attributes {stable_mosaic.version = 11 : i64} {
  func.func @_linear_kernel(%arg0: i32, %arg1: i32, %arg2: memref<16x32xf32, #tpu.memory_space<vmem>>, %arg3: memref<32x128xbf16, #tpu.memory_space<vmem>>, %arg4: memref<1x128xf32, #tpu.memory_space<vmem>>, %arg5: memref<16x128xf32, #tpu.memory_space<vmem>>) attributes {dimension_semantics = [#tpu.dimension_semantics<parallel>, #tpu.dimension_semantics<parallel>], iteration_bounds = array<i64: 1, 1>, scalar_prefetch = 0 : i64, scratch_operands = 0 : i64, tpu.core_type = #tpu.core_type<tc>, window_params = [{transform_indices = @transform_0, window_bounds = array<i64: 16, 32>}, {transform_indices = @transform_1, window_bounds = array<i64: 32, 128>}, {transform_indices = @transform_2, window_bounds = array<i64: 1, 128>}, {transform_indices = @transform_3, window_bounds = array<i64: 16, 128>}]} {
    %c0 = arith.constant 0 : index
    %c0_0 = arith.constant 0 : index
    %0 = vector.load %arg2[%c0, %c0_0] : memref<16x32xf32, #tpu.memory_space<vmem>>, vector<16x32xf32>
    %1 = arith.truncf %0 : vector<16x32xf32> to vector<16x32xbf16>
    %c0_1 = arith.constant 0 : index
    %c0_2 = arith.constant 0 : index
    %2 = vector.load %arg3[%c0_1, %c0_2] : memref<32x128xbf16, #tpu.memory_space<vmem>>, vector<32x128xbf16>
    %cst = arith.constant dense<0.000000e+00> : vector<16x128xf32>
    %3 = tpu.matmul %1, %2, %cst {dimension_numbers = #tpu.dot_dimension_numbers<[1], [0], [0], [1], [0, 0, 1, 1], [], []>} : vector<16x32xbf16>, vector<32x128xbf16>, vector<16x128xf32> -> vector<16x128xf32>
    %c0_3 = arith.constant 0 : index
    %c0_4 = arith.constant 0 : index
    %4 = vector.load %arg4[%c0_3, %c0_4] : memref<1x128xf32, #tpu.memory_space<vmem>>, vector<1x128xf32>
    %5 = vector.broadcast %4 : vector<1x128xf32> to vector<16x128xf32>
    %6 = arith.addf %3, %5 : vector<16x128xf32>
    %c0_5 = arith.constant 0 : index
    %c0_6 = arith.constant 0 : index
    %7 = vector.load %arg5[%c0_5, %c0_6] : memref<16x128xf32, #tpu.memory_space<vmem>>, vector<16x128xf32>
    tpu.vector_store %arg5[%c0_5, %c0_6], %6 {strides = array<i32>} : memref<16x128xf32, #tpu.memory_space<vmem>>, vector<16x128xf32>,
    return
  }
  func.func @transform_0(%arg0: i32, %arg1: i32) -> (i32, i32) {
    %c0_i32 = arith.constant 0 : i32
    %c0_i32_0 = arith.constant 0 : i32
    return %arg0, %c0_i32 : i32, i32
  }
  func.func @transform_1(%arg0: i32, %arg1: i32) -> (i32, i32) {
    %c0_i32 = arith.constant 0 : i32
    %c0_i32_0 = arith.constant 0 : i32
    return %c0_i32, %arg1 : i32, i32
  }
  func.func @transform_2(%arg0: i32, %arg1: i32) -> (i32, i32) {
    %c0_i32 = arith.constant 0 : i32
    %c0_i32_0 = arith.constant 0 : i32
    return %c0_i32, %arg1 : i32, i32
  }
  func.func @transform_3(%arg0: i32, %arg1: i32) -> (i32, i32) {
    %c0_i32 = arith.constant 0 : i32
    return %arg0, %arg1 : i32, i32
  }
}

module attributes {stable_mosaic.version = 11 : i64} {
  func.func @_decoder_layer_kernel(%arg0: i32, %arg1: memref<1x8x32xf32, #tpu.memory_space<vmem>>, %arg2: memref<1x8x32xf32, #tpu.memory_space<vmem>>, %arg3: memref<8x8xf32, #tpu.memory_space<vmem>>, %arg4: memref<1x1x8xf32, #tpu.memory_space<vmem>>, %arg5: memref<1x1x8xf32, #tpu.memory_space<vmem>>, %arg6: memref<4x32x8xbf16, #tpu.memory_space<vmem>>, %arg7: memref<4x1x8xf32, #tpu.memory_space<vmem>>, %arg8: memref<4x32x8xbf16, #tpu.memory_space<vmem>>, %arg9: memref<4x1x8xf32, #tpu.memory_space<vmem>>, %arg10: memref<4x32x8xbf16, #tpu.memory_space<vmem>>, %arg11: memref<4x1x8xf32, #tpu.memory_space<vmem>>, %arg12: memref<4x8x32xbf16, #tpu.memory_space<vmem>>, %arg13: memref<1x32xf32, #tpu.memory_space<vmem>>, %arg14: memref<1x32xf32, #tpu.memory_space<vmem>>, %arg15: memref<1x32xf32, #tpu.memory_space<vmem>>, %arg16: memref<4x32x8xbf16, #tpu.memory_space<vmem>>, %arg17: memref<4x1x8xf32, #tpu.memory_space<vmem>>, %arg18: memref<4x32x8xbf16, #tpu.memory_space<vmem>>, %arg19: memref<4x1x8xf32, #tpu.memory_space<vmem>>, %arg20: memref<4x32x8xbf16, #tpu.memory_space<vmem>>, %arg21: memref<4x1x8xf32, #tpu.memory_space<vmem>>, %arg22: memref<4x8x32xbf16, #tpu.memory_space<vmem>>, %arg23: memref<1x32xf32, #tpu.memory_space<vmem>>, %arg24: memref<1x32xf32, #tpu.memory_space<vmem>>, %arg25: memref<1x32xf32, #tpu.memory_space<vmem>>, %arg26: memref<32x64xbf16, #tpu.memory_space<vmem>>, %arg27: memref<1x64xf32, #tpu.memory_space<vmem>>, %arg28: memref<64x32xbf16, #tpu.memory_space<vmem>>, %arg29: memref<1x32xf32, #tpu.memory_space<vmem>>, %arg30: memref<1x32xf32, #tpu.memory_space<vmem>>, %arg31: memref<1x32xf32, #tpu.memory_space<vmem>>, %arg32: memref<1x8x32xf32, #tpu.memory_space<vmem>>) attributes {dimension_semantics = [#tpu.dimension_semantics<parallel>], iteration_bounds = array<i64: 2>, scalar_prefetch = 0 : i64, scratch_operands = 0 : i64, tpu.core_type = #tpu.core_type<tc>, window_params = [{transform_indices = @transform_0, window_bounds = array<i64: 1, 8, 32>}, {transform_indices = @transform_1, window_bounds = array<i64: 1, 8, 32>}, {pipeline_mode = #tpu.pipeline_mode<synchronous>, transform_indices = @transform_2, window_bounds = array<i64: 8, 8>}, {transform_indices = @transform_3, window_bounds = array<i64: 1, 1, 8>}, {transform_indices = @transform_4, window_bounds = array<i64: 1, 1, 8>}, {pipeline_mode = #tpu.pipeline_mode<synchronous>, transform_indices = @transform_5, window_bounds = array<i64: 4, 32, 8>}, {pipeline_mode = #tpu.pipeline_mode<synchronous>, transform_indices = @transform_6, window_bounds = array<i64: 4, 1, 8>}, {pipeline_mode = #tpu.pipeline_mode<synchronous>, transform_indices = @transform_7, window_bounds = array<i64: 4, 32, 8>}, {pipeline_mode = #tpu.pipeline_mode<synchronous>, transform_indices = @transform_8, window_bounds = array<i64: 4, 1, 8>}, {pipeline_mode = #tpu.pipeline_mode<synchronous>, transform_indices = @transform_9, window_bounds = array<i64: 4, 32, 8>}, {pipeline_mode = #tpu.pipeline_mode<synchronous>, transform_indices = @transform_10, window_bounds = array<i64: 4, 1, 8>}, {pipeline_mode = #tpu.pipeline_mode<synchronous>, transform_indices = @transform_11, window_bounds = array<i64: 4, 8, 32>}, {pipeline_mode = #tpu.pipeline_mode<synchronous>, transform_indices = @transform_12, window_bounds = array<i64: 1, 32>}, {pipeline_mode = #tpu.pipeline_mode<synchronous>, transform_indices = @transform_13, window_bounds = array<i64: 1, 32>}, {pipeline_mode = #tpu.pipeline_mode<synchronous>, transform_indices = @transform_14, window_bounds = array<i64: 1, 32>}, {pipeline_mode = #tpu.pipeline_mode<synchronous>, transform_indices = @transform_15, window_bounds = array<i64: 4, 32, 8>}, {pipeline_mode = #tpu.pipeline_mode<synchronous>, transform_indices = @transform_16, window_bounds = array<i64: 4, 1, 8>}, {pipeline_mode = #tpu.pipeline_mode<synchronous>, transform_indices = @transform_17, window_bounds = array<i64: 4, 32, 8>}, {pipeline_mode = #tpu.pipeline_mode<synchronous>, transform_indices = @transform_18, window_bounds = array<i64: 4, 1, 8>}, {pipeline_mode = #tpu.pipeline_mode<synchronous>, transform_indices = @transform_19, window_bounds = array<i64: 4, 32, 8>}, {pipeline_mode = #tpu.pipeline_mode<synchronous>, transform_indices = @transform_20, window_bounds = array<i64: 4, 1, 8>}, {pipeline_mode = #tpu.pipeline_mode<synchronous>, transform_indices = @transform_21, window_bounds = array<i64: 4, 8, 32>}, {pipeline_mode = #tpu.pipeline_mode<synchronous>, transform_indices = @transform_22, window_bounds = array<i64: 1, 32>}, {pipeline_mode = #tpu.pipeline_mode<synchronous>, transform_indices = @transform_23, window_bounds = array<i64: 1, 32>}, {pipeline_mode = #tpu.pipeline_mode<synchronous>, transform_indices = @transform_24, window_bounds = array<i64: 1, 32>}, {pipeline_mode = #tpu.pipeline_mode<synchronous>, transform_indices = @transform_25, window_bounds = array<i64: 32, 64>}, {pipeline_mode = #tpu.pipeline_mode<synchronous>, transform_indices = @transform_26, window_bounds = array<i64: 1, 64>}, {pipeline_mode = #tpu.pipeline_mode<synchronous>, transform_indices = @transform_27, window_bounds = array<i64: 64, 32>}, {pipeline_mode = #tpu.pipeline_mode<synchronous>, transform_indices = @transform_28, window_bounds = array<i64: 1, 32>}, {pipeline_mode = #tpu.pipeline_mode<synchronous>, transform_indices = @transform_29, window_bounds = array<i64: 1, 32>}, {pipeline_mode = #tpu.pipeline_mode<synchronous>, transform_indices = @transform_30, window_bounds = array<i64: 1, 32>}, {transform_indices = @transform_31, window_bounds = array<i64: 1, 8, 32>}]} {
    %c0 = arith.constant 0 : index
    %c0_0 = arith.constant 0 : index
    %c0_1 = arith.constant 0 : index
    %0 = vector.load %arg1[%c0, %c0_0, %c0_1] : memref<1x8x32xf32, #tpu.memory_space<vmem>>, vector<1x8x32xf32>
    %1 = vector.shape_cast %0 : vector<1x8x32xf32> to vector<8x32xf32>
    %c0_2 = arith.constant 0 : index
    %c0_3 = arith.constant 0 : index
    %c0_4 = arith.constant 0 : index
    %2 = vector.load %arg2[%c0_2, %c0_3, %c0_4] : memref<1x8x32xf32, #tpu.memory_space<vmem>>, vector<1x8x32xf32>
    %3 = vector.shape_cast %2 : vector<1x8x32xf32> to vector<8x32xf32>
    %c0_5 = arith.constant 0 : index
    %c0_6 = arith.constant 0 : index
    %4 = vector.load %arg3[%c0_5, %c0_6] : memref<8x8xf32, #tpu.memory_space<vmem>>, vector<8x8xf32>
    %c0_7 = arith.constant 0 : index
    %c0_8 = arith.constant 0 : index
    %c0_9 = arith.constant 0 : index
    %5 = vector.load %arg4[%c0_7, %c0_8, %c0_9] : memref<1x1x8xf32, #tpu.memory_space<vmem>>, vector<1x1x8xf32>
    %6 = vector.shape_cast %5 : vector<1x1x8xf32> to vector<1x8xf32>
    %7 = vector.broadcast %6 : vector<1x8xf32> to vector<8x8xf32>
    %8 = arith.addf %4, %7 : vector<8x8xf32>
    %9 = arith.truncf %1 : vector<8x32xf32> to vector<8x32xbf16>
    %10 = arith.truncf %1 : vector<8x32xf32> to vector<8x32xbf16>
    %cst = arith.constant 0.000000e+00 : f32
    %11 = vector.broadcast %cst : f32 to vector<8x32xf32>
    %c0_10 = arith.constant 0 : index
    %c0_11 = arith.constant 0 : index
    %c0_12 = arith.constant 0 : index
    %12 = vector.load %arg6[%c0_10, %c0_11, %c0_12] : memref<4x32x8xbf16, #tpu.memory_space<vmem>>, vector<1x32x8xbf16>
    %13 = vector.shape_cast %12 : vector<1x32x8xbf16> to vector<32x8xbf16>
    %cst_13 = arith.constant dense<0.000000e+00> : vector<8x8xf32>
    %14 = tpu.matmul %9, %13, %cst_13 {dimension_numbers = #tpu.dot_dimension_numbers<[1], [0], [0], [1], [0, 0, 1, 1], [], []>} : vector<8x32xbf16>, vector<32x8xbf16>, vector<8x8xf32> -> vector<8x8xf32>
    %c0_14 = arith.constant 0 : index
    %c0_15 = arith.constant 0 : index
    %c0_16 = arith.constant 0 : index
    %15 = vector.load %arg7[%c0_14, %c0_15, %c0_16] : memref<4x1x8xf32, #tpu.memory_space<vmem>>, vector<1x1x8xf32>
    %16 = vector.shape_cast %15 : vector<1x1x8xf32> to vector<1x8xf32>
    %17 = vector.broadcast %16 : vector<1x8xf32> to vector<8x8xf32>
    %18 = arith.addf %14, %17 : vector<8x8xf32>
    %c0_17 = arith.constant 0 : index
    %c0_18 = arith.constant 0 : index
    %c0_19 = arith.constant 0 : index
    %19 = vector.load %arg8[%c0_17, %c0_18, %c0_19] : memref<4x32x8xbf16, #tpu.memory_space<vmem>>, vector<1x32x8xbf16>
    %20 = vector.shape_cast %19 : vector<1x32x8xbf16> to vector<32x8xbf16>
    %cst_20 = arith.constant dense<0.000000e+00> : vector<8x8xf32>
    %21 = tpu.matmul %10, %20, %cst_20 {dimension_numbers = #tpu.dot_dimension_numbers<[1], [0], [0], [1], [0, 0, 1, 1], [], []>} : vector<8x32xbf16>, vector<32x8xbf16>, vector<8x8xf32> -> vector<8x8xf32>
    %c0_21 = arith.constant 0 : index
    %c0_22 = arith.constant 0 : index
    %c0_23 = arith.constant 0 : index
    %22 = vector.load %arg9[%c0_21, %c0_22, %c0_23] : memref<4x1x8xf32, #tpu.memory_space<vmem>>, vector<1x1x8xf32>
    %23 = vector.shape_cast %22 : vector<1x1x8xf32> to vector<1x8xf32>
    %24 = vector.broadcast %23 : vector<1x8xf32> to vector<8x8xf32>
    %25 = arith.addf %21, %24 : vector<8x8xf32>
    %c0_24 = arith.constant 0 : index
    %c0_25 = arith.constant 0 : index
    %c0_26 = arith.constant 0 : index
    %26 = vector.load %arg10[%c0_24, %c0_25, %c0_26] : memref<4x32x8xbf16, #tpu.memory_space<vmem>>, vector<1x32x8xbf16>
    %27 = vector.shape_cast %26 : vector<1x32x8xbf16> to vector<32x8xbf16>
    %cst_27 = arith.constant dense<0.000000e+00> : vector<8x8xf32>
    %28 = tpu.matmul %10, %27, %cst_27 {dimension_numbers = #tpu.dot_dimension_numbers<[1], [0], [0], [1], [0, 0, 1, 1], [], []>} : vector<8x32xbf16>, vector<32x8xbf16>, vector<8x8xf32> -> vector<8x8xf32>
    %c0_28 = arith.constant 0 : index
    %c0_29 = arith.constant 0 : index
    %c0_30 = arith.constant 0 : index
    %29 = vector.load %arg11[%c0_28, %c0_29, %c0_30] : memref<4x1x8xf32, #tpu.memory_space<vmem>>, vector<1x1x8xf32>
    %30 = vector.shape_cast %29 : vector<1x1x8xf32> to vector<1x8xf32>
    %31 = vector.broadcast %30 : vector<1x8xf32> to vector<8x8xf32>
    %32 = arith.addf %28, %31 : vector<8x8xf32>
    %33 = tpu.transpose %25, [1, 0] : vector<8x8xf32> -> vector<8x8xf32>
    %cst_31 = arith.constant dense<0.000000e+00> : vector<8x8xf32>
    %34 = tpu.matmul %18, %33, %cst_31 {dimension_numbers = #tpu.dot_dimension_numbers<[1], [0], [0], [1], [0, 0, 1, 1], [], []>} : vector<8x8xf32>, vector<8x8xf32>, vector<8x8xf32> -> vector<8x8xf32>
    %cst_32 = arith.constant 0.353553385 : f32
    %35 = vector.broadcast %cst_32 : f32 to vector<8x8xf32>
    %36 = arith.mulf %34, %35 : vector<8x8xf32>
    %37 = arith.addf %36, %8 : vector<8x8xf32>
    %cst_33 = arith.constant dense<0xFF800000> : vector<8xf32>
    %38 = vector.multi_reduction <maximumf>, %37, %cst_33 [1] : vector<8x8xf32> to vector<8xf32>
    %39 = vector.shape_cast %38 : vector<8xf32> to vector<8x1xf32>
    %40 = vector.broadcast %39 : vector<8x1xf32> to vector<8x8xf32>
    %41 = arith.subf %37, %40 : vector<8x8xf32>
    %42 = math.exp %41 : vector<8x8xf32>
    %cst_34 = arith.constant dense<0.000000e+00> : vector<8xf32>
    %43 = vector.multi_reduction <add>, %42, %cst_34 [1] : vector<8x8xf32> to vector<8xf32>
    %44 = vector.shape_cast %43 : vector<8xf32> to vector<8x1xf32>
    %45 = tpu.reciprocal %44 {approx = true} : vector<8x1xf32> -> vector<8x1xf32>
    %46 = vector.broadcast %45 : vector<8x1xf32> to vector<8x8xf32>
    %47 = arith.mulf %42, %46 : vector<8x8xf32>
    %cst_35 = arith.constant dense<0.000000e+00> : vector<8x8xf32>
    %48 = tpu.matmul %47, %32, %cst_35 {dimension_numbers = #tpu.dot_dimension_numbers<[1], [0], [0], [1], [0, 0, 1, 1], [], []>} : vector<8x8xf32>, vector<8x8xf32>, vector<8x8xf32> -> vector<8x8xf32>
    %49 = arith.truncf %48 : vector<8x8xf32> to vector<8x8xbf16>
    %c0_36 = arith.constant 0 : index
    %c0_37 = arith.constant 0 : index
    %c0_38 = arith.constant 0 : index
    %50 = vector.load %arg12[%c0_36, %c0_37, %c0_38] : memref<4x8x32xbf16, #tpu.memory_space<vmem>>, vector<1x8x32xbf16>
    %51 = vector.shape_cast %50 : vector<1x8x32xbf16> to vector<8x32xbf16>
    %cst_39 = arith.constant dense<0.000000e+00> : vector<8x32xf32>
    %52 = tpu.matmul %49, %51, %cst_39 {dimension_numbers = #tpu.dot_dimension_numbers<[1], [0], [0], [1], [0, 0, 1, 1], [], []>} : vector<8x8xbf16>, vector<8x32xbf16>, vector<8x32xf32> -> vector<8x32xf32>
    %53 = arith.addf %11, %52 : vector<8x32xf32>
    %c1 = arith.constant 1 : index
    %c0_40 = arith.constant 0 : index
    %c0_41 = arith.constant 0 : index
    %54 = vector.load %arg6[%c1, %c0_40, %c0_41] : memref<4x32x8xbf16, #tpu.memory_space<vmem>>, vector<1x32x8xbf16>
    %55 = vector.shape_cast %54 : vector<1x32x8xbf16> to vector<32x8xbf16>
    %cst_42 = arith.constant dense<0.000000e+00> : vector<8x8xf32>
    %56 = tpu.matmul %9, %55, %cst_42 {dimension_numbers = #tpu.dot_dimension_numbers<[1], [0], [0], [1], [0, 0, 1, 1], [], []>} : vector<8x32xbf16>, vector<32x8xbf16>, vector<8x8xf32> -> vector<8x8xf32>
    %c1_43 = arith.constant 1 : index
    %c0_44 = arith.constant 0 : index
    %c0_45 = arith.constant 0 : index
    %57 = vector.load %arg7[%c1_43, %c0_44, %c0_45] : memref<4x1x8xf32, #tpu.memory_space<vmem>>, vector<1x1x8xf32>
    %58 = vector.shape_cast %57 : vector<1x1x8xf32> to vector<1x8xf32>
    %59 = vector.broadcast %58 : vector<1x8xf32> to vector<8x8xf32>
    %60 = arith.addf %56, %59 : vector<8x8xf32>
    %c1_46 = arith.constant 1 : index
    %c0_47 = arith.constant 0 : index
    %c0_48 = arith.constant 0 : index
    %61 = vector.load %arg8[%c1_46, %c0_47, %c0_48] : memref<4x32x8xbf16, #tpu.memory_space<vmem>>, vector<1x32x8xbf16>
    %62 = vector.shape_cast %61 : vector<1x32x8xbf16> to vector<32x8xbf16>
    %cst_49 = arith.constant dense<0.000000e+00> : vector<8x8xf32>
    %63 = tpu.matmul %10, %62, %cst_49 {dimension_numbers = #tpu.dot_dimension_numbers<[1], [0], [0], [1], [0, 0, 1, 1], [], []>} : vector<8x32xbf16>, vector<32x8xbf16>, vector<8x8xf32> -> vector<8x8xf32>
    %c1_50 = arith.constant 1 : index
    %c0_51 = arith.constant 0 : index
    %c0_52 = arith.constant 0 : index
    %64 = vector.load %arg9[%c1_50, %c0_51, %c0_52] : memref<4x1x8xf32, #tpu.memory_space<vmem>>, vector<1x1x8xf32>
    %65 = vector.shape_cast %64 : vector<1x1x8xf32> to vector<1x8xf32>
    %66 = vector.broadcast %65 : vector<1x8xf32> to vector<8x8xf32>
    %67 = arith.addf %63, %66 : vector<8x8xf32>
    %c1_53 = arith.constant 1 : index
    %c0_54 = arith.constant 0 : index
    %c0_55 = arith.constant 0 : index
    %68 = vector.load %arg10[%c1_53, %c0_54, %c0_55] : memref<4x32x8xbf16, #tpu.memory_space<vmem>>, vector<1x32x8xbf16>
    %69 = vector.shape_cast %68 : vector<1x32x8xbf16> to vector<32x8xbf16>
    %cst_56 = arith.constant dense<0.000000e+00> : vector<8x8xf32>
    %70 = tpu.matmul %10, %69, %cst_56 {dimension_numbers = #tpu.dot_dimension_numbers<[1], [0], [0], [1], [0, 0, 1, 1], [], []>} : vector<8x32xbf16>, vector<32x8xbf16>, vector<8x8xf32> -> vector<8x8xf32>
    %c1_57 = arith.constant 1 : index
    %c0_58 = arith.constant 0 : index
    %c0_59 = arith.constant 0 : index
    %71 = vector.load %arg11[%c1_57, %c0_58, %c0_59] : memref<4x1x8xf32, #tpu.memory_space<vmem>>, vector<1x1x8xf32>
    %72 = vector.shape_cast %71 : vector<1x1x8xf32> to vector<1x8xf32>
    %73 = vector.broadcast %72 : vector<1x8xf32> to vector<8x8xf32>
    %74 = arith.addf %70, %73 : vector<8x8xf32>
    %75 = tpu.transpose %67, [1, 0] : vector<8x8xf32> -> vector<8x8xf32>
    %cst_60 = arith.constant dense<0.000000e+00> : vector<8x8xf32>
    %76 = tpu.matmul %60, %75, %cst_60 {dimension_numbers = #tpu.dot_dimension_numbers<[1], [0], [0], [1], [0, 0, 1, 1], [], []>} : vector<8x8xf32>, vector<8x8xf32>, vector<8x8xf32> -> vector<8x8xf32>
    %cst_61 = arith.constant 0.353553385 : f32
    %77 = vector.broadcast %cst_61 : f32 to vector<8x8xf32>
    %78 = arith.mulf %76, %77 : vector<8x8xf32>
    %79 = arith.addf %78, %8 : vector<8x8xf32>
    %cst_62 = arith.constant dense<0xFF800000> : vector<8xf32>
    %80 = vector.multi_reduction <maximumf>, %79, %cst_62 [1] : vector<8x8xf32> to vector<8xf32>
    %81 = vector.shape_cast %80 : vector<8xf32> to vector<8x1xf32>
    %82 = vector.broadcast %81 : vector<8x1xf32> to vector<8x8xf32>
    %83 = arith.subf %79, %82 : vector<8x8xf32>
    %84 = math.exp %83 : vector<8x8xf32>
    %cst_63 = arith.constant dense<0.000000e+00> : vector<8xf32>
    %85 = vector.multi_reduction <add>, %84, %cst_63 [1] : vector<8x8xf32> to vector<8xf32>
    %86 = vector.shape_cast %85 : vector<8xf32> to vector<8x1xf32>
    %87 = tpu.reciprocal %86 {approx = true} : vector<8x1xf32> -> vector<8x1xf32>
    %88 = vector.broadcast %87 : vector<8x1xf32> to vector<8x8xf32>
    %89 = arith.mulf %84, %88 : vector<8x8xf32>
    %cst_64 = arith.constant dense<0.000000e+00> : vector<8x8xf32>
    %90 = tpu.matmul %89, %74, %cst_64 {dimension_numbers = #tpu.dot_dimension_numbers<[1], [0], [0], [1], [0, 0, 1, 1], [], []>} : vector<8x8xf32>, vector<8x8xf32>, vector<8x8xf32> -> vector<8x8xf32>
    %91 = arith.truncf %90 : vector<8x8xf32> to vector<8x8xbf16>
    %c1_65 = arith.constant 1 : index
    %c0_66 = arith.constant 0 : index
    %c0_67 = arith.constant 0 : index
    %92 = vector.load %arg12[%c1_65, %c0_66, %c0_67] : memref<4x8x32xbf16, #tpu.memory_space<vmem>>, vector<1x8x32xbf16>
    %93 = vector.shape_cast %92 : vector<1x8x32xbf16> to vector<8x32xbf16>
    %cst_68 = arith.constant dense<0.000000e+00> : vector<8x32xf32>
    %94 = tpu.matmul %91, %93, %cst_68 {dimension_numbers = #tpu.dot_dimension_numbers<[1], [0], [0], [1], [0, 0, 1, 1], [], []>} : vector<8x8xbf16>, vector<8x32xbf16>, vector<8x32xf32> -> vector<8x32xf32>
    %95 = arith.addf %53, %94 : vector<8x32xf32>
    %c2 = arith.constant 2 : index
    %c0_69 = arith.constant 0 : index
    %c0_70 = arith.constant 0 : index
    %96 = vector.load %arg6[%c2, %c0_69, %c0_70] : memref<4x32x8xbf16, #tpu.memory_space<vmem>>, vector<1x32x8xbf16>
    %97 = vector.shape_cast %96 : vector<1x32x8xbf16> to vector<32x8xbf16>
    %cst_71 = arith.constant dense<0.000000e+00> : vector<8x8xf32>
    %98 = tpu.matmul %9, %97, %cst_71 {dimension_numbers = #tpu.dot_dimension_numbers<[1], [0], [0], [1], [0, 0, 1, 1], [], []>} : vector<8x32xbf16>, vector<32x8xbf16>, vector<8x8xf32> -> vector<8x8xf32>
    %c2_72 = arith.constant 2 : index
    %c0_73 = arith.constant 0 : index
    %c0_74 = arith.constant 0 : index
    %99 = vector.load %arg7[%c2_72, %c0_73, %c0_74] : memref<4x1x8xf32, #tpu.memory_space<vmem>>, vector<1x1x8xf32>
    %100 = vector.shape_cast %99 : vector<1x1x8xf32> to vector<1x8xf32>
    %101 = vector.broadcast %100 : vector<1x8xf32> to vector<8x8xf32>
    %102 = arith.addf %98, %101 : vector<8x8xf32>
    %c2_75 = arith.constant 2 : index
    %c0_76 = arith.constant 0 : index
    %c0_77 = arith.constant 0 : index
    %103 = vector.load %arg8[%c2_75, %c0_76, %c0_77] : memref<4x32x8xbf16, #tpu.memory_space<vmem>>, vector<1x32x8xbf16>
    %104 = vector.shape_cast %103 : vector<1x32x8xbf16> to vector<32x8xbf16>
    %cst_78 = arith.constant dense<0.000000e+00> : vector<8x8xf32>
    %105 = tpu.matmul %10, %104, %cst_78 {dimension_numbers = #tpu.dot_dimension_numbers<[1], [0], [0], [1], [0, 0, 1, 1], [], []>} : vector<8x32xbf16>, vector<32x8xbf16>, vector<8x8xf32> -> vector<8x8xf32>
    %c2_79 = arith.constant 2 : index
    %c0_80 = arith.constant 0 : index
    %c0_81 = arith.constant 0 : index
    %106 = vector.load %arg9[%c2_79, %c0_80, %c0_81] : memref<4x1x8xf32, #tpu.memory_space<vmem>>, vector<1x1x8xf32>
    %107 = vector.shape_cast %106 : vector<1x1x8xf32> to vector<1x8xf32>
    %108 = vector.broadcast %107 : vector<1x8xf32> to vector<8x8xf32>
    %109 = arith.addf %105, %108 : vector<8x8xf32>
    %c2_82 = arith.constant 2 : index
    %c0_83 = arith.constant 0 : index
    %c0_84 = arith.constant 0 : index
    %110 = vector.load %arg10[%c2_82, %c0_83, %c0_84] : memref<4x32x8xbf16, #tpu.memory_space<vmem>>, vector<1x32x8xbf16>
    %111 = vector.shape_cast %110 : vector<1x32x8xbf16> to vector<32x8xbf16>
    %cst_85 = arith.constant dense<0.000000e+00> : vector<8x8xf32>
    %112 = tpu.matmul %10, %111, %cst_85 {dimension_numbers = #tpu.dot_dimension_numbers<[1], [0], [0], [1], [0, 0, 1, 1], [], []>} : vector<8x32xbf16>, vector<32x8xbf16>, vector<8x8xf32> -> vector<8x8xf32>
    %c2_86 = arith.constant 2 : index
    %c0_87 = arith.constant 0 : index
    %c0_88 = arith.constant 0 : index
    %113 = vector.load %arg11[%c2_86, %c0_87, %c0_88] : memref<4x1x8xf32, #tpu.memory_space<vmem>>, vector<1x1x8xf32>
    %114 = vector.shape_cast %113 : vector<1x1x8xf32> to vector<1x8xf32>
    %115 = vector.broadcast %114 : vector<1x8xf32> to vector<8x8xf32>
    %116 = arith.addf %112, %115 : vector<8x8xf32>
    %117 = tpu.transpose %109, [1, 0] : vector<8x8xf32> -> vector<8x8xf32>
    %cst_89 = arith.constant dense<0.000000e+00> : vector<8x8xf32>
    %118 = tpu.matmul %102, %117, %cst_89 {dimension_numbers = #tpu.dot_dimension_numbers<[1], [0], [0], [1], [0, 0, 1, 1], [], []>} : vector<8x8xf32>, vector<8x8xf32>, vector<8x8xf32> -> vector<8x8xf32>
    %cst_90 = arith.constant 0.353553385 : f32
    %119 = vector.broadcast %cst_90 : f32 to vector<8x8xf32>
    %120 = arith.mulf %118, %119 : vector<8x8xf32>
    %121 = arith.addf %120, %8 : vector<8x8xf32>
    %cst_91 = arith.constant dense<0xFF800000> : vector<8xf32>
    %122 = vector.multi_reduction <maximumf>, %121, %cst_91 [1] : vector<8x8xf32> to vector<8xf32>
    %123 = vector.shape_cast %122 : vector<8xf32> to vector<8x1xf32>
    %124 = vector.broadcast %123 : vector<8x1xf32> to vector<8x8xf32>
    %125 = arith.subf %121, %124 : vector<8x8xf32>
    %126 = math.exp %125 : vector<8x8xf32>
    %cst_92 = arith.constant dense<0.000000e+00> : vector<8xf32>
    %127 = vector.multi_reduction <add>, %126, %cst_92 [1] : vector<8x8xf32> to vector<8xf32>
    %128 = vector.shape_cast %127 : vector<8xf32> to vector<8x1xf32>
    %129 = tpu.reciprocal %128 {approx = true} : vector<8x1xf32> -> vector<8x1xf32>
    %130 = vector.broadcast %129 : vector<8x1xf32> to vector<8x8xf32>
    %131 = arith.mulf %126, %130 : vector<8x8xf32>
    %cst_93 = arith.constant dense<0.000000e+00> : vector<8x8xf32>
    %132 = tpu.matmul %131, %116, %cst_93 {dimension_numbers = #tpu.dot_dimension_numbers<[1], [0], [0], [1], [0, 0, 1, 1], [], []>} : vector<8x8xf32>, vector<8x8xf32>, vector<8x8xf32> -> vector<8x8xf32>
    %133 = arith.truncf %132 : vector<8x8xf32> to vector<8x8xbf16>
    %c2_94 = arith.constant 2 : index
    %c0_95 = arith.constant 0 : index
    %c0_96 = arith.constant 0 : index
    %134 = vector.load %arg12[%c2_94, %c0_95, %c0_96] : memref<4x8x32xbf16, #tpu.memory_space<vmem>>, vector<1x8x32xbf16>
    %135 = vector.shape_cast %134 : vector<1x8x32xbf16> to vector<8x32xbf16>
    %cst_97 = arith.constant dense<0.000000e+00> : vector<8x32xf32>
    %136 = tpu.matmul %133, %135, %cst_97 {dimension_numbers = #tpu.dot_dimension_numbers<[1], [0], [0], [1], [0, 0, 1, 1], [], []>} : vector<8x8xbf16>, vector<8x32xbf16>, vector<8x32xf32> -> vector<8x32xf32>
    %137 = arith.addf %95, %136 : vector<8x32xf32>
    %c3 = arith.constant 3 : index
    %c0_98 = arith.constant 0 : index
    %c0_99 = arith.constant 0 : index
    %138 = vector.load %arg6[%c3, %c0_98, %c0_99] : memref<4x32x8xbf16, #tpu.memory_space<vmem>>, vector<1x32x8xbf16>
    %139 = vector.shape_cast %138 : vector<1x32x8xbf16> to vector<32x8xbf16>
    %cst_100 = arith.constant dense<0.000000e+00> : vector<8x8xf32>
    %140 = tpu.matmul %9, %139, %cst_100 {dimension_numbers = #tpu.dot_dimension_numbers<[1], [0], [0], [1], [0, 0, 1, 1], [], []>} : vector<8x32xbf16>, vector<32x8xbf16>, vector<8x8xf32> -> vector<8x8xf32>
    %c3_101 = arith.constant 3 : index
    %c0_102 = arith.constant 0 : index
    %c0_103 = arith.constant 0 : index
    %141 = vector.load %arg7[%c3_101, %c0_102, %c0_103] : memref<4x1x8xf32, #tpu.memory_space<vmem>>, vector<1x1x8xf32>
    %142 = vector.shape_cast %141 : vector<1x1x8xf32> to vector<1x8xf32>
    %143 = vector.broadcast %142 : vector<1x8xf32> to vector<8x8xf32>
    %144 = arith.addf %140, %143 : vector<8x8xf32>
    %c3_104 = arith.constant 3 : index
    %c0_105 = arith.constant 0 : index
    %c0_106 = arith.constant 0 : index
    %145 = vector.load %arg8[%c3_104, %c0_105, %c0_106] : memref<4x32x8xbf16, #tpu.memory_space<vmem>>, vector<1x32x8xbf16>
    %146 = vector.shape_cast %145 : vector<1x32x8xbf16> to vector<32x8xbf16>
    %cst_107 = arith.constant dense<0.000000e+00> : vector<8x8xf32>
    %147 = tpu.matmul %10, %146, %cst_107 {dimension_numbers = #tpu.dot_dimension_numbers<[1], [0], [0], [1], [0, 0, 1, 1], [], []>} : vector<8x32xbf16>, vector<32x8xbf16>, vector<8x8xf32> -> vector<8x8xf32>
    %c3_108 = arith.constant 3 : index
    %c0_109 = arith.constant 0 : index
    %c0_110 = arith.constant 0 : index
    %148 = vector.load %arg9[%c3_108, %c0_109, %c0_110] : memref<4x1x8xf32, #tpu.memory_space<vmem>>, vector<1x1x8xf32>
    %149 = vector.shape_cast %148 : vector<1x1x8xf32> to vector<1x8xf32>
    %150 = vector.broadcast %149 : vector<1x8xf32> to vector<8x8xf32>
    %151 = arith.addf %147, %150 : vector<8x8xf32>
    %c3_111 = arith.constant 3 : index
    %c0_112 = arith.constant 0 : index
    %c0_113 = arith.constant 0 : index
    %152 = vector.load %arg10[%c3_111, %c0_112, %c0_113] : memref<4x32x8xbf16, #tpu.memory_space<vmem>>, vector<1x32x8xbf16>
    %153 = vector.shape_cast %152 : vector<1x32x8xbf16> to vector<32x8xbf16>
    %cst_114 = arith.constant dense<0.000000e+00> : vector<8x8xf32>
    %154 = tpu.matmul %10, %153, %cst_114 {dimension_numbers = #tpu.dot_dimension_numbers<[1], [0], [0], [1], [0, 0, 1, 1], [], []>} : vector<8x32xbf16>, vector<32x8xbf16>, vector<8x8xf32> -> vector<8x8xf32>
    %c3_115 = arith.constant 3 : index
    %c0_116 = arith.constant 0 : index
    %c0_117 = arith.constant 0 : index
    %155 = vector.load %arg11[%c3_115, %c0_116, %c0_117] : memref<4x1x8xf32, #tpu.memory_space<vmem>>, vector<1x1x8xf32>
    %156 = vector.shape_cast %155 : vector<1x1x8xf32> to vector<1x8xf32>
    %157 = vector.broadcast %156 : vector<1x8xf32> to vector<8x8xf32>
    %158 = arith.addf %154, %157 : vector<8x8xf32>
    %159 = tpu.transpose %151, [1, 0] : vector<8x8xf32> -> vector<8x8xf32>
    %cst_118 = arith.constant dense<0.000000e+00> : vector<8x8xf32>
    %160 = tpu.matmul %144, %159, %cst_118 {dimension_numbers = #tpu.dot_dimension_numbers<[1], [0], [0], [1], [0, 0, 1, 1], [], []>} : vector<8x8xf32>, vector<8x8xf32>, vector<8x8xf32> -> vector<8x8xf32>
    %cst_119 = arith.constant 0.353553385 : f32
    %161 = vector.broadcast %cst_119 : f32 to vector<8x8xf32>
    %162 = arith.mulf %160, %161 : vector<8x8xf32>
    %163 = arith.addf %162, %8 : vector<8x8xf32>
    %cst_120 = arith.constant dense<0xFF800000> : vector<8xf32>
    %164 = vector.multi_reduction <maximumf>, %163, %cst_120 [1] : vector<8x8xf32> to vector<8xf32>
    %165 = vector.shape_cast %164 : vector<8xf32> to vector<8x1xf32>
    %166 = vector.broadcast %165 : vector<8x1xf32> to vector<8x8xf32>
    %167 = arith.subf %163, %166 : vector<8x8xf32>
    %168 = math.exp %167 : vector<8x8xf32>
    %cst_121 = arith.constant dense<0.000000e+00> : vector<8xf32>
    %169 = vector.multi_reduction <add>, %168, %cst_121 [1] : vector<8x8xf32> to vector<8xf32>
    %170 = vector.shape_cast %169 : vector<8xf32> to vector<8x1xf32>
    %171 = tpu.reciprocal %170 {approx = true} : vector<8x1xf32> -> vector<8x1xf32>
    %172 = vector.broadcast %171 : vector<8x1xf32> to vector<8x8xf32>
    %173 = arith.mulf %168, %172 : vector<8x8xf32>
    %cst_122 = arith.constant dense<0.000000e+00> : vector<8x8xf32>
    %174 = tpu.matmul %173, %158, %cst_122 {dimension_numbers = #tpu.dot_dimension_numbers<[1], [0], [0], [1], [0, 0, 1, 1], [], []>} : vector<8x8xf32>, vector<8x8xf32>, vector<8x8xf32> -> vector<8x8xf32>
    %175 = arith.truncf %174 : vector<8x8xf32> to vector<8x8xbf16>
    %c3_123 = arith.constant 3 : index
    %c0_124 = arith.constant 0 : index
    %c0_125 = arith.constant 0 : index
    %176 = vector.load %arg12[%c3_123, %c0_124, %c0_125] : memref<4x8x32xbf16, #tpu.memory_space<vmem>>, vector<1x8x32xbf16>
    %177 = vector.shape_cast %176 : vector<1x8x32xbf16> to vector<8x32xbf16>
    %cst_126 = arith.constant dense<0.000000e+00> : vector<8x32xf32>
    %178 = tpu.matmul %175, %177, %cst_126 {dimension_numbers = #tpu.dot_dimension_numbers<[1], [0], [0], [1], [0, 0, 1, 1], [], []>} : vector<8x8xbf16>, vector<8x32xbf16>, vector<8x32xf32> -> vector<8x32xf32>
    %179 = arith.addf %137, %178 : vector<8x32xf32>
    %c0_127 = arith.constant 0 : index
    %c0_128 = arith.constant 0 : index
    %180 = vector.load %arg13[%c0_127, %c0_128] : memref<1x32xf32, #tpu.memory_space<vmem>>, vector<1x32xf32>
    %181 = vector.broadcast %180 : vector<1x32xf32> to vector<8x32xf32>
    %182 = arith.addf %179, %181 : vector<8x32xf32>
    %183 = arith.addf %1, %182 : vector<8x32xf32>
    %c0_129 = arith.constant 0 : index
    %c0_130 = arith.constant 0 : index
    %184 = vector.load %arg14[%c0_129, %c0_130] : memref<1x32xf32, #tpu.memory_space<vmem>>, vector<1x32xf32>
    %c0_131 = arith.constant 0 : index
    %c0_132 = arith.constant 0 : index
    %185 = vector.load %arg15[%c0_131, %c0_132] : memref<1x32xf32, #tpu.memory_space<vmem>>, vector<1x32xf32>
    %cst_133 = arith.constant dense<0.000000e+00> : vector<8xf32>
    %186 = vector.multi_reduction <add>, %183, %cst_133 [1] : vector<8x32xf32> to vector<8xf32>
    %187 = vector.shape_cast %186 : vector<8xf32> to vector<8x1xf32>
    %cst_134 = arith.constant 3.200000e+01 : f32
    %188 = vector.broadcast %cst_134 : f32 to vector<8x1xf32>
    %189 = arith.divf %187, %188 : vector<8x1xf32>
    %190 = vector.broadcast %189 : vector<8x1xf32> to vector<8x32xf32>
    %191 = arith.subf %183, %190 : vector<8x32xf32>
    %192 = arith.mulf %191, %191 : vector<8x32xf32>
    %cst_135 = arith.constant dense<0.000000e+00> : vector<8xf32>
    %193 = vector.multi_reduction <add>, %192, %cst_135 [1] : vector<8x32xf32> to vector<8xf32>
    %194 = vector.shape_cast %193 : vector<8xf32> to vector<8x1xf32>
    %cst_136 = arith.constant 3.200000e+01 : f32
    %195 = vector.broadcast %cst_136 : f32 to vector<8x1xf32>
    %196 = arith.divf %194, %195 : vector<8x1xf32>
    %cst_137 = arith.constant 9.99999974E-6 : f32
    %197 = vector.broadcast %cst_137 : f32 to vector<8x1xf32>
    %198 = arith.addf %196, %197 : vector<8x1xf32>
    %199 = math.rsqrt %198 : vector<8x1xf32>
    %200 = vector.broadcast %199 : vector<8x1xf32> to vector<8x32xf32>
    %201 = arith.mulf %191, %200 : vector<8x32xf32>
    %202 = vector.broadcast %184 : vector<1x32xf32> to vector<8x32xf32>
    %203 = arith.mulf %201, %202 : vector<8x32xf32>
    %204 = vector.broadcast %185 : vector<1x32xf32> to vector<8x32xf32>
    %205 = arith.addf %203, %204 : vector<8x32xf32>
    %c0_138 = arith.constant 0 : index
    %c0_139 = arith.constant 0 : index
    %c0_140 = arith.constant 0 : index
    %206 = vector.load %arg5[%c0_138, %c0_139, %c0_140] : memref<1x1x8xf32, #tpu.memory_space<vmem>>, vector<1x1x8xf32>
    %207 = vector.shape_cast %206 : vector<1x1x8xf32> to vector<1x8xf32>
    %208 = arith.truncf %205 : vector<8x32xf32> to vector<8x32xbf16>
    %209 = arith.truncf %3 : vector<8x32xf32> to vector<8x32xbf16>
    %cst_141 = arith.constant 0.000000e+00 : f32
    %210 = vector.broadcast %cst_141 : f32 to vector<8x32xf32>
    %c0_142 = arith.constant 0 : index
    %c0_143 = arith.constant 0 : index
    %c0_144 = arith.constant 0 : index
    %211 = vector.load %arg16[%c0_142, %c0_143, %c0_144] : memref<4x32x8xbf16, #tpu.memory_space<vmem>>, vector<1x32x8xbf16>
    %212 = vector.shape_cast %211 : vector<1x32x8xbf16> to vector<32x8xbf16>
    %cst_145 = arith.constant dense<0.000000e+00> : vector<8x8xf32>
    %213 = tpu.matmul %208, %212, %cst_145 {dimension_numbers = #tpu.dot_dimension_numbers<[1], [0], [0], [1], [0, 0, 1, 1], [], []>} : vector<8x32xbf16>, vector<32x8xbf16>, vector<8x8xf32> -> vector<8x8xf32>
    %c0_146 = arith.constant 0 : index
    %c0_147 = arith.constant 0 : index
    %c0_148 = arith.constant 0 : index
    %214 = vector.load %arg17[%c0_146, %c0_147, %c0_148] : memref<4x1x8xf32, #tpu.memory_space<vmem>>, vector<1x1x8xf32>
    %215 = vector.shape_cast %214 : vector<1x1x8xf32> to vector<1x8xf32>
    %216 = vector.broadcast %215 : vector<1x8xf32> to vector<8x8xf32>
    %217 = arith.addf %213, %216 : vector<8x8xf32>
    %c0_149 = arith.constant 0 : index
    %c0_150 = arith.constant 0 : index
    %c0_151 = arith.constant 0 : index
    %218 = vector.load %arg18[%c0_149, %c0_150, %c0_151] : memref<4x32x8xbf16, #tpu.memory_space<vmem>>, vector<1x32x8xbf16>
    %219 = vector.shape_cast %218 : vector<1x32x8xbf16> to vector<32x8xbf16>
    %cst_152 = arith.constant dense<0.000000e+00> : vector<8x8xf32>
    %220 = tpu.matmul %209, %219, %cst_152 {dimension_numbers = #tpu.dot_dimension_numbers<[1], [0], [0], [1], [0, 0, 1, 1], [], []>} : vector<8x32xbf16>, vector<32x8xbf16>, vector<8x8xf32> -> vector<8x8xf32>
    %c0_153 = arith.constant 0 : index
    %c0_154 = arith.constant 0 : index
    %c0_155 = arith.constant 0 : index
    %221 = vector.load %arg19[%c0_153, %c0_154, %c0_155] : memref<4x1x8xf32, #tpu.memory_space<vmem>>, vector<1x1x8xf32>
    %222 = vector.shape_cast %221 : vector<1x1x8xf32> to vector<1x8xf32>
    %223 = vector.broadcast %222 : vector<1x8xf32> to vector<8x8xf32>
    %224 = arith.addf %220, %223 : vector<8x8xf32>
    %c0_156 = arith.constant 0 : index
    %c0_157 = arith.constant 0 : index
    %c0_158 = arith.constant 0 : index
    %225 = vector.load %arg20[%c0_156, %c0_157, %c0_158] : memref<4x32x8xbf16, #tpu.memory_space<vmem>>, vector<1x32x8xbf16>
    %226 = vector.shape_cast %225 : vector<1x32x8xbf16> to vector<32x8xbf16>
    %cst_159 = arith.constant dense<0.000000e+00> : vector<8x8xf32>
    %227 = tpu.matmul %209, %226, %cst_159 {dimension_numbers = #tpu.dot_dimension_numbers<[1], [0], [0], [1], [0, 0, 1, 1], [], []>} : vector<8x32xbf16>, vector<32x8xbf16>, vector<8x8xf32> -> vector<8x8xf32>
    %c0_160 = arith.constant 0 : index
    %c0_161 = arith.constant 0 : index
    %c0_162 = arith.constant 0 : index
    %228 = vector.load %arg21[%c0_160, %c0_161, %c0_162] : memref<4x1x8xf32, #tpu.memory_space<vmem>>, vector<1x1x8xf32>
    %229 = vector.shape_cast %228 : vector<1x1x8xf32> to vector<1x8xf32>
    %230 = vector.broadcast %229 : vector<1x8xf32> to vector<8x8xf32>
    %231 = arith.addf %227, %230 : vector<8x8xf32>
    %232 = tpu.transpose %224, [1, 0] : vector<8x8xf32> -> vector<8x8xf32>
    %cst_163 = arith.constant dense<0.000000e+00> : vector<8x8xf32>
    %233 = tpu.matmul %217, %232, %cst_163 {dimension_numbers = #tpu.dot_dimension_numbers<[1], [0], [0], [1], [0, 0, 1, 1], [], []>} : vector<8x8xf32>, vector<8x8xf32>, vector<8x8xf32> -> vector<8x8xf32>
    %cst_164 = arith.constant 0.353553385 : f32
    %234 = vector.broadcast %cst_164 : f32 to vector<8x8xf32>
    %235 = arith.mulf %233, %234 : vector<8x8xf32>
    %236 = vector.broadcast %207 : vector<1x8xf32> to vector<8x8xf32>
    %237 = arith.addf %235, %236 : vector<8x8xf32>
    %cst_165 = arith.constant dense<0xFF800000> : vector<8xf32>
    %238 = vector.multi_reduction <maximumf>, %237, %cst_165 [1] : vector<8x8xf32> to vector<8xf32>
    %239 = vector.shape_cast %238 : vector<8xf32> to vector<8x1xf32>
    %240 = vector.broadcast %239 : vector<8x1xf32> to vector<8x8xf32>
    %241 = arith.subf %237, %240 : vector<8x8xf32>
    %242 = math.exp %241 : vector<8x8xf32>
    %cst_166 = arith.constant dense<0.000000e+00> : vector<8xf32>
    %243 = vector.multi_reduction <add>, %242, %cst_166 [1] : vector<8x8xf32> to vector<8xf32>
    %244 = vector.shape_cast %243 : vector<8xf32> to vector<8x1xf32>
    %245 = tpu.reciprocal %244 {approx = true} : vector<8x1xf32> -> vector<8x1xf32>
    %246 = vector.broadcast %245 : vector<8x1xf32> to vector<8x8xf32>
    %247 = arith.mulf %242, %246 : vector<8x8xf32>
    %cst_167 = arith.constant dense<0.000000e+00> : vector<8x8xf32>
    %248 = tpu.matmul %247, %231, %cst_167 {dimension_numbers = #tpu.dot_dimension_numbers<[1], [0], [0], [1], [0, 0, 1, 1], [], []>} : vector<8x8xf32>, vector<8x8xf32>, vector<8x8xf32> -> vector<8x8xf32>
    %249 = arith.truncf %248 : vector<8x8xf32> to vector<8x8xbf16>
    %c0_168 = arith.constant 0 : index
    %c0_169 = arith.constant 0 : index
    %c0_170 = arith.constant 0 : index
    %250 = vector.load %arg22[%c0_168, %c0_169, %c0_170] : memref<4x8x32xbf16, #tpu.memory_space<vmem>>, vector<1x8x32xbf16>
    %251 = vector.shape_cast %250 : vector<1x8x32xbf16> to vector<8x32xbf16>
    %cst_171 = arith.constant dense<0.000000e+00> : vector<8x32xf32>
    %252 = tpu.matmul %249, %251, %cst_171 {dimension_numbers = #tpu.dot_dimension_numbers<[1], [0], [0], [1], [0, 0, 1, 1], [], []>} : vector<8x8xbf16>, vector<8x32xbf16>, vector<8x32xf32> -> vector<8x32xf32>
    %253 = arith.addf %210, %252 : vector<8x32xf32>
    %c1_172 = arith.constant 1 : index
    %c0_173 = arith.constant 0 : index
    %c0_174 = arith.constant 0 : index
    %254 = vector.load %arg16[%c1_172, %c0_173, %c0_174] : memref<4x32x8xbf16, #tpu.memory_space<vmem>>, vector<1x32x8xbf16>
    %255 = vector.shape_cast %254 : vector<1x32x8xbf16> to vector<32x8xbf16>
    %cst_175 = arith.constant dense<0.000000e+00> : vector<8x8xf32>
    %256 = tpu.matmul %208, %255, %cst_175 {dimension_numbers = #tpu.dot_dimension_numbers<[1], [0], [0], [1], [0, 0, 1, 1], [], []>} : vector<8x32xbf16>, vector<32x8xbf16>, vector<8x8xf32> -> vector<8x8xf32>
    %c1_176 = arith.constant 1 : index
    %c0_177 = arith.constant 0 : index
    %c0_178 = arith.constant 0 : index
    %257 = vector.load %arg17[%c1_176, %c0_177, %c0_178] : memref<4x1x8xf32, #tpu.memory_space<vmem>>, vector<1x1x8xf32>
    %258 = vector.shape_cast %257 : vector<1x1x8xf32> to vector<1x8xf32>
    %259 = vector.broadcast %258 : vector<1x8xf32> to vector<8x8xf32>
    %260 = arith.addf %256, %259 : vector<8x8xf32>
    %c1_179 = arith.constant 1 : index
    %c0_180 = arith.constant 0 : index
    %c0_181 = arith.constant 0 : index
    %261 = vector.load %arg18[%c1_179, %c0_180, %c0_181] : memref<4x32x8xbf16, #tpu.memory_space<vmem>>, vector<1x32x8xbf16>
    %262 = vector.shape_cast %261 : vector<1x32x8xbf16> to vector<32x8xbf16>
    %cst_182 = arith.constant dense<0.000000e+00> : vector<8x8xf32>
    %263 = tpu.matmul %209, %262, %cst_182 {dimension_numbers = #tpu.dot_dimension_numbers<[1], [0], [0], [1], [0, 0, 1, 1], [], []>} : vector<8x32xbf16>, vector<32x8xbf16>, vector<8x8xf32> -> vector<8x8xf32>
    %c1_183 = arith.constant 1 : index
    %c0_184 = arith.constant 0 : index
    %c0_185 = arith.constant 0 : index
    %264 = vector.load %arg19[%c1_183, %c0_184, %c0_185] : memref<4x1x8xf32, #tpu.memory_space<vmem>>, vector<1x1x8xf32>
    %265 = vector.shape_cast %264 : vector<1x1x8xf32> to vector<1x8xf32>
    %266 = vector.broadcast %265 : vector<1x8xf32> to vector<8x8xf32>
    %267 = arith.addf %263, %266 : vector<8x8xf32>
    %c1_186 = arith.constant 1 : index
    %c0_187 = arith.constant 0 : index
    %c0_188 = arith.constant 0 : index
    %268 = vector.load %arg20[%c1_186, %c0_187, %c0_188] : memref<4x32x8xbf16, #tpu.memory_space<vmem>>, vector<1x32x8xbf16>
    %269 = vector.shape_cast %268 : vector<1x32x8xbf16> to vector<32x8xbf16>
    %cst_189 = arith.constant dense<0.000000e+00> : vector<8x8xf32>
    %270 = tpu.matmul %209, %269, %cst_189 {dimension_numbers = #tpu.dot_dimension_numbers<[1], [0], [0], [1], [0, 0, 1, 1], [], []>} : vector<8x32xbf16>, vector<32x8xbf16>, vector<8x8xf32> -> vector<8x8xf32>
    %c1_190 = arith.constant 1 : index
    %c0_191 = arith.constant 0 : index
    %c0_192 = arith.constant 0 : index
    %271 = vector.load %arg21[%c1_190, %c0_191, %c0_192] : memref<4x1x8xf32, #tpu.memory_space<vmem>>, vector<1x1x8xf32>
    %272 = vector.shape_cast %271 : vector<1x1x8xf32> to vector<1x8xf32>
    %273 = vector.broadcast %272 : vector<1x8xf32> to vector<8x8xf32>
    %274 = arith.addf %270, %273 : vector<8x8xf32>
    %275 = tpu.transpose %267, [1, 0] : vector<8x8xf32> -> vector<8x8xf32>
    %cst_193 = arith.constant dense<0.000000e+00> : vector<8x8xf32>
    %276 = tpu.matmul %260, %275, %cst_193 {dimension_numbers = #tpu.dot_dimension_numbers<[1], [0], [0], [1], [0, 0, 1, 1], [], []>} : vector<8x8xf32>, vector<8x8xf32>, vector<8x8xf32> -> vector<8x8xf32>
    %cst_194 = arith.constant 0.353553385 : f32
    %277 = vector.broadcast %cst_194 : f32 to vector<8x8xf32>
    %278 = arith.mulf %276, %277 : vector<8x8xf32>
    %279 = vector.broadcast %207 : vector<1x8xf32> to vector<8x8xf32>
    %280 = arith.addf %278, %279 : vector<8x8xf32>
    %cst_195 = arith.constant dense<0xFF800000> : vector<8xf32>
    %281 = vector.multi_reduction <maximumf>, %280, %cst_195 [1] : vector<8x8xf32> to vector<8xf32>
    %282 = vector.shape_cast %281 : vector<8xf32> to vector<8x1xf32>
    %283 = vector.broadcast %282 : vector<8x1xf32> to vector<8x8xf32>
    %284 = arith.subf %280, %283 : vector<8x8xf32>
    %285 = math.exp %284 : vector<8x8xf32>
    %cst_196 = arith.constant dense<0.000000e+00> : vector<8xf32>
    %286 = vector.multi_reduction <add>, %285, %cst_196 [1] : vector<8x8xf32> to vector<8xf32>
    %287 = vector.shape_cast %286 : vector<8xf32> to vector<8x1xf32>
    %288 = tpu.reciprocal %287 {approx = true} : vector<8x1xf32> -> vector<8x1xf32>
    %289 = vector.broadcast %288 : vector<8x1xf32> to vector<8x8xf32>
    %290 = arith.mulf %285, %289 : vector<8x8xf32>
    %cst_197 = arith.constant dense<0.000000e+00> : vector<8x8xf32>
    %291 = tpu.matmul %290, %274, %cst_197 {dimension_numbers = #tpu.dot_dimension_numbers<[1], [0], [0], [1], [0, 0, 1, 1], [], []>} : vector<8x8xf32>, vector<8x8xf32>, vector<8x8xf32> -> vector<8x8xf32>
    %292 = arith.truncf %291 : vector<8x8xf32> to vector<8x8xbf16>
    %c1_198 = arith.constant 1 : index
    %c0_199 = arith.constant 0 : index
    %c0_200 = arith.constant 0 : index
    %293 = vector.load %arg22[%c1_198, %c0_199, %c0_200] : memref<4x8x32xbf16, #tpu.memory_space<vmem>>, vector<1x8x32xbf16>
    %294 = vector.shape_cast %293 : vector<1x8x32xbf16> to vector<8x32xbf16>
    %cst_201 = arith.constant dense<0.000000e+00> : vector<8x32xf32>
    %295 = tpu.matmul %292, %294, %cst_201 {dimension_numbers = #tpu.dot_dimension_numbers<[1], [0], [0], [1], [0, 0, 1, 1], [], []>} : vector<8x8xbf16>, vector<8x32xbf16>, vector<8x32xf32> -> vector<8x32xf32>
    %296 = arith.addf %253, %295 : vector<8x32xf32>
    %c2_202 = arith.constant 2 : index
    %c0_203 = arith.constant 0 : index
    %c0_204 = arith.constant 0 : index
    %297 = vector.load %arg16[%c2_202, %c0_203, %c0_204] : memref<4x32x8xbf16, #tpu.memory_space<vmem>>, vector<1x32x8xbf16>
    %298 = vector.shape_cast %297 : vector<1x32x8xbf16> to vector<32x8xbf16>
    %cst_205 = arith.constant dense<0.000000e+00> : vector<8x8xf32>
    %299 = tpu.matmul %208, %298, %cst_205 {dimension_numbers = #tpu.dot_dimension_numbers<[1], [0], [0], [1], [0, 0, 1, 1], [], []>} : vector<8x32xbf16>, vector<32x8xbf16>, vector<8x8xf32> -> vector<8x8xf32>
    %c2_206 = arith.constant 2 : index
    %c0_207 = arith.constant 0 : index
    %c0_208 = arith.constant 0 : index
    %300 = vector.load %arg17[%c2_206, %c0_207, %c0_208] : memref<4x1x8xf32, #tpu.memory_space<vmem>>, vector<1x1x8xf32>
    %301 = vector.shape_cast %300 : vector<1x1x8xf32> to vector<1x8xf32>
    %302 = vector.broadcast %301 : vector<1x8xf32> to vector<8x8xf32>
    %303 = arith.addf %299, %302 : vector<8x8xf32>
    %c2_209 = arith.constant 2 : index
    %c0_210 = arith.constant 0 : index
    %c0_211 = arith.constant 0 : index
    %304 = vector.load %arg18[%c2_209, %c0_210, %c0_211] : memref<4x32x8xbf16, #tpu.memory_space<vmem>>, vector<1x32x8xbf16>
    %305 = vector.shape_cast %304 : vector<1x32x8xbf16> to vector<32x8xbf16>
    %cst_212 = arith.constant dense<0.000000e+00> : vector<8x8xf32>
    %306 = tpu.matmul %209, %305, %cst_212 {dimension_numbers = #tpu.dot_dimension_numbers<[1], [0], [0], [1], [0, 0, 1, 1], [], []>} : vector<8x32xbf16>, vector<32x8xbf16>, vector<8x8xf32> -> vector<8x8xf32>
    %c2_213 = arith.constant 2 : index
    %c0_214 = arith.constant 0 : index
    %c0_215 = arith.constant 0 : index
    %307 = vector.load %arg19[%c2_213, %c0_214, %c0_215] : memref<4x1x8xf32, #tpu.memory_space<vmem>>, vector<1x1x8xf32>
    %308 = vector.shape_cast %307 : vector<1x1x8xf32> to vector<1x8xf32>
    %309 = vector.broadcast %308 : vector<1x8xf32> to vector<8x8xf32>
    %310 = arith.addf %306, %309 : vector<8x8xf32>
    %c2_216 = arith.constant 2 : index
    %c0_217 = arith.constant 0 : index
    %c0_218 = arith.constant 0 : index
    %311 = vector.load %arg20[%c2_216, %c0_217, %c0_218] : memref<4x32x8xbf16, #tpu.memory_space<vmem>>, vector<1x32x8xbf16>
    %312 = vector.shape_cast %311 : vector<1x32x8xbf16> to vector<32x8xbf16>
    %cst_219 = arith.constant dense<0.000000e+00> : vector<8x8xf32>
    %313 = tpu.matmul %209, %312, %cst_219 {dimension_numbers = #tpu.dot_dimension_numbers<[1], [0], [0], [1], [0, 0, 1, 1], [], []>} : vector<8x32xbf16>, vector<32x8xbf16>, vector<8x8xf32> -> vector<8x8xf32>
    %c2_220 = arith.constant 2 : index
    %c0_221 = arith.constant 0 : index
    %c0_222 = arith.constant 0 : index
    %314 = vector.load %arg21[%c2_220, %c0_221, %c0_222] : memref<4x1x8xf32, #tpu.memory_space<vmem>>, vector<1x1x8xf32>
    %315 = vector.shape_cast %314 : vector<1x1x8xf32> to vector<1x8xf32>
    %316 = vector.broadcast %315 : vector<1x8xf32> to vector<8x8xf32>
    %317 = arith.addf %313, %316 : vector<8x8xf32>
    %318 = tpu.transpose %310, [1, 0] : vector<8x8xf32> -> vector<8x8xf32>
    %cst_223 = arith.constant dense<0.000000e+00> : vector<8x8xf32>
    %319 = tpu.matmul %303, %318, %cst_223 {dimension_numbers = #tpu.dot_dimension_numbers<[1], [0], [0], [1], [0, 0, 1, 1], [], []>} : vector<8x8xf32>, vector<8x8xf32>, vector<8x8xf32> -> vector<8x8xf32>
    %cst_224 = arith.constant 0.353553385 : f32
    %320 = vector.broadcast %cst_224 : f32 to vector<8x8xf32>
    %321 = arith.mulf %319, %320 : vector<8x8xf32>
    %322 = vector.broadcast %207 : vector<1x8xf32> to vector<8x8xf32>
    %323 = arith.addf %321, %322 : vector<8x8xf32>
    %cst_225 = arith.constant dense<0xFF800000> : vector<8xf32>
    %324 = vector.multi_reduction <maximumf>, %323, %cst_225 [1] : vector<8x8xf32> to vector<8xf32>
    %325 = vector.shape_cast %324 : vector<8xf32> to vector<8x1xf32>
    %326 = vector.broadcast %325 : vector<8x1xf32> to vector<8x8xf32>
    %327 = arith.subf %323, %326 : vector<8x8xf32>
    %328 = math.exp %327 : vector<8x8xf32>
    %cst_226 = arith.constant dense<0.000000e+00> : vector<8xf32>
    %329 = vector.multi_reduction <add>, %328, %cst_226 [1] : vector<8x8xf32> to vector<8xf32>
    %330 = vector.shape_cast %329 : vector<8xf32> to vector<8x1xf32>
    %331 = tpu.reciprocal %330 {approx = true} : vector<8x1xf32> -> vector<8x1xf32>
    %332 = vector.broadcast %331 : vector<8x1xf32> to vector<8x8xf32>
    %333 = arith.mulf %328, %332 : vector<8x8xf32>
    %cst_227 = arith.constant dense<0.000000e+00> : vector<8x8xf32>
    %334 = tpu.matmul %333, %317, %cst_227 {dimension_numbers = #tpu.dot_dimension_numbers<[1], [0], [0], [1], [0, 0, 1, 1], [], []>} : vector<8x8xf32>, vector<8x8xf32>, vector<8x8xf32> -> vector<8x8xf32>
    %335 = arith.truncf %334 : vector<8x8xf32> to vector<8x8xbf16>
    %c2_228 = arith.constant 2 : index
    %c0_229 = arith.constant 0 : index
    %c0_230 = arith.constant 0 : index
    %336 = vector.load %arg22[%c2_228, %c0_229, %c0_230] : memref<4x8x32xbf16, #tpu.memory_space<vmem>>, vector<1x8x32xbf16>
    %337 = vector.shape_cast %336 : vector<1x8x32xbf16> to vector<8x32xbf16>
    %cst_231 = arith.constant dense<0.000000e+00> : vector<8x32xf32>
    %338 = tpu.matmul %335, %337, %cst_231 {dimension_numbers = #tpu.dot_dimension_numbers<[1], [0], [0], [1], [0, 0, 1, 1], [], []>} : vector<8x8xbf16>, vector<8x32xbf16>, vector<8x32xf32> -> vector<8x32xf32>
    %339 = arith.addf %296, %338 : vector<8x32xf32>
    %c3_232 = arith.constant 3 : index
    %c0_233 = arith.constant 0 : index
    %c0_234 = arith.constant 0 : index
    %340 = vector.load %arg16[%c3_232, %c0_233, %c0_234] : memref<4x32x8xbf16, #tpu.memory_space<vmem>>, vector<1x32x8xbf16>
    %341 = vector.shape_cast %340 : vector<1x32x8xbf16> to vector<32x8xbf16>
    %cst_235 = arith.constant dense<0.000000e+00> : vector<8x8xf32>
    %342 = tpu.matmul %208, %341, %cst_235 {dimension_numbers = #tpu.dot_dimension_numbers<[1], [0], [0], [1], [0, 0, 1, 1], [], []>} : vector<8x32xbf16>, vector<32x8xbf16>, vector<8x8xf32> -> vector<8x8xf32>
    %c3_236 = arith.constant 3 : index
    %c0_237 = arith.constant 0 : index
    %c0_238 = arith.constant 0 : index
    %343 = vector.load %arg17[%c3_236, %c0_237, %c0_238] : memref<4x1x8xf32, #tpu.memory_space<vmem>>, vector<1x1x8xf32>
    %344 = vector.shape_cast %343 : vector<1x1x8xf32> to vector<1x8xf32>
    %345 = vector.broadcast %344 : vector<1x8xf32> to vector<8x8xf32>
    %346 = arith.addf %342, %345 : vector<8x8xf32>
    %c3_239 = arith.constant 3 : index
    %c0_240 = arith.constant 0 : index
    %c0_241 = arith.constant 0 : index
    %347 = vector.load %arg18[%c3_239, %c0_240, %c0_241] : memref<4x32x8xbf16, #tpu.memory_space<vmem>>, vector<1x32x8xbf16>
    %348 = vector.shape_cast %347 : vector<1x32x8xbf16> to vector<32x8xbf16>
    %cst_242 = arith.constant dense<0.000000e+00> : vector<8x8xf32>
    %349 = tpu.matmul %209, %348, %cst_242 {dimension_numbers = #tpu.dot_dimension_numbers<[1], [0], [0], [1], [0, 0, 1, 1], [], []>} : vector<8x32xbf16>, vector<32x8xbf16>, vector<8x8xf32> -> vector<8x8xf32>
    %c3_243 = arith.constant 3 : index
    %c0_244 = arith.constant 0 : index
    %c0_245 = arith.constant 0 : index
    %350 = vector.load %arg19[%c3_243, %c0_244, %c0_245] : memref<4x1x8xf32, #tpu.memory_space<vmem>>, vector<1x1x8xf32>
    %351 = vector.shape_cast %350 : vector<1x1x8xf32> to vector<1x8xf32>
    %352 = vector.broadcast %351 : vector<1x8xf32> to vector<8x8xf32>
    %353 = arith.addf %349, %352 : vector<8x8xf32>
    %c3_246 = arith.constant 3 : index
    %c0_247 = arith.constant 0 : index
    %c0_248 = arith.constant 0 : index
    %354 = vector.load %arg20[%c3_246, %c0_247, %c0_248] : memref<4x32x8xbf16, #tpu.memory_space<vmem>>, vector<1x32x8xbf16>
    %355 = vector.shape_cast %354 : vector<1x32x8xbf16> to vector<32x8xbf16>
    %cst_249 = arith.constant dense<0.000000e+00> : vector<8x8xf32>
    %356 = tpu.matmul %209, %355, %cst_249 {dimension_numbers = #tpu.dot_dimension_numbers<[1], [0], [0], [1], [0, 0, 1, 1], [], []>} : vector<8x32xbf16>, vector<32x8xbf16>, vector<8x8xf32> -> vector<8x8xf32>
    %c3_250 = arith.constant 3 : index
    %c0_251 = arith.constant 0 : index
    %c0_252 = arith.constant 0 : index
    %357 = vector.load %arg21[%c3_250, %c0_251, %c0_252] : memref<4x1x8xf32, #tpu.memory_space<vmem>>, vector<1x1x8xf32>
    %358 = vector.shape_cast %357 : vector<1x1x8xf32> to vector<1x8xf32>
    %359 = vector.broadcast %358 : vector<1x8xf32> to vector<8x8xf32>
    %360 = arith.addf %356, %359 : vector<8x8xf32>
    %361 = tpu.transpose %353, [1, 0] : vector<8x8xf32> -> vector<8x8xf32>
    %cst_253 = arith.constant dense<0.000000e+00> : vector<8x8xf32>
    %362 = tpu.matmul %346, %361, %cst_253 {dimension_numbers = #tpu.dot_dimension_numbers<[1], [0], [0], [1], [0, 0, 1, 1], [], []>} : vector<8x8xf32>, vector<8x8xf32>, vector<8x8xf32> -> vector<8x8xf32>
    %cst_254 = arith.constant 0.353553385 : f32
    %363 = vector.broadcast %cst_254 : f32 to vector<8x8xf32>
    %364 = arith.mulf %362, %363 : vector<8x8xf32>
    %365 = vector.broadcast %207 : vector<1x8xf32> to vector<8x8xf32>
    %366 = arith.addf %364, %365 : vector<8x8xf32>
    %cst_255 = arith.constant dense<0xFF800000> : vector<8xf32>
    %367 = vector.multi_reduction <maximumf>, %366, %cst_255 [1] : vector<8x8xf32> to vector<8xf32>
    %368 = vector.shape_cast %367 : vector<8xf32> to vector<8x1xf32>
    %369 = vector.broadcast %368 : vector<8x1xf32> to vector<8x8xf32>
    %370 = arith.subf %366, %369 : vector<8x8xf32>
    %371 = math.exp %370 : vector<8x8xf32>
    %cst_256 = arith.constant dense<0.000000e+00> : vector<8xf32>
    %372 = vector.multi_reduction <add>, %371, %cst_256 [1] : vector<8x8xf32> to vector<8xf32>
    %373 = vector.shape_cast %372 : vector<8xf32> to vector<8x1xf32>
    %374 = tpu.reciprocal %373 {approx = true} : vector<8x1xf32> -> vector<8x1xf32>
    %375 = vector.broadcast %374 : vector<8x1xf32> to vector<8x8xf32>
    %376 = arith.mulf %371, %375 : vector<8x8xf32>
    %cst_257 = arith.constant dense<0.000000e+00> : vector<8x8xf32>
    %377 = tpu.matmul %376, %360, %cst_257 {dimension_numbers = #tpu.dot_dimension_numbers<[1], [0], [0], [1], [0, 0, 1, 1], [], []>} : vector<8x8xf32>, vector<8x8xf32>, vector<8x8xf32> -> vector<8x8xf32>
    %378 = arith.truncf %377 : vector<8x8xf32> to vector<8x8xbf16>
    %c3_258 = arith.constant 3 : index
    %c0_259 = arith.constant 0 : index
    %c0_260 = arith.constant 0 : index
    %379 = vector.load %arg22[%c3_258, %c0_259, %c0_260] : memref<4x8x32xbf16, #tpu.memory_space<vmem>>, vector<1x8x32xbf16>
    %380 = vector.shape_cast %379 : vector<1x8x32xbf16> to vector<8x32xbf16>
    %cst_261 = arith.constant dense<0.000000e+00> : vector<8x32xf32>
    %381 = tpu.matmul %378, %380, %cst_261 {dimension_numbers = #tpu.dot_dimension_numbers<[1], [0], [0], [1], [0, 0, 1, 1], [], []>} : vector<8x8xbf16>, vector<8x32xbf16>, vector<8x32xf32> -> vector<8x32xf32>
    %382 = arith.addf %339, %381 : vector<8x32xf32>
    %c0_262 = arith.constant 0 : index
    %c0_263 = arith.constant 0 : index
    %383 = vector.load %arg23[%c0_262, %c0_263] : memref<1x32xf32, #tpu.memory_space<vmem>>, vector<1x32xf32>
    %384 = vector.broadcast %383 : vector<1x32xf32> to vector<8x32xf32>
    %385 = arith.addf %382, %384 : vector<8x32xf32>
    %386 = arith.addf %205, %385 : vector<8x32xf32>
    %c0_264 = arith.constant 0 : index
    %c0_265 = arith.constant 0 : index
    %387 = vector.load %arg24[%c0_264, %c0_265] : memref<1x32xf32, #tpu.memory_space<vmem>>, vector<1x32xf32>
    %c0_266 = arith.constant 0 : index
    %c0_267 = arith.constant 0 : index
    %388 = vector.load %arg25[%c0_266, %c0_267] : memref<1x32xf32, #tpu.memory_space<vmem>>, vector<1x32xf32>
    %cst_268 = arith.constant dense<0.000000e+00> : vector<8xf32>
    %389 = vector.multi_reduction <add>, %386, %cst_268 [1] : vector<8x32xf32> to vector<8xf32>
    %390 = vector.shape_cast %389 : vector<8xf32> to vector<8x1xf32>
    %cst_269 = arith.constant 3.200000e+01 : f32
    %391 = vector.broadcast %cst_269 : f32 to vector<8x1xf32>
    %392 = arith.divf %390, %391 : vector<8x1xf32>
    %393 = vector.broadcast %392 : vector<8x1xf32> to vector<8x32xf32>
    %394 = arith.subf %386, %393 : vector<8x32xf32>
    %395 = arith.mulf %394, %394 : vector<8x32xf32>
    %cst_270 = arith.constant dense<0.000000e+00> : vector<8xf32>
    %396 = vector.multi_reduction <add>, %395, %cst_270 [1] : vector<8x32xf32> to vector<8xf32>
    %397 = vector.shape_cast %396 : vector<8xf32> to vector<8x1xf32>
    %cst_271 = arith.constant 3.200000e+01 : f32
    %398 = vector.broadcast %cst_271 : f32 to vector<8x1xf32>
    %399 = arith.divf %397, %398 : vector<8x1xf32>
    %cst_272 = arith.constant 9.99999974E-6 : f32
    %400 = vector.broadcast %cst_272 : f32 to vector<8x1xf32>
    %401 = arith.addf %399, %400 : vector<8x1xf32>
    %402 = math.rsqrt %401 : vector<8x1xf32>
    %403 = vector.broadcast %402 : vector<8x1xf32> to vector<8x32xf32>
    %404 = arith.mulf %394, %403 : vector<8x32xf32>
    %405 = vector.broadcast %387 : vector<1x32xf32> to vector<8x32xf32>
    %406 = arith.mulf %404, %405 : vector<8x32xf32>
    %407 = vector.broadcast %388 : vector<1x32xf32> to vector<8x32xf32>
    %408 = arith.addf %406, %407 : vector<8x32xf32>
    %409 = arith.truncf %408 : vector<8x32xf32> to vector<8x32xbf16>
    %c0_273 = arith.constant 0 : index
    %c0_274 = arith.constant 0 : index
    %410 = vector.load %arg26[%c0_273, %c0_274] : memref<32x64xbf16, #tpu.memory_space<vmem>>, vector<32x64xbf16>
    %cst_275 = arith.constant dense<0.000000e+00> : vector<8x64xf32>
    %411 = tpu.matmul %409, %410, %cst_275 {dimension_numbers = #tpu.dot_dimension_numbers<[1], [0], [0], [1], [0, 0, 1, 1], [], []>} : vector<8x32xbf16>, vector<32x64xbf16>, vector<8x64xf32> -> vector<8x64xf32>
    %c0_276 = arith.constant 0 : index
    %c0_277 = arith.constant 0 : index
    %412 = vector.load %arg27[%c0_276, %c0_277] : memref<1x64xf32, #tpu.memory_space<vmem>>, vector<1x64xf32>
    %413 = vector.broadcast %412 : vector<1x64xf32> to vector<8x64xf32>
    %414 = arith.addf %411, %413 : vector<8x64xf32>
    %cst_278 = arith.constant 0.000000e+00 : f32
    %415 = vector.broadcast %cst_278 : f32 to vector<8x64xf32>
    %416 = arith.maximumf %414, %415 : vector<8x64xf32>
    %417 = arith.truncf %416 : vector<8x64xf32> to vector<8x64xbf16>
    %c0_279 = arith.constant 0 : index
    %c0_280 = arith.constant 0 : index
    %418 = vector.load %arg28[%c0_279, %c0_280] : memref<64x32xbf16, #tpu.memory_space<vmem>>, vector<64x32xbf16>
    %cst_281 = arith.constant dense<0.000000e+00> : vector<8x32xf32>
    %419 = tpu.matmul %417, %418, %cst_281 {dimension_numbers = #tpu.dot_dimension_numbers<[1], [0], [0], [1], [0, 0, 1, 1], [], []>} : vector<8x64xbf16>, vector<64x32xbf16>, vector<8x32xf32> -> vector<8x32xf32>
    %c0_282 = arith.constant 0 : index
    %c0_283 = arith.constant 0 : index
    %420 = vector.load %arg29[%c0_282, %c0_283] : memref<1x32xf32, #tpu.memory_space<vmem>>, vector<1x32xf32>
    %421 = vector.broadcast %420 : vector<1x32xf32> to vector<8x32xf32>
    %422 = arith.addf %419, %421 : vector<8x32xf32>
    %423 = arith.addf %408, %422 : vector<8x32xf32>
    %c0_284 = arith.constant 0 : index
    %c0_285 = arith.constant 0 : index
    %424 = vector.load %arg30[%c0_284, %c0_285] : memref<1x32xf32, #tpu.memory_space<vmem>>, vector<1x32xf32>
    %c0_286 = arith.constant 0 : index
    %c0_287 = arith.constant 0 : index
    %425 = vector.load %arg31[%c0_286, %c0_287] : memref<1x32xf32, #tpu.memory_space<vmem>>, vector<1x32xf32>
    %cst_288 = arith.constant dense<0.000000e+00> : vector<8xf32>
    %426 = vector.multi_reduction <add>, %423, %cst_288 [1] : vector<8x32xf32> to vector<8xf32>
    %427 = vector.shape_cast %426 : vector<8xf32> to vector<8x1xf32>
    %cst_289 = arith.constant 3.200000e+01 : f32
    %428 = vector.broadcast %cst_289 : f32 to vector<8x1xf32>
    %429 = arith.divf %427, %428 : vector<8x1xf32>
    %430 = vector.broadcast %429 : vector<8x1xf32> to vector<8x32xf32>
    %431 = arith.subf %423, %430 : vector<8x32xf32>
    %432 = arith.mulf %431, %431 : vector<8x32xf32>
    %cst_290 = arith.constant dense<0.000000e+00> : vector<8xf32>
    %433 = vector.multi_reduction <add>, %432, %cst_290 [1] : vector<8x32xf32> to vector<8xf32>
    %434 = vector.shape_cast %433 : vector<8xf32> to vector<8x1xf32>
    %cst_291 = arith.constant 3.200000e+01 : f32
    %435 = vector.broadcast %cst_291 : f32 to vector<8x1xf32>
    %436 = arith.divf %434, %435 : vector<8x1xf32>
    %cst_292 = arith.constant 9.99999974E-6 : f32
    %437 = vector.broadcast %cst_292 : f32 to vector<8x1xf32>
    %438 = arith.addf %436, %437 : vector<8x1xf32>
    %439 = math.rsqrt %438 : vector<8x1xf32>
    %440 = vector.broadcast %439 : vector<8x1xf32> to vector<8x32xf32>
    %441 = arith.mulf %431, %440 : vector<8x32xf32>
    %442 = vector.broadcast %424 : vector<1x32xf32> to vector<8x32xf32>
    %443 = arith.mulf %441, %442 : vector<8x32xf32>
    %444 = vector.broadcast %425 : vector<1x32xf32> to vector<8x32xf32>
    %445 = arith.addf %443, %444 : vector<8x32xf32>
    %c0_293 = arith.constant 0 : index
    %c0_294 = arith.constant 0 : index
    %c0_295 = arith.constant 0 : index
    %446 = vector.load %arg32[%c0_293, %c0_294, %c0_295] : memref<1x8x32xf32, #tpu.memory_space<vmem>>, vector<1x8x32xf32>
    %447 = vector.shape_cast %446 : vector<1x8x32xf32> to vector<8x32xf32>
    %448 = vector.shape_cast %445 : vector<8x32xf32> to vector<1x8x32xf32>
    tpu.vector_store %arg32[%c0_293, %c0_294, %c0_295], %448 {strides = array<i32>} : memref<1x8x32xf32, #tpu.memory_space<vmem>>, vector<1x8x32xf32>,
    return
  }
  func.func @transform_0(%arg0: i32) -> (i32, i32, i32) {
    %c0_i32 = arith.constant 0 : i32
    %c0_i32_0 = arith.constant 0 : i32
    %c0_i32_1 = arith.constant 0 : i32
    return %arg0, %c0_i32, %c0_i32_0 : i32, i32, i32
  }
  func.func @transform_1(%arg0: i32) -> (i32, i32, i32) {
    %c0_i32 = arith.constant 0 : i32
    %c0_i32_0 = arith.constant 0 : i32
    %c0_i32_1 = arith.constant 0 : i32
    return %arg0, %c0_i32, %c0_i32_0 : i32, i32, i32
  }
  func.func @transform_2(%arg0: i32) -> (i32, i32) {
    %c0_i32 = arith.constant 0 : i32
    %c0_i32_0 = arith.constant 0 : i32
    %c0_i32_1 = arith.constant 0 : i32
    return %c0_i32, %c0_i32_0 : i32, i32
  }
  func.func @transform_3(%arg0: i32) -> (i32, i32, i32) {
    %c0_i32 = arith.constant 0 : i32
    %c0_i32_0 = arith.constant 0 : i32
    %c0_i32_1 = arith.constant 0 : i32
    return %arg0, %c0_i32, %c0_i32_0 : i32, i32, i32
  }
  func.func @transform_4(%arg0: i32) -> (i32, i32, i32) {
    %c0_i32 = arith.constant 0 : i32
    %c0_i32_0 = arith.constant 0 : i32
    %c0_i32_1 = arith.constant 0 : i32
    return %arg0, %c0_i32, %c0_i32_0 : i32, i32, i32
  }
  func.func @transform_5(%arg0: i32) -> (i32, i32, i32) {
    %c0_i32 = arith.constant 0 : i32
    %c0_i32_0 = arith.constant 0 : i32
    %c0_i32_1 = arith.constant 0 : i32
    %c0_i32_2 = arith.constant 0 : i32
    return %c0_i32, %c0_i32_0, %c0_i32_1 : i32, i32, i32
  }
  func.func @transform_6(%arg0: i32) -> (i32, i32, i32) {
    %c0_i32 = arith.constant 0 : i32
    %c0_i32_0 = arith.constant 0 : i32
    %c0_i32_1 = arith.constant 0 : i32
    %c0_i32_2 = arith.constant 0 : i32
    return %c0_i32, %c0_i32_0, %c0_i32_1 : i32, i32, i32
  }
  func.func @transform_7(%arg0: i32) -> (i32, i32, i32) {
    %c0_i32 = arith.constant 0 : i32
    %c0_i32_0 = arith.constant 0 : i32
    %c0_i32_1 = arith.constant 0 : i32
    %c0_i32_2 = arith.constant 0 : i32
    return %c0_i32, %c0_i32_0, %c0_i32_1 : i32, i32, i32
  }
  func.func @transform_8(%arg0: i32) -> (i32, i32, i32) {
    %c0_i32 = arith.constant 0 : i32
    %c0_i32_0 = arith.constant 0 : i32
    %c0_i32_1 = arith.constant 0 : i32
    %c0_i32_2 = arith.constant 0 : i32
    return %c0_i32, %c0_i32_0, %c0_i32_1 : i32, i32, i32
  }
  func.func @transform_9(%arg0: i32) -> (i32, i32, i32) {
    %c0_i32 = arith.constant 0 : i32
    %c0_i32_0 = arith.constant 0 : i32
    %c0_i32_1 = arith.constant 0 : i32
    %c0_i32_2 = arith.constant 0 : i32
    return %c0_i32, %c0_i32_0, %c0_i32_1 : i32, i32, i32
  }
  func.func @transform_10(%arg0: i32) -> (i32, i32, i32) {
    %c0_i32 = arith.constant 0 : i32
    %c0_i32_0 = arith.constant 0 : i32
    %c0_i32_1 = arith.constant 0 : i32
    %c0_i32_2 = arith.constant 0 : i32
    return %c0_i32, %c0_i32_0, %c0_i32_1 : i32, i32, i32
  }
  func.func @transform_11(%arg0: i32) -> (i32, i32, i32) {
    %c0_i32 = arith.constant 0 : i32
    %c0_i32_0 = arith.constant 0 : i32
    %c0_i32_1 = arith.constant 0 : i32
    %c0_i32_2 = arith.constant 0 : i32
    return %c0_i32, %c0_i32_0, %c0_i32_1 : i32, i32, i32
  }
  func.func @transform_12(%arg0: i32) -> (i32, i32) {
    %c0_i32 = arith.constant 0 : i32
    %c0_i32_0 = arith.constant 0 : i32
    %c0_i32_1 = arith.constant 0 : i32
    return %c0_i32, %c0_i32_0 : i32, i32
  }
  func.func @transform_13(%arg0: i32) -> (i32, i32) {
    %c0_i32 = arith.constant 0 : i32
    %c0_i32_0 = arith.constant 0 : i32
    %c0_i32_1 = arith.constant 0 : i32
    return %c0_i32, %c0_i32_0 : i32, i32
  }
  func.func @transform_14(%arg0: i32) -> (i32, i32) {
    %c0_i32 = arith.constant 0 : i32
    %c0_i32_0 = arith.constant 0 : i32
    %c0_i32_1 = arith.constant 0 : i32
    return %c0_i32, %c0_i32_0 : i32, i32
  }
  func.func @transform_15(%arg0: i32) -> (i32, i32, i32) {
    %c0_i32 = arith.constant 0 : i32
    %c0_i32_0 = arith.constant 0 : i32
    %c0_i32_1 = arith.constant 0 : i32
    %c0_i32_2 = arith.constant 0 : i32
    return %c0_i32, %c0_i32_0, %c0_i32_1 : i32, i32, i32
  }
  func.func @transform_16(%arg0: i32) -> (i32, i32, i32) {
    %c0_i32 = arith.constant 0 : i32
    %c0_i32_0 = arith.constant 0 : i32
    %c0_i32_1 = arith.constant 0 : i32
    %c0_i32_2 = arith.constant 0 : i32
    return %c0_i32, %c0_i32_0, %c0_i32_1 : i32, i32, i32
  }
  func.func @transform_17(%arg0: i32) -> (i32, i32, i32) {
    %c0_i32 = arith.constant 0 : i32
    %c0_i32_0 = arith.constant 0 : i32
    %c0_i32_1 = arith.constant 0 : i32
    %c0_i32_2 = arith.constant 0 : i32
    return %c0_i32, %c0_i32_0, %c0_i32_1 : i32, i32, i32
  }
  func.func @transform_18(%arg0: i32) -> (i32, i32, i32) {
    %c0_i32 = arith.constant 0 : i32
    %c0_i32_0 = arith.constant 0 : i32
    %c0_i32_1 = arith.constant 0 : i32
    %c0_i32_2 = arith.constant 0 : i32
    return %c0_i32, %c0_i32_0, %c0_i32_1 : i32, i32, i32
  }
  func.func @transform_19(%arg0: i32) -> (i32, i32, i32) {
    %c0_i32 = arith.constant 0 : i32
    %c0_i32_0 = arith.constant 0 : i32
    %c0_i32_1 = arith.constant 0 : i32
    %c0_i32_2 = arith.constant 0 : i32
    return %c0_i32, %c0_i32_0, %c0_i32_1 : i32, i32, i32
  }
  func.func @transform_20(%arg0: i32) -> (i32, i32, i32) {
    %c0_i32 = arith.constant 0 : i32
    %c0_i32_0 = arith.constant 0 : i32
    %c0_i32_1 = arith.constant 0 : i32
    %c0_i32_2 = arith.constant 0 : i32
    return %c0_i32, %c0_i32_0, %c0_i32_1 : i32, i32, i32
  }
  func.func @transform_21(%arg0: i32) -> (i32, i32, i32) {
    %c0_i32 = arith.constant 0 : i32
    %c0_i32_0 = arith.constant 0 : i32
    %c0_i32_1 = arith.constant 0 : i32
    %c0_i32_2 = arith.constant 0 : i32
    return %c0_i32, %c0_i32_0, %c0_i32_1 : i32, i32, i32
  }
  func.func @transform_22(%arg0: i32) -> (i32, i32) {
    %c0_i32 = arith.constant 0 : i32
    %c0_i32_0 = arith.constant 0 : i32
    %c0_i32_1 = arith.constant 0 : i32
    return %c0_i32, %c0_i32_0 : i32, i32
  }
  func.func @transform_23(%arg0: i32) -> (i32, i32) {
    %c0_i32 = arith.constant 0 : i32
    %c0_i32_0 = arith.constant 0 : i32
    %c0_i32_1 = arith.constant 0 : i32
    return %c0_i32, %c0_i32_0 : i32, i32
  }
  func.func @transform_24(%arg0: i32) -> (i32, i32) {
    %c0_i32 = arith.constant 0 : i32
    %c0_i32_0 = arith.constant 0 : i32
    %c0_i32_1 = arith.constant 0 : i32
    return %c0_i32, %c0_i32_0 : i32, i32
  }
  func.func @transform_25(%arg0: i32) -> (i32, i32) {
    %c0_i32 = arith.constant 0 : i32
    %c0_i32_0 = arith.constant 0 : i32
    %c0_i32_1 = arith.constant 0 : i32
    return %c0_i32, %c0_i32_0 : i32, i32
  }
  func.func @transform_26(%arg0: i32) -> (i32, i32) {
    %c0_i32 = arith.constant 0 : i32
    %c0_i32_0 = arith.constant 0 : i32
    %c0_i32_1 = arith.constant 0 : i32
    return %c0_i32, %c0_i32_0 : i32, i32
  }
  func.func @transform_27(%arg0: i32) -> (i32, i32) {
    %c0_i32 = arith.constant 0 : i32
    %c0_i32_0 = arith.constant 0 : i32
    %c0_i32_1 = arith.constant 0 : i32
    return %c0_i32, %c0_i32_0 : i32, i32
  }
  func.func @transform_28(%arg0: i32) -> (i32, i32) {
    %c0_i32 = arith.constant 0 : i32
    %c0_i32_0 = arith.constant 0 : i32
    %c0_i32_1 = arith.constant 0 : i32
    return %c0_i32, %c0_i32_0 : i32, i32
  }
  func.func @transform_29(%arg0: i32) -> (i32, i32) {
    %c0_i32 = arith.constant 0 : i32
    %c0_i32_0 = arith.constant 0 : i32
    %c0_i32_1 = arith.constant 0 : i32
    return %c0_i32, %c0_i32_0 : i32, i32
  }
  func.func @transform_30(%arg0: i32) -> (i32, i32) {
    %c0_i32 = arith.constant 0 : i32
    %c0_i32_0 = arith.constant 0 : i32
    %c0_i32_1 = arith.constant 0 : i32
    return %c0_i32, %c0_i32_0 : i32, i32
  }
  func.func @transform_31(%arg0: i32) -> (i32, i32, i32) {
    %c0_i32 = arith.constant 0 : i32
    %c0_i32_0 = arith.constant 0 : i32
    %c0_i32_1 = arith.constant 0 : i32
    return %arg0, %c0_i32, %c0_i32_0 : i32, i32, i32
  }
}

</mosaic_0001>

<llo_original>
// kernel: seq2seq_forward.13
$region0: #{seq2seq_forward.13}
  #allocation0 [shape = 'u32[]', space=smem, size = 0x4, offset = 0x4, fixed_abs, tag = 'smem constant byte address 0x4 - core index']
  #allocation1 [shape = 'u32[144,128]{1,0:T(1,128)}', space=vmem, size = 0x12000, scoped, tag = 'internal scratch']
  %s0 = inlined_call_operand.vmem [shape: f32[16,32], index: 0, kind: input, shape index: {}]
  %s1 = inlined_call_operand.vmem [shape: bf16[32,128], index: 1, kind: input, shape index: {}]
  %s2 = inlined_call_operand.vmem [shape: f32[1,128], index: 2, kind: input, shape index: {}]
  %s3 = inlined_call_operand.vmem [shape: f32[16,128], index: 3, kind: output, shape index: {}]
  %s4 = sld [smem:[#allocation0]]
  $region22: #{seq2seq_forward.13} parent=0
    _
  %s6 = ssub.s32 1, %s4
  %s7 = scalar_select 0, %s6, %s4
  // Predicated region
  $region2: #{seq2seq_forward.13} parent=0 // pred_check
    _
  $region3: #{seq2seq_forward.13} parent=0 // pred_check_branch
    %9 = sbr.rel (0) target = $region5
  $region4: #{seq2seq_forward.13} parent=0 // pred_region
    _
  $region5: #{seq2seq_forward.13} parent=0 // pred_fallthru
    _
  // Predicated region
  $region6: #{seq2seq_forward.13} parent=0 // pred_check
    _
  $region7: #{seq2seq_forward.13} parent=0 // pred_check_branch
    %11 = sbr.rel (0) target = $region9
  $region8: #{seq2seq_forward.13} parent=0 // pred_region
    _
  $region9: #{seq2seq_forward.13} parent=0 // pred_fallthru
    _
  // Predicated region
  $region10: #{seq2seq_forward.13} parent=0 // pred_check
    _
  $region11: #{seq2seq_forward.13} parent=0 // pred_check_branch
    %13 = sbr.rel (0) target = $region13
  $region12: #{seq2seq_forward.13} parent=0 // pred_region
    _
  $region13: #{seq2seq_forward.13} parent=0 // pred_fallthru
    _
  %v15 = vld [vmem:[%s0] sm:$0xff]
  %v16 = vld [vmem:[%s0 + $0x8] sm:$0xff]
  %v17 = vpack.c.bf16 %v16, %v15
  %v18 = vld [vmem:[%s1] sm:$0xf]
  %v19 = vld [vmem:[%s1 + $0x4] sm:$0xf]
  %v20 = vld [vmem:[%s1 + $0x8] sm:$0xf]
  %v21 = vld [vmem:[%s1 + $0xc] sm:$0xf]
  %v22 = vld [vmem:[%s2] sm:$0x1]
  %v24 = vlaneseq
  %v25 = vshrl.u32 %v24, 7
  %v26 = vsub.s32 0, %v25
  %v27 = vrot.slane %v22, %v26
  %v33 = vunpack.c.l.b16 %v18
  %v34 = vunpack.c.l.b16 %v19
  %v35 = vunpack.c.l.b16 %v20
  %v36 = vunpack.c.l.b16 %v21
  %v37 = vpack.c.b16 %v34, %v33
  %v38 = vpack.c.b16 %v36, %v35
  %vm41 = vcmask 261120
  %v43 = vsel %vm41, %v17, 0
  %45 = vmatprep.subr.bf16.mxu0 0
  %46 = vmatpush1.bf16.msra.mxu0 %v37
  %47 = vmatprep.subr.bf16.mxu0 0
  %48 = vmatpush1.bf16.msra.mxu0 %v38
  %49 = vmatprep.subr.bf16.mxu0 0
  %50 = vmatpush1.bf16.msra.mxu0 0
  %51 = vmatprep.subr.bf16.mxu0 0
  %52 = vmatpush1.bf16.msra.mxu0 0
  %53 = vmatprep.subr.bf16.mxu0 0
  %54 = vmatpush1.bf16.msra.mxu0 0
  %55 = vmatprep.subr.bf16.mxu0 0
  %56 = vmatpush1.bf16.msra.mxu0 0
  %57 = vmatprep.subr.bf16.mxu0 0
  %58 = vmatpush1.bf16.msra.mxu0 0
  %59 = vmatprep.subr.bf16.mxu0 0
  %60 = vmatpush1.bf16.msra.mxu0 0
  %61 = vmatprep.subr.bf16.mxu0 0
  %62 = vmatpush1.bf16.msra.mxu0 0
  %63 = vmatprep.subr.bf16.mxu0 0
  %64 = vmatpush1.bf16.msra.mxu0 0
  %65 = vmatprep.subr.bf16.mxu0 0
  %66 = vmatpush1.bf16.msra.mxu0 0
  %67 = vmatprep.subr.bf16.mxu0 0
  %68 = vmatpush1.bf16.msra.mxu0 0
  %69 = vmatprep.subr.bf16.mxu0 0
  %70 = vmatpush1.bf16.msra.mxu0 0
  %71 = vmatprep.subr.bf16.mxu0 0
  %72 = vmatpush1.bf16.msra.mxu0 0
  %73 = vmatprep.subr.bf16.mxu0 0
  %74 = vmatpush1.bf16.msra.mxu0 0
  %75 = vmatprep.subr.bf16.mxu0 0
  %76 = vmatpush1.bf16.msra.mxu0 0
  %77 = vmatprep.mubr.bf16.mxu0 0
  %78 = vmatmul.mubr.bf16.gmra.mrb[0].mxu0 %v43
  %v79 = vpop.f32.mrb[0].mxu0
  %v80 = vadd.f32 %v27, %v79
  %v81 = vpop.f32.mrb[0].mxu0
  %v82 = vpop.f32.mrb[0].mxu0
  %v83 = vadd.f32 %v27, %v82
  %v84 = vpop.f32.mrb[0].mxu0
  %85 = vdwg.mxu0
  %86 = vst [vmem:[%s3] sm:$0xff] %v80
  %87 = vst [vmem:[%s3 + $0x8] sm:$0xff] %v83
  // Predicated region
  $region14: #{seq2seq_forward.13} parent=0 // pred_check
    _
  $region15: #{seq2seq_forward.13} parent=0 // pred_check_branch
    %89 = sbr.rel (0) target = $region17
  $region16: #{seq2seq_forward.13} parent=0 // pred_region
    _
  $region17: #{seq2seq_forward.13} parent=0 // pred_fallthru
    _
  // Predicated region
  $region18: #{seq2seq_forward.13} parent=0 // pred_check
    _
  $region19: #{seq2seq_forward.13} parent=0 // pred_check_branch
    %91 = sbr.rel (0) target = $region21
  $region20: #{seq2seq_forward.13} parent=0 // pred_region
    _
  $region21: #{seq2seq_forward.13} parent=0 // pred_fallthru
    _

// kernel: seq2seq_forward.9
$region0: #{seq2seq_forward.9}
  #allocation0 [shape = 'u32[]', space=smem, size = 0x4, offset = 0x4, fixed_abs, tag = 'smem constant byte address 0x4 - core index']
  #allocation1 [shape = 'u32[144,128]{1,0:T(1,128)}', space=vmem, size = 0x12000, scoped, tag = 'internal scratch']
  %s0 = inlined_call_operand.vmem [shape: f32[16,32], index: 0, kind: input, shape index: {}]
  %s1 = inlined_call_operand.vmem [shape: f32[1,32], index: 1, kind: input, shape index: {}]
  %s2 = inlined_call_operand.vmem [shape: f32[1,32], index: 2, kind: input, shape index: {}]
  %s3 = inlined_call_operand.vmem [shape: f32[16,32], index: 3, kind: output, shape index: {}]
  %s4 = sld [smem:[#allocation0]]
  $region22: #{seq2seq_forward.9} parent=0
    _
  %s6 = ssub.s32 1, %s4
  %s7 = scalar_select 0, %s6, %s4
  // Predicated region
  $region2: #{seq2seq_forward.9} parent=0 // pred_check
    _
  $region3: #{seq2seq_forward.9} parent=0 // pred_check_branch
    %9 = sbr.rel (0) target = $region5
  $region4: #{seq2seq_forward.9} parent=0 // pred_region
    _
  $region5: #{seq2seq_forward.9} parent=0 // pred_fallthru
    _
  // Predicated region
  $region6: #{seq2seq_forward.9} parent=0 // pred_check
    _
  $region7: #{seq2seq_forward.9} parent=0 // pred_check_branch
    %11 = sbr.rel (0) target = $region9
  $region8: #{seq2seq_forward.9} parent=0 // pred_region
    _
  $region9: #{seq2seq_forward.9} parent=0 // pred_fallthru
    _
  // Predicated region
  $region10: #{seq2seq_forward.9} parent=0 // pred_check
    _
  $region11: #{seq2seq_forward.9} parent=0 // pred_check_branch
    %13 = sbr.rel (0) target = $region13
  $region12: #{seq2seq_forward.9} parent=0 // pred_region
    _
  $region13: #{seq2seq_forward.9} parent=0 // pred_fallthru
    _
  %v14 = vld [vmem:[%s0] sm:$0xff]
  %v15 = vld [vmem:[%s0 + $0x8] sm:$0xff]
  %v16 = vld [vmem:[%s1] sm:$0x1]
  %v17 = vld [vmem:[%s2] sm:$0x1]
  %vm18 = vcmask 261120
  %v19 = vsel %vm18, %v14, 0.0
  %20 = vadd.xlane.f32.xlu0 %v19
  %v21 = vpop.xlane.xlu0 %20
  %v22 = vsel %vm18, %v15, 0.0
  %23 = vadd.xlane.f32.xlu0 %v22
  %v24 = vpop.xlane.xlu0 %23
  %v25 = vrcp.pop 32.0
  %v26 = vmul.f32 %v21, %v25
  %v27 = vmul.f32 %v24, %v25
  %v28 = vsub.f32 %v14, %v26
  %v29 = vsub.f32 %v15, %v27
  %v30 = vmul.f32 %v28, %v28
  %v31 = vmul.f32 %v29, %v29
  %v32 = vsel %vm18, %v30, 0.0
  %33 = vadd.xlane.f32.xlu0 %v32
  %v34 = vpop.xlane.xlu0 %33
  %v35 = vsel %vm18, %v31, 0.0
  %36 = vadd.xlane.f32.xlu0 %v35
  %v37 = vpop.xlane.xlu0 %36
  %v38 = vmul.f32 %v34, %v25
  %v39 = vmul.f32 %v37, %v25
  %v40 = vadd.f32 %v38, 1e-05
  %v41 = vadd.f32 %v39, 1e-05
  %v42 = vrsqrt.pop %v40
  %v43 = vrsqrt.pop %v41
  %v44 = vmul.f32 %v28, %v42
  %v45 = vmul.f32 %v29, %v43
  %v47 = vlaneseq
  %v48 = vshrl.u32 %v47, 7
  %v49 = vsub.s32 0, %v48
  %v50 = vrot.slane %v16, %v49
  %v52 = vmul.f32 %v44, %v50
  %v53 = vmul.f32 %v45, %v50
  %v55 = vlaneseq
  %v56 = vshrl.u32 %v55, 7
  %v57 = vsub.s32 0, %v56
  %v58 = vrot.slane %v17, %v57
  %v60 = vadd.f32 %v52, %v58
  %v61 = vadd.f32 %v53, %v58
  %62 = vst.msk [vmem:[%s3] sm:$0xff] %vm18, %v60
  %63 = vst.msk [vmem:[%s3 + $0x8] sm:$0xff] %vm18, %v61
  // Predicated region
  $region14: #{seq2seq_forward.9} parent=0 // pred_check
    _
  $region15: #{seq2seq_forward.9} parent=0 // pred_check_branch
    %65 = sbr.rel (0) target = $region17
  $region16: #{seq2seq_forward.9} parent=0 // pred_region
    _
  $region17: #{seq2seq_forward.9} parent=0 // pred_fallthru
    _
  // Predicated region
  $region18: #{seq2seq_forward.9} parent=0 // pred_check
    _
  $region19: #{seq2seq_forward.9} parent=0 // pred_check_branch
    %67 = sbr.rel (0) target = $region21
  $region20: #{seq2seq_forward.9} parent=0 // pred_region
    _
  $region21: #{seq2seq_forward.9} parent=0 // pred_fallthru
    _

// kernel: seq2seq_forward.7
$region0: #{seq2seq_forward.7}
  #allocation0 [shape = 'u32[]', space=smem, size = 0x4, offset = 0x4, fixed_abs, tag = 'smem constant byte address 0x4 - core index']
  #allocation1 [shape = 'u32[144,128]{1,0:T(1,128)}', space=vmem, size = 0x12000, scoped, tag = 'internal scratch']
  %s0 = inlined_call_operand.vmem [shape: f32[2,8,32], index: 0, kind: input, shape index: {}]
  %s1 = inlined_call_operand.vmem [shape: f32[8,8], index: 1, kind: input, shape index: {}]
  %s2 = inlined_call_operand.vmem [shape: f32[2,1,8], index: 2, kind: input, shape index: {}]
  %s3 = inlined_call_operand.vmem [shape: bf16[4,32,8], index: 3, kind: input, shape index: {}]
  %s4 = inlined_call_operand.vmem [shape: f32[4,1,8], index: 4, kind: input, shape index: {}]
  %s5 = inlined_call_operand.vmem [shape: bf16[4,32,8], index: 5, kind: input, shape index: {}]
  %s6 = inlined_call_operand.vmem [shape: f32[4,1,8], index: 6, kind: input, shape index: {}]
  %s7 = inlined_call_operand.vmem [shape: bf16[4,32,8], index: 7, kind: input, shape index: {}]
  %s8 = inlined_call_operand.vmem [shape: f32[4,1,8], index: 8, kind: input, shape index: {}]
  %s9 = inlined_call_operand.vmem [shape: bf16[4,8,32], index: 9, kind: input, shape index: {}]
  %s10 = inlined_call_operand.vmem [shape: f32[1,32], index: 10, kind: input, shape index: {}]
  %s11 = inlined_call_operand.vmem [shape: f32[1,32], index: 11, kind: input, shape index: {}]
  %s12 = inlined_call_operand.vmem [shape: f32[1,32], index: 12, kind: input, shape index: {}]
  %s13 = inlined_call_operand.vmem [shape: bf16[32,64], index: 13, kind: input, shape index: {}]
  %s14 = inlined_call_operand.vmem [shape: f32[1,64], index: 14, kind: input, shape index: {}]
  %s15 = inlined_call_operand.vmem [shape: bf16[64,32], index: 15, kind: input, shape index: {}]
  %s16 = inlined_call_operand.vmem [shape: f32[1,32], index: 16, kind: input, shape index: {}]
  %s17 = inlined_call_operand.vmem [shape: f32[1,32], index: 17, kind: input, shape index: {}]
  %s18 = inlined_call_operand.vmem [shape: f32[1,32], index: 18, kind: input, shape index: {}]
  %s19 = inlined_call_operand.vmem [shape: f32[2,8,32], index: 19, kind: output, shape index: {}]
  %s20 = sld [smem:[#allocation0]]
  $region109: #{seq2seq_forward.7} parent=0
    _
  %s22 = ssub.s32 1, %s20
  %s23 = scalar_select 0, %s22, %s20
  loop: start=0, step=1, limit=4
  $region2: #{seq2seq_forward.7} parent=0 // loop_pre_header
    _
  $region3: #{seq2seq_forward.7} parent=0 // loop_header
    %s25 = sphi 0, %s29
    %p26 = scmp.ge.s32.totalorder %s25, 4
    %s35 = sphi 0, %s37
    %s38 = sphi 0, %s35
    %s39 = sphi 0, %s38
    %s55 = sphi 0, %s39
    %s59 = sphi 0, %s59
    %s61 = sphi 0, %s59
    %s62 = sphi 0, %s61
    %s76 = sphi 0, %s62
    %s82 = sphi 0, %s84
    %s85 = sphi 0, %s82
    %s86 = sphi 0, %s85
    %s102 = sphi 0, %s86
    %s106 = sphi 0, %s106
    %s108 = sphi 0, %s106
    %s109 = sphi 0, %s108
    %s123 = sphi 0, %s109
    %s127 = sphi 0, %s127
    %s129 = sphi 0, %s127
    %s130 = sphi 0, %s129
    %s144 = sphi 0, %s130
    %s148 = sphi 0, %s148
    %s150 = sphi 0, %s148
    %s151 = sphi 0, %s150
    %s165 = sphi 0, %s151
    %s169 = sphi 0, %s169
    %s171 = sphi 0, %s169
    %s172 = sphi 0, %s171
    %s186 = sphi 0, %s172
    %s190 = sphi 0, %s190
    %s192 = sphi 0, %s190
    %s193 = sphi 0, %s192
    %s207 = sphi 0, %s193
    %s211 = sphi 0, %s211
    %s213 = sphi 0, %s211
    %s214 = sphi 0, %s213
    %s228 = sphi 0, %s214
    %s232 = sphi 0, %s232
    %s234 = sphi 0, %s232
    %s235 = sphi 0, %s234
    %s249 = sphi 0, %s235
    %s253 = sphi 0, %s253
    %s255 = sphi 0, %s253
    %s256 = sphi 0, %s255
    %s270 = sphi 0, %s256
    %s274 = sphi 0, %s274
    %s276 = sphi 0, %s274
    %s277 = sphi 0, %s276
    %s291 = sphi 0, %s277
    %s295 = sphi 0, %s295
    %s297 = sphi 0, %s295
    %s298 = sphi 0, %s297
    %s312 = sphi 0, %s298
    %s316 = sphi 0, %s316
    %s318 = sphi 0, %s316
    %s319 = sphi 0, %s318
    %s333 = sphi 0, %s319
    %s337 = sphi 0, %s337
    %s339 = sphi 0, %s337
    %s340 = sphi 0, %s339
    %s354 = sphi 0, %s340
    %s358 = sphi 0, %s358
    %s360 = sphi 0, %s358
    %s361 = sphi 0, %s360
    %s375 = sphi 0, %s361
    %s379 = sphi 0, %s379
    %s381 = sphi 0, %s379
    %s382 = sphi 0, %s381
    %s396 = sphi 0, %s382
    %s400 = sphi 0, %s400
    %s402 = sphi 0, %s400
    %s403 = sphi 0, %s402
    %s417 = sphi 0, %s403
    %s421 = sphi 0, %s421
    %s423 = sphi 0, %s421
    %s424 = sphi 0, %s423
    %s438 = sphi 0, %s424
    %s444 = sphi 0, %s446
    %s447 = sphi 0, %s444
    %s448 = sphi 0, %s447
    %s464 = sphi 0, %s448
  $region4: #{seq2seq_forward.7} parent=0 // loop_header_branch
    %28 = sbr.rel (%p26) target = $region8
  $region5: #{seq2seq_forward.7} parent=0 // loop_body
    %s30 = ssub.s32 %s25, 1
    %s31 = ssub.s32 %s25, 2
    %s32 = sadd.s32 %s25, 1
    %s33 = ssub.s32 %s25, %s32
    %p34 = scmp.eq.s32.totalorder %s33, 0
    %s36 = sadd.s32 %s35, 1
    %s37 = scalar_select %p34, %s35, %s36
    %p40 = pneg %p34
    %p41 = scmp.eq.s32.totalorder %s25, 1
    %p42 = por %p40, %p41
    %p43 = scmp.ne.s32.totalorder %s35, %s38
    %p44 = scmp.eq.s32.totalorder %s25, 0
    %p45 = por %p43, %p44
    %p46 = scmp.ne.s32.totalorder %s35, %s38
    %p47 = scmp.eq.s32.totalorder %s30, 1
    %p48 = por %p46, %p47
    %p49 = scmp.ne.s32.totalorder %s38, %s39
    %p50 = scmp.eq.s32.totalorder %s30, 0
    %p51 = por %p49, %p50
    %p52 = scmp.ne.s32.totalorder %s38, %s39
    %p53 = scmp.eq.s32.totalorder %s31, 1
    %p54 = por %p52, %p53
    %p56 = scmp.ne.s32.totalorder %s39, %s55
    %p57 = scmp.eq.s32.totalorder %s31, 0
    %p58 = por %p56, %p57
    %s60 = sadd.s32 %s59, 1
    %p63 = scmp.eq.s32.totalorder %s25, 1
    %p64 = scmp.ne.s32.totalorder %s59, %s61
    %p65 = scmp.eq.s32.totalorder %s25, 0
    %p66 = por %p64, %p65
    %p67 = scmp.ne.s32.totalorder %s59, %s61
    %p68 = scmp.eq.s32.totalorder %s30, 1
    %p69 = por %p67, %p68
    %p70 = scmp.ne.s32.totalorder %s61, %s62
    %p71 = scmp.eq.s32.totalorder %s30, 0
    %p72 = por %p70, %p71
    %p73 = scmp.ne.s32.totalorder %s61, %s62
    %p74 = scmp.eq.s32.totalorder %s31, 1
    %p75 = por %p73, %p74
    %p77 = scmp.ne.s32.totalorder %s62, %s76
    %p78 = scmp.eq.s32.totalorder %s31, 0
    %p79 = por %p77, %p78
    %s80 = ssub.s32 %s25, %s32
    %p81 = scmp.eq.s32.totalorder %s80, 0
    %s83 = sadd.s32 %s82, 1
    %s84 = scalar_select %p81, %s82, %s83
    %p87 = pneg %p81
    %p88 = scmp.eq.s32.totalorder %s25, 1
    %p89 = por %p87, %p88
    %p90 = scmp.ne.s32.totalorder %s82, %s85
    %p91 = scmp.eq.s32.totalorder %s25, 0
    %p92 = por %p90, %p91
    %p93 = scmp.ne.s32.totalorder %s82, %s85
    %p94 = scmp.eq.s32.totalorder %s30, 1
    %p95 = por %p93, %p94
    %p96 = scmp.ne.s32.totalorder %s85, %s86
    %p97 = scmp.eq.s32.totalorder %s30, 0
    %p98 = por %p96, %p97
    %p99 = scmp.ne.s32.totalorder %s85, %s86
    %p100 = scmp.eq.s32.totalorder %s31, 1
    %p101 = por %p99, %p100
    %p103 = scmp.ne.s32.totalorder %s86, %s102
    %p104 = scmp.eq.s32.totalorder %s31, 0
    %p105 = por %p103, %p104
    %s107 = sadd.s32 %s106, 1
    %p110 = scmp.eq.s32.totalorder %s25, 1
    %p111 = scmp.ne.s32.totalorder %s106, %s108
    %p112 = scmp.eq.s32.totalorder %s25, 0
    %p113 = por %p111, %p112
    %p114 = scmp.ne.s32.totalorder %s106, %s108
    %p115 = scmp.eq.s32.totalorder %s30, 1
    %p116 = por %p114, %p115
    %p117 = scmp.ne.s32.totalorder %s108, %s109
    %p118 = scmp.eq.s32.totalorder %s30, 0
    %p119 = por %p117, %p118
    %p120 = scmp.ne.s32.totalorder %s108, %s109
    %p121 = scmp.eq.s32.totalorder %s31, 1
    %p122 = por %p120, %p121
    %p124 = scmp.ne.s32.totalorder %s109, %s123
    %p125 = scmp.eq.s32.totalorder %s31, 0
    %p126 = por %p124, %p125
    %s128 = sadd.s32 %s127, 1
    %p131 = scmp.eq.s32.totalorder %s25, 1
    %p132 = scmp.ne.s32.totalorder %s127, %s129
    %p133 = scmp.eq.s32.totalorder %s25, 0
    %p134 = por %p132, %p133
    %p135 = scmp.ne.s32.totalorder %s127, %s129
    %p136 = scmp.eq.s32.totalorder %s30, 1
    %p137 = por %p135, %p136
    %p138 = scmp.ne.s32.totalorder %s129, %s130
    %p139 = scmp.eq.s32.totalorder %s30, 0
    %p140 = por %p138, %p139
    %p141 = scmp.ne.s32.totalorder %s129, %s130
    %p142 = scmp.eq.s32.totalorder %s31, 1
    %p143 = por %p141, %p142
    %p145 = scmp.ne.s32.totalorder %s130, %s144
    %p146 = scmp.eq.s32.totalorder %s31, 0
    %p147 = por %p145, %p146
    %s149 = sadd.s32 %s148, 1
    %p152 = scmp.eq.s32.totalorder %s25, 1
    %p153 = scmp.ne.s32.totalorder %s148, %s150
    %p154 = scmp.eq.s32.totalorder %s25, 0
    %p155 = por %p153, %p154
    %p156 = scmp.ne.s32.totalorder %s148, %s150
    %p157 = scmp.eq.s32.totalorder %s30, 1
    %p158 = por %p156, %p157
    %p159 = scmp.ne.s32.totalorder %s150, %s151
    %p160 = scmp.eq.s32.totalorder %s30, 0
    %p161 = por %p159, %p160
    %p162 = scmp.ne.s32.totalorder %s150, %s151
    %p163 = scmp.eq.s32.totalorder %s31, 1
    %p164 = por %p162, %p163
    %p166 = scmp.ne.s32.totalorder %s151, %s165
    %p167 = scmp.eq.s32.totalorder %s31, 0
    %p168 = por %p166, %p167
    %s170 = sadd.s32 %s169, 1
    %p173 = scmp.eq.s32.totalorder %s25, 1
    %p174 = scmp.ne.s32.totalorder %s169, %s171
    %p175 = scmp.eq.s32.totalorder %s25, 0
    %p176 = por %p174, %p175
    %p177 = scmp.ne.s32.totalorder %s169, %s171
    %p178 = scmp.eq.s32.totalorder %s30, 1
    %p179 = por %p177, %p178
    %p180 = scmp.ne.s32.totalorder %s171, %s172
    %p181 = scmp.eq.s32.totalorder %s30, 0
    %p182 = por %p180, %p181
    %p183 = scmp.ne.s32.totalorder %s171, %s172
    %p184 = scmp.eq.s32.totalorder %s31, 1
    %p185 = por %p183, %p184
    %p187 = scmp.ne.s32.totalorder %s172, %s186
    %p188 = scmp.eq.s32.totalorder %s31, 0
    %p189 = por %p187, %p188
    %s191 = sadd.s32 %s190, 1
    %p194 = scmp.eq.s32.totalorder %s25, 1
    %p195 = scmp.ne.s32.totalorder %s190, %s192
    %p196 = scmp.eq.s32.totalorder %s25, 0
    %p197 = por %p195, %p196
    %p198 = scmp.ne.s32.totalorder %s190, %s192
    %p199 = scmp.eq.s32.totalorder %s30, 1
    %p200 = por %p198, %p199
    %p201 = scmp.ne.s32.totalorder %s192, %s193
    %p202 = scmp.eq.s32.totalorder %s30, 0
    %p203 = por %p201, %p202
    %p204 = scmp.ne.s32.totalorder %s192, %s193
    %p205 = scmp.eq.s32.totalorder %s31, 1
    %p206 = por %p204, %p205
    %p208 = scmp.ne.s32.totalorder %s193, %s207
    %p209 = scmp.eq.s32.totalorder %s31, 0
    %p210 = por %p208, %p209
    %s212 = sadd.s32 %s211, 1
    %p215 = scmp.eq.s32.totalorder %s25, 1
    %p216 = scmp.ne.s32.totalorder %s211, %s213
    %p217 = scmp.eq.s32.totalorder %s25, 0
    %p218 = por %p216, %p217
    %p219 = scmp.ne.s32.totalorder %s211, %s213
    %p220 = scmp.eq.s32.totalorder %s30, 1
    %p221 = por %p219, %p220
    %p222 = scmp.ne.s32.totalorder %s213, %s214
    %p223 = scmp.eq.s32.totalorder %s30, 0
    %p224 = por %p222, %p223
    %p225 = scmp.ne.s32.totalorder %s213, %s214
    %p226 = scmp.eq.s32.totalorder %s31, 1
    %p227 = por %p225, %p226
    %p229 = scmp.ne.s32.totalorder %s214, %s228
    %p230 = scmp.eq.s32.totalorder %s31, 0
    %p231 = por %p229, %p230
    %s233 = sadd.s32 %s232, 1
    %p236 = scmp.eq.s32.totalorder %s25, 1
    %p237 = scmp.ne.s32.totalorder %s232, %s234
    %p238 = scmp.eq.s32.totalorder %s25, 0
    %p239 = por %p237, %p238
    %p240 = scmp.ne.s32.totalorder %s232, %s234
    %p241 = scmp.eq.s32.totalorder %s30, 1
    %p242 = por %p240, %p241
    %p243 = scmp.ne.s32.totalorder %s234, %s235
    %p244 = scmp.eq.s32.totalorder %s30, 0
    %p245 = por %p243, %p244
    %p246 = scmp.ne.s32.totalorder %s234, %s235
    %p247 = scmp.eq.s32.totalorder %s31, 1
    %p248 = por %p246, %p247
    %p250 = scmp.ne.s32.totalorder %s235, %s249
    %p251 = scmp.eq.s32.totalorder %s31, 0
    %p252 = por %p250, %p251
    %s254 = sadd.s32 %s253, 1
    %p257 = scmp.eq.s32.totalorder %s25, 1
    %p258 = scmp.ne.s32.totalorder %s253, %s255
    %p259 = scmp.eq.s32.totalorder %s25, 0
    %p260 = por %p258, %p259
    %p261 = scmp.ne.s32.totalorder %s253, %s255
    %p262 = scmp.eq.s32.totalorder %s30, 1
    %p263 = por %p261, %p262
    %p264 = scmp.ne.s32.totalorder %s255, %s256
    %p265 = scmp.eq.s32.totalorder %s30, 0
    %p266 = por %p264, %p265
    %p267 = scmp.ne.s32.totalorder %s255, %s256
    %p268 = scmp.eq.s32.totalorder %s31, 1
    %p269 = por %p267, %p268
    %p271 = scmp.ne.s32.totalorder %s256, %s270
    %p272 = scmp.eq.s32.totalorder %s31, 0
    %p273 = por %p271, %p272
    %s275 = sadd.s32 %s274, 1
    %p278 = scmp.eq.s32.totalorder %s25, 1
    %p279 = scmp.ne.s32.totalorder %s274, %s276
    %p280 = scmp.eq.s32.totalorder %s25, 0
    %p281 = por %p279, %p280
    %p282 = scmp.ne.s32.totalorder %s274, %s276
    %p283 = scmp.eq.s32.totalorder %s30, 1
    %p284 = por %p282, %p283
    %p285 = scmp.ne.s32.totalorder %s276, %s277
    %p286 = scmp.eq.s32.totalorder %s30, 0
    %p287 = por %p285, %p286
    %p288 = scmp.ne.s32.totalorder %s276, %s277
    %p289 = scmp.eq.s32.totalorder %s31, 1
    %p290 = por %p288, %p289
    %p292 = scmp.ne.s32.totalorder %s277, %s291
    %p293 = scmp.eq.s32.totalorder %s31, 0
    %p294 = por %p292, %p293
    %s296 = sadd.s32 %s295, 1
    %p299 = scmp.eq.s32.totalorder %s25, 1
    %p300 = scmp.ne.s32.totalorder %s295, %s297
    %p301 = scmp.eq.s32.totalorder %s25, 0
    %p302 = por %p300, %p301
    %p303 = scmp.ne.s32.totalorder %s295, %s297
    %p304 = scmp.eq.s32.totalorder %s30, 1
    %p305 = por %p303, %p304
    %p306 = scmp.ne.s32.totalorder %s297, %s298
    %p307 = scmp.eq.s32.totalorder %s30, 0
    %p308 = por %p306, %p307
    %p309 = scmp.ne.s32.totalorder %s297, %s298
    %p310 = scmp.eq.s32.totalorder %s31, 1
    %p311 = por %p309, %p310
    %p313 = scmp.ne.s32.totalorder %s298, %s312
    %p314 = scmp.eq.s32.totalorder %s31, 0
    %p315 = por %p313, %p314
    %s317 = sadd.s32 %s316, 1
    %p320 = scmp.eq.s32.totalorder %s25, 1
    %p321 = scmp.ne.s32.totalorder %s316, %s318
    %p322 = scmp.eq.s32.totalorder %s25, 0
    %p323 = por %p321, %p322
    %p324 = scmp.ne.s32.totalorder %s316, %s318
    %p325 = scmp.eq.s32.totalorder %s30, 1
    %p326 = por %p324, %p325
    %p327 = scmp.ne.s32.totalorder %s318, %s319
    %p328 = scmp.eq.s32.totalorder %s30, 0
    %p329 = por %p327, %p328
    %p330 = scmp.ne.s32.totalorder %s318, %s319
    %p331 = scmp.eq.s32.totalorder %s31, 1
    %p332 = por %p330, %p331
    %p334 = scmp.ne.s32.totalorder %s319, %s333
    %p335 = scmp.eq.s32.totalorder %s31, 0
    %p336 = por %p334, %p335
    %s338 = sadd.s32 %s337, 1
    %p341 = scmp.eq.s32.totalorder %s25, 1
    %p342 = scmp.ne.s32.totalorder %s337, %s339
    %p343 = scmp.eq.s32.totalorder %s25, 0
    %p344 = por %p342, %p343
    %p345 = scmp.ne.s32.totalorder %s337, %s339
    %p346 = scmp.eq.s32.totalorder %s30, 1
    %p347 = por %p345, %p346
    %p348 = scmp.ne.s32.totalorder %s339, %s340
    %p349 = scmp.eq.s32.totalorder %s30, 0
    %p350 = por %p348, %p349
    %p351 = scmp.ne.s32.totalorder %s339, %s340
    %p352 = scmp.eq.s32.totalorder %s31, 1
    %p353 = por %p351, %p352
    %p355 = scmp.ne.s32.totalorder %s340, %s354
    %p356 = scmp.eq.s32.totalorder %s31, 0
    %p357 = por %p355, %p356
    %s359 = sadd.s32 %s358, 1
    %p362 = scmp.eq.s32.totalorder %s25, 1
    %p363 = scmp.ne.s32.totalorder %s358, %s360
    %p364 = scmp.eq.s32.totalorder %s25, 0
    %p365 = por %p363, %p364
    %p366 = scmp.ne.s32.totalorder %s358, %s360
    %p367 = scmp.eq.s32.totalorder %s30, 1
    %p368 = por %p366, %p367
    %p369 = scmp.ne.s32.totalorder %s360, %s361
    %p370 = scmp.eq.s32.totalorder %s30, 0
    %p371 = por %p369, %p370
    %p372 = scmp.ne.s32.totalorder %s360, %s361
    %p373 = scmp.eq.s32.totalorder %s31, 1
    %p374 = por %p372, %p373
    %p376 = scmp.ne.s32.totalorder %s361, %s375
    %p377 = scmp.eq.s32.totalorder %s31, 0
    %p378 = por %p376, %p377
    %s380 = sadd.s32 %s379, 1
    %p383 = scmp.eq.s32.totalorder %s25, 1
    %p384 = scmp.ne.s32.totalorder %s379, %s381
    %p385 = scmp.eq.s32.totalorder %s25, 0
    %p386 = por %p384, %p385
    %p387 = scmp.ne.s32.totalorder %s379, %s381
    %p388 = scmp.eq.s32.totalorder %s30, 1
    %p389 = por %p387, %p388
    %p390 = scmp.ne.s32.totalorder %s381, %s382
    %p391 = scmp.eq.s32.totalorder %s30, 0
    %p392 = por %p390, %p391
    %p393 = scmp.ne.s32.totalorder %s381, %s382
    %p394 = scmp.eq.s32.totalorder %s31, 1
    %p395 = por %p393, %p394
    %p397 = scmp.ne.s32.totalorder %s382, %s396
    %p398 = scmp.eq.s32.totalorder %s31, 0
    %p399 = por %p397, %p398
    %s401 = sadd.s32 %s400, 1
    %p404 = scmp.eq.s32.totalorder %s25, 1
    %p405 = scmp.ne.s32.totalorder %s400, %s402
    %p406 = scmp.eq.s32.totalorder %s25, 0
    %p407 = por %p405, %p406
    %p408 = scmp.ne.s32.totalorder %s400, %s402
    %p409 = scmp.eq.s32.totalorder %s30, 1
    %p410 = por %p408, %p409
    %p411 = scmp.ne.s32.totalorder %s402, %s403
    %p412 = scmp.eq.s32.totalorder %s30, 0
    %p413 = por %p411, %p412
    %p414 = scmp.ne.s32.totalorder %s402, %s403
    %p415 = scmp.eq.s32.totalorder %s31, 1
    %p416 = por %p414, %p415
    %p418 = scmp.ne.s32.totalorder %s403, %s417
    %p419 = scmp.eq.s32.totalorder %s31, 0
    %p420 = por %p418, %p419
    %s422 = sadd.s32 %s421, 1
    %p425 = scmp.eq.s32.totalorder %s25, 1
    %p426 = scmp.ne.s32.totalorder %s421, %s423
    %p427 = scmp.eq.s32.totalorder %s25, 0
    %p428 = por %p426, %p427
    %p429 = scmp.ne.s32.totalorder %s421, %s423
    %p430 = scmp.eq.s32.totalorder %s30, 1
    %p431 = por %p429, %p430
    %p432 = scmp.ne.s32.totalorder %s423, %s424
    %p433 = scmp.eq.s32.totalorder %s30, 0
    %p434 = por %p432, %p433
    %p435 = scmp.ne.s32.totalorder %s423, %s424
    %p436 = scmp.eq.s32.totalorder %s31, 1
    %p437 = por %p435, %p436
    %p439 = scmp.ne.s32.totalorder %s424, %s438
    %p440 = scmp.eq.s32.totalorder %s31, 0
    %p441 = por %p439, %p440
    %s442 = ssub.s32 %s25, %s32
    %p443 = scmp.eq.s32.totalorder %s442, 0
    %s445 = sadd.s32 %s444, 1
    %s446 = scalar_select %p443, %s444, %s445
    %p449 = pneg %p443
    %p450 = scmp.eq.s32.totalorder %s25, 1
    %p451 = por %p449, %p450
    %p452 = scmp.ne.s32.totalorder %s444, %s447
    %p453 = scmp.eq.s32.totalorder %s25, 0
    %p454 = por %p452, %p453
    %p455 = scmp.ne.s32.totalorder %s444, %s447
    %p456 = scmp.eq.s32.totalorder %s30, 1
    %p457 = por %p455, %p456
    %p458 = scmp.ne.s32.totalorder %s447, %s448
    %p459 = scmp.eq.s32.totalorder %s30, 0
    %p460 = por %p458, %p459
    %p461 = scmp.ne.s32.totalorder %s447, %s448
    %p462 = scmp.eq.s32.totalorder %s31, 1
    %p463 = por %p461, %p462
    %p465 = scmp.ne.s32.totalorder %s448, %s464
    %p466 = scmp.eq.s32.totalorder %s31, 0
    %p467 = por %p465, %p466
    %p468 = scmp.le.s32.totalorder 1, %s25
    %p469 = scmp.lt.s32.totalorder %s25, 3
    %p470 = pnand %p468, %p469
    %p471 = pneg %p470
    // Predicated region
    $region9: #{seq2seq_forward.7} parent=5 // pred_check
      _
    $region10: #{seq2seq_forward.7} parent=5 // pred_check_branch
      %473 = sbr.rel (%p470) target = $region12
    $region11: #{seq2seq_forward.7} parent=5 // pred_region
      %s474 = ssub.s32 %s25, 1
      // Predicated region
      $region13: #{seq2seq_forward.7} parent=11 // pred_check
        %p475 = pneg %p72
      $region14: #{seq2seq_forward.7} parent=11 // pred_check_branch
        %477 = sbr.rel (%p475) target = $region16
      $region15: #{seq2seq_forward.7} parent=11 // pred_region
        _
      $region16: #{seq2seq_forward.7} parent=11 // pred_fallthru
        _
      // Predicated region
      $region17: #{seq2seq_forward.7} parent=11 // pred_check
        %p478 = pneg %p119
      $region18: #{seq2seq_forward.7} parent=11 // pred_check_branch
        %480 = sbr.rel (%p478) target = $region20
      $region19: #{seq2seq_forward.7} parent=11 // pred_region
        _
      $region20: #{seq2seq_forward.7} parent=11 // pred_fallthru
        _
      // Predicated region
      $region21: #{seq2seq_forward.7} parent=11 // pred_check
        %p481 = pneg %p140
      $region22: #{seq2seq_forward.7} parent=11 // pred_check_branch
        %483 = sbr.rel (%p481) target = $region24
      $region23: #{seq2seq_forward.7} parent=11 // pred_region
        _
      $region24: #{seq2seq_forward.7} parent=11 // pred_fallthru
        _
      // Predicated region
      $region25: #{seq2seq_forward.7} parent=11 // pred_check
        %p484 = pneg %p161
      $region26: #{seq2seq_forward.7} parent=11 // pred_check_branch
        %486 = sbr.rel (%p484) target = $region28
      $region27: #{seq2seq_forward.7} parent=11 // pred_region
        _
      $region28: #{seq2seq_forward.7} parent=11 // pred_fallthru
        _
      // Predicated region
      $region29: #{seq2seq_forward.7} parent=11 // pred_check
        %p487 = pneg %p182
      $region30: #{seq2seq_forward.7} parent=11 // pred_check_branch
        %489 = sbr.rel (%p487) target = $region32
      $region31: #{seq2seq_forward.7} parent=11 // pred_region
        _
      $region32: #{seq2seq_forward.7} parent=11 // pred_fallthru
        _
      // Predicated region
      $region33: #{seq2seq_forward.7} parent=11 // pred_check
        %p490 = pneg %p203
      $region34: #{seq2seq_forward.7} parent=11 // pred_check_branch
        %492 = sbr.rel (%p490) target = $region36
      $region35: #{seq2seq_forward.7} parent=11 // pred_region
        _
      $region36: #{seq2seq_forward.7} parent=11 // pred_fallthru
        _
      // Predicated region
      $region37: #{seq2seq_forward.7} parent=11 // pred_check
        %p493 = pneg %p224
      $region38: #{seq2seq_forward.7} parent=11 // pred_check_branch
        %495 = sbr.rel (%p493) target = $region40
      $region39: #{seq2seq_forward.7} parent=11 // pred_region
        _
      $region40: #{seq2seq_forward.7} parent=11 // pred_fallthru
        _
      // Predicated region
      $region41: #{seq2seq_forward.7} parent=11 // pred_check
        %p496 = pneg %p245
      $region42: #{seq2seq_forward.7} parent=11 // pred_check_branch
        %498 = sbr.rel (%p496) target = $region44
      $region43: #{seq2seq_forward.7} parent=11 // pred_region
        _
      $region44: #{seq2seq_forward.7} parent=11 // pred_fallthru
        _
      // Predicated region
      $region45: #{seq2seq_forward.7} parent=11 // pred_check
        %p499 = pneg %p266
      $region46: #{seq2seq_forward.7} parent=11 // pred_check_branch
        %501 = sbr.rel (%p499) target = $region48
      $region47: #{seq2seq_forward.7} parent=11 // pred_region
        _
      $region48: #{seq2seq_forward.7} parent=11 // pred_fallthru
        _
      // Predicated region
      $region49: #{seq2seq_forward.7} parent=11 // pred_check
        %p502 = pneg %p287
      $region50: #{seq2seq_forward.7} parent=11 // pred_check_branch
        %504 = sbr.rel (%p502) target = $region52
      $region51: #{seq2seq_forward.7} parent=11 // pred_region
        _
      $region52: #{seq2seq_forward.7} parent=11 // pred_fallthru
        _
      // Predicated region
      $region53: #{seq2seq_forward.7} parent=11 // pred_check
        %p505 = pneg %p308
      $region54: #{seq2seq_forward.7} parent=11 // pred_check_branch
        %507 = sbr.rel (%p505) target = $region56
      $region55: #{seq2seq_forward.7} parent=11 // pred_region
        _
      $region56: #{seq2seq_forward.7} parent=11 // pred_fallthru
        _
      // Predicated region
      $region57: #{seq2seq_forward.7} parent=11 // pred_check
        %p508 = pneg %p329
      $region58: #{seq2seq_forward.7} parent=11 // pred_check_branch
        %510 = sbr.rel (%p508) target = $region60
      $region59: #{seq2seq_forward.7} parent=11 // pred_region
        _
      $region60: #{seq2seq_forward.7} parent=11 // pred_fallthru
        _
      // Predicated region
      $region61: #{seq2seq_forward.7} parent=11 // pred_check
        %p511 = pneg %p350
      $region62: #{seq2seq_forward.7} parent=11 // pred_check_branch
        %513 = sbr.rel (%p511) target = $region64
      $region63: #{seq2seq_forward.7} parent=11 // pred_region
        _
      $region64: #{seq2seq_forward.7} parent=11 // pred_fallthru
        _
      // Predicated region
      $region65: #{seq2seq_forward.7} parent=11 // pred_check
        %p514 = pneg %p371
      $region66: #{seq2seq_forward.7} parent=11 // pred_check_branch
        %516 = sbr.rel (%p514) target = $region68
      $region67: #{seq2seq_forward.7} parent=11 // pred_region
        _
      $region68: #{seq2seq_forward.7} parent=11 // pred_fallthru
        _
      // Predicated region
      $region69: #{seq2seq_forward.7} parent=11 // pred_check
        %p517 = pneg %p392
      $region70: #{seq2seq_forward.7} parent=11 // pred_check_branch
        %519 = sbr.rel (%p517) target = $region72
      $region71: #{seq2seq_forward.7} parent=11 // pred_region
        _
      $region72: #{seq2seq_forward.7} parent=11 // pred_fallthru
        _
      // Predicated region
      $region73: #{seq2seq_forward.7} parent=11 // pred_check
        %p520 = pneg %p413
      $region74: #{seq2seq_forward.7} parent=11 // pred_check_branch
        %522 = sbr.rel (%p520) target = $region76
      $region75: #{seq2seq_forward.7} parent=11 // pred_region
        _
      $region76: #{seq2seq_forward.7} parent=11 // pred_fallthru
        _
      // Predicated region
      $region77: #{seq2seq_forward.7} parent=11 // pred_check
        %p523 = pneg %p434
      $region78: #{seq2seq_forward.7} parent=11 // pred_check_branch
        %525 = sbr.rel (%p523) target = $region80
      $region79: #{seq2seq_forward.7} parent=11 // pred_region
        _
      $region80: #{seq2seq_forward.7} parent=11 // pred_fallthru
        _
    $region12: #{seq2seq_forward.7} parent=5 // pred_fallthru
      _
    %p526 = scmp.lt.s32.totalorder %s25, 2
    // Predicated region
    $region81: #{seq2seq_forward.7} parent=5 // pred_check
      %p527 = pneg %p526
    $region82: #{seq2seq_forward.7} parent=5 // pred_check_branch
      %529 = sbr.rel (%p527) target = $region84
    $region83: #{seq2seq_forward.7} parent=5 // pred_region
      // Predicated region
      $region85: #{seq2seq_forward.7} parent=83 // pred_check
        %p530 = pneg %p45
      $region86: #{seq2seq_forward.7} parent=83 // pred_check_branch
        %532 = sbr.rel (%p530) target = $region88
      $region87: #{seq2seq_forward.7} parent=83 // pred_region
        %p533 = scmp.lt.s32.totalorder %s25, 1
        %s534 = scalar_select %p533, %s25, 1
        %s535 = smul.addr %s534, 8
        %s536 = scalar_lea.vmem %s0, %s535
      $region88: #{seq2seq_forward.7} parent=83 // pred_fallthru
        _
      // Predicated region
      $region89: #{seq2seq_forward.7} parent=83 // pred_check
        %p537 = pneg %p92
      $region90: #{seq2seq_forward.7} parent=83 // pred_check_branch
        %539 = sbr.rel (%p537) target = $region92
      $region91: #{seq2seq_forward.7} parent=83 // pred_region
        %p540 = scmp.lt.s32.totalorder %s25, 1
        %s541 = scalar_select %p540, %s25, 1
        %s542 = scalar_lea.vmem %s2, %s541
      $region92: #{seq2seq_forward.7} parent=83 // pred_fallthru
        _
    $region84: #{seq2seq_forward.7} parent=5 // pred_fallthru
      _
    %p543 = scmp.le.s32.totalorder 1, %s25
    %p544 = scmp.lt.s32.totalorder %s25, 3
    %p545 = pnand %p543, %p544
    %p546 = pneg %p545
    // Predicated region
    $region93: #{seq2seq_forward.7} parent=5 // pred_check
      _
    $region94: #{seq2seq_forward.7} parent=5 // pred_check_branch
      %548 = sbr.rel (%p545) target = $region96
    $region95: #{seq2seq_forward.7} parent=5 // pred_region
      %s549 = ssub.s32 %s25, 1
      %p550 = scmp.lt.s32.totalorder %s30, 1
      %s551 = scalar_select %p550, %s30, 1
      %s552 = smul.addr %s551, 8
      %s553 = scalar_lea.vmem %s0, %s552
      %p554 = pneg %p51
      %p555 = pneg %p48
      %p556 = pneg %p72
      %p557 = pneg %p69
      %p558 = scmp.lt.s32.totalorder %s30, 1
      %s559 = scalar_select %p558, %s30, 1
      %s560 = scalar_lea.vmem %s2, %s559
      %p561 = pneg %p98
      %p562 = pneg %p95
      %p563 = pneg %p119
      %p564 = pneg %p116
      %p565 = pneg %p140
      %p566 = pneg %p137
      %p567 = pneg %p161
      %p568 = pneg %p158
      %p569 = pneg %p182
      %p570 = pneg %p179
      %p571 = pneg %p203
      %p572 = pneg %p200
      %p573 = pneg %p224
      %p574 = pneg %p221
      %p575 = pneg %p245
      %p576 = pneg %p242
      %p577 = pneg %p266
      %p578 = pneg %p263
      %p579 = pneg %p287
      %p580 = pneg %p284
      %p581 = pneg %p308
      %p582 = pneg %p305
      %p583 = pneg %p329
      %p584 = pneg %p326
      %p585 = pneg %p350
      %p586 = pneg %p347
      %p587 = pneg %p371
      %p588 = pneg %p368
      %p589 = pneg %p392
      %p590 = pneg %p389
      %p591 = pneg %p413
      %p592 = pneg %p410
      %p593 = pneg %p434
      %p594 = pneg %p431
      %p595 = pneg %p460
      %p596 = pneg %p457
      %p597 = scmp.lt.s32.totalorder %s30, 1
      %s598 = scalar_select %p597, %s30, 1
      %s599 = smul.addr %s598, 8
      %s600 = scalar_lea.vmem %s19, %s599
      %p601 = scmp.lt.s32.totalorder %s30, 1
      %s602 = scalar_select %p601, %s30, 1
      %s603 = smul.addr %s602, 8
      %s604 = scalar_lea.vmem %s0, %s603
      %p605 = scmp.lt.s32.totalorder %s30, 1
      %s606 = scalar_select %p605, %s30, 1
      %s607 = scalar_lea.vmem %s2, %s606
      %p608 = scmp.lt.s32.totalorder %s30, 1
      %s609 = scalar_select %p608, %s30, 1
      %s610 = smul.addr %s609, 8
      %s611 = scalar_lea.vmem %s19, %s610
      %v613 = vld [vmem:[%s604] sm:$0xff]
      %v614 = vld [vmem:[%s1] sm:$0xff]
      %v615 = vld [vmem:[%s607] sm:$0x1]
      %v617 = vlaneseq
      %v618 = vshrl.u32 %v617, 7
      %v619 = vsub.s32 0, %v618
      %v620 = vrot.slane %v615, %v619
      %v622 = vadd.f32 %v614, %v620
      %v623 = vpack.c.bf16 %v613, %v613
      %v624 = vld [vmem:[%s3] sm:$0xf]
      %v625 = vld [vmem:[%s3 + $0x4] sm:$0xf]
      %v626 = vld [vmem:[%s3 + $0x8] sm:$0xf]
      %v627 = vld [vmem:[%s3 + $0xc] sm:$0xf]
      %v628 = vld [vmem:[%s4] sm:$0x1]
      %v630 = vlaneseq
      %v631 = vshrl.u32 %v630, 7
      %v632 = vsub.s32 0, %v631
      %v633 = vrot.slane %v628, %v632
      %v639 = vunpack.c.l.b16 %v624
      %v640 = vunpack.c.l.b16 %v625
      %v641 = vunpack.c.l.b16 %v626
      %v642 = vunpack.c.l.b16 %v627
      %v643 = vpack.c.b16 %v640, %v639
      %v644 = vpack.c.b16 %v642, %v641
      %vm647 = vcmask 261120
      %v649 = vsel %vm647, %v623, 0
      %651 = vmatprep.subr.bf16.mxu0 0
      %652 = vmatpush1.bf16.msra.mxu0 %v643
      %653 = vmatprep.subr.bf16.mxu0 0
      %654 = vmatpush1.bf16.msra.mxu0 %v644
      %655 = vmatprep.subr.bf16.mxu0 0
      %656 = vmatpush1.bf16.msra.mxu0 0
      %657 = vmatprep.subr.bf16.mxu0 0
      %658 = vmatpush1.bf16.msra.mxu0 0
      %659 = vmatprep.subr.bf16.mxu0 0
      %660 = vmatpush1.bf16.msra.mxu0 0
      %661 = vmatprep.subr.bf16.mxu0 0
      %662 = vmatpush1.bf16.msra.mxu0 0
      %663 = vmatprep.subr.bf16.mxu0 0
      %664 = vmatpush1.bf16.msra.mxu0 0
      %665 = vmatprep.subr.bf16.mxu0 0
      %666 = vmatpush1.bf16.msra.mxu0 0
      %667 = vmatprep.subr.bf16.mxu0 0
      %668 = vmatpush1.bf16.msra.mxu0 0
      %669 = vmatprep.subr.bf16.mxu0 0
      %670 = vmatpush1.bf16.msra.mxu0 0
      %671 = vmatprep.subr.bf16.mxu0 0
      %672 = vmatpush1.bf16.msra.mxu0 0
      %673 = vmatprep.subr.bf16.mxu0 0
      %674 = vmatpush1.bf16.msra.mxu0 0
      %675 = vmatprep.subr.bf16.mxu0 0
      %676 = vmatpush1.bf16.msra.mxu0 0
      %677 = vmatprep.subr.bf16.mxu0 0
      %678 = vmatpush1.bf16.msra.mxu0 0
      %679 = vmatprep.subr.bf16.mxu0 0
      %680 = vmatpush1.bf16.msra.mxu0 0
      %681 = vmatprep.subr.bf16.mxu0 0
      %682 = vmatpush1.bf16.msra.mxu0 0
      %683 = vmatprep.mubr.bf16.mxu0 0
      %684 = vmatmul.mubr.bf16.gmra.mrb[0].mxu0 %v649
      %v685 = vpop.f32.mrb[0].mxu0
      %v686 = vadd.f32 %v633, %v685
      %v687 = vpop.f32.mrb[0].mxu0
      %v688 = vpop.f32.mrb[0].mxu0
      %v689 = vpop.f32.mrb[0].mxu0
      %690 = vdwg.mxu0
      %v691 = vld [vmem:[%s5] sm:$0xf]
      %v692 = vld [vmem:[%s5 + $0x4] sm:$0xf]
      %v693 = vld [vmem:[%s5 + $0x8] sm:$0xf]
      %v694 = vld [vmem:[%s5 + $0xc] sm:$0xf]
      %v695 = vld [vmem:[%s6] sm:$0x1]
      %v697 = vlaneseq
      %v698 = vshrl.u32 %v697, 7
      %v699 = vsub.s32 0, %v698
      %v700 = vrot.slane %v695, %v699
      %v706 = vunpack.c.l.b16 %v691
      %v707 = vunpack.c.l.b16 %v692
      %v708 = vunpack.c.l.b16 %v693
      %v709 = vunpack.c.l.b16 %v694
      %v710 = vpack.c.b16 %v707, %v706
      %v711 = vpack.c.b16 %v709, %v708
      %714 = vmatprep.subr.bf16.mxu0 0
      %715 = vmatpush1.bf16.msra.mxu0 %v710
      %716 = vmatprep.subr.bf16.mxu0 0
      %717 = vmatpush1.bf16.msra.mxu0 %v711
      %718 = vmatprep.subr.bf16.mxu0 0
      %719 = vmatpush1.bf16.msra.mxu0 0
      %720 = vmatprep.subr.bf16.mxu0 0
      %721 = vmatpush1.bf16.msra.mxu0 0
      %722 = vmatprep.subr.bf16.mxu0 0
      %723 = vmatpush1.bf16.msra.mxu0 0
      %724 = vmatprep.subr.bf16.mxu0 0
      %725 = vmatpush1.bf16.msra.mxu0 0
      %726 = vmatprep.subr.bf16.mxu0 0
      %727 = vmatpush1.bf16.msra.mxu0 0
      %728 = vmatprep.subr.bf16.mxu0 0
      %729 = vmatpush1.bf16.msra.mxu0 0
      %730 = vmatprep.subr.bf16.mxu0 0
      %731 = vmatpush1.bf16.msra.mxu0 0
      %732 = vmatprep.subr.bf16.mxu0 0
      %733 = vmatpush1.bf16.msra.mxu0 0
      %734 = vmatprep.subr.bf16.mxu0 0
      %735 = vmatpush1.bf16.msra.mxu0 0
      %736 = vmatprep.subr.bf16.mxu0 0
      %737 = vmatpush1.bf16.msra.mxu0 0
      %738 = vmatprep.subr.bf16.mxu0 0
      %739 = vmatpush1.bf16.msra.mxu0 0
      %740 = vmatprep.subr.bf16.mxu0 0
      %741 = vmatpush1.bf16.msra.mxu0 0
      %742 = vmatprep.subr.bf16.mxu0 0
      %743 = vmatpush1.bf16.msra.mxu0 0
      %744 = vmatprep.subr.bf16.mxu0 0
      %745 = vmatpush1.bf16.msra.mxu0 0
      %746 = vmatprep.mubr.bf16.mxu0 0
      %747 = vmatmul.mubr.bf16.gmra.mrb[0].mxu0 %v649
      %v748 = vpop.f32.mrb[0].mxu0
      %v749 = vadd.f32 %v700, %v748
      %v750 = vpop.f32.mrb[0].mxu0
      %v751 = vpop.f32.mrb[0].mxu0
      %v752 = vpop.f32.mrb[0].mxu0
      %753 = vdwg.mxu0
      %v754 = vld [vmem:[%s7] sm:$0xf]
      %v755 = vld [vmem:[%s7 + $0x4] sm:$0xf]
      %v756 = vld [vmem:[%s7 + $0x8] sm:$0xf]
      %v757 = vld [vmem:[%s7 + $0xc] sm:$0xf]
      %v758 = vld [vmem:[%s8] sm:$0x1]
      %v760 = vlaneseq
      %v761 = vshrl.u32 %v760, 7
      %v762 = vsub.s32 0, %v761
      %v763 = vrot.slane %v758, %v762
      %v769 = vunpack.c.l.b16 %v754
      %v770 = vunpack.c.l.b16 %v755
      %v771 = vunpack.c.l.b16 %v756
      %v772 = vunpack.c.l.b16 %v757
      %v773 = vpack.c.b16 %v770, %v769
      %v774 = vpack.c.b16 %v772, %v771
      %777 = vmatprep.subr.bf16.mxu0 0
      %778 = vmatpush1.bf16.msra.mxu0 %v773
      %779 = vmatprep.subr.bf16.mxu0 0
      %780 = vmatpush1.bf16.msra.mxu0 %v774
      %781 = vmatprep.subr.bf16.mxu0 0
      %782 = vmatpush1.bf16.msra.mxu0 0
      %783 = vmatprep.subr.bf16.mxu0 0
      %784 = vmatpush1.bf16.msra.mxu0 0
      %785 = vmatprep.subr.bf16.mxu0 0
      %786 = vmatpush1.bf16.msra.mxu0 0
      %787 = vmatprep.subr.bf16.mxu0 0
      %788 = vmatpush1.bf16.msra.mxu0 0
      %789 = vmatprep.subr.bf16.mxu0 0
      %790 = vmatpush1.bf16.msra.mxu0 0
      %791 = vmatprep.subr.bf16.mxu0 0
      %792 = vmatpush1.bf16.msra.mxu0 0
      %793 = vmatprep.subr.bf16.mxu0 0
      %794 = vmatpush1.bf16.msra.mxu0 0
      %795 = vmatprep.subr.bf16.mxu0 0
      %796 = vmatpush1.bf16.msra.mxu0 0
      %797 = vmatprep.subr.bf16.mxu0 0
      %798 = vmatpush1.bf16.msra.mxu0 0
      %799 = vmatprep.subr.bf16.mxu0 0
      %800 = vmatpush1.bf16.msra.mxu0 0
      %801 = vmatprep.subr.bf16.mxu0 0
      %802 = vmatpush1.bf16.msra.mxu0 0
      %803 = vmatprep.subr.bf16.mxu0 0
      %804 = vmatpush1.bf16.msra.mxu0 0
      %805 = vmatprep.subr.bf16.mxu0 0
      %806 = vmatpush1.bf16.msra.mxu0 0
      %807 = vmatprep.subr.bf16.mxu0 0
      %808 = vmatpush1.bf16.msra.mxu0 0
      %809 = vmatprep.mubr.bf16.mxu0 0
      %810 = vmatmul.mubr.bf16.gmra.mrb[0].mxu0 %v649
      %v811 = vpop.f32.mrb[0].mxu0
      %v812 = vadd.f32 %v763, %v811
      %v813 = vpop.f32.mrb[0].mxu0
      %v814 = vpop.f32.mrb[0].mxu0
      %v815 = vpop.f32.mrb[0].mxu0
      %816 = vdwg.mxu0
      %vm817 = vcmask 64512
      %v819 = vsel %vm817, %v686, 0
      %v822 = vsel %vm817, %v749, 0
      %824 = vmatprep.subr.mxu0 0.0
      %825 = vmatpush1.xpose.msra.mxu0 %v822
      %826 = vmatprep.subr.mxu0 0.0
      %827 = vmatpush1.xpose.msra.mxu0 0.0
      %828 = vmatprep.subr.mxu0 0.0
      %829 = vmatpush1.xpose.msra.mxu0 0.0
      %830 = vmatprep.subr.mxu0 0.0
      %831 = vmatpush1.xpose.msra.mxu0 0.0
      %832 = vmatprep.subr.mxu0 0.0
      %833 = vmatpush1.xpose.msra.mxu0 0.0
      %834 = vmatprep.subr.mxu0 0.0
      %835 = vmatpush1.xpose.msra.mxu0 0.0
      %836 = vmatprep.subr.mxu0 0.0
      %837 = vmatpush1.xpose.msra.mxu0 0.0
      %838 = vmatprep.subr.mxu0 0.0
      %839 = vmatpush1.xpose.msra.mxu0 0.0
      %840 = vmatprep.subr.mxu0 0.0
      %841 = vmatpush1.xpose.msra.mxu0 0.0
      %842 = vmatprep.subr.mxu0 0.0
      %843 = vmatpush1.xpose.msra.mxu0 0.0
      %844 = vmatprep.subr.mxu0 0.0
      %845 = vmatpush1.xpose.msra.mxu0 0.0
      %846 = vmatprep.subr.mxu0 0.0
      %847 = vmatpush1.xpose.msra.mxu0 0.0
      %848 = vmatprep.subr.mxu0 0.0
      %849 = vmatpush1.xpose.msra.mxu0 0.0
      %850 = vmatprep.subr.mxu0 0.0
      %851 = vmatpush1.xpose.msra.mxu0 0.0
      %852 = vmatprep.subr.mxu0 0.0
      %853 = vmatpush1.xpose.msra.mxu0 0.0
      %854 = vmatprep.subr.mxu0 0.0
      %855 = vmatpush1.xpose.msra.mxu0 0.0
      %856 = vmatprep.subr.mxu0 0.0
      %857 = vmatpush1.xpose.msra.mxu0 0.0
      %858 = vmatprep.subr.mxu0 0.0
      %859 = vmatpush1.xpose.msra.mxu0 0.0
      %860 = vmatprep.subr.mxu0 0.0
      %861 = vmatpush1.xpose.msra.mxu0 0.0
      %862 = vmatprep.subr.mxu0 0.0
      %863 = vmatpush1.xpose.msra.mxu0 0.0
      %864 = vmatprep.subr.mxu0 0.0
      %865 = vmatpush1.xpose.msra.mxu0 0.0
      %866 = vmatprep.subr.mxu0 0.0
      %867 = vmatpush1.xpose.msra.mxu0 0.0
      %868 = vmatprep.subr.mxu0 0.0
      %869 = vmatpush1.xpose.msra.mxu0 0.0
      %870 = vmatprep.subr.mxu0 0.0
      %871 = vmatpush1.xpose.msra.mxu0 0.0
      %872 = vmatprep.subr.mxu0 0.0
      %873 = vmatpush1.xpose.msra.mxu0 0.0
      %874 = vmatprep.subr.mxu0 0.0
      %875 = vmatpush1.xpose.msra.mxu0 0.0
      %876 = vmatprep.subr.mxu0 0.0
      %877 = vmatpush1.xpose.msra.mxu0 0.0
      %878 = vmatprep.subr.mxu0 0.0
      %879 = vmatpush1.xpose.msra.mxu0 0.0
      %880 = vmatprep.subr.mxu0 0.0
      %881 = vmatpush1.xpose.msra.mxu0 0.0
      %882 = vmatprep.subr.mxu0 0.0
      %883 = vmatpush1.xpose.msra.mxu0 0.0
      %884 = vmatprep.subr.mxu0 0.0
      %885 = vmatpush1.xpose.msra.mxu0 0.0
      %886 = vmatprep.subr.mxu0 0.0
      %887 = vmatpush1.xpose.msra.mxu0 0.0
      %888 = vmatprep.mubr.f32.mxu0 0.0
      %889 = vmatmul.mubr.f32.gmra.mrb[0].mxu0 %v819
      %v890 = vpop.f32.mrb[0].mxu0
      %v891 = vadd.f32 0.0, %v890
      %v892 = vpop.f32.mrb[0].mxu0
      %893 = vdwg.mxu0
      %v894 = vmul.f32 %v891, 0.35355338
      %v895 = vadd.f32 %v894, %v622
      %v896 = vsel %vm817, %v895, -inf
      %897 = vmax.xlane.f32.xlu0 %v896
      %v898 = vpop.xlane.xlu0 %897
      %v899 = vsub.f32 %v895, %v898
      %v900 = vmul.f32 %v899, 1.442695
      %v901 = vpow.pop %v900
      %v902 = vsel %vm817, %v901, 0.0
      %903 = vadd.xlane.f32.xlu0 %v902
      %v904 = vpop.xlane.xlu0 %903
      %v905 = vrcp.pop %v904
      %v906 = vmul.f32 %v901, %v905
      %v908 = vsel %vm817, %v906, 0
      %910 = vmatprep.subr.mxu0 0.0
      %911 = vmatpush1.msra.mxu0 %v812
      %912 = vmatprep.subr.mxu0 0.0
      %913 = vmatpush1.msra.mxu0 0.0
      %914 = vmatprep.subr.mxu0 0.0
      %915 = vmatpush1.msra.mxu0 0.0
      %916 = vmatprep.subr.mxu0 0.0
      %917 = vmatpush1.msra.mxu0 0.0
      %918 = vmatprep.subr.mxu0 0.0
      %919 = vmatpush1.msra.mxu0 0.0
      %920 = vmatprep.subr.mxu0 0.0
      %921 = vmatpush1.msra.mxu0 0.0
      %922 = vmatprep.subr.mxu0 0.0
      %923 = vmatpush1.msra.mxu0 0.0
      %924 = vmatprep.subr.mxu0 0.0
      %925 = vmatpush1.msra.mxu0 0.0
      %926 = vmatprep.subr.mxu0 0.0
      %927 = vmatpush1.msra.mxu0 0.0
      %928 = vmatprep.subr.mxu0 0.0
      %929 = vmatpush1.msra.mxu0 0.0
      %930 = vmatprep.subr.mxu0 0.0
      %931 = vmatpush1.msra.mxu0 0.0
      %932 = vmatprep.subr.mxu0 0.0
      %933 = vmatpush1.msra.mxu0 0.0
      %934 = vmatprep.subr.mxu0 0.0
      %935 = vmatpush1.msra.mxu0 0.0
      %936 = vmatprep.subr.mxu0 0.0
      %937 = vmatpush1.msra.mxu0 0.0
      %938 = vmatprep.subr.mxu0 0.0
      %939 = vmatpush1.msra.mxu0 0.0
      %940 = vmatprep.subr.mxu0 0.0
      %941 = vmatpush1.msra.mxu0 0.0
      %942 = vmatprep.subr.mxu0 0.0
      %943 = vmatpush1.msra.mxu0 0.0
      %944 = vmatprep.subr.mxu0 0.0
      %945 = vmatpush1.msra.mxu0 0.0
      %946 = vmatprep.subr.mxu0 0.0
      %947 = vmatpush1.msra.mxu0 0.0
      %948 = vmatprep.subr.mxu0 0.0
      %949 = vmatpush1.msra.mxu0 0.0
      %950 = vmatprep.subr.mxu0 0.0
      %951 = vmatpush1.msra.mxu0 0.0
      %952 = vmatprep.subr.mxu0 0.0
      %953 = vmatpush1.msra.mxu0 0.0
      %954 = vmatprep.subr.mxu0 0.0
      %955 = vmatpush1.msra.mxu0 0.0
      %956 = vmatprep.subr.mxu0 0.0
      %957 = vmatpush1.msra.mxu0 0.0
      %958 = vmatprep.subr.mxu0 0.0
      %959 = vmatpush1.msra.mxu0 0.0
      %960 = vmatprep.subr.mxu0 0.0
      %961 = vmatpush1.msra.mxu0 0.0
      %962 = vmatprep.subr.mxu0 0.0
      %963 = vmatpush1.msra.mxu0 0.0
      %964 = vmatprep.subr.mxu0 0.0
      %965 = vmatpush1.msra.mxu0 0.0
      %966 = vmatprep.subr.mxu0 0.0
      %967 = vmatpush1.msra.mxu0 0.0
      %968 = vmatprep.subr.mxu0 0.0
      %969 = vmatpush1.msra.mxu0 0.0
      %970 = vmatprep.subr.mxu0 0.0
      %971 = vmatpush1.msra.mxu0 0.0
      %972 = vmatprep.subr.mxu0 0.0
      %973 = vmatpush1.msra.mxu0 0.0
      %974 = vmatprep.mubr.f32.mxu0 0.0
      %975 = vmatmul.mubr.f32.gmra.mrb[0].mxu0 %v908
      %v976 = vpop.f32.mrb[0].mxu0
      %v977 = vadd.f32 0.0, %v976
      %v978 = vpop.f32.mrb[0].mxu0
      %979 = vdwg.mxu0
      %v980 = vpack.c.bf16 %v977, %v977
      %v981 = vld [vmem:[%s9] sm:$0xf]
      %s982 = scalar_lea.vmem %s3, 16
      %v983 = vld [vmem:[%s982] sm:$0xf]
      %v984 = vld [vmem:[%s982 + $0x4] sm:$0xf]
      %v985 = vld [vmem:[%s982 + $0x8] sm:$0xf]
      %v986 = vld [vmem:[%s982 + $0xc] sm:$0xf]
      %s987 = scalar_lea.vmem %s4, 1
      %v988 = vld [vmem:[%s987] sm:$0x1]
      %v990 = vlaneseq
      %v991 = vshrl.u32 %v990, 7
      %v992 = vsub.s32 0, %v991
      %v993 = vrot.slane %v988, %v992
      %v999 = vunpack.c.l.b16 %v983
      %v1000 = vunpack.c.l.b16 %v984
      %v1001 = vunpack.c.l.b16 %v985
      %v1002 = vunpack.c.l.b16 %v986
      %v1003 = vpack.c.b16 %v1000, %v999
      %v1004 = vpack.c.b16 %v1002, %v1001
      %1007 = vmatprep.subr.bf16.mxu0 0
      %1008 = vmatpush1.bf16.msra.mxu0 %v1003
      %1009 = vmatprep.subr.bf16.mxu0 0
      %1010 = vmatpush1.bf16.msra.mxu0 %v1004
      %1011 = vmatprep.subr.bf16.mxu0 0
      %1012 = vmatpush1.bf16.msra.mxu0 0
      %1013 = vmatprep.subr.bf16.mxu0 0
      %1014 = vmatpush1.bf16.msra.mxu0 0
      %1015 = vmatprep.subr.bf16.mxu0 0
      %1016 = vmatpush1.bf16.msra.mxu0 0
      %1017 = vmatprep.subr.bf16.mxu0 0
      %1018 = vmatpush1.bf16.msra.mxu0 0
      %1019 = vmatprep.subr.bf16.mxu0 0
      %1020 = vmatpush1.bf16.msra.mxu0 0
      %1021 = vmatprep.subr.bf16.mxu0 0
      %1022 = vmatpush1.bf16.msra.mxu0 0
      %1023 = vmatprep.subr.bf16.mxu0 0
      %1024 = vmatpush1.bf16.msra.mxu0 0
      %1025 = vmatprep.subr.bf16.mxu0 0
      %1026 = vmatpush1.bf16.msra.mxu0 0
      %1027 = vmatprep.subr.bf16.mxu0 0
      %1028 = vmatpush1.bf16.msra.mxu0 0
      %1029 = vmatprep.subr.bf16.mxu0 0
      %1030 = vmatpush1.bf16.msra.mxu0 0
      %1031 = vmatprep.subr.bf16.mxu0 0
      %1032 = vmatpush1.bf16.msra.mxu0 0
      %1033 = vmatprep.subr.bf16.mxu0 0
      %1034 = vmatpush1.bf16.msra.mxu0 0
      %1035 = vmatprep.subr.bf16.mxu0 0
      %1036 = vmatpush1.bf16.msra.mxu0 0
      %1037 = vmatprep.subr.bf16.mxu0 0
      %1038 = vmatpush1.bf16.msra.mxu0 0
      %1039 = vmatprep.mubr.bf16.mxu0 0
      %1040 = vmatmul.mubr.bf16.gmra.mrb[0].mxu0 %v649
      %v1041 = vpop.f32.mrb[0].mxu0
      %v1042 = vadd.f32 %v993, %v1041
      %v1043 = vpop.f32.mrb[0].mxu0
      %v1044 = vpop.f32.mrb[0].mxu0
      %v1045 = vpop.f32.mrb[0].mxu0
      %1046 = vdwg.mxu0
      %s1047 = scalar_lea.vmem %s5, 16
      %v1048 = vld [vmem:[%s1047] sm:$0xf]
      %v1049 = vld [vmem:[%s1047 + $0x4] sm:$0xf]
      %v1050 = vld [vmem:[%s1047 + $0x8] sm:$0xf]
      %v1051 = vld [vmem:[%s1047 + $0xc] sm:$0xf]
      %s1052 = scalar_lea.vmem %s6, 1
      %v1053 = vld [vmem:[%s1052] sm:$0x1]
      %v1055 = vlaneseq
      %v1056 = vshrl.u32 %v1055, 7
      %v1057 = vsub.s32 0, %v1056
      %v1058 = vrot.slane %v1053, %v1057
      %v1064 = vunpack.c.l.b16 %v1048
      %v1065 = vunpack.c.l.b16 %v1049
      %v1066 = vunpack.c.l.b16 %v1050
      %v1067 = vunpack.c.l.b16 %v1051
      %v1068 = vpack.c.b16 %v1065, %v1064
      %v1069 = vpack.c.b16 %v1067, %v1066
      %1072 = vmatprep.subr.bf16.mxu0 0
      %1073 = vmatpush1.bf16.msra.mxu0 %v1068
      %1074 = vmatprep.subr.bf16.mxu0 0
      %1075 = vmatpush1.bf16.msra.mxu0 %v1069
      %1076 = vmatprep.subr.bf16.mxu0 0
      %1077 = vmatpush1.bf16.msra.mxu0 0
      %1078 = vmatprep.subr.bf16.mxu0 0
      %1079 = vmatpush1.bf16.msra.mxu0 0
      %1080 = vmatprep.subr.bf16.mxu0 0
      %1081 = vmatpush1.bf16.msra.mxu0 0
      %1082 = vmatprep.subr.bf16.mxu0 0
      %1083 = vmatpush1.bf16.msra.mxu0 0
      %1084 = vmatprep.subr.bf16.mxu0 0
      %1085 = vmatpush1.bf16.msra.mxu0 0
      %1086 = vmatprep.subr.bf16.mxu0 0
      %1087 = vmatpush1.bf16.msra.mxu0 0
      %1088 = vmatprep.subr.bf16.mxu0 0
      %1089 = vmatpush1.bf16.msra.mxu0 0
      %1090 = vmatprep.subr.bf16.mxu0 0
      %1091 = vmatpush1.bf16.msra.mxu0 0
      %1092 = vmatprep.subr.bf16.mxu0 0
      %1093 = vmatpush1.bf16.msra.mxu0 0
      %1094 = vmatprep.subr.bf16.mxu0 0
      %1095 = vmatpush1.bf16.msra.mxu0 0
      %1096 = vmatprep.subr.bf16.mxu0 0
      %1097 = vmatpush1.bf16.msra.mxu0 0
      %1098 = vmatprep.subr.bf16.mxu0 0
      %1099 = vmatpush1.bf16.msra.mxu0 0
      %1100 = vmatprep.subr.bf16.mxu0 0
      %1101 = vmatpush1.bf16.msra.mxu0 0
      %1102 = vmatprep.subr.bf16.mxu0 0
      %1103 = vmatpush1.bf16.msra.mxu0 0
      %1104 = vmatprep.mubr.bf16.mxu0 0
      %1105 = vmatmul.mubr.bf16.gmra.mrb[0].mxu0 %v649
      %v1106 = vpop.f32.mrb[0].mxu0
      %v1107 = vadd.f32 %v1058, %v1106
      %v1108 = vpop.f32.mrb[0].mxu0
      %v1109 = vpop.f32.mrb[0].mxu0
      %v1110 = vpop.f32.mrb[0].mxu0
      %1111 = vdwg.mxu0
      %s1112 = scalar_lea.vmem %s7, 16
      %v1113 = vld [vmem:[%s1112] sm:$0xf]
      %v1114 = vld [vmem:[%s1112 + $0x4] sm:$0xf]
      %v1115 = vld [vmem:[%s1112 + $0x8] sm:$0xf]
      %v1116 = vld [vmem:[%s1112 + $0xc] sm:$0xf]
      %s1117 = scalar_lea.vmem %s8, 1
      %v1118 = vld [vmem:[%s1117] sm:$0x1]
      %v1120 = vlaneseq
      %v1121 = vshrl.u32 %v1120, 7
      %v1122 = vsub.s32 0, %v1121
      %v1123 = vrot.slane %v1118, %v1122
      %v1129 = vunpack.c.l.b16 %v1113
      %v1130 = vunpack.c.l.b16 %v1114
      %v1131 = vunpack.c.l.b16 %v1115
      %v1132 = vunpack.c.l.b16 %v1116
      %v1133 = vpack.c.b16 %v1130, %v1129
      %v1134 = vpack.c.b16 %v1132, %v1131
      %1137 = vmatprep.subr.bf16.mxu0 0
      %1138 = vmatpush1.bf16.msra.mxu0 %v1133
      %1139 = vmatprep.subr.bf16.mxu0 0
      %1140 = vmatpush1.bf16.msra.mxu0 %v1134
      %1141 = vmatprep.subr.bf16.mxu0 0
      %1142 = vmatpush1.bf16.msra.mxu0 0
      %1143 = vmatprep.subr.bf16.mxu0 0
      %1144 = vmatpush1.bf16.msra.mxu0 0
      %1145 = vmatprep.subr.bf16.mxu0 0
      %1146 = vmatpush1.bf16.msra.mxu0 0
      %1147 = vmatprep.subr.bf16.mxu0 0
      %1148 = vmatpush1.bf16.msra.mxu0 0
      %1149 = vmatprep.subr.bf16.mxu0 0
      %1150 = vmatpush1.bf16.msra.mxu0 0
      %1151 = vmatprep.subr.bf16.mxu0 0
      %1152 = vmatpush1.bf16.msra.mxu0 0
      %1153 = vmatprep.subr.bf16.mxu0 0
      %1154 = vmatpush1.bf16.msra.mxu0 0
      %1155 = vmatprep.subr.bf16.mxu0 0
      %1156 = vmatpush1.bf16.msra.mxu0 0
      %1157 = vmatprep.subr.bf16.mxu0 0
      %1158 = vmatpush1.bf16.msra.mxu0 0
      %1159 = vmatprep.subr.bf16.mxu0 0
      %1160 = vmatpush1.bf16.msra.mxu0 0
      %1161 = vmatprep.subr.bf16.mxu0 0
      %1162 = vmatpush1.bf16.msra.mxu0 0
      %1163 = vmatprep.subr.bf16.mxu0 0
      %1164 = vmatpush1.bf16.msra.mxu0 0
      %1165 = vmatprep.subr.bf16.mxu0 0
      %1166 = vmatpush1.bf16.msra.mxu0 0
      %1167 = vmatprep.subr.bf16.mxu0 0
      %1168 = vmatpush1.bf16.msra.mxu0 0
      %1169 = vmatprep.mubr.bf16.mxu0 0
      %1170 = vmatmul.mubr.bf16.gmra.mrb[0].mxu0 %v649
      %v1171 = vpop.f32.mrb[0].mxu0
      %v1172 = vadd.f32 %v1123, %v1171
      %v1173 = vpop.f32.mrb[0].mxu0
      %v1174 = vpop.f32.mrb[0].mxu0
      %v1175 = vpop.f32.mrb[0].mxu0
      %1176 = vdwg.mxu0
      %v1178 = vsel %vm817, %v1042, 0
      %v1181 = vsel %vm817, %v1107, 0
      %1183 = vmatprep.subr.mxu0 0.0
      %1184 = vmatpush1.xpose.msra.mxu0 %v1181
      %1185 = vmatprep.subr.mxu0 0.0
      %1186 = vmatpush1.xpose.msra.mxu0 0.0
      %1187 = vmatprep.subr.mxu0 0.0
      %1188 = vmatpush1.xpose.msra.mxu0 0.0
      %1189 = vmatprep.subr.mxu0 0.0
      %1190 = vmatpush1.xpose.msra.mxu0 0.0
      %1191 = vmatprep.subr.mxu0 0.0
      %1192 = vmatpush1.xpose.msra.mxu0 0.0
      %1193 = vmatprep.subr.mxu0 0.0
      %1194 = vmatpush1.xpose.msra.mxu0 0.0
      %1195 = vmatprep.subr.mxu0 0.0
      %1196 = vmatpush1.xpose.msra.mxu0 0.0
      %1197 = vmatprep.subr.mxu0 0.0
      %1198 = vmatpush1.xpose.msra.mxu0 0.0
      %1199 = vmatprep.subr.mxu0 0.0
      %1200 = vmatpush1.xpose.msra.mxu0 0.0
      %1201 = vmatprep.subr.mxu0 0.0
      %1202 = vmatpush1.xpose.msra.mxu0 0.0
      %1203 = vmatprep.subr.mxu0 0.0
      %1204 = vmatpush1.xpose.msra.mxu0 0.0
      %1205 = vmatprep.subr.mxu0 0.0
      %1206 = vmatpush1.xpose.msra.mxu0 0.0
      %1207 = vmatprep.subr.mxu0 0.0
      %1208 = vmatpush1.xpose.msra.mxu0 0.0
      %1209 = vmatprep.subr.mxu0 0.0
      %1210 = vmatpush1.xpose.msra.mxu0 0.0
      %1211 = vmatprep.subr.mxu0 0.0
      %1212 = vmatpush1.xpose.msra.mxu0 0.0
      %1213 = vmatprep.subr.mxu0 0.0
      %1214 = vmatpush1.xpose.msra.mxu0 0.0
      %1215 = vmatprep.subr.mxu0 0.0
      %1216 = vmatpush1.xpose.msra.mxu0 0.0
      %1217 = vmatprep.subr.mxu0 0.0
      %1218 = vmatpush1.xpose.msra.mxu0 0.0
      %1219 = vmatprep.subr.mxu0 0.0
      %1220 = vmatpush1.xpose.msra.mxu0 0.0
      %1221 = vmatprep.subr.mxu0 0.0
      %1222 = vmatpush1.xpose.msra.mxu0 0.0
      %1223 = vmatprep.subr.mxu0 0.0
      %1224 = vmatpush1.xpose.msra.mxu0 0.0
      %1225 = vmatprep.subr.mxu0 0.0
      %1226 = vmatpush1.xpose.msra.mxu0 0.0
      %1227 = vmatprep.subr.mxu0 0.0
      %1228 = vmatpush1.xpose.msra.mxu0 0.0
      %1229 = vmatprep.subr.mxu0 0.0
      %1230 = vmatpush1.xpose.msra.mxu0 0.0
      %1231 = vmatprep.subr.mxu0 0.0
      %1232 = vmatpush1.xpose.msra.mxu0 0.0
      %1233 = vmatprep.subr.mxu0 0.0
      %1234 = vmatpush1.xpose.msra.mxu0 0.0
      %1235 = vmatprep.subr.mxu0 0.0
      %1236 = vmatpush1.xpose.msra.mxu0 0.0
      %1237 = vmatprep.subr.mxu0 0.0
      %1238 = vmatpush1.xpose.msra.mxu0 0.0
      %1239 = vmatprep.subr.mxu0 0.0
      %1240 = vmatpush1.xpose.msra.mxu0 0.0
      %1241 = vmatprep.subr.mxu0 0.0
      %1242 = vmatpush1.xpose.msra.mxu0 0.0
      %1243 = vmatprep.subr.mxu0 0.0
      %1244 = vmatpush1.xpose.msra.mxu0 0.0
      %1245 = vmatprep.subr.mxu0 0.0
      %1246 = vmatpush1.xpose.msra.mxu0 0.0
      %1247 = vmatprep.mubr.f32.mxu0 0.0
      %1248 = vmatmul.mubr.f32.gmra.mrb[0].mxu0 %v1178
      %v1249 = vpop.f32.mrb[0].mxu0
      %v1250 = vadd.f32 0.0, %v1249
      %v1251 = vpop.f32.mrb[0].mxu0
      %1252 = vdwg.mxu0
      %v1253 = vmul.f32 %v1250, 0.35355338
      %v1254 = vadd.f32 %v1253, %v622
      %v1255 = vsel %vm817, %v1254, -inf
      %1256 = vmax.xlane.f32.xlu0 %v1255
      %v1257 = vpop.xlane.xlu0 %1256
      %v1258 = vsub.f32 %v1254, %v1257
      %v1259 = vmul.f32 %v1258, 1.442695
      %v1260 = vpow.pop %v1259
      %v1261 = vsel %vm817, %v1260, 0.0
      %1262 = vadd.xlane.f32.xlu0 %v1261
      %v1263 = vpop.xlane.xlu0 %1262
      %v1264 = vrcp.pop %v1263
      %v1265 = vmul.f32 %v1260, %v1264
      %v1267 = vsel %vm817, %v1265, 0
      %1269 = vmatprep.subr.mxu0 0.0
      %1270 = vmatpush1.msra.mxu0 %v1172
      %1271 = vmatprep.subr.mxu0 0.0
      %1272 = vmatpush1.msra.mxu0 0.0
      %1273 = vmatprep.subr.mxu0 0.0
      %1274 = vmatpush1.msra.mxu0 0.0
      %1275 = vmatprep.subr.mxu0 0.0
      %1276 = vmatpush1.msra.mxu0 0.0
      %1277 = vmatprep.subr.mxu0 0.0
      %1278 = vmatpush1.msra.mxu0 0.0
      %1279 = vmatprep.subr.mxu0 0.0
      %1280 = vmatpush1.msra.mxu0 0.0
      %1281 = vmatprep.subr.mxu0 0.0
      %1282 = vmatpush1.msra.mxu0 0.0
      %1283 = vmatprep.subr.mxu0 0.0
      %1284 = vmatpush1.msra.mxu0 0.0
      %1285 = vmatprep.subr.mxu0 0.0
      %1286 = vmatpush1.msra.mxu0 0.0
      %1287 = vmatprep.subr.mxu0 0.0
      %1288 = vmatpush1.msra.mxu0 0.0
      %1289 = vmatprep.subr.mxu0 0.0
      %1290 = vmatpush1.msra.mxu0 0.0
      %1291 = vmatprep.subr.mxu0 0.0
      %1292 = vmatpush1.msra.mxu0 0.0
      %1293 = vmatprep.subr.mxu0 0.0
      %1294 = vmatpush1.msra.mxu0 0.0
      %1295 = vmatprep.subr.mxu0 0.0
      %1296 = vmatpush1.msra.mxu0 0.0
      %1297 = vmatprep.subr.mxu0 0.0
      %1298 = vmatpush1.msra.mxu0 0.0
      %1299 = vmatprep.subr.mxu0 0.0
      %1300 = vmatpush1.msra.mxu0 0.0
      %1301 = vmatprep.subr.mxu0 0.0
      %1302 = vmatpush1.msra.mxu0 0.0
      %1303 = vmatprep.subr.mxu0 0.0
      %1304 = vmatpush1.msra.mxu0 0.0
      %1305 = vmatprep.subr.mxu0 0.0
      %1306 = vmatpush1.msra.mxu0 0.0
      %1307 = vmatprep.subr.mxu0 0.0
      %1308 = vmatpush1.msra.mxu0 0.0
      %1309 = vmatprep.subr.mxu0 0.0
      %1310 = vmatpush1.msra.mxu0 0.0
      %1311 = vmatprep.subr.mxu0 0.0
      %1312 = vmatpush1.msra.mxu0 0.0
      %1313 = vmatprep.subr.mxu0 0.0
      %1314 = vmatpush1.msra.mxu0 0.0
      %1315 = vmatprep.subr.mxu0 0.0
      %1316 = vmatpush1.msra.mxu0 0.0
      %1317 = vmatprep.subr.mxu0 0.0
      %1318 = vmatpush1.msra.mxu0 0.0
      %1319 = vmatprep.subr.mxu0 0.0
      %1320 = vmatpush1.msra.mxu0 0.0
      %1321 = vmatprep.subr.mxu0 0.0
      %1322 = vmatpush1.msra.mxu0 0.0
      %1323 = vmatprep.subr.mxu0 0.0
      %1324 = vmatpush1.msra.mxu0 0.0
      %1325 = vmatprep.subr.mxu0 0.0
      %1326 = vmatpush1.msra.mxu0 0.0
      %1327 = vmatprep.subr.mxu0 0.0
      %1328 = vmatpush1.msra.mxu0 0.0
      %1329 = vmatprep.subr.mxu0 0.0
      %1330 = vmatpush1.msra.mxu0 0.0
      %1331 = vmatprep.subr.mxu0 0.0
      %1332 = vmatpush1.msra.mxu0 0.0
      %1333 = vmatprep.mubr.f32.mxu0 0.0
      %1334 = vmatmul.mubr.f32.gmra.mrb[0].mxu0 %v1267
      %v1335 = vpop.f32.mrb[0].mxu0
      %v1336 = vadd.f32 0.0, %v1335
      %v1337 = vpop.f32.mrb[0].mxu0
      %1338 = vdwg.mxu0
      %v1339 = vpack.c.bf16 %v1336, %v1336
      %s1340 = scalar_lea.vmem %s9, 4
      %v1341 = vld [vmem:[%s1340] sm:$0xf]
      %v1343 = vsel %vm817, %v1339, 0
      %vm1345 = vcmask 1043456
      %v1347 = vsel %vm1345, %v1341, 0
      %1349 = vmatprep.subr.bf16.mxu0 0
      %1350 = vmatpush1.bf16.msra.mxu0 %v1347
      %1351 = vmatprep.subr.bf16.mxu0 0
      %1352 = vmatpush1.bf16.msra.mxu0 0
      %1353 = vmatprep.subr.bf16.mxu0 0
      %1354 = vmatpush1.bf16.msra.mxu0 0
      %1355 = vmatprep.subr.bf16.mxu0 0
      %1356 = vmatpush1.bf16.msra.mxu0 0
      %1357 = vmatprep.subr.bf16.mxu0 0
      %1358 = vmatpush1.bf16.msra.mxu0 0
      %1359 = vmatprep.subr.bf16.mxu0 0
      %1360 = vmatpush1.bf16.msra.mxu0 0
      %1361 = vmatprep.subr.bf16.mxu0 0
      %1362 = vmatpush1.bf16.msra.mxu0 0
      %1363 = vmatprep.subr.bf16.mxu0 0
      %1364 = vmatpush1.bf16.msra.mxu0 0
      %1365 = vmatprep.subr.bf16.mxu0 0
      %1366 = vmatpush1.bf16.msra.mxu0 0
      %1367 = vmatprep.subr.bf16.mxu0 0
      %1368 = vmatpush1.bf16.msra.mxu0 0
      %1369 = vmatprep.subr.bf16.mxu0 0
      %1370 = vmatpush1.bf16.msra.mxu0 0
      %1371 = vmatprep.subr.bf16.mxu0 0
      %1372 = vmatpush1.bf16.msra.mxu0 0
      %1373 = vmatprep.subr.bf16.mxu0 0
      %1374 = vmatpush1.bf16.msra.mxu0 0
      %1375 = vmatprep.subr.bf16.mxu0 0
      %1376 = vmatpush1.bf16.msra.mxu0 0
      %1377 = vmatprep.subr.bf16.mxu0 0
      %1378 = vmatpush1.bf16.msra.mxu0 0
      %1379 = vmatprep.subr.bf16.mxu0 0
      %1380 = vmatpush1.bf16.msra.mxu0 0
      %1381 = vmatprep.mubr.bf16.mxu0 0
      %1382 = vmatmul.mubr.bf16.gmra.mrb[0].mxu0 %v1343
      %v1383 = vpop.f32.mrb[0].mxu0
      %v1384 = vadd.f32 0.0, %v1383
      %v1385 = vpop.f32.mrb[0].mxu0
      %v1386 = vpop.f32.mrb[0].mxu0
      %v1387 = vpop.f32.mrb[0].mxu0
      %1388 = vdwg.mxu0
      %v1390 = vsel %vm817, %v980, 0
      %v1393 = vsel %vm1345, %v981, 0
      %1395 = vmatprep.subr.bf16.mxu0 0
      %1396 = vmatpush1.bf16.msra.mxu0 %v1393
      %1397 = vmatprep.subr.bf16.mxu0 0
      %1398 = vmatpush1.bf16.msra.mxu0 0
      %1399 = vmatprep.subr.bf16.mxu0 0
      %1400 = vmatpush1.bf16.msra.mxu0 0
      %1401 = vmatprep.subr.bf16.mxu0 0
      %1402 = vmatpush1.bf16.msra.mxu0 0
      %1403 = vmatprep.subr.bf16.mxu0 0
      %1404 = vmatpush1.bf16.msra.mxu0 0
      %1405 = vmatprep.subr.bf16.mxu0 0
      %1406 = vmatpush1.bf16.msra.mxu0 0
      %1407 = vmatprep.subr.bf16.mxu0 0
      %1408 = vmatpush1.bf16.msra.mxu0 0
      %1409 = vmatprep.subr.bf16.mxu0 0
      %1410 = vmatpush1.bf16.msra.mxu0 0
      %1411 = vmatprep.subr.bf16.mxu0 0
      %1412 = vmatpush1.bf16.msra.mxu0 0
      %1413 = vmatprep.subr.bf16.mxu0 0
      %1414 = vmatpush1.bf16.msra.mxu0 0
      %1415 = vmatprep.subr.bf16.mxu0 0
      %1416 = vmatpush1.bf16.msra.mxu0 0
      %1417 = vmatprep.subr.bf16.mxu0 0
      %1418 = vmatpush1.bf16.msra.mxu0 0
      %1419 = vmatprep.subr.bf16.mxu0 0
      %1420 = vmatpush1.bf16.msra.mxu0 0
      %1421 = vmatprep.subr.bf16.mxu0 0
      %1422 = vmatpush1.bf16.msra.mxu0 0
      %1423 = vmatprep.subr.bf16.mxu0 0
      %1424 = vmatpush1.bf16.msra.mxu0 0
      %1425 = vmatprep.subr.bf16.mxu0 0
      %1426 = vmatpush1.bf16.msra.mxu0 0
      %1427 = vmatprep.mubr.bf16.mxu0 0
      %1428 = vmatmul.mubr.bf16.gmra.mrb[0].mxu0 %v1390
      %v1429 = vpop.f32.mrb[0].mxu0
      %v1430 = vadd.f32 %v1384, %v1429
      %v1431 = vpop.f32.mrb[0].mxu0
      %v1432 = vpop.f32.mrb[0].mxu0
      %v1433 = vpop.f32.mrb[0].mxu0
      %1434 = vdwg.mxu0
      %s1435 = scalar_lea.vmem %s3, 32
      %v1436 = vld [vmem:[%s1435] sm:$0xf]
      %v1437 = vld [vmem:[%s1435 + $0x4] sm:$0xf]
      %v1438 = vld [vmem:[%s1435 + $0x8] sm:$0xf]
      %v1439 = vld [vmem:[%s1435 + $0xc] sm:$0xf]
      %s1440 = scalar_lea.vmem %s4, 2
      %v1441 = vld [vmem:[%s1440] sm:$0x1]
      %v1443 = vlaneseq
      %v1444 = vshrl.u32 %v1443, 7
      %v1445 = vsub.s32 0, %v1444
      %v1446 = vrot.slane %v1441, %v1445
      %v1452 = vunpack.c.l.b16 %v1436
      %v1453 = vunpack.c.l.b16 %v1437
      %v1454 = vunpack.c.l.b16 %v1438
      %v1455 = vunpack.c.l.b16 %v1439
      %v1456 = vpack.c.b16 %v1453, %v1452
      %v1457 = vpack.c.b16 %v1455, %v1454
      %1460 = vmatprep.subr.bf16.mxu0 0
      %1461 = vmatpush1.bf16.msra.mxu0 %v1456
      %1462 = vmatprep.subr.bf16.mxu0 0
      %1463 = vmatpush1.bf16.msra.mxu0 %v1457
      %1464 = vmatprep.subr.bf16.mxu0 0
      %1465 = vmatpush1.bf16.msra.mxu0 0
      %1466 = vmatprep.subr.bf16.mxu0 0
      %1467 = vmatpush1.bf16.msra.mxu0 0
      %1468 = vmatprep.subr.bf16.mxu0 0
      %1469 = vmatpush1.bf16.msra.mxu0 0
      %1470 = vmatprep.subr.bf16.mxu0 0
      %1471 = vmatpush1.bf16.msra.mxu0 0
      %1472 = vmatprep.subr.bf16.mxu0 0
      %1473 = vmatpush1.bf16.msra.mxu0 0
      %1474 = vmatprep.subr.bf16.mxu0 0
      %1475 = vmatpush1.bf16.msra.mxu0 0
      %1476 = vmatprep.subr.bf16.mxu0 0
      %1477 = vmatpush1.bf16.msra.mxu0 0
      %1478 = vmatprep.subr.bf16.mxu0 0
      %1479 = vmatpush1.bf16.msra.mxu0 0
      %1480 = vmatprep.subr.bf16.mxu0 0
      %1481 = vmatpush1.bf16.msra.mxu0 0
      %1482 = vmatprep.subr.bf16.mxu0 0
      %1483 = vmatpush1.bf16.msra.mxu0 0
      %1484 = vmatprep.subr.bf16.mxu0 0
      %1485 = vmatpush1.bf16.msra.mxu0 0
      %1486 = vmatprep.subr.bf16.mxu0 0
      %1487 = vmatpush1.bf16.msra.mxu0 0
      %1488 = vmatprep.subr.bf16.mxu0 0
      %1489 = vmatpush1.bf16.msra.mxu0 0
      %1490 = vmatprep.subr.bf16.mxu0 0
      %1491 = vmatpush1.bf16.msra.mxu0 0
      %1492 = vmatprep.mubr.bf16.mxu0 0
      %1493 = vmatmul.mubr.bf16.gmra.mrb[0].mxu0 %v649
      %v1494 = vpop.f32.mrb[0].mxu0
      %v1495 = vadd.f32 %v1446, %v1494
      %v1496 = vpop.f32.mrb[0].mxu0
      %v1497 = vpop.f32.mrb[0].mxu0
      %v1498 = vpop.f32.mrb[0].mxu0
      %1499 = vdwg.mxu0
      %s1500 = scalar_lea.vmem %s5, 32
      %v1501 = vld [vmem:[%s1500] sm:$0xf]
      %v1502 = vld [vmem:[%s1500 + $0x4] sm:$0xf]
      %v1503 = vld [vmem:[%s1500 + $0x8] sm:$0xf]
      %v1504 = vld [vmem:[%s1500 + $0xc] sm:$0xf]
      %s1505 = scalar_lea.vmem %s6, 2
      %v1506 = vld [vmem:[%s1505] sm:$0x1]
      %v1508 = vlaneseq
      %v1509 = vshrl.u32 %v1508, 7
      %v1510 = vsub.s32 0, %v1509
      %v1511 = vrot.slane %v1506, %v1510
      %v1517 = vunpack.c.l.b16 %v1501
      %v1518 = vunpack.c.l.b16 %v1502
      %v1519 = vunpack.c.l.b16 %v1503
      %v1520 = vunpack.c.l.b16 %v1504
      %v1521 = vpack.c.b16 %v1518, %v1517
      %v1522 = vpack.c.b16 %v1520, %v1519
      %1525 = vmatprep.subr.bf16.mxu0 0
      %1526 = vmatpush1.bf16.msra.mxu0 %v1521
      %1527 = vmatprep.subr.bf16.mxu0 0
      %1528 = vmatpush1.bf16.msra.mxu0 %v1522
      %1529 = vmatprep.subr.bf16.mxu0 0
      %1530 = vmatpush1.bf16.msra.mxu0 0
      %1531 = vmatprep.subr.bf16.mxu0 0
      %1532 = vmatpush1.bf16.msra.mxu0 0
      %1533 = vmatprep.subr.bf16.mxu0 0
      %1534 = vmatpush1.bf16.msra.mxu0 0
      %1535 = vmatprep.subr.bf16.mxu0 0
      %1536 = vmatpush1.bf16.msra.mxu0 0
      %1537 = vmatprep.subr.bf16.mxu0 0
      %1538 = vmatpush1.bf16.msra.mxu0 0
      %1539 = vmatprep.subr.bf16.mxu0 0
      %1540 = vmatpush1.bf16.msra.mxu0 0
      %1541 = vmatprep.subr.bf16.mxu0 0
      %1542 = vmatpush1.bf16.msra.mxu0 0
      %1543 = vmatprep.subr.bf16.mxu0 0
      %1544 = vmatpush1.bf16.msra.mxu0 0
      %1545 = vmatprep.subr.bf16.mxu0 0
      %1546 = vmatpush1.bf16.msra.mxu0 0
      %1547 = vmatprep.subr.bf16.mxu0 0
      %1548 = vmatpush1.bf16.msra.mxu0 0
      %1549 = vmatprep.subr.bf16.mxu0 0
      %1550 = vmatpush1.bf16.msra.mxu0 0
      %1551 = vmatprep.subr.bf16.mxu0 0
      %1552 = vmatpush1.bf16.msra.mxu0 0
      %1553 = vmatprep.subr.bf16.mxu0 0
      %1554 = vmatpush1.bf16.msra.mxu0 0
      %1555 = vmatprep.subr.bf16.mxu0 0
      %1556 = vmatpush1.bf16.msra.mxu0 0
      %1557 = vmatprep.mubr.bf16.mxu0 0
      %1558 = vmatmul.mubr.bf16.gmra.mrb[0].mxu0 %v649
      %v1559 = vpop.f32.mrb[0].mxu0
      %v1560 = vadd.f32 %v1511, %v1559
      %v1561 = vpop.f32.mrb[0].mxu0
      %v1562 = vpop.f32.mrb[0].mxu0
      %v1563 = vpop.f32.mrb[0].mxu0
      %1564 = vdwg.mxu0
      %s1565 = scalar_lea.vmem %s7, 32
      %v1566 = vld [vmem:[%s1565] sm:$0xf]
      %v1567 = vld [vmem:[%s1565 + $0x4] sm:$0xf]
      %v1568 = vld [vmem:[%s1565 + $0x8] sm:$0xf]
      %v1569 = vld [vmem:[%s1565 + $0xc] sm:$0xf]
      %s1570 = scalar_lea.vmem %s8, 2
      %v1571 = vld [vmem:[%s1570] sm:$0x1]
      %v1573 = vlaneseq
      %v1574 = vshrl.u32 %v1573, 7
      %v1575 = vsub.s32 0, %v1574
      %v1576 = vrot.slane %v1571, %v1575
      %v1582 = vunpack.c.l.b16 %v1566
      %v1583 = vunpack.c.l.b16 %v1567
      %v1584 = vunpack.c.l.b16 %v1568
      %v1585 = vunpack.c.l.b16 %v1569
      %v1586 = vpack.c.b16 %v1583, %v1582
      %v1587 = vpack.c.b16 %v1585, %v1584
      %1590 = vmatprep.subr.bf16.mxu0 0
      %1591 = vmatpush1.bf16.msra.mxu0 %v1586
      %1592 = vmatprep.subr.bf16.mxu0 0
      %1593 = vmatpush1.bf16.msra.mxu0 %v1587
      %1594 = vmatprep.subr.bf16.mxu0 0
      %1595 = vmatpush1.bf16.msra.mxu0 0
      %1596 = vmatprep.subr.bf16.mxu0 0
      %1597 = vmatpush1.bf16.msra.mxu0 0
      %1598 = vmatprep.subr.bf16.mxu0 0
      %1599 = vmatpush1.bf16.msra.mxu0 0
      %1600 = vmatprep.subr.bf16.mxu0 0
      %1601 = vmatpush1.bf16.msra.mxu0 0
      %1602 = vmatprep.subr.bf16.mxu0 0
      %1603 = vmatpush1.bf16.msra.mxu0 0
      %1604 = vmatprep.subr.bf16.mxu0 0
      %1605 = vmatpush1.bf16.msra.mxu0 0
      %1606 = vmatprep.subr.bf16.mxu0 0
      %1607 = vmatpush1.bf16.msra.mxu0 0
      %1608 = vmatprep.subr.bf16.mxu0 0
      %1609 = vmatpush1.bf16.msra.mxu0 0
      %1610 = vmatprep.subr.bf16.mxu0 0
      %1611 = vmatpush1.bf16.msra.mxu0 0
      %1612 = vmatprep.subr.bf16.mxu0 0
      %1613 = vmatpush1.bf16.msra.mxu0 0
      %1614 = vmatprep.subr.bf16.mxu0 0
      %1615 = vmatpush1.bf16.msra.mxu0 0
      %1616 = vmatprep.subr.bf16.mxu0 0
      %1617 = vmatpush1.bf16.msra.mxu0 0
      %1618 = vmatprep.subr.bf16.mxu0 0
      %1619 = vmatpush1.bf16.msra.mxu0 0
      %1620 = vmatprep.subr.bf16.mxu0 0
      %1621 = vmatpush1.bf16.msra.mxu0 0
      %1622 = vmatprep.mubr.bf16.mxu0 0
      %1623 = vmatmul.mubr.bf16.gmra.mrb[0].mxu0 %v649
      %v1624 = vpop.f32.mrb[0].mxu0
      %v1625 = vadd.f32 %v1576, %v1624
      %v1626 = vpop.f32.mrb[0].mxu0
      %v1627 = vpop.f32.mrb[0].mxu0
      %v1628 = vpop.f32.mrb[0].mxu0
      %1629 = vdwg.mxu0
      %v1631 = vsel %vm817, %v1495, 0
      %v1634 = vsel %vm817, %v1560, 0
      %1636 = vmatprep.subr.mxu0 0.0
      %1637 = vmatpush1.xpose.msra.mxu0 %v1634
      %1638 = vmatprep.subr.mxu0 0.0
      %1639 = vmatpush1.xpose.msra.mxu0 0.0
      %1640 = vmatprep.subr.mxu0 0.0
      %1641 = vmatpush1.xpose.msra.mxu0 0.0
      %1642 = vmatprep.subr.mxu0 0.0
      %1643 = vmatpush1.xpose.msra.mxu0 0.0
      %1644 = vmatprep.subr.mxu0 0.0
      %1645 = vmatpush1.xpose.msra.mxu0 0.0
      %1646 = vmatprep.subr.mxu0 0.0
      %1647 = vmatpush1.xpose.msra.mxu0 0.0
      %1648 = vmatprep.subr.mxu0 0.0
      %1649 = vmatpush1.xpose.msra.mxu0 0.0
      %1650 = vmatprep.subr.mxu0 0.0
      %1651 = vmatpush1.xpose.msra.mxu0 0.0
      %1652 = vmatprep.subr.mxu0 0.0
      %1653 = vmatpush1.xpose.msra.mxu0 0.0
      %1654 = vmatprep.subr.mxu0 0.0
      %1655 = vmatpush1.xpose.msra.mxu0 0.0
      %1656 = vmatprep.subr.mxu0 0.0
      %1657 = vmatpush1.xpose.msra.mxu0 0.0
      %1658 = vmatprep.subr.mxu0 0.0
      %1659 = vmatpush1.xpose.msra.mxu0 0.0
      %1660 = vmatprep.subr.mxu0 0.0
      %1661 = vmatpush1.xpose.msra.mxu0 0.0
      %1662 = vmatprep.subr.mxu0 0.0
      %1663 = vmatpush1.xpose.msra.mxu0 0.0
      %1664 = vmatprep.subr.mxu0 0.0
      %1665 = vmatpush1.xpose.msra.mxu0 0.0
      %1666 = vmatprep.subr.mxu0 0.0
      %1667 = vmatpush1.xpose.msra.mxu0 0.0
      %1668 = vmatprep.subr.mxu0 0.0
      %1669 = vmatpush1.xpose.msra.mxu0 0.0
      %1670 = vmatprep.subr.mxu0 0.0
      %1671 = vmatpush1.xpose.msra.mxu0 0.0
      %1672 = vmatprep.subr.mxu0 0.0
      %1673 = vmatpush1.xpose.msra.mxu0 0.0
      %1674 = vmatprep.subr.mxu0 0.0
      %1675 = vmatpush1.xpose.msra.mxu0 0.0
      %1676 = vmatprep.subr.mxu0 0.0
      %1677 = vmatpush1.xpose.msra.mxu0 0.0
      %1678 = vmatprep.subr.mxu0 0.0
      %1679 = vmatpush1.xpose.msra.mxu0 0.0
      %1680 = vmatprep.subr.mxu0 0.0
      %1681 = vmatpush1.xpose.msra.mxu0 0.0
      %1682 = vmatprep.subr.mxu0 0.0
      %1683 = vmatpush1.xpose.msra.mxu0 0.0
      %1684 = vmatprep.subr.mxu0 0.0
      %1685 = vmatpush1.xpose.msra.mxu0 0.0
      %1686 = vmatprep.subr.mxu0 0.0
      %1687 = vmatpush1.xpose.msra.mxu0 0.0
      %1688 = vmatprep.subr.mxu0 0.0
      %1689 = vmatpush1.xpose.msra.mxu0 0.0
      %1690 = vmatprep.subr.mxu0 0.0
      %1691 = vmatpush1.xpose.msra.mxu0 0.0
      %1692 = vmatprep.subr.mxu0 0.0
      %1693 = vmatpush1.xpose.msra.mxu0 0.0
      %1694 = vmatprep.subr.mxu0 0.0
      %1695 = vmatpush1.xpose.msra.mxu0 0.0
      %1696 = vmatprep.subr.mxu0 0.0
      %1697 = vmatpush1.xpose.msra.mxu0 0.0
      %1698 = vmatprep.subr.mxu0 0.0
      %1699 = vmatpush1.xpose.msra.mxu0 0.0
      %1700 = vmatprep.mubr.f32.mxu0 0.0
      %1701 = vmatmul.mubr.f32.gmra.mrb[0].mxu0 %v1631
      %v1702 = vpop.f32.mrb[0].mxu0
      %v1703 = vadd.f32 0.0, %v1702
      %v1704 = vpop.f32.mrb[0].mxu0
      %1705 = vdwg.mxu0
      %v1706 = vmul.f32 %v1703, 0.35355338
      %v1707 = vadd.f32 %v1706, %v622
      %v1708 = vsel %vm817, %v1707, -inf
      %1709 = vmax.xlane.f32.xlu0 %v1708
      %v1710 = vpop.xlane.xlu0 %1709
      %v1711 = vsub.f32 %v1707, %v1710
      %v1712 = vmul.f32 %v1711, 1.442695
      %v1713 = vpow.pop %v1712
      %v1714 = vsel %vm817, %v1713, 0.0
      %1715 = vadd.xlane.f32.xlu0 %v1714
      %v1716 = vpop.xlane.xlu0 %1715
      %v1717 = vrcp.pop %v1716
      %v1718 = vmul.f32 %v1713, %v1717
      %v1720 = vsel %vm817, %v1718, 0
      %1722 = vmatprep.subr.mxu0 0.0
      %1723 = vmatpush1.msra.mxu0 %v1625
      %1724 = vmatprep.subr.mxu0 0.0
      %1725 = vmatpush1.msra.mxu0 0.0
      %1726 = vmatprep.subr.mxu0 0.0
      %1727 = vmatpush1.msra.mxu0 0.0
      %1728 = vmatprep.subr.mxu0 0.0
      %1729 = vmatpush1.msra.mxu0 0.0
      %1730 = vmatprep.subr.mxu0 0.0
      %1731 = vmatpush1.msra.mxu0 0.0
      %1732 = vmatprep.subr.mxu0 0.0
      %1733 = vmatpush1.msra.mxu0 0.0
      %1734 = vmatprep.subr.mxu0 0.0
      %1735 = vmatpush1.msra.mxu0 0.0
      %1736 = vmatprep.subr.mxu0 0.0
      %1737 = vmatpush1.msra.mxu0 0.0
      %1738 = vmatprep.subr.mxu0 0.0
      %1739 = vmatpush1.msra.mxu0 0.0
      %1740 = vmatprep.subr.mxu0 0.0
      %1741 = vmatpush1.msra.mxu0 0.0
      %1742 = vmatprep.subr.mxu0 0.0
      %1743 = vmatpush1.msra.mxu0 0.0
      %1744 = vmatprep.subr.mxu0 0.0
      %1745 = vmatpush1.msra.mxu0 0.0
      %1746 = vmatprep.subr.mxu0 0.0
      %1747 = vmatpush1.msra.mxu0 0.0
      %1748 = vmatprep.subr.mxu0 0.0
      %1749 = vmatpush1.msra.mxu0 0.0
      %1750 = vmatprep.subr.mxu0 0.0
      %1751 = vmatpush1.msra.mxu0 0.0
      %1752 = vmatprep.subr.mxu0 0.0
      %1753 = vmatpush1.msra.mxu0 0.0
      %1754 = vmatprep.subr.mxu0 0.0
      %1755 = vmatpush1.msra.mxu0 0.0
      %1756 = vmatprep.subr.mxu0 0.0
      %1757 = vmatpush1.msra.mxu0 0.0
      %1758 = vmatprep.subr.mxu0 0.0
      %1759 = vmatpush1.msra.mxu0 0.0
      %1760 = vmatprep.subr.mxu0 0.0
      %1761 = vmatpush1.msra.mxu0 0.0
      %1762 = vmatprep.subr.mxu0 0.0
      %1763 = vmatpush1.msra.mxu0 0.0
      %1764 = vmatprep.subr.mxu0 0.0
      %1765 = vmatpush1.msra.mxu0 0.0
      %1766 = vmatprep.subr.mxu0 0.0
      %1767 = vmatpush1.msra.mxu0 0.0
      %1768 = vmatprep.subr.mxu0 0.0
      %1769 = vmatpush1.msra.mxu0 0.0
      %1770 = vmatprep.subr.mxu0 0.0
      %1771 = vmatpush1.msra.mxu0 0.0
      %1772 = vmatprep.subr.mxu0 0.0
      %1773 = vmatpush1.msra.mxu0 0.0
      %1774 = vmatprep.subr.mxu0 0.0
      %1775 = vmatpush1.msra.mxu0 0.0
      %1776 = vmatprep.subr.mxu0 0.0
      %1777 = vmatpush1.msra.mxu0 0.0
      %1778 = vmatprep.subr.mxu0 0.0
      %1779 = vmatpush1.msra.mxu0 0.0
      %1780 = vmatprep.subr.mxu0 0.0
      %1781 = vmatpush1.msra.mxu0 0.0
      %1782 = vmatprep.subr.mxu0 0.0
      %1783 = vmatpush1.msra.mxu0 0.0
      %1784 = vmatprep.subr.mxu0 0.0
      %1785 = vmatpush1.msra.mxu0 0.0
      %1786 = vmatprep.mubr.f32.mxu0 0.0
      %1787 = vmatmul.mubr.f32.gmra.mrb[0].mxu0 %v1720
      %v1788 = vpop.f32.mrb[0].mxu0
      %v1789 = vadd.f32 0.0, %v1788
      %v1790 = vpop.f32.mrb[0].mxu0
      %1791 = vdwg.mxu0
      %v1792 = vpack.c.bf16 %v1789, %v1789
      %s1793 = scalar_lea.vmem %s9, 8
      %v1794 = vld [vmem:[%s1793] sm:$0xf]
      %v1796 = vsel %vm817, %v1792, 0
      %v1799 = vsel %vm1345, %v1794, 0
      %1801 = vmatprep.subr.bf16.mxu0 0
      %1802 = vmatpush1.bf16.msra.mxu0 %v1799
      %1803 = vmatprep.subr.bf16.mxu0 0
      %1804 = vmatpush1.bf16.msra.mxu0 0
      %1805 = vmatprep.subr.bf16.mxu0 0
      %1806 = vmatpush1.bf16.msra.mxu0 0
      %1807 = vmatprep.subr.bf16.mxu0 0
      %1808 = vmatpush1.bf16.msra.mxu0 0
      %1809 = vmatprep.subr.bf16.mxu0 0
      %1810 = vmatpush1.bf16.msra.mxu0 0
      %1811 = vmatprep.subr.bf16.mxu0 0
      %1812 = vmatpush1.bf16.msra.mxu0 0
      %1813 = vmatprep.subr.bf16.mxu0 0
      %1814 = vmatpush1.bf16.msra.mxu0 0
      %1815 = vmatprep.subr.bf16.mxu0 0
      %1816 = vmatpush1.bf16.msra.mxu0 0
      %1817 = vmatprep.subr.bf16.mxu0 0
      %1818 = vmatpush1.bf16.msra.mxu0 0
      %1819 = vmatprep.subr.bf16.mxu0 0
      %1820 = vmatpush1.bf16.msra.mxu0 0
      %1821 = vmatprep.subr.bf16.mxu0 0
      %1822 = vmatpush1.bf16.msra.mxu0 0
      %1823 = vmatprep.subr.bf16.mxu0 0
      %1824 = vmatpush1.bf16.msra.mxu0 0
      %1825 = vmatprep.subr.bf16.mxu0 0
      %1826 = vmatpush1.bf16.msra.mxu0 0
      %1827 = vmatprep.subr.bf16.mxu0 0
      %1828 = vmatpush1.bf16.msra.mxu0 0
      %1829 = vmatprep.subr.bf16.mxu0 0
      %1830 = vmatpush1.bf16.msra.mxu0 0
      %1831 = vmatprep.subr.bf16.mxu0 0
      %1832 = vmatpush1.bf16.msra.mxu0 0
      %1833 = vmatprep.mubr.bf16.mxu0 0
      %1834 = vmatmul.mubr.bf16.gmra.mrb[0].mxu0 %v1796
      %v1835 = vpop.f32.mrb[0].mxu0
      %v1836 = vadd.f32 0.0, %v1835
      %v1837 = vpop.f32.mrb[0].mxu0
      %v1838 = vpop.f32.mrb[0].mxu0
      %v1839 = vpop.f32.mrb[0].mxu0
      %1840 = vdwg.mxu0
      %v1841 = vadd.f32 %v1430, %v1836
      %s1842 = scalar_lea.vmem %s3, 48
      %v1843 = vld [vmem:[%s1842] sm:$0xf]
      %v1844 = vld [vmem:[%s1842 + $0x4] sm:$0xf]
      %v1845 = vld [vmem:[%s1842 + $0x8] sm:$0xf]
      %v1846 = vld [vmem:[%s1842 + $0xc] sm:$0xf]
      %s1847 = scalar_lea.vmem %s4, 3
      %v1848 = vld [vmem:[%s1847] sm:$0x1]
      %v1850 = vlaneseq
      %v1851 = vshrl.u32 %v1850, 7
      %v1852 = vsub.s32 0, %v1851
      %v1853 = vrot.slane %v1848, %v1852
      %v1859 = vunpack.c.l.b16 %v1843
      %v1860 = vunpack.c.l.b16 %v1844
      %v1861 = vunpack.c.l.b16 %v1845
      %v1862 = vunpack.c.l.b16 %v1846
      %v1863 = vpack.c.b16 %v1860, %v1859
      %v1864 = vpack.c.b16 %v1862, %v1861
      %1867 = vmatprep.subr.bf16.mxu0 0
      %1868 = vmatpush1.bf16.msra.mxu0 %v1863
      %1869 = vmatprep.subr.bf16.mxu0 0
      %1870 = vmatpush1.bf16.msra.mxu0 %v1864
      %1871 = vmatprep.subr.bf16.mxu0 0
      %1872 = vmatpush1.bf16.msra.mxu0 0
      %1873 = vmatprep.subr.bf16.mxu0 0
      %1874 = vmatpush1.bf16.msra.mxu0 0
      %1875 = vmatprep.subr.bf16.mxu0 0
      %1876 = vmatpush1.bf16.msra.mxu0 0
      %1877 = vmatprep.subr.bf16.mxu0 0
      %1878 = vmatpush1.bf16.msra.mxu0 0
      %1879 = vmatprep.subr.bf16.mxu0 0
      %1880 = vmatpush1.bf16.msra.mxu0 0
      %1881 = vmatprep.subr.bf16.mxu0 0
      %1882 = vmatpush1.bf16.msra.mxu0 0
      %1883 = vmatprep.subr.bf16.mxu0 0
      %1884 = vmatpush1.bf16.msra.mxu0 0
      %1885 = vmatprep.subr.bf16.mxu0 0
      %1886 = vmatpush1.bf16.msra.mxu0 0
      %1887 = vmatprep.subr.bf16.mxu0 0
      %1888 = vmatpush1.bf16.msra.mxu0 0
      %1889 = vmatprep.subr.bf16.mxu0 0
      %1890 = vmatpush1.bf16.msra.mxu0 0
      %1891 = vmatprep.subr.bf16.mxu0 0
      %1892 = vmatpush1.bf16.msra.mxu0 0
      %1893 = vmatprep.subr.bf16.mxu0 0
      %1894 = vmatpush1.bf16.msra.mxu0 0
      %1895 = vmatprep.subr.bf16.mxu0 0
      %1896 = vmatpush1.bf16.msra.mxu0 0
      %1897 = vmatprep.subr.bf16.mxu0 0
      %1898 = vmatpush1.bf16.msra.mxu0 0
      %1899 = vmatprep.mubr.bf16.mxu0 0
      %1900 = vmatmul.mubr.bf16.gmra.mrb[0].mxu0 %v649
      %v1901 = vpop.f32.mrb[0].mxu0
      %v1902 = vadd.f32 %v1853, %v1901
      %v1903 = vpop.f32.mrb[0].mxu0
      %v1904 = vpop.f32.mrb[0].mxu0
      %v1905 = vpop.f32.mrb[0].mxu0
      %1906 = vdwg.mxu0
      %s1907 = scalar_lea.vmem %s5, 48
      %v1908 = vld [vmem:[%s1907] sm:$0xf]
      %v1909 = vld [vmem:[%s1907 + $0x4] sm:$0xf]
      %v1910 = vld [vmem:[%s1907 + $0x8] sm:$0xf]
      %v1911 = vld [vmem:[%s1907 + $0xc] sm:$0xf]
      %s1912 = scalar_lea.vmem %s6, 3
      %v1913 = vld [vmem:[%s1912] sm:$0x1]
      %v1915 = vlaneseq
      %v1916 = vshrl.u32 %v1915, 7
      %v1917 = vsub.s32 0, %v1916
      %v1918 = vrot.slane %v1913, %v1917
      %v1924 = vunpack.c.l.b16 %v1908
      %v1925 = vunpack.c.l.b16 %v1909
      %v1926 = vunpack.c.l.b16 %v1910
      %v1927 = vunpack.c.l.b16 %v1911
      %v1928 = vpack.c.b16 %v1925, %v1924
      %v1929 = vpack.c.b16 %v1927, %v1926
      %1932 = vmatprep.subr.bf16.mxu0 0
      %1933 = vmatpush1.bf16.msra.mxu0 %v1928
      %1934 = vmatprep.subr.bf16.mxu0 0
      %1935 = vmatpush1.bf16.msra.mxu0 %v1929
      %1936 = vmatprep.subr.bf16.mxu0 0
      %1937 = vmatpush1.bf16.msra.mxu0 0
      %1938 = vmatprep.subr.bf16.mxu0 0
      %1939 = vmatpush1.bf16.msra.mxu0 0
      %1940 = vmatprep.subr.bf16.mxu0 0
      %1941 = vmatpush1.bf16.msra.mxu0 0
      %1942 = vmatprep.subr.bf16.mxu0 0
      %1943 = vmatpush1.bf16.msra.mxu0 0
      %1944 = vmatprep.subr.bf16.mxu0 0
      %1945 = vmatpush1.bf16.msra.mxu0 0
      %1946 = vmatprep.subr.bf16.mxu0 0
      %1947 = vmatpush1.bf16.msra.mxu0 0
      %1948 = vmatprep.subr.bf16.mxu0 0
      %1949 = vmatpush1.bf16.msra.mxu0 0
      %1950 = vmatprep.subr.bf16.mxu0 0
      %1951 = vmatpush1.bf16.msra.mxu0 0
      %1952 = vmatprep.subr.bf16.mxu0 0
      %1953 = vmatpush1.bf16.msra.mxu0 0
      %1954 = vmatprep.subr.bf16.mxu0 0
      %1955 = vmatpush1.bf16.msra.mxu0 0
      %1956 = vmatprep.subr.bf16.mxu0 0
      %1957 = vmatpush1.bf16.msra.mxu0 0
      %1958 = vmatprep.subr.bf16.mxu0 0
      %1959 = vmatpush1.bf16.msra.mxu0 0
      %1960 = vmatprep.subr.bf16.mxu0 0
      %1961 = vmatpush1.bf16.msra.mxu0 0
      %1962 = vmatprep.subr.bf16.mxu0 0
      %1963 = vmatpush1.bf16.msra.mxu0 0
      %1964 = vmatprep.mubr.bf16.mxu0 0
      %1965 = vmatmul.mubr.bf16.gmra.mrb[0].mxu0 %v649
      %v1966 = vpop.f32.mrb[0].mxu0
      %v1967 = vadd.f32 %v1918, %v1966
      %v1968 = vpop.f32.mrb[0].mxu0
      %v1969 = vpop.f32.mrb[0].mxu0
      %v1970 = vpop.f32.mrb[0].mxu0
      %1971 = vdwg.mxu0
      %s1972 = scalar_lea.vmem %s7, 48
      %v1973 = vld [vmem:[%s1972] sm:$0xf]
      %v1974 = vld [vmem:[%s1972 + $0x4] sm:$0xf]
      %v1975 = vld [vmem:[%s1972 + $0x8] sm:$0xf]
      %v1976 = vld [vmem:[%s1972 + $0xc] sm:$0xf]
      %s1977 = scalar_lea.vmem %s8, 3
      %v1978 = vld [vmem:[%s1977] sm:$0x1]
      %v1980 = vlaneseq
      %v1981 = vshrl.u32 %v1980, 7
      %v1982 = vsub.s32 0, %v1981
      %v1983 = vrot.slane %v1978, %v1982
      %v1989 = vunpack.c.l.b16 %v1973
      %v1990 = vunpack.c.l.b16 %v1974
      %v1991 = vunpack.c.l.b16 %v1975
      %v1992 = vunpack.c.l.b16 %v1976
      %v1993 = vpack.c.b16 %v1990, %v1989
      %v1994 = vpack.c.b16 %v1992, %v1991
      %1997 = vmatprep.subr.bf16.mxu0 0
      %1998 = vmatpush1.bf16.msra.mxu0 %v1993
      %1999 = vmatprep.subr.bf16.mxu0 0
      %2000 = vmatpush1.bf16.msra.mxu0 %v1994
      %2001 = vmatprep.subr.bf16.mxu0 0
      %2002 = vmatpush1.bf16.msra.mxu0 0
      %2003 = vmatprep.subr.bf16.mxu0 0
      %2004 = vmatpush1.bf16.msra.mxu0 0
      %2005 = vmatprep.subr.bf16.mxu0 0
      %2006 = vmatpush1.bf16.msra.mxu0 0
      %2007 = vmatprep.subr.bf16.mxu0 0
      %2008 = vmatpush1.bf16.msra.mxu0 0
      %2009 = vmatprep.subr.bf16.mxu0 0
      %2010 = vmatpush1.bf16.msra.mxu0 0
      %2011 = vmatprep.subr.bf16.mxu0 0
      %2012 = vmatpush1.bf16.msra.mxu0 0
      %2013 = vmatprep.subr.bf16.mxu0 0
      %2014 = vmatpush1.bf16.msra.mxu0 0
      %2015 = vmatprep.subr.bf16.mxu0 0
      %2016 = vmatpush1.bf16.msra.mxu0 0
      %2017 = vmatprep.subr.bf16.mxu0 0
      %2018 = vmatpush1.bf16.msra.mxu0 0
      %2019 = vmatprep.subr.bf16.mxu0 0
      %2020 = vmatpush1.bf16.msra.mxu0 0
      %2021 = vmatprep.subr.bf16.mxu0 0
      %2022 = vmatpush1.bf16.msra.mxu0 0
      %2023 = vmatprep.subr.bf16.mxu0 0
      %2024 = vmatpush1.bf16.msra.mxu0 0
      %2025 = vmatprep.subr.bf16.mxu0 0
      %2026 = vmatpush1.bf16.msra.mxu0 0
      %2027 = vmatprep.subr.bf16.mxu0 0
      %2028 = vmatpush1.bf16.msra.mxu0 0
      %2029 = vmatprep.mubr.bf16.mxu0 0
      %2030 = vmatmul.mubr.bf16.gmra.mrb[0].mxu0 %v649
      %v2031 = vpop.f32.mrb[0].mxu0
      %v2032 = vadd.f32 %v1983, %v2031
      %v2033 = vpop.f32.mrb[0].mxu0
      %v2034 = vpop.f32.mrb[0].mxu0
      %v2035 = vpop.f32.mrb[0].mxu0
      %2036 = vdwg.mxu0
      %v2038 = vsel %vm817, %v1902, 0
      %v2041 = vsel %vm817, %v1967, 0
      %2043 = vmatprep.subr.mxu0 0.0
      %2044 = vmatpush1.xpose.msra.mxu0 %v2041
      %2045 = vmatprep.subr.mxu0 0.0
      %2046 = vmatpush1.xpose.msra.mxu0 0.0
      %2047 = vmatprep.subr.mxu0 0.0
      %2048 = vmatpush1.xpose.msra.mxu0 0.0
      %2049 = vmatprep.subr.mxu0 0.0
      %2050 = vmatpush1.xpose.msra.mxu0 0.0
      %2051 = vmatprep.subr.mxu0 0.0
      %2052 = vmatpush1.xpose.msra.mxu0 0.0
      %2053 = vmatprep.subr.mxu0 0.0
      %2054 = vmatpush1.xpose.msra.mxu0 0.0
      %2055 = vmatprep.subr.mxu0 0.0
      %2056 = vmatpush1.xpose.msra.mxu0 0.0
      %2057 = vmatprep.subr.mxu0 0.0
      %2058 = vmatpush1.xpose.msra.mxu0 0.0
      %2059 = vmatprep.subr.mxu0 0.0
      %2060 = vmatpush1.xpose.msra.mxu0 0.0
      %2061 = vmatprep.subr.mxu0 0.0
      %2062 = vmatpush1.xpose.msra.mxu0 0.0
      %2063 = vmatprep.subr.mxu0 0.0
      %2064 = vmatpush1.xpose.msra.mxu0 0.0
      %2065 = vmatprep.subr.mxu0 0.0
      %2066 = vmatpush1.xpose.msra.mxu0 0.0
      %2067 = vmatprep.subr.mxu0 0.0
      %2068 = vmatpush1.xpose.msra.mxu0 0.0
      %2069 = vmatprep.subr.mxu0 0.0
      %2070 = vmatpush1.xpose.msra.mxu0 0.0
      %2071 = vmatprep.subr.mxu0 0.0
      %2072 = vmatpush1.xpose.msra.mxu0 0.0
      %2073 = vmatprep.subr.mxu0 0.0
      %2074 = vmatpush1.xpose.msra.mxu0 0.0
      %2075 = vmatprep.subr.mxu0 0.0
      %2076 = vmatpush1.xpose.msra.mxu0 0.0
      %2077 = vmatprep.subr.mxu0 0.0
      %2078 = vmatpush1.xpose.msra.mxu0 0.0
      %2079 = vmatprep.subr.mxu0 0.0
      %2080 = vmatpush1.xpose.msra.mxu0 0.0
      %2081 = vmatprep.subr.mxu0 0.0
      %2082 = vmatpush1.xpose.msra.mxu0 0.0
      %2083 = vmatprep.subr.mxu0 0.0
      %2084 = vmatpush1.xpose.msra.mxu0 0.0
      %2085 = vmatprep.subr.mxu0 0.0
      %2086 = vmatpush1.xpose.msra.mxu0 0.0
      %2087 = vmatprep.subr.mxu0 0.0
      %2088 = vmatpush1.xpose.msra.mxu0 0.0
      %2089 = vmatprep.subr.mxu0 0.0
      %2090 = vmatpush1.xpose.msra.mxu0 0.0
      %2091 = vmatprep.subr.mxu0 0.0
      %2092 = vmatpush1.xpose.msra.mxu0 0.0
      %2093 = vmatprep.subr.mxu0 0.0
      %2094 = vmatpush1.xpose.msra.mxu0 0.0
      %2095 = vmatprep.subr.mxu0 0.0
      %2096 = vmatpush1.xpose.msra.mxu0 0.0
      %2097 = vmatprep.subr.mxu0 0.0
      %2098 = vmatpush1.xpose.msra.mxu0 0.0
      %2099 = vmatprep.subr.mxu0 0.0
      %2100 = vmatpush1.xpose.msra.mxu0 0.0
      %2101 = vmatprep.subr.mxu0 0.0
      %2102 = vmatpush1.xpose.msra.mxu0 0.0
      %2103 = vmatprep.subr.mxu0 0.0
      %2104 = vmatpush1.xpose.msra.mxu0 0.0
      %2105 = vmatprep.subr.mxu0 0.0
      %2106 = vmatpush1.xpose.msra.mxu0 0.0
      %2107 = vmatprep.mubr.f32.mxu0 0.0
      %2108 = vmatmul.mubr.f32.gmra.mrb[0].mxu0 %v2038
      %v2109 = vpop.f32.mrb[0].mxu0
      %v2110 = vadd.f32 0.0, %v2109
      %v2111 = vpop.f32.mrb[0].mxu0
      %2112 = vdwg.mxu0
      %v2113 = vmul.f32 %v2110, 0.35355338
      %v2114 = vadd.f32 %v2113, %v622
      %v2115 = vsel %vm817, %v2114, -inf
      %2116 = vmax.xlane.f32.xlu0 %v2115
      %v2117 = vpop.xlane.xlu0 %2116
      %v2118 = vsub.f32 %v2114, %v2117
      %v2119 = vmul.f32 %v2118, 1.442695
      %v2120 = vpow.pop %v2119
      %v2121 = vsel %vm817, %v2120, 0.0
      %2122 = vadd.xlane.f32.xlu0 %v2121
      %v2123 = vpop.xlane.xlu0 %2122
      %v2124 = vrcp.pop %v2123
      %v2125 = vmul.f32 %v2120, %v2124
      %v2127 = vsel %vm817, %v2125, 0
      %2129 = vmatprep.subr.mxu0 0.0
      %2130 = vmatpush1.msra.mxu0 %v2032
      %2131 = vmatprep.subr.mxu0 0.0
      %2132 = vmatpush1.msra.mxu0 0.0
      %2133 = vmatprep.subr.mxu0 0.0
      %2134 = vmatpush1.msra.mxu0 0.0
      %2135 = vmatprep.subr.mxu0 0.0
      %2136 = vmatpush1.msra.mxu0 0.0
      %2137 = vmatprep.subr.mxu0 0.0
      %2138 = vmatpush1.msra.mxu0 0.0
      %2139 = vmatprep.subr.mxu0 0.0
      %2140 = vmatpush1.msra.mxu0 0.0
      %2141 = vmatprep.subr.mxu0 0.0
      %2142 = vmatpush1.msra.mxu0 0.0
      %2143 = vmatprep.subr.mxu0 0.0
      %2144 = vmatpush1.msra.mxu0 0.0
      %2145 = vmatprep.subr.mxu0 0.0
      %2146 = vmatpush1.msra.mxu0 0.0
      %2147 = vmatprep.subr.mxu0 0.0
      %2148 = vmatpush1.msra.mxu0 0.0
      %2149 = vmatprep.subr.mxu0 0.0
      %2150 = vmatpush1.msra.mxu0 0.0
      %2151 = vmatprep.subr.mxu0 0.0
      %2152 = vmatpush1.msra.mxu0 0.0
      %2153 = vmatprep.subr.mxu0 0.0
      %2154 = vmatpush1.msra.mxu0 0.0
      %2155 = vmatprep.subr.mxu0 0.0
      %2156 = vmatpush1.msra.mxu0 0.0
      %2157 = vmatprep.subr.mxu0 0.0
      %2158 = vmatpush1.msra.mxu0 0.0
      %2159 = vmatprep.subr.mxu0 0.0
      %2160 = vmatpush1.msra.mxu0 0.0
      %2161 = vmatprep.subr.mxu0 0.0
      %2162 = vmatpush1.msra.mxu0 0.0
      %2163 = vmatprep.subr.mxu0 0.0
      %2164 = vmatpush1.msra.mxu0 0.0
      %2165 = vmatprep.subr.mxu0 0.0
      %2166 = vmatpush1.msra.mxu0 0.0
      %2167 = vmatprep.subr.mxu0 0.0
      %2168 = vmatpush1.msra.mxu0 0.0
      %2169 = vmatprep.subr.mxu0 0.0
      %2170 = vmatpush1.msra.mxu0 0.0
      %2171 = vmatprep.subr.mxu0 0.0
      %2172 = vmatpush1.msra.mxu0 0.0
      %2173 = vmatprep.subr.mxu0 0.0
      %2174 = vmatpush1.msra.mxu0 0.0
      %2175 = vmatprep.subr.mxu0 0.0
      %2176 = vmatpush1.msra.mxu0 0.0
      %2177 = vmatprep.subr.mxu0 0.0
      %2178 = vmatpush1.msra.mxu0 0.0
      %2179 = vmatprep.subr.mxu0 0.0
      %2180 = vmatpush1.msra.mxu0 0.0
      %2181 = vmatprep.subr.mxu0 0.0
      %2182 = vmatpush1.msra.mxu0 0.0
      %2183 = vmatprep.subr.mxu0 0.0
      %2184 = vmatpush1.msra.mxu0 0.0
      %2185 = vmatprep.subr.mxu0 0.0
      %2186 = vmatpush1.msra.mxu0 0.0
      %2187 = vmatprep.subr.mxu0 0.0
      %2188 = vmatpush1.msra.mxu0 0.0
      %2189 = vmatprep.subr.mxu0 0.0
      %2190 = vmatpush1.msra.mxu0 0.0
      %2191 = vmatprep.subr.mxu0 0.0
      %2192 = vmatpush1.msra.mxu0 0.0
      %2193 = vmatprep.mubr.f32.mxu0 0.0
      %2194 = vmatmul.mubr.f32.gmra.mrb[0].mxu0 %v2127
      %v2195 = vpop.f32.mrb[0].mxu0
      %v2196 = vadd.f32 0.0, %v2195
      %v2197 = vpop.f32.mrb[0].mxu0
      %2198 = vdwg.mxu0
      %v2199 = vpack.c.bf16 %v2196, %v2196
      %s2200 = scalar_lea.vmem %s9, 12
      %v2201 = vld [vmem:[%s2200] sm:$0xf]
      %v2203 = vsel %vm817, %v2199, 0
      %v2206 = vsel %vm1345, %v2201, 0
      %2208 = vmatprep.subr.bf16.mxu0 0
      %2209 = vmatpush1.bf16.msra.mxu0 %v2206
      %2210 = vmatprep.subr.bf16.mxu0 0
      %2211 = vmatpush1.bf16.msra.mxu0 0
      %2212 = vmatprep.subr.bf16.mxu0 0
      %2213 = vmatpush1.bf16.msra.mxu0 0
      %2214 = vmatprep.subr.bf16.mxu0 0
      %2215 = vmatpush1.bf16.msra.mxu0 0
      %2216 = vmatprep.subr.bf16.mxu0 0
      %2217 = vmatpush1.bf16.msra.mxu0 0
      %2218 = vmatprep.subr.bf16.mxu0 0
      %2219 = vmatpush1.bf16.msra.mxu0 0
      %2220 = vmatprep.subr.bf16.mxu0 0
      %2221 = vmatpush1.bf16.msra.mxu0 0
      %2222 = vmatprep.subr.bf16.mxu0 0
      %2223 = vmatpush1.bf16.msra.mxu0 0
      %2224 = vmatprep.subr.bf16.mxu0 0
      %2225 = vmatpush1.bf16.msra.mxu0 0
      %2226 = vmatprep.subr.bf16.mxu0 0
      %2227 = vmatpush1.bf16.msra.mxu0 0
      %2228 = vmatprep.subr.bf16.mxu0 0
      %2229 = vmatpush1.bf16.msra.mxu0 0
      %2230 = vmatprep.subr.bf16.mxu0 0
      %2231 = vmatpush1.bf16.msra.mxu0 0
      %2232 = vmatprep.subr.bf16.mxu0 0
      %2233 = vmatpush1.bf16.msra.mxu0 0
      %2234 = vmatprep.subr.bf16.mxu0 0
      %2235 = vmatpush1.bf16.msra.mxu0 0
      %2236 = vmatprep.subr.bf16.mxu0 0
      %2237 = vmatpush1.bf16.msra.mxu0 0
      %2238 = vmatprep.subr.bf16.mxu0 0
      %2239 = vmatpush1.bf16.msra.mxu0 0
      %2240 = vmatprep.mubr.bf16.mxu0 0
      %2241 = vmatmul.mubr.bf16.gmra.mrb[0].mxu0 %v2203
      %v2242 = vpop.f32.mrb[0].mxu0
      %v2243 = vadd.f32 0.0, %v2242
      %v2244 = vpop.f32.mrb[0].mxu0
      %v2245 = vpop.f32.mrb[0].mxu0
      %v2246 = vpop.f32.mrb[0].mxu0
      %2247 = vdwg.mxu0
      %v2248 = vadd.f32 %v1841, %v2243
      %v2249 = vld [vmem:[%s10] sm:$0x1]
      %v2251 = vlaneseq
      %v2252 = vshrl.u32 %v2251, 7
      %v2253 = vsub.s32 0, %v2252
      %v2254 = vrot.slane %v2249, %v2253
      %v2256 = vadd.f32 %v2248, %v2254
      %v2257 = vadd.f32 %v613, %v2256
      %v2258 = vld [vmem:[%s11] sm:$0x1]
      %v2259 = vld [vmem:[%s12] sm:$0x1]
      %v2260 = vsel %vm647, %v2257, 0.0
      %2261 = vadd.xlane.f32.xlu0 %v2260
      %v2262 = vpop.xlane.xlu0 %2261
      %v2263 = vrcp.pop 32.0
      %v2264 = vmul.f32 %v2262, %v2263
      %v2265 = vsub.f32 %v2257, %v2264
      %v2266 = vmul.f32 %v2265, %v2265
      %v2267 = vsel %vm647, %v2266, 0.0
      %2268 = vadd.xlane.f32.xlu0 %v2267
      %v2269 = vpop.xlane.xlu0 %2268
      %v2270 = vmul.f32 %v2269, %v2263
      %v2271 = vadd.f32 %v2270, 1e-05
      %v2272 = vrsqrt.pop %v2271
      %v2273 = vmul.f32 %v2265, %v2272
      %v2275 = vlaneseq
      %v2276 = vshrl.u32 %v2275, 7
      %v2277 = vsub.s32 0, %v2276
      %v2278 = vrot.slane %v2258, %v2277
      %v2280 = vmul.f32 %v2273, %v2278
      %v2282 = vlaneseq
      %v2283 = vshrl.u32 %v2282, 7
      %v2284 = vsub.s32 0, %v2283
      %v2285 = vrot.slane %v2259, %v2284
      %v2287 = vadd.f32 %v2280, %v2285
      %v2288 = vpack.c.bf16 %v2287, %v2287
      %v2289 = vld [vmem:[%s13] sm:$0xf]
      %v2290 = vld [vmem:[%s13 + $0x4] sm:$0xf]
      %v2291 = vld [vmem:[%s13 + $0x8] sm:$0xf]
      %v2292 = vld [vmem:[%s13 + $0xc] sm:$0xf]
      %v2293 = vld [vmem:[%s14] sm:$0x1]
      %v2295 = vlaneseq
      %v2296 = vshrl.u32 %v2295, 7
      %v2297 = vsub.s32 0, %v2296
      %v2298 = vrot.slane %v2293, %v2297
      %v2304 = vunpack.c.l.b16 %v2289
      %v2305 = vunpack.c.l.b16 %v2290
      %v2306 = vunpack.c.l.b16 %v2291
      %v2307 = vunpack.c.l.b16 %v2292
      %v2308 = vpack.c.b16 %v2305, %v2304
      %v2309 = vpack.c.b16 %v2307, %v2306
      %v2313 = vsel %vm647, %v2288, 0
      %2315 = vmatprep.subr.bf16.mxu0 0
      %2316 = vmatpush1.bf16.msra.mxu0 %v2308
      %2317 = vmatprep.subr.bf16.mxu0 0
      %2318 = vmatpush1.bf16.msra.mxu0 %v2309
      %2319 = vmatprep.subr.bf16.mxu0 0
      %2320 = vmatpush1.bf16.msra.mxu0 0
      %2321 = vmatprep.subr.bf16.mxu0 0
      %2322 = vmatpush1.bf16.msra.mxu0 0
      %2323 = vmatprep.subr.bf16.mxu0 0
      %2324 = vmatpush1.bf16.msra.mxu0 0
      %2325 = vmatprep.subr.bf16.mxu0 0
      %2326 = vmatpush1.bf16.msra.mxu0 0
      %2327 = vmatprep.subr.bf16.mxu0 0
      %2328 = vmatpush1.bf16.msra.mxu0 0
      %2329 = vmatprep.subr.bf16.mxu0 0
      %2330 = vmatpush1.bf16.msra.mxu0 0
      %2331 = vmatprep.subr.bf16.mxu0 0
      %2332 = vmatpush1.bf16.msra.mxu0 0
      %2333 = vmatprep.subr.bf16.mxu0 0
      %2334 = vmatpush1.bf16.msra.mxu0 0
      %2335 = vmatprep.subr.bf16.mxu0 0
      %2336 = vmatpush1.bf16.msra.mxu0 0
      %2337 = vmatprep.subr.bf16.mxu0 0
      %2338 = vmatpush1.bf16.msra.mxu0 0
      %2339 = vmatprep.subr.bf16.mxu0 0
      %2340 = vmatpush1.bf16.msra.mxu0 0
      %2341 = vmatprep.subr.bf16.mxu0 0
      %2342 = vmatpush1.bf16.msra.mxu0 0
      %2343 = vmatprep.subr.bf16.mxu0 0
      %2344 = vmatpush1.bf16.msra.mxu0 0
      %2345 = vmatprep.subr.bf16.mxu0 0
      %2346 = vmatpush1.bf16.msra.mxu0 0
      %2347 = vmatprep.mubr.bf16.mxu0 0
      %2348 = vmatmul.mubr.bf16.gmra.mrb[0].mxu0 %v2313
      %v2349 = vpop.f32.mrb[0].mxu0
      %v2350 = vadd.f32 %v2298, %v2349
      %v2351 = vpop.f32.mrb[0].mxu0
      %v2352 = vpop.f32.mrb[0].mxu0
      %v2353 = vpop.f32.mrb[0].mxu0
      %2354 = vdwg.mxu0
      %v2355 = vmax.f32 %v2350, 0.0
      %v2356 = vpack.c.bf16 %v2355, %v2355
      %v2357 = vld [vmem:[%s15] sm:$0xf]
      %v2358 = vld [vmem:[%s15 + $0x4] sm:$0xf]
      %v2359 = vld [vmem:[%s15 + $0x8] sm:$0xf]
      %v2360 = vld [vmem:[%s15 + $0xc] sm:$0xf]
      %v2361 = vld [vmem:[%s15 + $0x10] sm:$0xf]
      %v2362 = vld [vmem:[%s15 + $0x14] sm:$0xf]
      %v2363 = vld [vmem:[%s15 + $0x18] sm:$0xf]
      %v2364 = vld [vmem:[%s15 + $0x1c] sm:$0xf]
      %v2365 = vld [vmem:[%s16] sm:$0x1]
      %v2367 = vlaneseq
      %v2368 = vshrl.u32 %v2367, 7
      %v2369 = vsub.s32 0, %v2368
      %v2370 = vrot.slane %v2365, %v2369
      %v2380 = vunpack.c.l.b16 %v2357
      %v2381 = vunpack.c.l.b16 %v2358
      %v2382 = vunpack.c.l.b16 %v2359
      %v2383 = vunpack.c.l.b16 %v2360
      %v2384 = vunpack.c.l.b16 %v2361
      %v2385 = vunpack.c.l.b16 %v2362
      %v2386 = vunpack.c.l.b16 %v2363
      %v2387 = vunpack.c.l.b16 %v2364
      %v2388 = vpack.c.b16 %v2381, %v2380
      %v2389 = vpack.c.b16 %v2383, %v2382
      %v2390 = vpack.c.b16 %v2385, %v2384
      %v2391 = vpack.c.b16 %v2387, %v2386
      %vm2396 = vcmask 523264
      %v2398 = vsel %vm2396, %v2356, 0
      %2400 = vmatprep.subr.bf16.mxu0 0
      %2401 = vmatpush1.bf16.msra.mxu0 %v2388
      %2402 = vmatprep.subr.bf16.mxu0 0
      %2403 = vmatpush1.bf16.msra.mxu0 %v2389
      %2404 = vmatprep.subr.bf16.mxu0 0
      %2405 = vmatpush1.bf16.msra.mxu0 %v2390
      %2406 = vmatprep.subr.bf16.mxu0 0
      %2407 = vmatpush1.bf16.msra.mxu0 %v2391
      %2408 = vmatprep.subr.bf16.mxu0 0
      %2409 = vmatpush1.bf16.msra.mxu0 0
      %2410 = vmatprep.subr.bf16.mxu0 0
      %2411 = vmatpush1.bf16.msra.mxu0 0
      %2412 = vmatprep.subr.bf16.mxu0 0
      %2413 = vmatpush1.bf16.msra.mxu0 0
      %2414 = vmatprep.subr.bf16.mxu0 0
      %2415 = vmatpush1.bf16.msra.mxu0 0
      %2416 = vmatprep.subr.bf16.mxu0 0
      %2417 = vmatpush1.bf16.msra.mxu0 0
      %2418 = vmatprep.subr.bf16.mxu0 0
      %2419 = vmatpush1.bf16.msra.mxu0 0
      %2420 = vmatprep.subr.bf16.mxu0 0
      %2421 = vmatpush1.bf16.msra.mxu0 0
      %2422 = vmatprep.subr.bf16.mxu0 0
      %2423 = vmatpush1.bf16.msra.mxu0 0
      %2424 = vmatprep.subr.bf16.mxu0 0
      %2425 = vmatpush1.bf16.msra.mxu0 0
      %2426 = vmatprep.subr.bf16.mxu0 0
      %2427 = vmatpush1.bf16.msra.mxu0 0
      %2428 = vmatprep.subr.bf16.mxu0 0
      %2429 = vmatpush1.bf16.msra.mxu0 0
      %2430 = vmatprep.subr.bf16.mxu0 0
      %2431 = vmatpush1.bf16.msra.mxu0 0
      %2432 = vmatprep.mubr.bf16.mxu0 0
      %2433 = vmatmul.mubr.bf16.gmra.mrb[0].mxu0 %v2398
      %v2434 = vpop.f32.mrb[0].mxu0
      %v2435 = vadd.f32 %v2370, %v2434
      %v2436 = vpop.f32.mrb[0].mxu0
      %v2437 = vpop.f32.mrb[0].mxu0
      %v2438 = vpop.f32.mrb[0].mxu0
      %2439 = vdwg.mxu0
      %v2440 = vadd.f32 %v2287, %v2435
      %v2441 = vld [vmem:[%s17] sm:$0x1]
      %v2442 = vld [vmem:[%s18] sm:$0x1]
      %v2443 = vsel %vm647, %v2440, 0.0
      %2444 = vadd.xlane.f32.xlu0 %v2443
      %v2445 = vpop.xlane.xlu0 %2444
      %v2446 = vmul.f32 %v2445, %v2263
      %v2447 = vsub.f32 %v2440, %v2446
      %v2448 = vmul.f32 %v2447, %v2447
      %v2449 = vsel %vm647, %v2448, 0.0
      %2450 = vadd.xlane.f32.xlu0 %v2449
      %v2451 = vpop.xlane.xlu0 %2450
      %v2452 = vmul.f32 %v2451, %v2263
      %v2453 = vadd.f32 %v2452, 1e-05
      %v2454 = vrsqrt.pop %v2453
      %v2455 = vmul.f32 %v2447, %v2454
      %v2457 = vlaneseq
      %v2458 = vshrl.u32 %v2457, 7
      %v2459 = vsub.s32 0, %v2458
      %v2460 = vrot.slane %v2441, %v2459
      %v2462 = vmul.f32 %v2455, %v2460
      %v2464 = vlaneseq
      %v2465 = vshrl.u32 %v2464, 7
      %v2466 = vsub.s32 0, %v2465
      %v2467 = vrot.slane %v2442, %v2466
      %v2469 = vadd.f32 %v2462, %v2467
      %2470 = vst.msk [vmem:[%s611] sm:$0xff] %vm647, %v2469
      %p2471 = scmp.lt.s32.totalorder %s30, 1
      %s2472 = scalar_select %p2471, %s30, 1
      %s2473 = smul.addr %s2472, 8
      %s2474 = scalar_lea.vmem %s19, %s2473
      // Predicated region
      $region97: #{seq2seq_forward.7} parent=95 // pred_check
        %p2475 = pneg %p457
      $region98: #{seq2seq_forward.7} parent=95 // pred_check_branch
        %2477 = sbr.rel (%p2475) target = $region100
      $region99: #{seq2seq_forward.7} parent=95 // pred_region
        _
      $region100: #{seq2seq_forward.7} parent=95 // pred_fallthru
        _
    $region96: #{seq2seq_forward.7} parent=5 // pred_fallthru
      _
    %p2478 = scmp.le.s32.totalorder 2, %s25
    // Predicated region
    $region101: #{seq2seq_forward.7} parent=5 // pred_check
      %p2479 = pneg %p2478
    $region102: #{seq2seq_forward.7} parent=5 // pred_check_branch
      %2481 = sbr.rel (%p2479) target = $region104
    $region103: #{seq2seq_forward.7} parent=5 // pred_region
      %s2482 = ssub.s32 %s25, 2
      // Predicated region
      $region105: #{seq2seq_forward.7} parent=103 // pred_check
        %p2483 = pneg %p463
      $region106: #{seq2seq_forward.7} parent=103 // pred_check_branch
        %2485 = sbr.rel (%p2483) target = $region108
      $region107: #{seq2seq_forward.7} parent=103 // pred_region
        %p2486 = scmp.lt.s32.totalorder %s31, 1
        %s2487 = scalar_select %p2486, %s31, 1
        %s2488 = smul.addr %s2487, 8
        %s2489 = scalar_lea.vmem %s19, %s2488
      $region108: #{seq2seq_forward.7} parent=103 // pred_fallthru
        _
    $region104: #{seq2seq_forward.7} parent=5 // pred_fallthru
      _
  $region6: #{seq2seq_forward.7} parent=0 // loop_footer
    %s29 = sadd.s32 1, %s25
  $region7: #{seq2seq_forward.7} parent=0 // loop_footer_branch
    %24 = sbr.rel target = $region3
  $region8: #{seq2seq_forward.7} parent=0 // loop_exit
    _

// kernel: seq2seq_forward.10
$region0: #{seq2seq_forward.10}
  #allocation0 [shape = 'u32[]', space=smem, size = 0x4, offset = 0x4, fixed_abs, tag = 'smem constant byte address 0x4 - core index']
  #allocation1 [shape = 'u32[144,128]{1,0:T(1,128)}', space=vmem, size = 0x12000, scoped, tag = 'internal scratch']
  %s0 = inlined_call_operand.smem [shape: u32[32], index: -1, kind: input, shape index: {}]
  %s1 = sld [smem:[%s0]]
  %s2 = scalar_lea.smem %s0, 1
  %s3 = sld [smem:[%s2]]
  %s4 = scalar_lea.smem %s0, 2
  %s5 = sld [smem:[%s4]]
  %s6 = scalar_lea.smem %s0, 3
  %s7 = sld [smem:[%s6]]
  %s8 = scalar_lea.smem %s0, 4
  %s9 = sld [smem:[%s8]]
  %s10 = scalar_lea.smem %s0, 5
  %s11 = sld [smem:[%s10]]
  %s12 = scalar_lea.smem %s0, 6
  %s13 = sld [smem:[%s12]]
  %s14 = scalar_lea.smem %s0, 7
  %s15 = sld [smem:[%s14]]
  %s16 = scalar_lea.smem %s0, 8
  %s17 = sld [smem:[%s16]]
  %s18 = scalar_lea.smem %s0, 9
  %s19 = sld [smem:[%s18]]
  %s20 = scalar_lea.smem %s0, 10
  %s21 = sld [smem:[%s20]]
  %s22 = scalar_lea.smem %s0, 11
  %s23 = sld [smem:[%s22]]
  %s24 = scalar_lea.smem %s0, 12
  %s25 = sld [smem:[%s24]]
  %s26 = scalar_lea.smem %s0, 13
  %s27 = sld [smem:[%s26]]
  %s28 = scalar_lea.smem %s0, 14
  %s29 = sld [smem:[%s28]]
  %s30 = scalar_lea.smem %s0, 15
  %s31 = sld [smem:[%s30]]
  %s32 = scalar_lea.smem %s0, 16
  %s33 = sld [smem:[%s32]]
  %s34 = scalar_lea.smem %s0, 17
  %s35 = sld [smem:[%s34]]
  %s36 = scalar_lea.smem %s0, 18
  %s37 = sld [smem:[%s36]]
  %s38 = scalar_lea.smem %s0, 19
  %s39 = sld [smem:[%s38]]
  %s40 = scalar_lea.smem %s0, 20
  %s41 = sld [smem:[%s40]]
  %s42 = scalar_lea.smem %s0, 21
  %s43 = sld [smem:[%s42]]
  %s44 = scalar_lea.smem %s0, 22
  %s45 = sld [smem:[%s44]]
  %s46 = scalar_lea.smem %s0, 23
  %s47 = sld [smem:[%s46]]
  %s48 = scalar_lea.smem %s0, 24
  %s49 = sld [smem:[%s48]]
  %s50 = scalar_lea.smem %s0, 25
  %s51 = sld [smem:[%s50]]
  %s52 = scalar_lea.smem %s0, 26
  %s53 = sld [smem:[%s52]]
  %s54 = scalar_lea.smem %s0, 27
  %s55 = sld [smem:[%s54]]
  %s56 = scalar_lea.smem %s0, 28
  %s57 = sld [smem:[%s56]]
  %s58 = scalar_lea.smem %s0, 29
  %s59 = sld [smem:[%s58]]
  %s60 = scalar_lea.smem %s0, 30
  %s61 = sld [smem:[%s60]]
  %s62 = scalar_lea.smem %s0, 31
  %s63 = sld [smem:[%s62]]
  %s64 = sld [smem:[#allocation0]]
  $region157: #{seq2seq_forward.10} parent=0
    _
  %s66 = ssub.s32 1, %s64
  %s67 = scalar_select 0, %s66, %s64
  loop: start=0, step=1, limit=4
  $region2: #{seq2seq_forward.10} parent=0 // loop_pre_header
    _
  $region3: #{seq2seq_forward.10} parent=0 // loop_header
    %s69 = sphi 0, %s73
    %p70 = scmp.ge.s32.totalorder %s69, 4
    %s79 = sphi 0, %s81
    %s82 = sphi 0, %s79
    %s83 = sphi 0, %s82
    %s99 = sphi 0, %s83
    %s105 = sphi 0, %s107
    %s108 = sphi 0, %s105
    %s109 = sphi 0, %s108
    %s125 = sphi 0, %s109
    %s129 = sphi 0, %s129
    %s131 = sphi 0, %s129
    %s132 = sphi 0, %s131
    %s146 = sphi 0, %s132
    %s152 = sphi 0, %s154
    %s155 = sphi 0, %s152
    %s156 = sphi 0, %s155
    %s172 = sphi 0, %s156
    %s178 = sphi 0, %s180
    %s181 = sphi 0, %s178
    %s182 = sphi 0, %s181
    %s198 = sphi 0, %s182
    %s202 = sphi 0, %s202
    %s204 = sphi 0, %s202
    %s205 = sphi 0, %s204
    %s219 = sphi 0, %s205
    %s223 = sphi 0, %s223
    %s225 = sphi 0, %s223
    %s226 = sphi 0, %s225
    %s240 = sphi 0, %s226
    %s244 = sphi 0, %s244
    %s246 = sphi 0, %s244
    %s247 = sphi 0, %s246
    %s261 = sphi 0, %s247
    %s265 = sphi 0, %s265
    %s267 = sphi 0, %s265
    %s268 = sphi 0, %s267
    %s282 = sphi 0, %s268
    %s286 = sphi 0, %s286
    %s288 = sphi 0, %s286
    %s289 = sphi 0, %s288
    %s303 = sphi 0, %s289
    %s307 = sphi 0, %s307
    %s309 = sphi 0, %s307
    %s310 = sphi 0, %s309
    %s324 = sphi 0, %s310
    %s328 = sphi 0, %s328
    %s330 = sphi 0, %s328
    %s331 = sphi 0, %s330
    %s345 = sphi 0, %s331
    %s349 = sphi 0, %s349
    %s351 = sphi 0, %s349
    %s352 = sphi 0, %s351
    %s366 = sphi 0, %s352
    %s370 = sphi 0, %s370
    %s372 = sphi 0, %s370
    %s373 = sphi 0, %s372
    %s387 = sphi 0, %s373
    %s391 = sphi 0, %s391
    %s393 = sphi 0, %s391
    %s394 = sphi 0, %s393
    %s408 = sphi 0, %s394
    %s412 = sphi 0, %s412
    %s414 = sphi 0, %s412
    %s415 = sphi 0, %s414
    %s429 = sphi 0, %s415
    %s433 = sphi 0, %s433
    %s435 = sphi 0, %s433
    %s436 = sphi 0, %s435
    %s450 = sphi 0, %s436
    %s454 = sphi 0, %s454
    %s456 = sphi 0, %s454
    %s457 = sphi 0, %s456
    %s471 = sphi 0, %s457
    %s475 = sphi 0, %s475
    %s477 = sphi 0, %s475
    %s478 = sphi 0, %s477
    %s492 = sphi 0, %s478
    %s496 = sphi 0, %s496
    %s498 = sphi 0, %s496
    %s499 = sphi 0, %s498
    %s513 = sphi 0, %s499
    %s517 = sphi 0, %s517
    %s519 = sphi 0, %s517
    %s520 = sphi 0, %s519
    %s534 = sphi 0, %s520
    %s538 = sphi 0, %s538
    %s540 = sphi 0, %s538
    %s541 = sphi 0, %s540
    %s555 = sphi 0, %s541
    %s559 = sphi 0, %s559
    %s561 = sphi 0, %s559
    %s562 = sphi 0, %s561
    %s576 = sphi 0, %s562
    %s580 = sphi 0, %s580
    %s582 = sphi 0, %s580
    %s583 = sphi 0, %s582
    %s597 = sphi 0, %s583
    %s601 = sphi 0, %s601
    %s603 = sphi 0, %s601
    %s604 = sphi 0, %s603
    %s618 = sphi 0, %s604
    %s622 = sphi 0, %s622
    %s624 = sphi 0, %s622
    %s625 = sphi 0, %s624
    %s639 = sphi 0, %s625
    %s643 = sphi 0, %s643
    %s645 = sphi 0, %s643
    %s646 = sphi 0, %s645
    %s660 = sphi 0, %s646
    %s664 = sphi 0, %s664
    %s666 = sphi 0, %s664
    %s667 = sphi 0, %s666
    %s681 = sphi 0, %s667
    %s685 = sphi 0, %s685
    %s687 = sphi 0, %s685
    %s688 = sphi 0, %s687
    %s702 = sphi 0, %s688
    %s706 = sphi 0, %s706
    %s708 = sphi 0, %s706
    %s709 = sphi 0, %s708
    %s723 = sphi 0, %s709
    %s727 = sphi 0, %s727
    %s729 = sphi 0, %s727
    %s730 = sphi 0, %s729
    %s744 = sphi 0, %s730
    %s750 = sphi 0, %s752
    %s753 = sphi 0, %s750
    %s754 = sphi 0, %s753
    %s770 = sphi 0, %s754
  $region4: #{seq2seq_forward.10} parent=0 // loop_header_branch
    %72 = sbr.rel (%p70) target = $region8
  $region5: #{seq2seq_forward.10} parent=0 // loop_body
    %s74 = ssub.s32 %s69, 1
    %s75 = ssub.s32 %s69, 2
    %s76 = sadd.s32 %s69, 1
    %s77 = ssub.s32 %s69, %s76
    %p78 = scmp.eq.s32.totalorder %s77, 0
    %s80 = sadd.s32 %s79, 1
    %s81 = scalar_select %p78, %s79, %s80
    %p84 = pneg %p78
    %p85 = scmp.eq.s32.totalorder %s69, 1
    %p86 = por %p84, %p85
    %p87 = scmp.ne.s32.totalorder %s79, %s82
    %p88 = scmp.eq.s32.totalorder %s69, 0
    %p89 = por %p87, %p88
    %p90 = scmp.ne.s32.totalorder %s79, %s82
    %p91 = scmp.eq.s32.totalorder %s74, 1
    %p92 = por %p90, %p91
    %p93 = scmp.ne.s32.totalorder %s82, %s83
    %p94 = scmp.eq.s32.totalorder %s74, 0
    %p95 = por %p93, %p94
    %p96 = scmp.ne.s32.totalorder %s82, %s83
    %p97 = scmp.eq.s32.totalorder %s75, 1
    %p98 = por %p96, %p97
    %p100 = scmp.ne.s32.totalorder %s83, %s99
    %p101 = scmp.eq.s32.totalorder %s75, 0
    %p102 = por %p100, %p101
    %s103 = ssub.s32 %s69, %s76
    %p104 = scmp.eq.s32.totalorder %s103, 0
    %s106 = sadd.s32 %s105, 1
    %s107 = scalar_select %p104, %s105, %s106
    %p110 = pneg %p104
    %p111 = scmp.eq.s32.totalorder %s69, 1
    %p112 = por %p110, %p111
    %p113 = scmp.ne.s32.totalorder %s105, %s108
    %p114 = scmp.eq.s32.totalorder %s69, 0
    %p115 = por %p113, %p114
    %p116 = scmp.ne.s32.totalorder %s105, %s108
    %p117 = scmp.eq.s32.totalorder %s74, 1
    %p118 = por %p116, %p117
    %p119 = scmp.ne.s32.totalorder %s108, %s109
    %p120 = scmp.eq.s32.totalorder %s74, 0
    %p121 = por %p119, %p120
    %p122 = scmp.ne.s32.totalorder %s108, %s109
    %p123 = scmp.eq.s32.totalorder %s75, 1
    %p124 = por %p122, %p123
    %p126 = scmp.ne.s32.totalorder %s109, %s125
    %p127 = scmp.eq.s32.totalorder %s75, 0
    %p128 = por %p126, %p127
    %s130 = sadd.s32 %s129, 1
    %p133 = scmp.eq.s32.totalorder %s69, 1
    %p134 = scmp.ne.s32.totalorder %s129, %s131
    %p135 = scmp.eq.s32.totalorder %s69, 0
    %p136 = por %p134, %p135
    %p137 = scmp.ne.s32.totalorder %s129, %s131
    %p138 = scmp.eq.s32.totalorder %s74, 1
    %p139 = por %p137, %p138
    %p140 = scmp.ne.s32.totalorder %s131, %s132
    %p141 = scmp.eq.s32.totalorder %s74, 0
    %p142 = por %p140, %p141
    %p143 = scmp.ne.s32.totalorder %s131, %s132
    %p144 = scmp.eq.s32.totalorder %s75, 1
    %p145 = por %p143, %p144
    %p147 = scmp.ne.s32.totalorder %s132, %s146
    %p148 = scmp.eq.s32.totalorder %s75, 0
    %p149 = por %p147, %p148
    %s150 = ssub.s32 %s69, %s76
    %p151 = scmp.eq.s32.totalorder %s150, 0
    %s153 = sadd.s32 %s152, 1
    %s154 = scalar_select %p151, %s152, %s153
    %p157 = pneg %p151
    %p158 = scmp.eq.s32.totalorder %s69, 1
    %p159 = por %p157, %p158
    %p160 = scmp.ne.s32.totalorder %s152, %s155
    %p161 = scmp.eq.s32.totalorder %s69, 0
    %p162 = por %p160, %p161
    %p163 = scmp.ne.s32.totalorder %s152, %s155
    %p164 = scmp.eq.s32.totalorder %s74, 1
    %p165 = por %p163, %p164
    %p166 = scmp.ne.s32.totalorder %s155, %s156
    %p167 = scmp.eq.s32.totalorder %s74, 0
    %p168 = por %p166, %p167
    %p169 = scmp.ne.s32.totalorder %s155, %s156
    %p170 = scmp.eq.s32.totalorder %s75, 1
    %p171 = por %p169, %p170
    %p173 = scmp.ne.s32.totalorder %s156, %s172
    %p174 = scmp.eq.s32.totalorder %s75, 0
    %p175 = por %p173, %p174
    %s176 = ssub.s32 %s69, %s76
    %p177 = scmp.eq.s32.totalorder %s176, 0
    %s179 = sadd.s32 %s178, 1
    %s180 = scalar_select %p177, %s178, %s179
    %p183 = pneg %p177
    %p184 = scmp.eq.s32.totalorder %s69, 1
    %p185 = por %p183, %p184
    %p186 = scmp.ne.s32.totalorder %s178, %s181
    %p187 = scmp.eq.s32.totalorder %s69, 0
    %p188 = por %p186, %p187
    %p189 = scmp.ne.s32.totalorder %s178, %s181
    %p190 = scmp.eq.s32.totalorder %s74, 1
    %p191 = por %p189, %p190
    %p192 = scmp.ne.s32.totalorder %s181, %s182
    %p193 = scmp.eq.s32.totalorder %s74, 0
    %p194 = por %p192, %p193
    %p195 = scmp.ne.s32.totalorder %s181, %s182
    %p196 = scmp.eq.s32.totalorder %s75, 1
    %p197 = por %p195, %p196
    %p199 = scmp.ne.s32.totalorder %s182, %s198
    %p200 = scmp.eq.s32.totalorder %s75, 0
    %p201 = por %p199, %p200
    %s203 = sadd.s32 %s202, 1
    %p206 = scmp.eq.s32.totalorder %s69, 1
    %p207 = scmp.ne.s32.totalorder %s202, %s204
    %p208 = scmp.eq.s32.totalorder %s69, 0
    %p209 = por %p207, %p208
    %p210 = scmp.ne.s32.totalorder %s202, %s204
    %p211 = scmp.eq.s32.totalorder %s74, 1
    %p212 = por %p210, %p211
    %p213 = scmp.ne.s32.totalorder %s204, %s205
    %p214 = scmp.eq.s32.totalorder %s74, 0
    %p215 = por %p213, %p214
    %p216 = scmp.ne.s32.totalorder %s204, %s205
    %p217 = scmp.eq.s32.totalorder %s75, 1
    %p218 = por %p216, %p217
    %p220 = scmp.ne.s32.totalorder %s205, %s219
    %p221 = scmp.eq.s32.totalorder %s75, 0
    %p222 = por %p220, %p221
    %s224 = sadd.s32 %s223, 1
    %p227 = scmp.eq.s32.totalorder %s69, 1
    %p228 = scmp.ne.s32.totalorder %s223, %s225
    %p229 = scmp.eq.s32.totalorder %s69, 0
    %p230 = por %p228, %p229
    %p231 = scmp.ne.s32.totalorder %s223, %s225
    %p232 = scmp.eq.s32.totalorder %s74, 1
    %p233 = por %p231, %p232
    %p234 = scmp.ne.s32.totalorder %s225, %s226
    %p235 = scmp.eq.s32.totalorder %s74, 0
    %p236 = por %p234, %p235
    %p237 = scmp.ne.s32.totalorder %s225, %s226
    %p238 = scmp.eq.s32.totalorder %s75, 1
    %p239 = por %p237, %p238
    %p241 = scmp.ne.s32.totalorder %s226, %s240
    %p242 = scmp.eq.s32.totalorder %s75, 0
    %p243 = por %p241, %p242
    %s245 = sadd.s32 %s244, 1
    %p248 = scmp.eq.s32.totalorder %s69, 1
    %p249 = scmp.ne.s32.totalorder %s244, %s246
    %p250 = scmp.eq.s32.totalorder %s69, 0
    %p251 = por %p249, %p250
    %p252 = scmp.ne.s32.totalorder %s244, %s246
    %p253 = scmp.eq.s32.totalorder %s74, 1
    %p254 = por %p252, %p253
    %p255 = scmp.ne.s32.totalorder %s246, %s247
    %p256 = scmp.eq.s32.totalorder %s74, 0
    %p257 = por %p255, %p256
    %p258 = scmp.ne.s32.totalorder %s246, %s247
    %p259 = scmp.eq.s32.totalorder %s75, 1
    %p260 = por %p258, %p259
    %p262 = scmp.ne.s32.totalorder %s247, %s261
    %p263 = scmp.eq.s32.totalorder %s75, 0
    %p264 = por %p262, %p263
    %s266 = sadd.s32 %s265, 1
    %p269 = scmp.eq.s32.totalorder %s69, 1
    %p270 = scmp.ne.s32.totalorder %s265, %s267
    %p271 = scmp.eq.s32.totalorder %s69, 0
    %p272 = por %p270, %p271
    %p273 = scmp.ne.s32.totalorder %s265, %s267
    %p274 = scmp.eq.s32.totalorder %s74, 1
    %p275 = por %p273, %p274
    %p276 = scmp.ne.s32.totalorder %s267, %s268
    %p277 = scmp.eq.s32.totalorder %s74, 0
    %p278 = por %p276, %p277
    %p279 = scmp.ne.s32.totalorder %s267, %s268
    %p280 = scmp.eq.s32.totalorder %s75, 1
    %p281 = por %p279, %p280
    %p283 = scmp.ne.s32.totalorder %s268, %s282
    %p284 = scmp.eq.s32.totalorder %s75, 0
    %p285 = por %p283, %p284
    %s287 = sadd.s32 %s286, 1
    %p290 = scmp.eq.s32.totalorder %s69, 1
    %p291 = scmp.ne.s32.totalorder %s286, %s288
    %p292 = scmp.eq.s32.totalorder %s69, 0
    %p293 = por %p291, %p292
    %p294 = scmp.ne.s32.totalorder %s286, %s288
    %p295 = scmp.eq.s32.totalorder %s74, 1
    %p296 = por %p294, %p295
    %p297 = scmp.ne.s32.totalorder %s288, %s289
    %p298 = scmp.eq.s32.totalorder %s74, 0
    %p299 = por %p297, %p298
    %p300 = scmp.ne.s32.totalorder %s288, %s289
    %p301 = scmp.eq.s32.totalorder %s75, 1
    %p302 = por %p300, %p301
    %p304 = scmp.ne.s32.totalorder %s289, %s303
    %p305 = scmp.eq.s32.totalorder %s75, 0
    %p306 = por %p304, %p305
    %s308 = sadd.s32 %s307, 1
    %p311 = scmp.eq.s32.totalorder %s69, 1
    %p312 = scmp.ne.s32.totalorder %s307, %s309
    %p313 = scmp.eq.s32.totalorder %s69, 0
    %p314 = por %p312, %p313
    %p315 = scmp.ne.s32.totalorder %s307, %s309
    %p316 = scmp.eq.s32.totalorder %s74, 1
    %p317 = por %p315, %p316
    %p318 = scmp.ne.s32.totalorder %s309, %s310
    %p319 = scmp.eq.s32.totalorder %s74, 0
    %p320 = por %p318, %p319
    %p321 = scmp.ne.s32.totalorder %s309, %s310
    %p322 = scmp.eq.s32.totalorder %s75, 1
    %p323 = por %p321, %p322
    %p325 = scmp.ne.s32.totalorder %s310, %s324
    %p326 = scmp.eq.s32.totalorder %s75, 0
    %p327 = por %p325, %p326
    %s329 = sadd.s32 %s328, 1
    %p332 = scmp.eq.s32.totalorder %s69, 1
    %p333 = scmp.ne.s32.totalorder %s328, %s330
    %p334 = scmp.eq.s32.totalorder %s69, 0
    %p335 = por %p333, %p334
    %p336 = scmp.ne.s32.totalorder %s328, %s330
    %p337 = scmp.eq.s32.totalorder %s74, 1
    %p338 = por %p336, %p337
    %p339 = scmp.ne.s32.totalorder %s330, %s331
    %p340 = scmp.eq.s32.totalorder %s74, 0
    %p341 = por %p339, %p340
    %p342 = scmp.ne.s32.totalorder %s330, %s331
    %p343 = scmp.eq.s32.totalorder %s75, 1
    %p344 = por %p342, %p343
    %p346 = scmp.ne.s32.totalorder %s331, %s345
    %p347 = scmp.eq.s32.totalorder %s75, 0
    %p348 = por %p346, %p347
    %s350 = sadd.s32 %s349, 1
    %p353 = scmp.eq.s32.totalorder %s69, 1
    %p354 = scmp.ne.s32.totalorder %s349, %s351
    %p355 = scmp.eq.s32.totalorder %s69, 0
    %p356 = por %p354, %p355
    %p357 = scmp.ne.s32.totalorder %s349, %s351
    %p358 = scmp.eq.s32.totalorder %s74, 1
    %p359 = por %p357, %p358
    %p360 = scmp.ne.s32.totalorder %s351, %s352
    %p361 = scmp.eq.s32.totalorder %s74, 0
    %p362 = por %p360, %p361
    %p363 = scmp.ne.s32.totalorder %s351, %s352
    %p364 = scmp.eq.s32.totalorder %s75, 1
    %p365 = por %p363, %p364
    %p367 = scmp.ne.s32.totalorder %s352, %s366
    %p368 = scmp.eq.s32.totalorder %s75, 0
    %p369 = por %p367, %p368
    %s371 = sadd.s32 %s370, 1
    %p374 = scmp.eq.s32.totalorder %s69, 1
    %p375 = scmp.ne.s32.totalorder %s370, %s372
    %p376 = scmp.eq.s32.totalorder %s69, 0
    %p377 = por %p375, %p376
    %p378 = scmp.ne.s32.totalorder %s370, %s372
    %p379 = scmp.eq.s32.totalorder %s74, 1
    %p380 = por %p378, %p379
    %p381 = scmp.ne.s32.totalorder %s372, %s373
    %p382 = scmp.eq.s32.totalorder %s74, 0
    %p383 = por %p381, %p382
    %p384 = scmp.ne.s32.totalorder %s372, %s373
    %p385 = scmp.eq.s32.totalorder %s75, 1
    %p386 = por %p384, %p385
    %p388 = scmp.ne.s32.totalorder %s373, %s387
    %p389 = scmp.eq.s32.totalorder %s75, 0
    %p390 = por %p388, %p389
    %s392 = sadd.s32 %s391, 1
    %p395 = scmp.eq.s32.totalorder %s69, 1
    %p396 = scmp.ne.s32.totalorder %s391, %s393
    %p397 = scmp.eq.s32.totalorder %s69, 0
    %p398 = por %p396, %p397
    %p399 = scmp.ne.s32.totalorder %s391, %s393
    %p400 = scmp.eq.s32.totalorder %s74, 1
    %p401 = por %p399, %p400
    %p402 = scmp.ne.s32.totalorder %s393, %s394
    %p403 = scmp.eq.s32.totalorder %s74, 0
    %p404 = por %p402, %p403
    %p405 = scmp.ne.s32.totalorder %s393, %s394
    %p406 = scmp.eq.s32.totalorder %s75, 1
    %p407 = por %p405, %p406
    %p409 = scmp.ne.s32.totalorder %s394, %s408
    %p410 = scmp.eq.s32.totalorder %s75, 0
    %p411 = por %p409, %p410
    %s413 = sadd.s32 %s412, 1
    %p416 = scmp.eq.s32.totalorder %s69, 1
    %p417 = scmp.ne.s32.totalorder %s412, %s414
    %p418 = scmp.eq.s32.totalorder %s69, 0
    %p419 = por %p417, %p418
    %p420 = scmp.ne.s32.totalorder %s412, %s414
    %p421 = scmp.eq.s32.totalorder %s74, 1
    %p422 = por %p420, %p421
    %p423 = scmp.ne.s32.totalorder %s414, %s415
    %p424 = scmp.eq.s32.totalorder %s74, 0
    %p425 = por %p423, %p424
    %p426 = scmp.ne.s32.totalorder %s414, %s415
    %p427 = scmp.eq.s32.totalorder %s75, 1
    %p428 = por %p426, %p427
    %p430 = scmp.ne.s32.totalorder %s415, %s429
    %p431 = scmp.eq.s32.totalorder %s75, 0
    %p432 = por %p430, %p431
    %s434 = sadd.s32 %s433, 1
    %p437 = scmp.eq.s32.totalorder %s69, 1
    %p438 = scmp.ne.s32.totalorder %s433, %s435
    %p439 = scmp.eq.s32.totalorder %s69, 0
    %p440 = por %p438, %p439
    %p441 = scmp.ne.s32.totalorder %s433, %s435
    %p442 = scmp.eq.s32.totalorder %s74, 1
    %p443 = por %p441, %p442
    %p444 = scmp.ne.s32.totalorder %s435, %s436
    %p445 = scmp.eq.s32.totalorder %s74, 0
    %p446 = por %p444, %p445
    %p447 = scmp.ne.s32.totalorder %s435, %s436
    %p448 = scmp.eq.s32.totalorder %s75, 1
    %p449 = por %p447, %p448
    %p451 = scmp.ne.s32.totalorder %s436, %s450
    %p452 = scmp.eq.s32.totalorder %s75, 0
    %p453 = por %p451, %p452
    %s455 = sadd.s32 %s454, 1
    %p458 = scmp.eq.s32.totalorder %s69, 1
    %p459 = scmp.ne.s32.totalorder %s454, %s456
    %p460 = scmp.eq.s32.totalorder %s69, 0
    %p461 = por %p459, %p460
    %p462 = scmp.ne.s32.totalorder %s454, %s456
    %p463 = scmp.eq.s32.totalorder %s74, 1
    %p464 = por %p462, %p463
    %p465 = scmp.ne.s32.totalorder %s456, %s457
    %p466 = scmp.eq.s32.totalorder %s74, 0
    %p467 = por %p465, %p466
    %p468 = scmp.ne.s32.totalorder %s456, %s457
    %p469 = scmp.eq.s32.totalorder %s75, 1
    %p470 = por %p468, %p469
    %p472 = scmp.ne.s32.totalorder %s457, %s471
    %p473 = scmp.eq.s32.totalorder %s75, 0
    %p474 = por %p472, %p473
    %s476 = sadd.s32 %s475, 1
    %p479 = scmp.eq.s32.totalorder %s69, 1
    %p480 = scmp.ne.s32.totalorder %s475, %s477
    %p481 = scmp.eq.s32.totalorder %s69, 0
    %p482 = por %p480, %p481
    %p483 = scmp.ne.s32.totalorder %s475, %s477
    %p484 = scmp.eq.s32.totalorder %s74, 1
    %p485 = por %p483, %p484
    %p486 = scmp.ne.s32.totalorder %s477, %s478
    %p487 = scmp.eq.s32.totalorder %s74, 0
    %p488 = por %p486, %p487
    %p489 = scmp.ne.s32.totalorder %s477, %s478
    %p490 = scmp.eq.s32.totalorder %s75, 1
    %p491 = por %p489, %p490
    %p493 = scmp.ne.s32.totalorder %s478, %s492
    %p494 = scmp.eq.s32.totalorder %s75, 0
    %p495 = por %p493, %p494
    %s497 = sadd.s32 %s496, 1
    %p500 = scmp.eq.s32.totalorder %s69, 1
    %p501 = scmp.ne.s32.totalorder %s496, %s498
    %p502 = scmp.eq.s32.totalorder %s69, 0
    %p503 = por %p501, %p502
    %p504 = scmp.ne.s32.totalorder %s496, %s498
    %p505 = scmp.eq.s32.totalorder %s74, 1
    %p506 = por %p504, %p505
    %p507 = scmp.ne.s32.totalorder %s498, %s499
    %p508 = scmp.eq.s32.totalorder %s74, 0
    %p509 = por %p507, %p508
    %p510 = scmp.ne.s32.totalorder %s498, %s499
    %p511 = scmp.eq.s32.totalorder %s75, 1
    %p512 = por %p510, %p511
    %p514 = scmp.ne.s32.totalorder %s499, %s513
    %p515 = scmp.eq.s32.totalorder %s75, 0
    %p516 = por %p514, %p515
    %s518 = sadd.s32 %s517, 1
    %p521 = scmp.eq.s32.totalorder %s69, 1
    %p522 = scmp.ne.s32.totalorder %s517, %s519
    %p523 = scmp.eq.s32.totalorder %s69, 0
    %p524 = por %p522, %p523
    %p525 = scmp.ne.s32.totalorder %s517, %s519
    %p526 = scmp.eq.s32.totalorder %s74, 1
    %p527 = por %p525, %p526
    %p528 = scmp.ne.s32.totalorder %s519, %s520
    %p529 = scmp.eq.s32.totalorder %s74, 0
    %p530 = por %p528, %p529
    %p531 = scmp.ne.s32.totalorder %s519, %s520
    %p532 = scmp.eq.s32.totalorder %s75, 1
    %p533 = por %p531, %p532
    %p535 = scmp.ne.s32.totalorder %s520, %s534
    %p536 = scmp.eq.s32.totalorder %s75, 0
    %p537 = por %p535, %p536
    %s539 = sadd.s32 %s538, 1
    %p542 = scmp.eq.s32.totalorder %s69, 1
    %p543 = scmp.ne.s32.totalorder %s538, %s540
    %p544 = scmp.eq.s32.totalorder %s69, 0
    %p545 = por %p543, %p544
    %p546 = scmp.ne.s32.totalorder %s538, %s540
    %p547 = scmp.eq.s32.totalorder %s74, 1
    %p548 = por %p546, %p547
    %p549 = scmp.ne.s32.totalorder %s540, %s541
    %p550 = scmp.eq.s32.totalorder %s74, 0
    %p551 = por %p549, %p550
    %p552 = scmp.ne.s32.totalorder %s540, %s541
    %p553 = scmp.eq.s32.totalorder %s75, 1
    %p554 = por %p552, %p553
    %p556 = scmp.ne.s32.totalorder %s541, %s555
    %p557 = scmp.eq.s32.totalorder %s75, 0
    %p558 = por %p556, %p557
    %s560 = sadd.s32 %s559, 1
    %p563 = scmp.eq.s32.totalorder %s69, 1
    %p564 = scmp.ne.s32.totalorder %s559, %s561
    %p565 = scmp.eq.s32.totalorder %s69, 0
    %p566 = por %p564, %p565
    %p567 = scmp.ne.s32.totalorder %s559, %s561
    %p568 = scmp.eq.s32.totalorder %s74, 1
    %p569 = por %p567, %p568
    %p570 = scmp.ne.s32.totalorder %s561, %s562
    %p571 = scmp.eq.s32.totalorder %s74, 0
    %p572 = por %p570, %p571
    %p573 = scmp.ne.s32.totalorder %s561, %s562
    %p574 = scmp.eq.s32.totalorder %s75, 1
    %p575 = por %p573, %p574
    %p577 = scmp.ne.s32.totalorder %s562, %s576
    %p578 = scmp.eq.s32.totalorder %s75, 0
    %p579 = por %p577, %p578
    %s581 = sadd.s32 %s580, 1
    %p584 = scmp.eq.s32.totalorder %s69, 1
    %p585 = scmp.ne.s32.totalorder %s580, %s582
    %p586 = scmp.eq.s32.totalorder %s69, 0
    %p587 = por %p585, %p586
    %p588 = scmp.ne.s32.totalorder %s580, %s582
    %p589 = scmp.eq.s32.totalorder %s74, 1
    %p590 = por %p588, %p589
    %p591 = scmp.ne.s32.totalorder %s582, %s583
    %p592 = scmp.eq.s32.totalorder %s74, 0
    %p593 = por %p591, %p592
    %p594 = scmp.ne.s32.totalorder %s582, %s583
    %p595 = scmp.eq.s32.totalorder %s75, 1
    %p596 = por %p594, %p595
    %p598 = scmp.ne.s32.totalorder %s583, %s597
    %p599 = scmp.eq.s32.totalorder %s75, 0
    %p600 = por %p598, %p599
    %s602 = sadd.s32 %s601, 1
    %p605 = scmp.eq.s32.totalorder %s69, 1
    %p606 = scmp.ne.s32.totalorder %s601, %s603
    %p607 = scmp.eq.s32.totalorder %s69, 0
    %p608 = por %p606, %p607
    %p609 = scmp.ne.s32.totalorder %s601, %s603
    %p610 = scmp.eq.s32.totalorder %s74, 1
    %p611 = por %p609, %p610
    %p612 = scmp.ne.s32.totalorder %s603, %s604
    %p613 = scmp.eq.s32.totalorder %s74, 0
    %p614 = por %p612, %p613
    %p615 = scmp.ne.s32.totalorder %s603, %s604
    %p616 = scmp.eq.s32.totalorder %s75, 1
    %p617 = por %p615, %p616
    %p619 = scmp.ne.s32.totalorder %s604, %s618
    %p620 = scmp.eq.s32.totalorder %s75, 0
    %p621 = por %p619, %p620
    %s623 = sadd.s32 %s622, 1
    %p626 = scmp.eq.s32.totalorder %s69, 1
    %p627 = scmp.ne.s32.totalorder %s622, %s624
    %p628 = scmp.eq.s32.totalorder %s69, 0
    %p629 = por %p627, %p628
    %p630 = scmp.ne.s32.totalorder %s622, %s624
    %p631 = scmp.eq.s32.totalorder %s74, 1
    %p632 = por %p630, %p631
    %p633 = scmp.ne.s32.totalorder %s624, %s625
    %p634 = scmp.eq.s32.totalorder %s74, 0
    %p635 = por %p633, %p634
    %p636 = scmp.ne.s32.totalorder %s624, %s625
    %p637 = scmp.eq.s32.totalorder %s75, 1
    %p638 = por %p636, %p637
    %p640 = scmp.ne.s32.totalorder %s625, %s639
    %p641 = scmp.eq.s32.totalorder %s75, 0
    %p642 = por %p640, %p641
    %s644 = sadd.s32 %s643, 1
    %p647 = scmp.eq.s32.totalorder %s69, 1
    %p648 = scmp.ne.s32.totalorder %s643, %s645
    %p649 = scmp.eq.s32.totalorder %s69, 0
    %p650 = por %p648, %p649
    %p651 = scmp.ne.s32.totalorder %s643, %s645
    %p652 = scmp.eq.s32.totalorder %s74, 1
    %p653 = por %p651, %p652
    %p654 = scmp.ne.s32.totalorder %s645, %s646
    %p655 = scmp.eq.s32.totalorder %s74, 0
    %p656 = por %p654, %p655
    %p657 = scmp.ne.s32.totalorder %s645, %s646
    %p658 = scmp.eq.s32.totalorder %s75, 1
    %p659 = por %p657, %p658
    %p661 = scmp.ne.s32.totalorder %s646, %s660
    %p662 = scmp.eq.s32.totalorder %s75, 0
    %p663 = por %p661, %p662
    %s665 = sadd.s32 %s664, 1
    %p668 = scmp.eq.s32.totalorder %s69, 1
    %p669 = scmp.ne.s32.totalorder %s664, %s666
    %p670 = scmp.eq.s32.totalorder %s69, 0
    %p671 = por %p669, %p670
    %p672 = scmp.ne.s32.totalorder %s664, %s666
    %p673 = scmp.eq.s32.totalorder %s74, 1
    %p674 = por %p672, %p673
    %p675 = scmp.ne.s32.totalorder %s666, %s667
    %p676 = scmp.eq.s32.totalorder %s74, 0
    %p677 = por %p675, %p676
    %p678 = scmp.ne.s32.totalorder %s666, %s667
    %p679 = scmp.eq.s32.totalorder %s75, 1
    %p680 = por %p678, %p679
    %p682 = scmp.ne.s32.totalorder %s667, %s681
    %p683 = scmp.eq.s32.totalorder %s75, 0
    %p684 = por %p682, %p683
    %s686 = sadd.s32 %s685, 1
    %p689 = scmp.eq.s32.totalorder %s69, 1
    %p690 = scmp.ne.s32.totalorder %s685, %s687
    %p691 = scmp.eq.s32.totalorder %s69, 0
    %p692 = por %p690, %p691
    %p693 = scmp.ne.s32.totalorder %s685, %s687
    %p694 = scmp.eq.s32.totalorder %s74, 1
    %p695 = por %p693, %p694
    %p696 = scmp.ne.s32.totalorder %s687, %s688
    %p697 = scmp.eq.s32.totalorder %s74, 0
    %p698 = por %p696, %p697
    %p699 = scmp.ne.s32.totalorder %s687, %s688
    %p700 = scmp.eq.s32.totalorder %s75, 1
    %p701 = por %p699, %p700
    %p703 = scmp.ne.s32.totalorder %s688, %s702
    %p704 = scmp.eq.s32.totalorder %s75, 0
    %p705 = por %p703, %p704
    %s707 = sadd.s32 %s706, 1
    %p710 = scmp.eq.s32.totalorder %s69, 1
    %p711 = scmp.ne.s32.totalorder %s706, %s708
    %p712 = scmp.eq.s32.totalorder %s69, 0
    %p713 = por %p711, %p712
    %p714 = scmp.ne.s32.totalorder %s706, %s708
    %p715 = scmp.eq.s32.totalorder %s74, 1
    %p716 = por %p714, %p715
    %p717 = scmp.ne.s32.totalorder %s708, %s709
    %p718 = scmp.eq.s32.totalorder %s74, 0
    %p719 = por %p717, %p718
    %p720 = scmp.ne.s32.totalorder %s708, %s709
    %p721 = scmp.eq.s32.totalorder %s75, 1
    %p722 = por %p720, %p721
    %p724 = scmp.ne.s32.totalorder %s709, %s723
    %p725 = scmp.eq.s32.totalorder %s75, 0
    %p726 = por %p724, %p725
    %s728 = sadd.s32 %s727, 1
    %p731 = scmp.eq.s32.totalorder %s69, 1
    %p732 = scmp.ne.s32.totalorder %s727, %s729
    %p733 = scmp.eq.s32.totalorder %s69, 0
    %p734 = por %p732, %p733
    %p735 = scmp.ne.s32.totalorder %s727, %s729
    %p736 = scmp.eq.s32.totalorder %s74, 1
    %p737 = por %p735, %p736
    %p738 = scmp.ne.s32.totalorder %s729, %s730
    %p739 = scmp.eq.s32.totalorder %s74, 0
    %p740 = por %p738, %p739
    %p741 = scmp.ne.s32.totalorder %s729, %s730
    %p742 = scmp.eq.s32.totalorder %s75, 1
    %p743 = por %p741, %p742
    %p745 = scmp.ne.s32.totalorder %s730, %s744
    %p746 = scmp.eq.s32.totalorder %s75, 0
    %p747 = por %p745, %p746
    %s748 = ssub.s32 %s69, %s76
    %p749 = scmp.eq.s32.totalorder %s748, 0
    %s751 = sadd.s32 %s750, 1
    %s752 = scalar_select %p749, %s750, %s751
    %p755 = pneg %p749
    %p756 = scmp.eq.s32.totalorder %s69, 1
    %p757 = por %p755, %p756
    %p758 = scmp.ne.s32.totalorder %s750, %s753
    %p759 = scmp.eq.s32.totalorder %s69, 0
    %p760 = por %p758, %p759
    %p761 = scmp.ne.s32.totalorder %s750, %s753
    %p762 = scmp.eq.s32.totalorder %s74, 1
    %p763 = por %p761, %p762
    %p764 = scmp.ne.s32.totalorder %s753, %s754
    %p765 = scmp.eq.s32.totalorder %s74, 0
    %p766 = por %p764, %p765
    %p767 = scmp.ne.s32.totalorder %s753, %s754
    %p768 = scmp.eq.s32.totalorder %s75, 1
    %p769 = por %p767, %p768
    %p771 = scmp.ne.s32.totalorder %s754, %s770
    %p772 = scmp.eq.s32.totalorder %s75, 0
    %p773 = por %p771, %p772
    %p774 = scmp.le.s32.totalorder 1, %s69
    %p775 = scmp.lt.s32.totalorder %s69, 3
    %p776 = pnand %p774, %p775
    %p777 = pneg %p776
    // Predicated region
    $region9: #{seq2seq_forward.10} parent=5 // pred_check
      _
    $region10: #{seq2seq_forward.10} parent=5 // pred_check_branch
      %779 = sbr.rel (%p776) target = $region12
    $region11: #{seq2seq_forward.10} parent=5 // pred_region
      %s780 = ssub.s32 %s69, 1
      // Predicated region
      $region13: #{seq2seq_forward.10} parent=11 // pred_check
        %p781 = pneg %p142
      $region14: #{seq2seq_forward.10} parent=11 // pred_check_branch
        %783 = sbr.rel (%p781) target = $region16
      $region15: #{seq2seq_forward.10} parent=11 // pred_region
        _
      $region16: #{seq2seq_forward.10} parent=11 // pred_fallthru
        _
      // Predicated region
      $region17: #{seq2seq_forward.10} parent=11 // pred_check
        %p784 = pneg %p215
      $region18: #{seq2seq_forward.10} parent=11 // pred_check_branch
        %786 = sbr.rel (%p784) target = $region20
      $region19: #{seq2seq_forward.10} parent=11 // pred_region
        _
      $region20: #{seq2seq_forward.10} parent=11 // pred_fallthru
        _
      // Predicated region
      $region21: #{seq2seq_forward.10} parent=11 // pred_check
        %p787 = pneg %p236
      $region22: #{seq2seq_forward.10} parent=11 // pred_check_branch
        %789 = sbr.rel (%p787) target = $region24
      $region23: #{seq2seq_forward.10} parent=11 // pred_region
        _
      $region24: #{seq2seq_forward.10} parent=11 // pred_fallthru
        _
      // Predicated region
      $region25: #{seq2seq_forward.10} parent=11 // pred_check
        %p790 = pneg %p257
      $region26: #{seq2seq_forward.10} parent=11 // pred_check_branch
        %792 = sbr.rel (%p790) target = $region28
      $region27: #{seq2seq_forward.10} parent=11 // pred_region
        _
      $region28: #{seq2seq_forward.10} parent=11 // pred_fallthru
        _
      // Predicated region
      $region29: #{seq2seq_forward.10} parent=11 // pred_check
        %p793 = pneg %p278
      $region30: #{seq2seq_forward.10} parent=11 // pred_check_branch
        %795 = sbr.rel (%p793) target = $region32
      $region31: #{seq2seq_forward.10} parent=11 // pred_region
        _
      $region32: #{seq2seq_forward.10} parent=11 // pred_fallthru
        _
      // Predicated region
      $region33: #{seq2seq_forward.10} parent=11 // pred_check
        %p796 = pneg %p299
      $region34: #{seq2seq_forward.10} parent=11 // pred_check_branch
        %798 = sbr.rel (%p796) target = $region36
      $region35: #{seq2seq_forward.10} parent=11 // pred_region
        _
      $region36: #{seq2seq_forward.10} parent=11 // pred_fallthru
        _
      // Predicated region
      $region37: #{seq2seq_forward.10} parent=11 // pred_check
        %p799 = pneg %p320
      $region38: #{seq2seq_forward.10} parent=11 // pred_check_branch
        %801 = sbr.rel (%p799) target = $region40
      $region39: #{seq2seq_forward.10} parent=11 // pred_region
        _
      $region40: #{seq2seq_forward.10} parent=11 // pred_fallthru
        _
      // Predicated region
      $region41: #{seq2seq_forward.10} parent=11 // pred_check
        %p802 = pneg %p341
      $region42: #{seq2seq_forward.10} parent=11 // pred_check_branch
        %804 = sbr.rel (%p802) target = $region44
      $region43: #{seq2seq_forward.10} parent=11 // pred_region
        _
      $region44: #{seq2seq_forward.10} parent=11 // pred_fallthru
        _
      // Predicated region
      $region45: #{seq2seq_forward.10} parent=11 // pred_check
        %p805 = pneg %p362
      $region46: #{seq2seq_forward.10} parent=11 // pred_check_branch
        %807 = sbr.rel (%p805) target = $region48
      $region47: #{seq2seq_forward.10} parent=11 // pred_region
        _
      $region48: #{seq2seq_forward.10} parent=11 // pred_fallthru
        _
      // Predicated region
      $region49: #{seq2seq_forward.10} parent=11 // pred_check
        %p808 = pneg %p383
      $region50: #{seq2seq_forward.10} parent=11 // pred_check_branch
        %810 = sbr.rel (%p808) target = $region52
      $region51: #{seq2seq_forward.10} parent=11 // pred_region
        _
      $region52: #{seq2seq_forward.10} parent=11 // pred_fallthru
        _
      // Predicated region
      $region53: #{seq2seq_forward.10} parent=11 // pred_check
        %p811 = pneg %p404
      $region54: #{seq2seq_forward.10} parent=11 // pred_check_branch
        %813 = sbr.rel (%p811) target = $region56
      $region55: #{seq2seq_forward.10} parent=11 // pred_region
        _
      $region56: #{seq2seq_forward.10} parent=11 // pred_fallthru
        _
      // Predicated region
      $region57: #{seq2seq_forward.10} parent=11 // pred_check
        %p814 = pneg %p425
      $region58: #{seq2seq_forward.10} parent=11 // pred_check_branch
        %816 = sbr.rel (%p814) target = $region60
      $region59: #{seq2seq_forward.10} parent=11 // pred_region
        _
      $region60: #{seq2seq_forward.10} parent=11 // pred_fallthru
        _
      // Predicated region
      $region61: #{seq2seq_forward.10} parent=11 // pred_check
        %p817 = pneg %p446
      $region62: #{seq2seq_forward.10} parent=11 // pred_check_branch
        %819 = sbr.rel (%p817) target = $region64
      $region63: #{seq2seq_forward.10} parent=11 // pred_region
        _
      $region64: #{seq2seq_forward.10} parent=11 // pred_fallthru
        _
      // Predicated region
      $region65: #{seq2seq_forward.10} parent=11 // pred_check
        %p820 = pneg %p467
      $region66: #{seq2seq_forward.10} parent=11 // pred_check_branch
        %822 = sbr.rel (%p820) target = $region68
      $region67: #{seq2seq_forward.10} parent=11 // pred_region
        _
      $region68: #{seq2seq_forward.10} parent=11 // pred_fallthru
        _
      // Predicated region
      $region69: #{seq2seq_forward.10} parent=11 // pred_check
        %p823 = pneg %p488
      $region70: #{seq2seq_forward.10} parent=11 // pred_check_branch
        %825 = sbr.rel (%p823) target = $region72
      $region71: #{seq2seq_forward.10} parent=11 // pred_region
        _
      $region72: #{seq2seq_forward.10} parent=11 // pred_fallthru
        _
      // Predicated region
      $region73: #{seq2seq_forward.10} parent=11 // pred_check
        %p826 = pneg %p509
      $region74: #{seq2seq_forward.10} parent=11 // pred_check_branch
        %828 = sbr.rel (%p826) target = $region76
      $region75: #{seq2seq_forward.10} parent=11 // pred_region
        _
      $region76: #{seq2seq_forward.10} parent=11 // pred_fallthru
        _
      // Predicated region
      $region77: #{seq2seq_forward.10} parent=11 // pred_check
        %p829 = pneg %p530
      $region78: #{seq2seq_forward.10} parent=11 // pred_check_branch
        %831 = sbr.rel (%p829) target = $region80
      $region79: #{seq2seq_forward.10} parent=11 // pred_region
        _
      $region80: #{seq2seq_forward.10} parent=11 // pred_fallthru
        _
      // Predicated region
      $region81: #{seq2seq_forward.10} parent=11 // pred_check
        %p832 = pneg %p551
      $region82: #{seq2seq_forward.10} parent=11 // pred_check_branch
        %834 = sbr.rel (%p832) target = $region84
      $region83: #{seq2seq_forward.10} parent=11 // pred_region
        _
      $region84: #{seq2seq_forward.10} parent=11 // pred_fallthru
        _
      // Predicated region
      $region85: #{seq2seq_forward.10} parent=11 // pred_check
        %p835 = pneg %p572
      $region86: #{seq2seq_forward.10} parent=11 // pred_check_branch
        %837 = sbr.rel (%p835) target = $region88
      $region87: #{seq2seq_forward.10} parent=11 // pred_region
        _
      $region88: #{seq2seq_forward.10} parent=11 // pred_fallthru
        _
      // Predicated region
      $region89: #{seq2seq_forward.10} parent=11 // pred_check
        %p838 = pneg %p593
      $region90: #{seq2seq_forward.10} parent=11 // pred_check_branch
        %840 = sbr.rel (%p838) target = $region92
      $region91: #{seq2seq_forward.10} parent=11 // pred_region
        _
      $region92: #{seq2seq_forward.10} parent=11 // pred_fallthru
        _
      // Predicated region
      $region93: #{seq2seq_forward.10} parent=11 // pred_check
        %p841 = pneg %p614
      $region94: #{seq2seq_forward.10} parent=11 // pred_check_branch
        %843 = sbr.rel (%p841) target = $region96
      $region95: #{seq2seq_forward.10} parent=11 // pred_region
        _
      $region96: #{seq2seq_forward.10} parent=11 // pred_fallthru
        _
      // Predicated region
      $region97: #{seq2seq_forward.10} parent=11 // pred_check
        %p844 = pneg %p635
      $region98: #{seq2seq_forward.10} parent=11 // pred_check_branch
        %846 = sbr.rel (%p844) target = $region100
      $region99: #{seq2seq_forward.10} parent=11 // pred_region
        _
      $region100: #{seq2seq_forward.10} parent=11 // pred_fallthru
        _
      // Predicated region
      $region101: #{seq2seq_forward.10} parent=11 // pred_check
        %p847 = pneg %p656
      $region102: #{seq2seq_forward.10} parent=11 // pred_check_branch
        %849 = sbr.rel (%p847) target = $region104
      $region103: #{seq2seq_forward.10} parent=11 // pred_region
        _
      $region104: #{seq2seq_forward.10} parent=11 // pred_fallthru
        _
      // Predicated region
      $region105: #{seq2seq_forward.10} parent=11 // pred_check
        %p850 = pneg %p677
      $region106: #{seq2seq_forward.10} parent=11 // pred_check_branch
        %852 = sbr.rel (%p850) target = $region108
      $region107: #{seq2seq_forward.10} parent=11 // pred_region
        _
      $region108: #{seq2seq_forward.10} parent=11 // pred_fallthru
        _
      // Predicated region
      $region109: #{seq2seq_forward.10} parent=11 // pred_check
        %p853 = pneg %p698
      $region110: #{seq2seq_forward.10} parent=11 // pred_check_branch
        %855 = sbr.rel (%p853) target = $region112
      $region111: #{seq2seq_forward.10} parent=11 // pred_region
        _
      $region112: #{seq2seq_forward.10} parent=11 // pred_fallthru
        _
      // Predicated region
      $region113: #{seq2seq_forward.10} parent=11 // pred_check
        %p856 = pneg %p719
      $region114: #{seq2seq_forward.10} parent=11 // pred_check_branch
        %858 = sbr.rel (%p856) target = $region116
      $region115: #{seq2seq_forward.10} parent=11 // pred_region
        _
      $region116: #{seq2seq_forward.10} parent=11 // pred_fallthru
        _
      // Predicated region
      $region117: #{seq2seq_forward.10} parent=11 // pred_check
        %p859 = pneg %p740
      $region118: #{seq2seq_forward.10} parent=11 // pred_check_branch
        %861 = sbr.rel (%p859) target = $region120
      $region119: #{seq2seq_forward.10} parent=11 // pred_region
        _
      $region120: #{seq2seq_forward.10} parent=11 // pred_fallthru
        _
    $region12: #{seq2seq_forward.10} parent=5 // pred_fallthru
      _
    %p862 = scmp.lt.s32.totalorder %s69, 2
    // Predicated region
    $region121: #{seq2seq_forward.10} parent=5 // pred_check
      %p863 = pneg %p862
    $region122: #{seq2seq_forward.10} parent=5 // pred_check_branch
      %865 = sbr.rel (%p863) target = $region124
    $region123: #{seq2seq_forward.10} parent=5 // pred_region
      // Predicated region
      $region125: #{seq2seq_forward.10} parent=123 // pred_check
        %p866 = pneg %p89
      $region126: #{seq2seq_forward.10} parent=123 // pred_check_branch
        %868 = sbr.rel (%p866) target = $region128
      $region127: #{seq2seq_forward.10} parent=123 // pred_region
        %p869 = scmp.lt.s32.totalorder %s69, 1
        %s870 = scalar_select %p869, %s69, 1
        %s871 = smul.addr %s870, 8
        %s872 = scalar_lea.vmem %s1, %s871
      $region128: #{seq2seq_forward.10} parent=123 // pred_fallthru
        _
      // Predicated region
      $region129: #{seq2seq_forward.10} parent=123 // pred_check
        %p873 = pneg %p115
      $region130: #{seq2seq_forward.10} parent=123 // pred_check_branch
        %875 = sbr.rel (%p873) target = $region132
      $region131: #{seq2seq_forward.10} parent=123 // pred_region
        %p876 = scmp.lt.s32.totalorder %s69, 1
        %s877 = scalar_select %p876, %s69, 1
        %s878 = smul.addr %s877, 8
        %s879 = scalar_lea.vmem %s3, %s878
      $region132: #{seq2seq_forward.10} parent=123 // pred_fallthru
        _
      // Predicated region
      $region133: #{seq2seq_forward.10} parent=123 // pred_check
        %p880 = pneg %p162
      $region134: #{seq2seq_forward.10} parent=123 // pred_check_branch
        %882 = sbr.rel (%p880) target = $region136
      $region135: #{seq2seq_forward.10} parent=123 // pred_region
        %p883 = scmp.lt.s32.totalorder %s69, 1
        %s884 = scalar_select %p883, %s69, 1
        %s885 = scalar_lea.vmem %s7, %s884
      $region136: #{seq2seq_forward.10} parent=123 // pred_fallthru
        _
      // Predicated region
      $region137: #{seq2seq_forward.10} parent=123 // pred_check
        %p886 = pneg %p188
      $region138: #{seq2seq_forward.10} parent=123 // pred_check_branch
        %888 = sbr.rel (%p886) target = $region140
      $region139: #{seq2seq_forward.10} parent=123 // pred_region
        %p889 = scmp.lt.s32.totalorder %s69, 1
        %s890 = scalar_select %p889, %s69, 1
        %s891 = scalar_lea.vmem %s9, %s890
      $region140: #{seq2seq_forward.10} parent=123 // pred_fallthru
        _
    $region124: #{seq2seq_forward.10} parent=5 // pred_fallthru
      _
    %p892 = scmp.le.s32.totalorder 1, %s69
    %p893 = scmp.lt.s32.totalorder %s69, 3
    %p894 = pnand %p892, %p893
    %p895 = pneg %p894
    // Predicated region
    $region141: #{seq2seq_forward.10} parent=5 // pred_check
      _
    $region142: #{seq2seq_forward.10} parent=5 // pred_check_branch
      %897 = sbr.rel (%p894) target = $region144
    $region143: #{seq2seq_forward.10} parent=5 // pred_region
      %s898 = ssub.s32 %s69, 1
      %p899 = scmp.lt.s32.totalorder %s74, 1
      %s900 = scalar_select %p899, %s74, 1
      %s901 = smul.addr %s900, 8
      %s902 = scalar_lea.vmem %s1, %s901
      %p903 = pneg %p95
      %p904 = pneg %p92
      %p905 = scmp.lt.s32.totalorder %s74, 1
      %s906 = scalar_select %p905, %s74, 1
      %s907 = smul.addr %s906, 8
      %s908 = scalar_lea.vmem %s3, %s907
      %p909 = pneg %p121
      %p910 = pneg %p118
      %p911 = pneg %p142
      %p912 = pneg %p139
      %p913 = scmp.lt.s32.totalorder %s74, 1
      %s914 = scalar_select %p913, %s74, 1
      %s915 = scalar_lea.vmem %s7, %s914
      %p916 = pneg %p168
      %p917 = pneg %p165
      %p918 = scmp.lt.s32.totalorder %s74, 1
      %s919 = scalar_select %p918, %s74, 1
      %s920 = scalar_lea.vmem %s9, %s919
      %p921 = pneg %p194
      %p922 = pneg %p191
      %p923 = pneg %p215
      %p924 = pneg %p212
      %p925 = pneg %p236
      %p926 = pneg %p233
      %p927 = pneg %p257
      %p928 = pneg %p254
      %p929 = pneg %p278
      %p930 = pneg %p275
      %p931 = pneg %p299
      %p932 = pneg %p296
      %p933 = pneg %p320
      %p934 = pneg %p317
      %p935 = pneg %p341
      %p936 = pneg %p338
      %p937 = pneg %p362
      %p938 = pneg %p359
      %p939 = pneg %p383
      %p940 = pneg %p380
      %p941 = pneg %p404
      %p942 = pneg %p401
      %p943 = pneg %p425
      %p944 = pneg %p422
      %p945 = pneg %p446
      %p946 = pneg %p443
      %p947 = pneg %p467
      %p948 = pneg %p464
      %p949 = pneg %p488
      %p950 = pneg %p485
      %p951 = pneg %p509
      %p952 = pneg %p506
      %p953 = pneg %p530
      %p954 = pneg %p527
      %p955 = pneg %p551
      %p956 = pneg %p548
      %p957 = pneg %p572
      %p958 = pneg %p569
      %p959 = pneg %p593
      %p960 = pneg %p590
      %p961 = pneg %p614
      %p962 = pneg %p611
      %p963 = pneg %p635
      %p964 = pneg %p632
      %p965 = pneg %p656
      %p966 = pneg %p653
      %p967 = pneg %p677
      %p968 = pneg %p674
      %p969 = pneg %p698
      %p970 = pneg %p695
      %p971 = pneg %p719
      %p972 = pneg %p716
      %p973 = pneg %p740
      %p974 = pneg %p737
      %p975 = pneg %p766
      %p976 = pneg %p763
      %p977 = scmp.lt.s32.totalorder %s74, 1
      %s978 = scalar_select %p977, %s74, 1
      %s979 = smul.addr %s978, 8
      %s980 = scalar_lea.vmem %s63, %s979
      %p981 = scmp.lt.s32.totalorder %s74, 1
      %s982 = scalar_select %p981, %s74, 1
      %s983 = smul.addr %s982, 8
      %s984 = scalar_lea.vmem %s1, %s983
      %p985 = scmp.lt.s32.totalorder %s74, 1
      %s986 = scalar_select %p985, %s74, 1
      %s987 = smul.addr %s986, 8
      %s988 = scalar_lea.vmem %s3, %s987
      %p989 = scmp.lt.s32.totalorder %s74, 1
      %s990 = scalar_select %p989, %s74, 1
      %s991 = scalar_lea.vmem %s7, %s990
      %p992 = scmp.lt.s32.totalorder %s74, 1
      %s993 = scalar_select %p992, %s74, 1
      %s994 = scalar_lea.vmem %s9, %s993
      %p995 = scmp.lt.s32.totalorder %s74, 1
      %s996 = scalar_select %p995, %s74, 1
      %s997 = smul.addr %s996, 8
      %s998 = scalar_lea.vmem %s63, %s997
      %v1000 = vld [vmem:[%s984] sm:$0xff]
      %v1001 = vld [vmem:[%s988] sm:$0xff]
      %v1002 = vld [vmem:[%s5] sm:$0xff]
      %v1003 = vld [vmem:[%s991] sm:$0x1]
      %v1005 = vlaneseq
      %v1006 = vshrl.u32 %v1005, 7
      %v1007 = vsub.s32 0, %v1006
      %v1008 = vrot.slane %v1003, %v1007
      %v1010 = vadd.f32 %v1002, %v1008
      %v1011 = vpack.c.bf16 %v1000, %v1000
      %v1012 = vld [vmem:[%s11] sm:$0xf]
      %v1013 = vld [vmem:[%s11 + $0x4] sm:$0xf]
      %v1014 = vld [vmem:[%s11 + $0x8] sm:$0xf]
      %v1015 = vld [vmem:[%s11 + $0xc] sm:$0xf]
      %v1016 = vld [vmem:[%s13] sm:$0x1]
      %v1018 = vlaneseq
      %v1019 = vshrl.u32 %v1018, 7
      %v1020 = vsub.s32 0, %v1019
      %v1021 = vrot.slane %v1016, %v1020
      %v1027 = vunpack.c.l.b16 %v1012
      %v1028 = vunpack.c.l.b16 %v1013
      %v1029 = vunpack.c.l.b16 %v1014
      %v1030 = vunpack.c.l.b16 %v1015
      %v1031 = vpack.c.b16 %v1028, %v1027
      %v1032 = vpack.c.b16 %v1030, %v1029
      %vm1035 = vcmask 261120
      %v1037 = vsel %vm1035, %v1011, 0
      %1039 = vmatprep.subr.bf16.mxu0 0
      %1040 = vmatpush1.bf16.msra.mxu0 %v1031
      %1041 = vmatprep.subr.bf16.mxu0 0
      %1042 = vmatpush1.bf16.msra.mxu0 %v1032
      %1043 = vmatprep.subr.bf16.mxu0 0
      %1044 = vmatpush1.bf16.msra.mxu0 0
      %1045 = vmatprep.subr.bf16.mxu0 0
      %1046 = vmatpush1.bf16.msra.mxu0 0
      %1047 = vmatprep.subr.bf16.mxu0 0
      %1048 = vmatpush1.bf16.msra.mxu0 0
      %1049 = vmatprep.subr.bf16.mxu0 0
      %1050 = vmatpush1.bf16.msra.mxu0 0
      %1051 = vmatprep.subr.bf16.mxu0 0
      %1052 = vmatpush1.bf16.msra.mxu0 0
      %1053 = vmatprep.subr.bf16.mxu0 0
      %1054 = vmatpush1.bf16.msra.mxu0 0
      %1055 = vmatprep.subr.bf16.mxu0 0
      %1056 = vmatpush1.bf16.msra.mxu0 0
      %1057 = vmatprep.subr.bf16.mxu0 0
      %1058 = vmatpush1.bf16.msra.mxu0 0
      %1059 = vmatprep.subr.bf16.mxu0 0
      %1060 = vmatpush1.bf16.msra.mxu0 0
      %1061 = vmatprep.subr.bf16.mxu0 0
      %1062 = vmatpush1.bf16.msra.mxu0 0
      %1063 = vmatprep.subr.bf16.mxu0 0
      %1064 = vmatpush1.bf16.msra.mxu0 0
      %1065 = vmatprep.subr.bf16.mxu0 0
      %1066 = vmatpush1.bf16.msra.mxu0 0
      %1067 = vmatprep.subr.bf16.mxu0 0
      %1068 = vmatpush1.bf16.msra.mxu0 0
      %1069 = vmatprep.subr.bf16.mxu0 0
      %1070 = vmatpush1.bf16.msra.mxu0 0
      %1071 = vmatprep.mubr.bf16.mxu0 0
      %1072 = vmatmul.mubr.bf16.gmra.mrb[0].mxu0 %v1037
      %v1073 = vpop.f32.mrb[0].mxu0
      %v1074 = vadd.f32 %v1021, %v1073
      %v1075 = vpop.f32.mrb[0].mxu0
      %v1076 = vpop.f32.mrb[0].mxu0
      %v1077 = vpop.f32.mrb[0].mxu0
      %1078 = vdwg.mxu0
      %v1079 = vld [vmem:[%s15] sm:$0xf]
      %v1080 = vld [vmem:[%s15 + $0x4] sm:$0xf]
      %v1081 = vld [vmem:[%s15 + $0x8] sm:$0xf]
      %v1082 = vld [vmem:[%s15 + $0xc] sm:$0xf]
      %v1083 = vld [vmem:[%s17] sm:$0x1]
      %v1085 = vlaneseq
      %v1086 = vshrl.u32 %v1085, 7
      %v1087 = vsub.s32 0, %v1086
      %v1088 = vrot.slane %v1083, %v1087
      %v1094 = vunpack.c.l.b16 %v1079
      %v1095 = vunpack.c.l.b16 %v1080
      %v1096 = vunpack.c.l.b16 %v1081
      %v1097 = vunpack.c.l.b16 %v1082
      %v1098 = vpack.c.b16 %v1095, %v1094
      %v1099 = vpack.c.b16 %v1097, %v1096
      %1102 = vmatprep.subr.bf16.mxu0 0
      %1103 = vmatpush1.bf16.msra.mxu0 %v1098
      %1104 = vmatprep.subr.bf16.mxu0 0
      %1105 = vmatpush1.bf16.msra.mxu0 %v1099
      %1106 = vmatprep.subr.bf16.mxu0 0
      %1107 = vmatpush1.bf16.msra.mxu0 0
      %1108 = vmatprep.subr.bf16.mxu0 0
      %1109 = vmatpush1.bf16.msra.mxu0 0
      %1110 = vmatprep.subr.bf16.mxu0 0
      %1111 = vmatpush1.bf16.msra.mxu0 0
      %1112 = vmatprep.subr.bf16.mxu0 0
      %1113 = vmatpush1.bf16.msra.mxu0 0
      %1114 = vmatprep.subr.bf16.mxu0 0
      %1115 = vmatpush1.bf16.msra.mxu0 0
      %1116 = vmatprep.subr.bf16.mxu0 0
      %1117 = vmatpush1.bf16.msra.mxu0 0
      %1118 = vmatprep.subr.bf16.mxu0 0
      %1119 = vmatpush1.bf16.msra.mxu0 0
      %1120 = vmatprep.subr.bf16.mxu0 0
      %1121 = vmatpush1.bf16.msra.mxu0 0
      %1122 = vmatprep.subr.bf16.mxu0 0
      %1123 = vmatpush1.bf16.msra.mxu0 0
      %1124 = vmatprep.subr.bf16.mxu0 0
      %1125 = vmatpush1.bf16.msra.mxu0 0
      %1126 = vmatprep.subr.bf16.mxu0 0
      %1127 = vmatpush1.bf16.msra.mxu0 0
      %1128 = vmatprep.subr.bf16.mxu0 0
      %1129 = vmatpush1.bf16.msra.mxu0 0
      %1130 = vmatprep.subr.bf16.mxu0 0
      %1131 = vmatpush1.bf16.msra.mxu0 0
      %1132 = vmatprep.subr.bf16.mxu0 0
      %1133 = vmatpush1.bf16.msra.mxu0 0
      %1134 = vmatprep.mubr.bf16.mxu0 0
      %1135 = vmatmul.mubr.bf16.gmra.mrb[0].mxu0 %v1037
      %v1136 = vpop.f32.mrb[0].mxu0
      %v1137 = vadd.f32 %v1088, %v1136
      %v1138 = vpop.f32.mrb[0].mxu0
      %v1139 = vpop.f32.mrb[0].mxu0
      %v1140 = vpop.f32.mrb[0].mxu0
      %1141 = vdwg.mxu0
      %v1142 = vld [vmem:[%s19] sm:$0xf]
      %v1143 = vld [vmem:[%s19 + $0x4] sm:$0xf]
      %v1144 = vld [vmem:[%s19 + $0x8] sm:$0xf]
      %v1145 = vld [vmem:[%s19 + $0xc] sm:$0xf]
      %v1146 = vld [vmem:[%s21] sm:$0x1]
      %v1148 = vlaneseq
      %v1149 = vshrl.u32 %v1148, 7
      %v1150 = vsub.s32 0, %v1149
      %v1151 = vrot.slane %v1146, %v1150
      %v1157 = vunpack.c.l.b16 %v1142
      %v1158 = vunpack.c.l.b16 %v1143
      %v1159 = vunpack.c.l.b16 %v1144
      %v1160 = vunpack.c.l.b16 %v1145
      %v1161 = vpack.c.b16 %v1158, %v1157
      %v1162 = vpack.c.b16 %v1160, %v1159
      %1165 = vmatprep.subr.bf16.mxu0 0
      %1166 = vmatpush1.bf16.msra.mxu0 %v1161
      %1167 = vmatprep.subr.bf16.mxu0 0
      %1168 = vmatpush1.bf16.msra.mxu0 %v1162
      %1169 = vmatprep.subr.bf16.mxu0 0
      %1170 = vmatpush1.bf16.msra.mxu0 0
      %1171 = vmatprep.subr.bf16.mxu0 0
      %1172 = vmatpush1.bf16.msra.mxu0 0
      %1173 = vmatprep.subr.bf16.mxu0 0
      %1174 = vmatpush1.bf16.msra.mxu0 0
      %1175 = vmatprep.subr.bf16.mxu0 0
      %1176 = vmatpush1.bf16.msra.mxu0 0
      %1177 = vmatprep.subr.bf16.mxu0 0
      %1178 = vmatpush1.bf16.msra.mxu0 0
      %1179 = vmatprep.subr.bf16.mxu0 0
      %1180 = vmatpush1.bf16.msra.mxu0 0
      %1181 = vmatprep.subr.bf16.mxu0 0
      %1182 = vmatpush1.bf16.msra.mxu0 0
      %1183 = vmatprep.subr.bf16.mxu0 0
      %1184 = vmatpush1.bf16.msra.mxu0 0
      %1185 = vmatprep.subr.bf16.mxu0 0
      %1186 = vmatpush1.bf16.msra.mxu0 0
      %1187 = vmatprep.subr.bf16.mxu0 0
      %1188 = vmatpush1.bf16.msra.mxu0 0
      %1189 = vmatprep.subr.bf16.mxu0 0
      %1190 = vmatpush1.bf16.msra.mxu0 0
      %1191 = vmatprep.subr.bf16.mxu0 0
      %1192 = vmatpush1.bf16.msra.mxu0 0
      %1193 = vmatprep.subr.bf16.mxu0 0
      %1194 = vmatpush1.bf16.msra.mxu0 0
      %1195 = vmatprep.subr.bf16.mxu0 0
      %1196 = vmatpush1.bf16.msra.mxu0 0
      %1197 = vmatprep.mubr.bf16.mxu0 0
      %1198 = vmatmul.mubr.bf16.gmra.mrb[0].mxu0 %v1037
      %v1199 = vpop.f32.mrb[0].mxu0
      %v1200 = vadd.f32 %v1151, %v1199
      %v1201 = vpop.f32.mrb[0].mxu0
      %v1202 = vpop.f32.mrb[0].mxu0
      %v1203 = vpop.f32.mrb[0].mxu0
      %1204 = vdwg.mxu0
      %vm1205 = vcmask 64512
      %v1207 = vsel %vm1205, %v1074, 0
      %v1210 = vsel %vm1205, %v1137, 0
      %1212 = vmatprep.subr.mxu0 0.0
      %1213 = vmatpush1.xpose.msra.mxu0 %v1210
      %1214 = vmatprep.subr.mxu0 0.0
      %1215 = vmatpush1.xpose.msra.mxu0 0.0
      %1216 = vmatprep.subr.mxu0 0.0
      %1217 = vmatpush1.xpose.msra.mxu0 0.0
      %1218 = vmatprep.subr.mxu0 0.0
      %1219 = vmatpush1.xpose.msra.mxu0 0.0
      %1220 = vmatprep.subr.mxu0 0.0
      %1221 = vmatpush1.xpose.msra.mxu0 0.0
      %1222 = vmatprep.subr.mxu0 0.0
      %1223 = vmatpush1.xpose.msra.mxu0 0.0
      %1224 = vmatprep.subr.mxu0 0.0
      %1225 = vmatpush1.xpose.msra.mxu0 0.0
      %1226 = vmatprep.subr.mxu0 0.0
      %1227 = vmatpush1.xpose.msra.mxu0 0.0
      %1228 = vmatprep.subr.mxu0 0.0
      %1229 = vmatpush1.xpose.msra.mxu0 0.0
      %1230 = vmatprep.subr.mxu0 0.0
      %1231 = vmatpush1.xpose.msra.mxu0 0.0
      %1232 = vmatprep.subr.mxu0 0.0
      %1233 = vmatpush1.xpose.msra.mxu0 0.0
      %1234 = vmatprep.subr.mxu0 0.0
      %1235 = vmatpush1.xpose.msra.mxu0 0.0
      %1236 = vmatprep.subr.mxu0 0.0
      %1237 = vmatpush1.xpose.msra.mxu0 0.0
      %1238 = vmatprep.subr.mxu0 0.0
      %1239 = vmatpush1.xpose.msra.mxu0 0.0
      %1240 = vmatprep.subr.mxu0 0.0
      %1241 = vmatpush1.xpose.msra.mxu0 0.0
      %1242 = vmatprep.subr.mxu0 0.0
      %1243 = vmatpush1.xpose.msra.mxu0 0.0
      %1244 = vmatprep.subr.mxu0 0.0
      %1245 = vmatpush1.xpose.msra.mxu0 0.0
      %1246 = vmatprep.subr.mxu0 0.0
      %1247 = vmatpush1.xpose.msra.mxu0 0.0
      %1248 = vmatprep.subr.mxu0 0.0
      %1249 = vmatpush1.xpose.msra.mxu0 0.0
      %1250 = vmatprep.subr.mxu0 0.0
      %1251 = vmatpush1.xpose.msra.mxu0 0.0
      %1252 = vmatprep.subr.mxu0 0.0
      %1253 = vmatpush1.xpose.msra.mxu0 0.0
      %1254 = vmatprep.subr.mxu0 0.0
      %1255 = vmatpush1.xpose.msra.mxu0 0.0
      %1256 = vmatprep.subr.mxu0 0.0
      %1257 = vmatpush1.xpose.msra.mxu0 0.0
      %1258 = vmatprep.subr.mxu0 0.0
      %1259 = vmatpush1.xpose.msra.mxu0 0.0
      %1260 = vmatprep.subr.mxu0 0.0
      %1261 = vmatpush1.xpose.msra.mxu0 0.0
      %1262 = vmatprep.subr.mxu0 0.0
      %1263 = vmatpush1.xpose.msra.mxu0 0.0
      %1264 = vmatprep.subr.mxu0 0.0
      %1265 = vmatpush1.xpose.msra.mxu0 0.0
      %1266 = vmatprep.subr.mxu0 0.0
      %1267 = vmatpush1.xpose.msra.mxu0 0.0
      %1268 = vmatprep.subr.mxu0 0.0
      %1269 = vmatpush1.xpose.msra.mxu0 0.0
      %1270 = vmatprep.subr.mxu0 0.0
      %1271 = vmatpush1.xpose.msra.mxu0 0.0
      %1272 = vmatprep.subr.mxu0 0.0
      %1273 = vmatpush1.xpose.msra.mxu0 0.0
      %1274 = vmatprep.subr.mxu0 0.0
      %1275 = vmatpush1.xpose.msra.mxu0 0.0
      %1276 = vmatprep.mubr.f32.mxu0 0.0
      %1277 = vmatmul.mubr.f32.gmra.mrb[0].mxu0 %v1207
      %v1278 = vpop.f32.mrb[0].mxu0
      %v1279 = vadd.f32 0.0, %v1278
      %v1280 = vpop.f32.mrb[0].mxu0
      %1281 = vdwg.mxu0
      %v1282 = vmul.f32 %v1279, 0.35355338
      %v1283 = vadd.f32 %v1282, %v1010
      %v1284 = vsel %vm1205, %v1283, -inf
      %1285 = vmax.xlane.f32.xlu0 %v1284
      %v1286 = vpop.xlane.xlu0 %1285
      %v1287 = vsub.f32 %v1283, %v1286
      %v1288 = vmul.f32 %v1287, 1.442695
      %v1289 = vpow.pop %v1288
      %v1290 = vsel %vm1205, %v1289, 0.0
      %1291 = vadd.xlane.f32.xlu0 %v1290
      %v1292 = vpop.xlane.xlu0 %1291
      %v1293 = vrcp.pop %v1292
      %v1294 = vmul.f32 %v1289, %v1293
      %v1296 = vsel %vm1205, %v1294, 0
      %1298 = vmatprep.subr.mxu0 0.0
      %1299 = vmatpush1.msra.mxu0 %v1200
      %1300 = vmatprep.subr.mxu0 0.0
      %1301 = vmatpush1.msra.mxu0 0.0
      %1302 = vmatprep.subr.mxu0 0.0
      %1303 = vmatpush1.msra.mxu0 0.0
      %1304 = vmatprep.subr.mxu0 0.0
      %1305 = vmatpush1.msra.mxu0 0.0
      %1306 = vmatprep.subr.mxu0 0.0
      %1307 = vmatpush1.msra.mxu0 0.0
      %1308 = vmatprep.subr.mxu0 0.0
      %1309 = vmatpush1.msra.mxu0 0.0
      %1310 = vmatprep.subr.mxu0 0.0
      %1311 = vmatpush1.msra.mxu0 0.0
      %1312 = vmatprep.subr.mxu0 0.0
      %1313 = vmatpush1.msra.mxu0 0.0
      %1314 = vmatprep.subr.mxu0 0.0
      %1315 = vmatpush1.msra.mxu0 0.0
      %1316 = vmatprep.subr.mxu0 0.0
      %1317 = vmatpush1.msra.mxu0 0.0
      %1318 = vmatprep.subr.mxu0 0.0
      %1319 = vmatpush1.msra.mxu0 0.0
      %1320 = vmatprep.subr.mxu0 0.0
      %1321 = vmatpush1.msra.mxu0 0.0
      %1322 = vmatprep.subr.mxu0 0.0
      %1323 = vmatpush1.msra.mxu0 0.0
      %1324 = vmatprep.subr.mxu0 0.0
      %1325 = vmatpush1.msra.mxu0 0.0
      %1326 = vmatprep.subr.mxu0 0.0
      %1327 = vmatpush1.msra.mxu0 0.0
      %1328 = vmatprep.subr.mxu0 0.0
      %1329 = vmatpush1.msra.mxu0 0.0
      %1330 = vmatprep.subr.mxu0 0.0
      %1331 = vmatpush1.msra.mxu0 0.0
      %1332 = vmatprep.subr.mxu0 0.0
      %1333 = vmatpush1.msra.mxu0 0.0
      %1334 = vmatprep.subr.mxu0 0.0
      %1335 = vmatpush1.msra.mxu0 0.0
      %1336 = vmatprep.subr.mxu0 0.0
      %1337 = vmatpush1.msra.mxu0 0.0
      %1338 = vmatprep.subr.mxu0 0.0
      %1339 = vmatpush1.msra.mxu0 0.0
      %1340 = vmatprep.subr.mxu0 0.0
      %1341 = vmatpush1.msra.mxu0 0.0
      %1342 = vmatprep.subr.mxu0 0.0
      %1343 = vmatpush1.msra.mxu0 0.0
      %1344 = vmatprep.subr.mxu0 0.0
      %1345 = vmatpush1.msra.mxu0 0.0
      %1346 = vmatprep.subr.mxu0 0.0
      %1347 = vmatpush1.msra.mxu0 0.0
      %1348 = vmatprep.subr.mxu0 0.0
      %1349 = vmatpush1.msra.mxu0 0.0
      %1350 = vmatprep.subr.mxu0 0.0
      %1351 = vmatpush1.msra.mxu0 0.0
      %1352 = vmatprep.subr.mxu0 0.0
      %1353 = vmatpush1.msra.mxu0 0.0
      %1354 = vmatprep.subr.mxu0 0.0
      %1355 = vmatpush1.msra.mxu0 0.0
      %1356 = vmatprep.subr.mxu0 0.0
      %1357 = vmatpush1.msra.mxu0 0.0
      %1358 = vmatprep.subr.mxu0 0.0
      %1359 = vmatpush1.msra.mxu0 0.0
      %1360 = vmatprep.subr.mxu0 0.0
      %1361 = vmatpush1.msra.mxu0 0.0
      %1362 = vmatprep.mubr.f32.mxu0 0.0
      %1363 = vmatmul.mubr.f32.gmra.mrb[0].mxu0 %v1296
      %v1364 = vpop.f32.mrb[0].mxu0
      %v1365 = vadd.f32 0.0, %v1364
      %v1366 = vpop.f32.mrb[0].mxu0
      %1367 = vdwg.mxu0
      %v1368 = vpack.c.bf16 %v1365, %v1365
      %v1369 = vld [vmem:[%s23] sm:$0xf]
      %s1370 = scalar_lea.vmem %s11, 16
      %v1371 = vld [vmem:[%s1370] sm:$0xf]
      %v1372 = vld [vmem:[%s1370 + $0x4] sm:$0xf]
      %v1373 = vld [vmem:[%s1370 + $0x8] sm:$0xf]
      %v1374 = vld [vmem:[%s1370 + $0xc] sm:$0xf]
      %s1375 = scalar_lea.vmem %s13, 1
      %v1376 = vld [vmem:[%s1375] sm:$0x1]
      %v1378 = vlaneseq
      %v1379 = vshrl.u32 %v1378, 7
      %v1380 = vsub.s32 0, %v1379
      %v1381 = vrot.slane %v1376, %v1380
      %v1387 = vunpack.c.l.b16 %v1371
      %v1388 = vunpack.c.l.b16 %v1372
      %v1389 = vunpack.c.l.b16 %v1373
      %v1390 = vunpack.c.l.b16 %v1374
      %v1391 = vpack.c.b16 %v1388, %v1387
      %v1392 = vpack.c.b16 %v1390, %v1389
      %1395 = vmatprep.subr.bf16.mxu0 0
      %1396 = vmatpush1.bf16.msra.mxu0 %v1391
      %1397 = vmatprep.subr.bf16.mxu0 0
      %1398 = vmatpush1.bf16.msra.mxu0 %v1392
      %1399 = vmatprep.subr.bf16.mxu0 0
      %1400 = vmatpush1.bf16.msra.mxu0 0
      %1401 = vmatprep.subr.bf16.mxu0 0
      %1402 = vmatpush1.bf16.msra.mxu0 0
      %1403 = vmatprep.subr.bf16.mxu0 0
      %1404 = vmatpush1.bf16.msra.mxu0 0
      %1405 = vmatprep.subr.bf16.mxu0 0
      %1406 = vmatpush1.bf16.msra.mxu0 0
      %1407 = vmatprep.subr.bf16.mxu0 0
      %1408 = vmatpush1.bf16.msra.mxu0 0
      %1409 = vmatprep.subr.bf16.mxu0 0
      %1410 = vmatpush1.bf16.msra.mxu0 0
      %1411 = vmatprep.subr.bf16.mxu0 0
      %1412 = vmatpush1.bf16.msra.mxu0 0
      %1413 = vmatprep.subr.bf16.mxu0 0
      %1414 = vmatpush1.bf16.msra.mxu0 0
      %1415 = vmatprep.subr.bf16.mxu0 0
      %1416 = vmatpush1.bf16.msra.mxu0 0
      %1417 = vmatprep.subr.bf16.mxu0 0
      %1418 = vmatpush1.bf16.msra.mxu0 0
      %1419 = vmatprep.subr.bf16.mxu0 0
      %1420 = vmatpush1.bf16.msra.mxu0 0
      %1421 = vmatprep.subr.bf16.mxu0 0
      %1422 = vmatpush1.bf16.msra.mxu0 0
      %1423 = vmatprep.subr.bf16.mxu0 0
      %1424 = vmatpush1.bf16.msra.mxu0 0
      %1425 = vmatprep.subr.bf16.mxu0 0
      %1426 = vmatpush1.bf16.msra.mxu0 0
      %1427 = vmatprep.mubr.bf16.mxu0 0
      %1428 = vmatmul.mubr.bf16.gmra.mrb[0].mxu0 %v1037
      %v1429 = vpop.f32.mrb[0].mxu0
      %v1430 = vadd.f32 %v1381, %v1429
      %v1431 = vpop.f32.mrb[0].mxu0
      %v1432 = vpop.f32.mrb[0].mxu0
      %v1433 = vpop.f32.mrb[0].mxu0
      %1434 = vdwg.mxu0
      %s1435 = scalar_lea.vmem %s15, 16
      %v1436 = vld [vmem:[%s1435] sm:$0xf]
      %v1437 = vld [vmem:[%s1435 + $0x4] sm:$0xf]
      %v1438 = vld [vmem:[%s1435 + $0x8] sm:$0xf]
      %v1439 = vld [vmem:[%s1435 + $0xc] sm:$0xf]
      %s1440 = scalar_lea.vmem %s17, 1
      %v1441 = vld [vmem:[%s1440] sm:$0x1]
      %v1443 = vlaneseq
      %v1444 = vshrl.u32 %v1443, 7
      %v1445 = vsub.s32 0, %v1444
      %v1446 = vrot.slane %v1441, %v1445
      %v1452 = vunpack.c.l.b16 %v1436
      %v1453 = vunpack.c.l.b16 %v1437
      %v1454 = vunpack.c.l.b16 %v1438
      %v1455 = vunpack.c.l.b16 %v1439
      %v1456 = vpack.c.b16 %v1453, %v1452
      %v1457 = vpack.c.b16 %v1455, %v1454
      %1460 = vmatprep.subr.bf16.mxu0 0
      %1461 = vmatpush1.bf16.msra.mxu0 %v1456
      %1462 = vmatprep.subr.bf16.mxu0 0
      %1463 = vmatpush1.bf16.msra.mxu0 %v1457
      %1464 = vmatprep.subr.bf16.mxu0 0
      %1465 = vmatpush1.bf16.msra.mxu0 0
      %1466 = vmatprep.subr.bf16.mxu0 0
      %1467 = vmatpush1.bf16.msra.mxu0 0
      %1468 = vmatprep.subr.bf16.mxu0 0
      %1469 = vmatpush1.bf16.msra.mxu0 0
      %1470 = vmatprep.subr.bf16.mxu0 0
      %1471 = vmatpush1.bf16.msra.mxu0 0
      %1472 = vmatprep.subr.bf16.mxu0 0
      %1473 = vmatpush1.bf16.msra.mxu0 0
      %1474 = vmatprep.subr.bf16.mxu0 0
      %1475 = vmatpush1.bf16.msra.mxu0 0
      %1476 = vmatprep.subr.bf16.mxu0 0
      %1477 = vmatpush1.bf16.msra.mxu0 0
      %1478 = vmatprep.subr.bf16.mxu0 0
      %1479 = vmatpush1.bf16.msra.mxu0 0
      %1480 = vmatprep.subr.bf16.mxu0 0
      %1481 = vmatpush1.bf16.msra.mxu0 0
      %1482 = vmatprep.subr.bf16.mxu0 0
      %1483 = vmatpush1.bf16.msra.mxu0 0
      %1484 = vmatprep.subr.bf16.mxu0 0
      %1485 = vmatpush1.bf16.msra.mxu0 0
      %1486 = vmatprep.subr.bf16.mxu0 0
      %1487 = vmatpush1.bf16.msra.mxu0 0
      %1488 = vmatprep.subr.bf16.mxu0 0
      %1489 = vmatpush1.bf16.msra.mxu0 0
      %1490 = vmatprep.subr.bf16.mxu0 0
      %1491 = vmatpush1.bf16.msra.mxu0 0
      %1492 = vmatprep.mubr.bf16.mxu0 0
      %1493 = vmatmul.mubr.bf16.gmra.mrb[0].mxu0 %v1037
      %v1494 = vpop.f32.mrb[0].mxu0
      %v1495 = vadd.f32 %v1446, %v1494
      %v1496 = vpop.f32.mrb[0].mxu0
      %v1497 = vpop.f32.mrb[0].mxu0
      %v1498 = vpop.f32.mrb[0].mxu0
      %1499 = vdwg.mxu0
      %s1500 = scalar_lea.vmem %s19, 16
      %v1501 = vld [vmem:[%s1500] sm:$0xf]
      %v1502 = vld [vmem:[%s1500 + $0x4] sm:$0xf]
      %v1503 = vld [vmem:[%s1500 + $0x8] sm:$0xf]
      %v1504 = vld [vmem:[%s1500 + $0xc] sm:$0xf]
      %s1505 = scalar_lea.vmem %s21, 1
      %v1506 = vld [vmem:[%s1505] sm:$0x1]
      %v1508 = vlaneseq
      %v1509 = vshrl.u32 %v1508, 7
      %v1510 = vsub.s32 0, %v1509
      %v1511 = vrot.slane %v1506, %v1510
      %v1517 = vunpack.c.l.b16 %v1501
      %v1518 = vunpack.c.l.b16 %v1502
      %v1519 = vunpack.c.l.b16 %v1503
      %v1520 = vunpack.c.l.b16 %v1504
      %v1521 = vpack.c.b16 %v1518, %v1517
      %v1522 = vpack.c.b16 %v1520, %v1519
      %1525 = vmatprep.subr.bf16.mxu0 0
      %1526 = vmatpush1.bf16.msra.mxu0 %v1521
      %1527 = vmatprep.subr.bf16.mxu0 0
      %1528 = vmatpush1.bf16.msra.mxu0 %v1522
      %1529 = vmatprep.subr.bf16.mxu0 0
      %1530 = vmatpush1.bf16.msra.mxu0 0
      %1531 = vmatprep.subr.bf16.mxu0 0
      %1532 = vmatpush1.bf16.msra.mxu0 0
      %1533 = vmatprep.subr.bf16.mxu0 0
      %1534 = vmatpush1.bf16.msra.mxu0 0
      %1535 = vmatprep.subr.bf16.mxu0 0
      %1536 = vmatpush1.bf16.msra.mxu0 0
      %1537 = vmatprep.subr.bf16.mxu0 0
      %1538 = vmatpush1.bf16.msra.mxu0 0
      %1539 = vmatprep.subr.bf16.mxu0 0
      %1540 = vmatpush1.bf16.msra.mxu0 0
      %1541 = vmatprep.subr.bf16.mxu0 0
      %1542 = vmatpush1.bf16.msra.mxu0 0
      %1543 = vmatprep.subr.bf16.mxu0 0
      %1544 = vmatpush1.bf16.msra.mxu0 0
      %1545 = vmatprep.subr.bf16.mxu0 0
      %1546 = vmatpush1.bf16.msra.mxu0 0
      %1547 = vmatprep.subr.bf16.mxu0 0
      %1548 = vmatpush1.bf16.msra.mxu0 0
      %1549 = vmatprep.subr.bf16.mxu0 0
      %1550 = vmatpush1.bf16.msra.mxu0 0
      %1551 = vmatprep.subr.bf16.mxu0 0
      %1552 = vmatpush1.bf16.msra.mxu0 0
      %1553 = vmatprep.subr.bf16.mxu0 0
      %1554 = vmatpush1.bf16.msra.mxu0 0
      %1555 = vmatprep.subr.bf16.mxu0 0
      %1556 = vmatpush1.bf16.msra.mxu0 0
      %1557 = vmatprep.mubr.bf16.mxu0 0
      %1558 = vmatmul.mubr.bf16.gmra.mrb[0].mxu0 %v1037
      %v1559 = vpop.f32.mrb[0].mxu0
      %v1560 = vadd.f32 %v1511, %v1559
      %v1561 = vpop.f32.mrb[0].mxu0
      %v1562 = vpop.f32.mrb[0].mxu0
      %v1563 = vpop.f32.mrb[0].mxu0
      %1564 = vdwg.mxu0
      %v1566 = vsel %vm1205, %v1430, 0
      %v1569 = vsel %vm1205, %v1495, 0
      %1571 = vmatprep.subr.mxu0 0.0
      %1572 = vmatpush1.xpose.msra.mxu0 %v1569
      %1573 = vmatprep.subr.mxu0 0.0
      %1574 = vmatpush1.xpose.msra.mxu0 0.0
      %1575 = vmatprep.subr.mxu0 0.0
      %1576 = vmatpush1.xpose.msra.mxu0 0.0
      %1577 = vmatprep.subr.mxu0 0.0
      %1578 = vmatpush1.xpose.msra.mxu0 0.0
      %1579 = vmatprep.subr.mxu0 0.0
      %1580 = vmatpush1.xpose.msra.mxu0 0.0
      %1581 = vmatprep.subr.mxu0 0.0
      %1582 = vmatpush1.xpose.msra.mxu0 0.0
      %1583 = vmatprep.subr.mxu0 0.0
      %1584 = vmatpush1.xpose.msra.mxu0 0.0
      %1585 = vmatprep.subr.mxu0 0.0
      %1586 = vmatpush1.xpose.msra.mxu0 0.0
      %1587 = vmatprep.subr.mxu0 0.0
      %1588 = vmatpush1.xpose.msra.mxu0 0.0
      %1589 = vmatprep.subr.mxu0 0.0
      %1590 = vmatpush1.xpose.msra.mxu0 0.0
      %1591 = vmatprep.subr.mxu0 0.0
      %1592 = vmatpush1.xpose.msra.mxu0 0.0
      %1593 = vmatprep.subr.mxu0 0.0
      %1594 = vmatpush1.xpose.msra.mxu0 0.0
      %1595 = vmatprep.subr.mxu0 0.0
      %1596 = vmatpush1.xpose.msra.mxu0 0.0
      %1597 = vmatprep.subr.mxu0 0.0
      %1598 = vmatpush1.xpose.msra.mxu0 0.0
      %1599 = vmatprep.subr.mxu0 0.0
      %1600 = vmatpush1.xpose.msra.mxu0 0.0
      %1601 = vmatprep.subr.mxu0 0.0
      %1602 = vmatpush1.xpose.msra.mxu0 0.0
      %1603 = vmatprep.subr.mxu0 0.0
      %1604 = vmatpush1.xpose.msra.mxu0 0.0
      %1605 = vmatprep.subr.mxu0 0.0
      %1606 = vmatpush1.xpose.msra.mxu0 0.0
      %1607 = vmatprep.subr.mxu0 0.0
      %1608 = vmatpush1.xpose.msra.mxu0 0.0
      %1609 = vmatprep.subr.mxu0 0.0
      %1610 = vmatpush1.xpose.msra.mxu0 0.0
      %1611 = vmatprep.subr.mxu0 0.0
      %1612 = vmatpush1.xpose.msra.mxu0 0.0
      %1613 = vmatprep.subr.mxu0 0.0
      %1614 = vmatpush1.xpose.msra.mxu0 0.0
      %1615 = vmatprep.subr.mxu0 0.0
      %1616 = vmatpush1.xpose.msra.mxu0 0.0
      %1617 = vmatprep.subr.mxu0 0.0
      %1618 = vmatpush1.xpose.msra.mxu0 0.0
      %1619 = vmatprep.subr.mxu0 0.0
      %1620 = vmatpush1.xpose.msra.mxu0 0.0
      %1621 = vmatprep.subr.mxu0 0.0
      %1622 = vmatpush1.xpose.msra.mxu0 0.0
      %1623 = vmatprep.subr.mxu0 0.0
      %1624 = vmatpush1.xpose.msra.mxu0 0.0
      %1625 = vmatprep.subr.mxu0 0.0
      %1626 = vmatpush1.xpose.msra.mxu0 0.0
      %1627 = vmatprep.subr.mxu0 0.0
      %1628 = vmatpush1.xpose.msra.mxu0 0.0
      %1629 = vmatprep.subr.mxu0 0.0
      %1630 = vmatpush1.xpose.msra.mxu0 0.0
      %1631 = vmatprep.subr.mxu0 0.0
      %1632 = vmatpush1.xpose.msra.mxu0 0.0
      %1633 = vmatprep.subr.mxu0 0.0
      %1634 = vmatpush1.xpose.msra.mxu0 0.0
      %1635 = vmatprep.mubr.f32.mxu0 0.0
      %1636 = vmatmul.mubr.f32.gmra.mrb[0].mxu0 %v1566
      %v1637 = vpop.f32.mrb[0].mxu0
      %v1638 = vadd.f32 0.0, %v1637
      %v1639 = vpop.f32.mrb[0].mxu0
      %1640 = vdwg.mxu0
      %v1641 = vmul.f32 %v1638, 0.35355338
      %v1642 = vadd.f32 %v1641, %v1010
      %v1643 = vsel %vm1205, %v1642, -inf
      %1644 = vmax.xlane.f32.xlu0 %v1643
      %v1645 = vpop.xlane.xlu0 %1644
      %v1646 = vsub.f32 %v1642, %v1645
      %v1647 = vmul.f32 %v1646, 1.442695
      %v1648 = vpow.pop %v1647
      %v1649 = vsel %vm1205, %v1648, 0.0
      %1650 = vadd.xlane.f32.xlu0 %v1649
      %v1651 = vpop.xlane.xlu0 %1650
      %v1652 = vrcp.pop %v1651
      %v1653 = vmul.f32 %v1648, %v1652
      %v1655 = vsel %vm1205, %v1653, 0
      %1657 = vmatprep.subr.mxu0 0.0
      %1658 = vmatpush1.msra.mxu0 %v1560
      %1659 = vmatprep.subr.mxu0 0.0
      %1660 = vmatpush1.msra.mxu0 0.0
      %1661 = vmatprep.subr.mxu0 0.0
      %1662 = vmatpush1.msra.mxu0 0.0
      %1663 = vmatprep.subr.mxu0 0.0
      %1664 = vmatpush1.msra.mxu0 0.0
      %1665 = vmatprep.subr.mxu0 0.0
      %1666 = vmatpush1.msra.mxu0 0.0
      %1667 = vmatprep.subr.mxu0 0.0
      %1668 = vmatpush1.msra.mxu0 0.0
      %1669 = vmatprep.subr.mxu0 0.0
      %1670 = vmatpush1.msra.mxu0 0.0
      %1671 = vmatprep.subr.mxu0 0.0
      %1672 = vmatpush1.msra.mxu0 0.0
      %1673 = vmatprep.subr.mxu0 0.0
      %1674 = vmatpush1.msra.mxu0 0.0
      %1675 = vmatprep.subr.mxu0 0.0
      %1676 = vmatpush1.msra.mxu0 0.0
      %1677 = vmatprep.subr.mxu0 0.0
      %1678 = vmatpush1.msra.mxu0 0.0
      %1679 = vmatprep.subr.mxu0 0.0
      %1680 = vmatpush1.msra.mxu0 0.0
      %1681 = vmatprep.subr.mxu0 0.0
      %1682 = vmatpush1.msra.mxu0 0.0
      %1683 = vmatprep.subr.mxu0 0.0
      %1684 = vmatpush1.msra.mxu0 0.0
      %1685 = vmatprep.subr.mxu0 0.0
      %1686 = vmatpush1.msra.mxu0 0.0
      %1687 = vmatprep.subr.mxu0 0.0
      %1688 = vmatpush1.msra.mxu0 0.0
      %1689 = vmatprep.subr.mxu0 0.0
      %1690 = vmatpush1.msra.mxu0 0.0
      %1691 = vmatprep.subr.mxu0 0.0
      %1692 = vmatpush1.msra.mxu0 0.0
      %1693 = vmatprep.subr.mxu0 0.0
      %1694 = vmatpush1.msra.mxu0 0.0
      %1695 = vmatprep.subr.mxu0 0.0
      %1696 = vmatpush1.msra.mxu0 0.0
      %1697 = vmatprep.subr.mxu0 0.0
      %1698 = vmatpush1.msra.mxu0 0.0
      %1699 = vmatprep.subr.mxu0 0.0
      %1700 = vmatpush1.msra.mxu0 0.0
      %1701 = vmatprep.subr.mxu0 0.0
      %1702 = vmatpush1.msra.mxu0 0.0
      %1703 = vmatprep.subr.mxu0 0.0
      %1704 = vmatpush1.msra.mxu0 0.0
      %1705 = vmatprep.subr.mxu0 0.0
      %1706 = vmatpush1.msra.mxu0 0.0
      %1707 = vmatprep.subr.mxu0 0.0
      %1708 = vmatpush1.msra.mxu0 0.0
      %1709 = vmatprep.subr.mxu0 0.0
      %1710 = vmatpush1.msra.mxu0 0.0
      %1711 = vmatprep.subr.mxu0 0.0
      %1712 = vmatpush1.msra.mxu0 0.0
      %1713 = vmatprep.subr.mxu0 0.0
      %1714 = vmatpush1.msra.mxu0 0.0
      %1715 = vmatprep.subr.mxu0 0.0
      %1716 = vmatpush1.msra.mxu0 0.0
      %1717 = vmatprep.subr.mxu0 0.0
      %1718 = vmatpush1.msra.mxu0 0.0
      %1719 = vmatprep.subr.mxu0 0.0
      %1720 = vmatpush1.msra.mxu0 0.0
      %1721 = vmatprep.mubr.f32.mxu0 0.0
      %1722 = vmatmul.mubr.f32.gmra.mrb[0].mxu0 %v1655
      %v1723 = vpop.f32.mrb[0].mxu0
      %v1724 = vadd.f32 0.0, %v1723
      %v1725 = vpop.f32.mrb[0].mxu0
      %1726 = vdwg.mxu0
      %v1727 = vpack.c.bf16 %v1724, %v1724
      %s1728 = scalar_lea.vmem %s23, 4
      %v1729 = vld [vmem:[%s1728] sm:$0xf]
      %v1731 = vsel %vm1205, %v1727, 0
      %vm1733 = vcmask 1043456
      %v1735 = vsel %vm1733, %v1729, 0
      %1737 = vmatprep.subr.bf16.mxu0 0
      %1738 = vmatpush1.bf16.msra.mxu0 %v1735
      %1739 = vmatprep.subr.bf16.mxu0 0
      %1740 = vmatpush1.bf16.msra.mxu0 0
      %1741 = vmatprep.subr.bf16.mxu0 0
      %1742 = vmatpush1.bf16.msra.mxu0 0
      %1743 = vmatprep.subr.bf16.mxu0 0
      %1744 = vmatpush1.bf16.msra.mxu0 0
      %1745 = vmatprep.subr.bf16.mxu0 0
      %1746 = vmatpush1.bf16.msra.mxu0 0
      %1747 = vmatprep.subr.bf16.mxu0 0
      %1748 = vmatpush1.bf16.msra.mxu0 0
      %1749 = vmatprep.subr.bf16.mxu0 0
      %1750 = vmatpush1.bf16.msra.mxu0 0
      %1751 = vmatprep.subr.bf16.mxu0 0
      %1752 = vmatpush1.bf16.msra.mxu0 0
      %1753 = vmatprep.subr.bf16.mxu0 0
      %1754 = vmatpush1.bf16.msra.mxu0 0
      %1755 = vmatprep.subr.bf16.mxu0 0
      %1756 = vmatpush1.bf16.msra.mxu0 0
      %1757 = vmatprep.subr.bf16.mxu0 0
      %1758 = vmatpush1.bf16.msra.mxu0 0
      %1759 = vmatprep.subr.bf16.mxu0 0
      %1760 = vmatpush1.bf16.msra.mxu0 0
      %1761 = vmatprep.subr.bf16.mxu0 0
      %1762 = vmatpush1.bf16.msra.mxu0 0
      %1763 = vmatprep.subr.bf16.mxu0 0
      %1764 = vmatpush1.bf16.msra.mxu0 0
      %1765 = vmatprep.subr.bf16.mxu0 0
      %1766 = vmatpush1.bf16.msra.mxu0 0
      %1767 = vmatprep.subr.bf16.mxu0 0
      %1768 = vmatpush1.bf16.msra.mxu0 0
      %1769 = vmatprep.mubr.bf16.mxu0 0
      %1770 = vmatmul.mubr.bf16.gmra.mrb[0].mxu0 %v1731
      %v1771 = vpop.f32.mrb[0].mxu0
      %v1772 = vadd.f32 0.0, %v1771
      %v1773 = vpop.f32.mrb[0].mxu0
      %v1774 = vpop.f32.mrb[0].mxu0
      %v1775 = vpop.f32.mrb[0].mxu0
      %1776 = vdwg.mxu0
      %v1778 = vsel %vm1205, %v1368, 0
      %v1781 = vsel %vm1733, %v1369, 0
      %1783 = vmatprep.subr.bf16.mxu0 0
      %1784 = vmatpush1.bf16.msra.mxu0 %v1781
      %1785 = vmatprep.subr.bf16.mxu0 0
      %1786 = vmatpush1.bf16.msra.mxu0 0
      %1787 = vmatprep.subr.bf16.mxu0 0
      %1788 = vmatpush1.bf16.msra.mxu0 0
      %1789 = vmatprep.subr.bf16.mxu0 0
      %1790 = vmatpush1.bf16.msra.mxu0 0
      %1791 = vmatprep.subr.bf16.mxu0 0
      %1792 = vmatpush1.bf16.msra.mxu0 0
      %1793 = vmatprep.subr.bf16.mxu0 0
      %1794 = vmatpush1.bf16.msra.mxu0 0
      %1795 = vmatprep.subr.bf16.mxu0 0
      %1796 = vmatpush1.bf16.msra.mxu0 0
      %1797 = vmatprep.subr.bf16.mxu0 0
      %1798 = vmatpush1.bf16.msra.mxu0 0
      %1799 = vmatprep.subr.bf16.mxu0 0
      %1800 = vmatpush1.bf16.msra.mxu0 0
      %1801 = vmatprep.subr.bf16.mxu0 0
      %1802 = vmatpush1.bf16.msra.mxu0 0
      %1803 = vmatprep.subr.bf16.mxu0 0
      %1804 = vmatpush1.bf16.msra.mxu0 0
      %1805 = vmatprep.subr.bf16.mxu0 0
      %1806 = vmatpush1.bf16.msra.mxu0 0
      %1807 = vmatprep.subr.bf16.mxu0 0
      %1808 = vmatpush1.bf16.msra.mxu0 0
      %1809 = vmatprep.subr.bf16.mxu0 0
      %1810 = vmatpush1.bf16.msra.mxu0 0
      %1811 = vmatprep.subr.bf16.mxu0 0
      %1812 = vmatpush1.bf16.msra.mxu0 0
      %1813 = vmatprep.subr.bf16.mxu0 0
      %1814 = vmatpush1.bf16.msra.mxu0 0
      %1815 = vmatprep.mubr.bf16.mxu0 0
      %1816 = vmatmul.mubr.bf16.gmra.mrb[0].mxu0 %v1778
      %v1817 = vpop.f32.mrb[0].mxu0
      %v1818 = vadd.f32 %v1772, %v1817
      %v1819 = vpop.f32.mrb[0].mxu0
      %v1820 = vpop.f32.mrb[0].mxu0
      %v1821 = vpop.f32.mrb[0].mxu0
      %1822 = vdwg.mxu0
      %s1823 = scalar_lea.vmem %s11, 32
      %v1824 = vld [vmem:[%s1823] sm:$0xf]
      %v1825 = vld [vmem:[%s1823 + $0x4] sm:$0xf]
      %v1826 = vld [vmem:[%s1823 + $0x8] sm:$0xf]
      %v1827 = vld [vmem:[%s1823 + $0xc] sm:$0xf]
      %s1828 = scalar_lea.vmem %s13, 2
      %v1829 = vld [vmem:[%s1828] sm:$0x1]
      %v1831 = vlaneseq
      %v1832 = vshrl.u32 %v1831, 7
      %v1833 = vsub.s32 0, %v1832
      %v1834 = vrot.slane %v1829, %v1833
      %v1840 = vunpack.c.l.b16 %v1824
      %v1841 = vunpack.c.l.b16 %v1825
      %v1842 = vunpack.c.l.b16 %v1826
      %v1843 = vunpack.c.l.b16 %v1827
      %v1844 = vpack.c.b16 %v1841, %v1840
      %v1845 = vpack.c.b16 %v1843, %v1842
      %1848 = vmatprep.subr.bf16.mxu0 0
      %1849 = vmatpush1.bf16.msra.mxu0 %v1844
      %1850 = vmatprep.subr.bf16.mxu0 0
      %1851 = vmatpush1.bf16.msra.mxu0 %v1845
      %1852 = vmatprep.subr.bf16.mxu0 0
      %1853 = vmatpush1.bf16.msra.mxu0 0
      %1854 = vmatprep.subr.bf16.mxu0 0
      %1855 = vmatpush1.bf16.msra.mxu0 0
      %1856 = vmatprep.subr.bf16.mxu0 0
      %1857 = vmatpush1.bf16.msra.mxu0 0
      %1858 = vmatprep.subr.bf16.mxu0 0
      %1859 = vmatpush1.bf16.msra.mxu0 0
      %1860 = vmatprep.subr.bf16.mxu0 0
      %1861 = vmatpush1.bf16.msra.mxu0 0
      %1862 = vmatprep.subr.bf16.mxu0 0
      %1863 = vmatpush1.bf16.msra.mxu0 0
      %1864 = vmatprep.subr.bf16.mxu0 0
      %1865 = vmatpush1.bf16.msra.mxu0 0
      %1866 = vmatprep.subr.bf16.mxu0 0
      %1867 = vmatpush1.bf16.msra.mxu0 0
      %1868 = vmatprep.subr.bf16.mxu0 0
      %1869 = vmatpush1.bf16.msra.mxu0 0
      %1870 = vmatprep.subr.bf16.mxu0 0
      %1871 = vmatpush1.bf16.msra.mxu0 0
      %1872 = vmatprep.subr.bf16.mxu0 0
      %1873 = vmatpush1.bf16.msra.mxu0 0
      %1874 = vmatprep.subr.bf16.mxu0 0
      %1875 = vmatpush1.bf16.msra.mxu0 0
      %1876 = vmatprep.subr.bf16.mxu0 0
      %1877 = vmatpush1.bf16.msra.mxu0 0
      %1878 = vmatprep.subr.bf16.mxu0 0
      %1879 = vmatpush1.bf16.msra.mxu0 0
      %1880 = vmatprep.mubr.bf16.mxu0 0
      %1881 = vmatmul.mubr.bf16.gmra.mrb[0].mxu0 %v1037
      %v1882 = vpop.f32.mrb[0].mxu0
      %v1883 = vadd.f32 %v1834, %v1882
      %v1884 = vpop.f32.mrb[0].mxu0
      %v1885 = vpop.f32.mrb[0].mxu0
      %v1886 = vpop.f32.mrb[0].mxu0
      %1887 = vdwg.mxu0
      %s1888 = scalar_lea.vmem %s15, 32
      %v1889 = vld [vmem:[%s1888] sm:$0xf]
      %v1890 = vld [vmem:[%s1888 + $0x4] sm:$0xf]
      %v1891 = vld [vmem:[%s1888 + $0x8] sm:$0xf]
      %v1892 = vld [vmem:[%s1888 + $0xc] sm:$0xf]
      %s1893 = scalar_lea.vmem %s17, 2
      %v1894 = vld [vmem:[%s1893] sm:$0x1]
      %v1896 = vlaneseq
      %v1897 = vshrl.u32 %v1896, 7
      %v1898 = vsub.s32 0, %v1897
      %v1899 = vrot.slane %v1894, %v1898
      %v1905 = vunpack.c.l.b16 %v1889
      %v1906 = vunpack.c.l.b16 %v1890
      %v1907 = vunpack.c.l.b16 %v1891
      %v1908 = vunpack.c.l.b16 %v1892
      %v1909 = vpack.c.b16 %v1906, %v1905
      %v1910 = vpack.c.b16 %v1908, %v1907
      %1913 = vmatprep.subr.bf16.mxu0 0
      %1914 = vmatpush1.bf16.msra.mxu0 %v1909
      %1915 = vmatprep.subr.bf16.mxu0 0
      %1916 = vmatpush1.bf16.msra.mxu0 %v1910
      %1917 = vmatprep.subr.bf16.mxu0 0
      %1918 = vmatpush1.bf16.msra.mxu0 0
      %1919 = vmatprep.subr.bf16.mxu0 0
      %1920 = vmatpush1.bf16.msra.mxu0 0
      %1921 = vmatprep.subr.bf16.mxu0 0
      %1922 = vmatpush1.bf16.msra.mxu0 0
      %1923 = vmatprep.subr.bf16.mxu0 0
      %1924 = vmatpush1.bf16.msra.mxu0 0
      %1925 = vmatprep.subr.bf16.mxu0 0
      %1926 = vmatpush1.bf16.msra.mxu0 0
      %1927 = vmatprep.subr.bf16.mxu0 0
      %1928 = vmatpush1.bf16.msra.mxu0 0
      %1929 = vmatprep.subr.bf16.mxu0 0
      %1930 = vmatpush1.bf16.msra.mxu0 0
      %1931 = vmatprep.subr.bf16.mxu0 0
      %1932 = vmatpush1.bf16.msra.mxu0 0
      %1933 = vmatprep.subr.bf16.mxu0 0
      %1934 = vmatpush1.bf16.msra.mxu0 0
      %1935 = vmatprep.subr.bf16.mxu0 0
      %1936 = vmatpush1.bf16.msra.mxu0 0
      %1937 = vmatprep.subr.bf16.mxu0 0
      %1938 = vmatpush1.bf16.msra.mxu0 0
      %1939 = vmatprep.subr.bf16.mxu0 0
      %1940 = vmatpush1.bf16.msra.mxu0 0
      %1941 = vmatprep.subr.bf16.mxu0 0
      %1942 = vmatpush1.bf16.msra.mxu0 0
      %1943 = vmatprep.subr.bf16.mxu0 0
      %1944 = vmatpush1.bf16.msra.mxu0 0
      %1945 = vmatprep.mubr.bf16.mxu0 0
      %1946 = vmatmul.mubr.bf16.gmra.mrb[0].mxu0 %v1037
      %v1947 = vpop.f32.mrb[0].mxu0
      %v1948 = vadd.f32 %v1899, %v1947
      %v1949 = vpop.f32.mrb[0].mxu0
      %v1950 = vpop.f32.mrb[0].mxu0
      %v1951 = vpop.f32.mrb[0].mxu0
      %1952 = vdwg.mxu0
      %s1953 = scalar_lea.vmem %s19, 32
      %v1954 = vld [vmem:[%s1953] sm:$0xf]
      %v1955 = vld [vmem:[%s1953 + $0x4] sm:$0xf]
      %v1956 = vld [vmem:[%s1953 + $0x8] sm:$0xf]
      %v1957 = vld [vmem:[%s1953 + $0xc] sm:$0xf]
      %s1958 = scalar_lea.vmem %s21, 2
      %v1959 = vld [vmem:[%s1958] sm:$0x1]
      %v1961 = vlaneseq
      %v1962 = vshrl.u32 %v1961, 7
      %v1963 = vsub.s32 0, %v1962
      %v1964 = vrot.slane %v1959, %v1963
      %v1970 = vunpack.c.l.b16 %v1954
      %v1971 = vunpack.c.l.b16 %v1955
      %v1972 = vunpack.c.l.b16 %v1956
      %v1973 = vunpack.c.l.b16 %v1957
      %v1974 = vpack.c.b16 %v1971, %v1970
      %v1975 = vpack.c.b16 %v1973, %v1972
      %1978 = vmatprep.subr.bf16.mxu0 0
      %1979 = vmatpush1.bf16.msra.mxu0 %v1974
      %1980 = vmatprep.subr.bf16.mxu0 0
      %1981 = vmatpush1.bf16.msra.mxu0 %v1975
      %1982 = vmatprep.subr.bf16.mxu0 0
      %1983 = vmatpush1.bf16.msra.mxu0 0
      %1984 = vmatprep.subr.bf16.mxu0 0
      %1985 = vmatpush1.bf16.msra.mxu0 0
      %1986 = vmatprep.subr.bf16.mxu0 0
      %1987 = vmatpush1.bf16.msra.mxu0 0
      %1988 = vmatprep.subr.bf16.mxu0 0
      %1989 = vmatpush1.bf16.msra.mxu0 0
      %1990 = vmatprep.subr.bf16.mxu0 0
      %1991 = vmatpush1.bf16.msra.mxu0 0
      %1992 = vmatprep.subr.bf16.mxu0 0
      %1993 = vmatpush1.bf16.msra.mxu0 0
      %1994 = vmatprep.subr.bf16.mxu0 0
      %1995 = vmatpush1.bf16.msra.mxu0 0
      %1996 = vmatprep.subr.bf16.mxu0 0
      %1997 = vmatpush1.bf16.msra.mxu0 0
      %1998 = vmatprep.subr.bf16.mxu0 0
      %1999 = vmatpush1.bf16.msra.mxu0 0
      %2000 = vmatprep.subr.bf16.mxu0 0
      %2001 = vmatpush1.bf16.msra.mxu0 0
      %2002 = vmatprep.subr.bf16.mxu0 0
      %2003 = vmatpush1.bf16.msra.mxu0 0
      %2004 = vmatprep.subr.bf16.mxu0 0
      %2005 = vmatpush1.bf16.msra.mxu0 0
      %2006 = vmatprep.subr.bf16.mxu0 0
      %2007 = vmatpush1.bf16.msra.mxu0 0
      %2008 = vmatprep.subr.bf16.mxu0 0
      %2009 = vmatpush1.bf16.msra.mxu0 0
      %2010 = vmatprep.mubr.bf16.mxu0 0
      %2011 = vmatmul.mubr.bf16.gmra.mrb[0].mxu0 %v1037
      %v2012 = vpop.f32.mrb[0].mxu0
      %v2013 = vadd.f32 %v1964, %v2012
      %v2014 = vpop.f32.mrb[0].mxu0
      %v2015 = vpop.f32.mrb[0].mxu0
      %v2016 = vpop.f32.mrb[0].mxu0
      %2017 = vdwg.mxu0
      %v2019 = vsel %vm1205, %v1883, 0
      %v2022 = vsel %vm1205, %v1948, 0
      %2024 = vmatprep.subr.mxu0 0.0
      %2025 = vmatpush1.xpose.msra.mxu0 %v2022
      %2026 = vmatprep.subr.mxu0 0.0
      %2027 = vmatpush1.xpose.msra.mxu0 0.0
      %2028 = vmatprep.subr.mxu0 0.0
      %2029 = vmatpush1.xpose.msra.mxu0 0.0
      %2030 = vmatprep.subr.mxu0 0.0
      %2031 = vmatpush1.xpose.msra.mxu0 0.0
      %2032 = vmatprep.subr.mxu0 0.0
      %2033 = vmatpush1.xpose.msra.mxu0 0.0
      %2034 = vmatprep.subr.mxu0 0.0
      %2035 = vmatpush1.xpose.msra.mxu0 0.0
      %2036 = vmatprep.subr.mxu0 0.0
      %2037 = vmatpush1.xpose.msra.mxu0 0.0
      %2038 = vmatprep.subr.mxu0 0.0
      %2039 = vmatpush1.xpose.msra.mxu0 0.0
      %2040 = vmatprep.subr.mxu0 0.0
      %2041 = vmatpush1.xpose.msra.mxu0 0.0
      %2042 = vmatprep.subr.mxu0 0.0
      %2043 = vmatpush1.xpose.msra.mxu0 0.0
      %2044 = vmatprep.subr.mxu0 0.0
      %2045 = vmatpush1.xpose.msra.mxu0 0.0
      %2046 = vmatprep.subr.mxu0 0.0
      %2047 = vmatpush1.xpose.msra.mxu0 0.0
      %2048 = vmatprep.subr.mxu0 0.0
      %2049 = vmatpush1.xpose.msra.mxu0 0.0
      %2050 = vmatprep.subr.mxu0 0.0
      %2051 = vmatpush1.xpose.msra.mxu0 0.0
      %2052 = vmatprep.subr.mxu0 0.0
      %2053 = vmatpush1.xpose.msra.mxu0 0.0
      %2054 = vmatprep.subr.mxu0 0.0
      %2055 = vmatpush1.xpose.msra.mxu0 0.0
      %2056 = vmatprep.subr.mxu0 0.0
      %2057 = vmatpush1.xpose.msra.mxu0 0.0
      %2058 = vmatprep.subr.mxu0 0.0
      %2059 = vmatpush1.xpose.msra.mxu0 0.0
      %2060 = vmatprep.subr.mxu0 0.0
      %2061 = vmatpush1.xpose.msra.mxu0 0.0
      %2062 = vmatprep.subr.mxu0 0.0
      %2063 = vmatpush1.xpose.msra.mxu0 0.0
      %2064 = vmatprep.subr.mxu0 0.0
      %2065 = vmatpush1.xpose.msra.mxu0 0.0
      %2066 = vmatprep.subr.mxu0 0.0
      %2067 = vmatpush1.xpose.msra.mxu0 0.0
      %2068 = vmatprep.subr.mxu0 0.0
      %2069 = vmatpush1.xpose.msra.mxu0 0.0
      %2070 = vmatprep.subr.mxu0 0.0
      %2071 = vmatpush1.xpose.msra.mxu0 0.0
      %2072 = vmatprep.subr.mxu0 0.0
      %2073 = vmatpush1.xpose.msra.mxu0 0.0
      %2074 = vmatprep.subr.mxu0 0.0
      %2075 = vmatpush1.xpose.msra.mxu0 0.0
      %2076 = vmatprep.subr.mxu0 0.0
      %2077 = vmatpush1.xpose.msra.mxu0 0.0
      %2078 = vmatprep.subr.mxu0 0.0
      %2079 = vmatpush1.xpose.msra.mxu0 0.0
      %2080 = vmatprep.subr.mxu0 0.0
      %2081 = vmatpush1.xpose.msra.mxu0 0.0
      %2082 = vmatprep.subr.mxu0 0.0
      %2083 = vmatpush1.xpose.msra.mxu0 0.0
      %2084 = vmatprep.subr.mxu0 0.0
      %2085 = vmatpush1.xpose.msra.mxu0 0.0
      %2086 = vmatprep.subr.mxu0 0.0
      %2087 = vmatpush1.xpose.msra.mxu0 0.0
      %2088 = vmatprep.mubr.f32.mxu0 0.0
      %2089 = vmatmul.mubr.f32.gmra.mrb[0].mxu0 %v2019
      %v2090 = vpop.f32.mrb[0].mxu0
      %v2091 = vadd.f32 0.0, %v2090
      %v2092 = vpop.f32.mrb[0].mxu0
      %2093 = vdwg.mxu0
      %v2094 = vmul.f32 %v2091, 0.35355338
      %v2095 = vadd.f32 %v2094, %v1010
      %v2096 = vsel %vm1205, %v2095, -inf
      %2097 = vmax.xlane.f32.xlu0 %v2096
      %v2098 = vpop.xlane.xlu0 %2097
      %v2099 = vsub.f32 %v2095, %v2098
      %v2100 = vmul.f32 %v2099, 1.442695
      %v2101 = vpow.pop %v2100
      %v2102 = vsel %vm1205, %v2101, 0.0
      %2103 = vadd.xlane.f32.xlu0 %v2102
      %v2104 = vpop.xlane.xlu0 %2103
      %v2105 = vrcp.pop %v2104
      %v2106 = vmul.f32 %v2101, %v2105
      %v2108 = vsel %vm1205, %v2106, 0
      %2110 = vmatprep.subr.mxu0 0.0
      %2111 = vmatpush1.msra.mxu0 %v2013
      %2112 = vmatprep.subr.mxu0 0.0
      %2113 = vmatpush1.msra.mxu0 0.0
      %2114 = vmatprep.subr.mxu0 0.0
      %2115 = vmatpush1.msra.mxu0 0.0
      %2116 = vmatprep.subr.mxu0 0.0
      %2117 = vmatpush1.msra.mxu0 0.0
      %2118 = vmatprep.subr.mxu0 0.0
      %2119 = vmatpush1.msra.mxu0 0.0
      %2120 = vmatprep.subr.mxu0 0.0
      %2121 = vmatpush1.msra.mxu0 0.0
      %2122 = vmatprep.subr.mxu0 0.0
      %2123 = vmatpush1.msra.mxu0 0.0
      %2124 = vmatprep.subr.mxu0 0.0
      %2125 = vmatpush1.msra.mxu0 0.0
      %2126 = vmatprep.subr.mxu0 0.0
      %2127 = vmatpush1.msra.mxu0 0.0
      %2128 = vmatprep.subr.mxu0 0.0
      %2129 = vmatpush1.msra.mxu0 0.0
      %2130 = vmatprep.subr.mxu0 0.0
      %2131 = vmatpush1.msra.mxu0 0.0
      %2132 = vmatprep.subr.mxu0 0.0
      %2133 = vmatpush1.msra.mxu0 0.0
      %2134 = vmatprep.subr.mxu0 0.0
      %2135 = vmatpush1.msra.mxu0 0.0
      %2136 = vmatprep.subr.mxu0 0.0
      %2137 = vmatpush1.msra.mxu0 0.0
      %2138 = vmatprep.subr.mxu0 0.0
      %2139 = vmatpush1.msra.mxu0 0.0
      %2140 = vmatprep.subr.mxu0 0.0
      %2141 = vmatpush1.msra.mxu0 0.0
      %2142 = vmatprep.subr.mxu0 0.0
      %2143 = vmatpush1.msra.mxu0 0.0
      %2144 = vmatprep.subr.mxu0 0.0
      %2145 = vmatpush1.msra.mxu0 0.0
      %2146 = vmatprep.subr.mxu0 0.0
      %2147 = vmatpush1.msra.mxu0 0.0
      %2148 = vmatprep.subr.mxu0 0.0
      %2149 = vmatpush1.msra.mxu0 0.0
      %2150 = vmatprep.subr.mxu0 0.0
      %2151 = vmatpush1.msra.mxu0 0.0
      %2152 = vmatprep.subr.mxu0 0.0
      %2153 = vmatpush1.msra.mxu0 0.0
      %2154 = vmatprep.subr.mxu0 0.0
      %2155 = vmatpush1.msra.mxu0 0.0
      %2156 = vmatprep.subr.mxu0 0.0
      %2157 = vmatpush1.msra.mxu0 0.0
      %2158 = vmatprep.subr.mxu0 0.0
      %2159 = vmatpush1.msra.mxu0 0.0
      %2160 = vmatprep.subr.mxu0 0.0
      %2161 = vmatpush1.msra.mxu0 0.0
      %2162 = vmatprep.subr.mxu0 0.0
      %2163 = vmatpush1.msra.mxu0 0.0
      %2164 = vmatprep.subr.mxu0 0.0
      %2165 = vmatpush1.msra.mxu0 0.0
      %2166 = vmatprep.subr.mxu0 0.0
      %2167 = vmatpush1.msra.mxu0 0.0
      %2168 = vmatprep.subr.mxu0 0.0
      %2169 = vmatpush1.msra.mxu0 0.0
      %2170 = vmatprep.subr.mxu0 0.0
      %2171 = vmatpush1.msra.mxu0 0.0
      %2172 = vmatprep.subr.mxu0 0.0
      %2173 = vmatpush1.msra.mxu0 0.0
      %2174 = vmatprep.mubr.f32.mxu0 0.0
      %2175 = vmatmul.mubr.f32.gmra.mrb[0].mxu0 %v2108
      %v2176 = vpop.f32.mrb[0].mxu0
      %v2177 = vadd.f32 0.0, %v2176
      %v2178 = vpop.f32.mrb[0].mxu0
      %2179 = vdwg.mxu0
      %v2180 = vpack.c.bf16 %v2177, %v2177
      %s2181 = scalar_lea.vmem %s23, 8
      %v2182 = vld [vmem:[%s2181] sm:$0xf]
      %v2184 = vsel %vm1205, %v2180, 0
      %v2187 = vsel %vm1733, %v2182, 0
      %2189 = vmatprep.subr.bf16.mxu0 0
      %2190 = vmatpush1.bf16.msra.mxu0 %v2187
      %2191 = vmatprep.subr.bf16.mxu0 0
      %2192 = vmatpush1.bf16.msra.mxu0 0
      %2193 = vmatprep.subr.bf16.mxu0 0
      %2194 = vmatpush1.bf16.msra.mxu0 0
      %2195 = vmatprep.subr.bf16.mxu0 0
      %2196 = vmatpush1.bf16.msra.mxu0 0
      %2197 = vmatprep.subr.bf16.mxu0 0
      %2198 = vmatpush1.bf16.msra.mxu0 0
      %2199 = vmatprep.subr.bf16.mxu0 0
      %2200 = vmatpush1.bf16.msra.mxu0 0
      %2201 = vmatprep.subr.bf16.mxu0 0
      %2202 = vmatpush1.bf16.msra.mxu0 0
      %2203 = vmatprep.subr.bf16.mxu0 0
      %2204 = vmatpush1.bf16.msra.mxu0 0
      %2205 = vmatprep.subr.bf16.mxu0 0
      %2206 = vmatpush1.bf16.msra.mxu0 0
      %2207 = vmatprep.subr.bf16.mxu0 0
      %2208 = vmatpush1.bf16.msra.mxu0 0
      %2209 = vmatprep.subr.bf16.mxu0 0
      %2210 = vmatpush1.bf16.msra.mxu0 0
      %2211 = vmatprep.subr.bf16.mxu0 0
      %2212 = vmatpush1.bf16.msra.mxu0 0
      %2213 = vmatprep.subr.bf16.mxu0 0
      %2214 = vmatpush1.bf16.msra.mxu0 0
      %2215 = vmatprep.subr.bf16.mxu0 0
      %2216 = vmatpush1.bf16.msra.mxu0 0
      %2217 = vmatprep.subr.bf16.mxu0 0
      %2218 = vmatpush1.bf16.msra.mxu0 0
      %2219 = vmatprep.subr.bf16.mxu0 0
      %2220 = vmatpush1.bf16.msra.mxu0 0
      %2221 = vmatprep.mubr.bf16.mxu0 0
      %2222 = vmatmul.mubr.bf16.gmra.mrb[0].mxu0 %v2184
      %v2223 = vpop.f32.mrb[0].mxu0
      %v2224 = vadd.f32 0.0, %v2223
      %v2225 = vpop.f32.mrb[0].mxu0
      %v2226 = vpop.f32.mrb[0].mxu0
      %v2227 = vpop.f32.mrb[0].mxu0
      %2228 = vdwg.mxu0
      %v2229 = vadd.f32 %v1818, %v2224
      %s2230 = scalar_lea.vmem %s11, 48
      %v2231 = vld [vmem:[%s2230] sm:$0xf]
      %v2232 = vld [vmem:[%s2230 + $0x4] sm:$0xf]
      %v2233 = vld [vmem:[%s2230 + $0x8] sm:$0xf]
      %v2234 = vld [vmem:[%s2230 + $0xc] sm:$0xf]
      %s2235 = scalar_lea.vmem %s13, 3
      %v2236 = vld [vmem:[%s2235] sm:$0x1]
      %v2238 = vlaneseq
      %v2239 = vshrl.u32 %v2238, 7
      %v2240 = vsub.s32 0, %v2239
      %v2241 = vrot.slane %v2236, %v2240
      %v2247 = vunpack.c.l.b16 %v2231
      %v2248 = vunpack.c.l.b16 %v2232
      %v2249 = vunpack.c.l.b16 %v2233
      %v2250 = vunpack.c.l.b16 %v2234
      %v2251 = vpack.c.b16 %v2248, %v2247
      %v2252 = vpack.c.b16 %v2250, %v2249
      %2255 = vmatprep.subr.bf16.mxu0 0
      %2256 = vmatpush1.bf16.msra.mxu0 %v2251
      %2257 = vmatprep.subr.bf16.mxu0 0
      %2258 = vmatpush1.bf16.msra.mxu0 %v2252
      %2259 = vmatprep.subr.bf16.mxu0 0
      %2260 = vmatpush1.bf16.msra.mxu0 0
      %2261 = vmatprep.subr.bf16.mxu0 0
      %2262 = vmatpush1.bf16.msra.mxu0 0
      %2263 = vmatprep.subr.bf16.mxu0 0
      %2264 = vmatpush1.bf16.msra.mxu0 0
      %2265 = vmatprep.subr.bf16.mxu0 0
      %2266 = vmatpush1.bf16.msra.mxu0 0
      %2267 = vmatprep.subr.bf16.mxu0 0
      %2268 = vmatpush1.bf16.msra.mxu0 0
      %2269 = vmatprep.subr.bf16.mxu0 0
      %2270 = vmatpush1.bf16.msra.mxu0 0
      %2271 = vmatprep.subr.bf16.mxu0 0
      %2272 = vmatpush1.bf16.msra.mxu0 0
      %2273 = vmatprep.subr.bf16.mxu0 0
      %2274 = vmatpush1.bf16.msra.mxu0 0
      %2275 = vmatprep.subr.bf16.mxu0 0
      %2276 = vmatpush1.bf16.msra.mxu0 0
      %2277 = vmatprep.subr.bf16.mxu0 0
      %2278 = vmatpush1.bf16.msra.mxu0 0
      %2279 = vmatprep.subr.bf16.mxu0 0
      %2280 = vmatpush1.bf16.msra.mxu0 0
      %2281 = vmatprep.subr.bf16.mxu0 0
      %2282 = vmatpush1.bf16.msra.mxu0 0
      %2283 = vmatprep.subr.bf16.mxu0 0
      %2284 = vmatpush1.bf16.msra.mxu0 0
      %2285 = vmatprep.subr.bf16.mxu0 0
      %2286 = vmatpush1.bf16.msra.mxu0 0
      %2287 = vmatprep.mubr.bf16.mxu0 0
      %2288 = vmatmul.mubr.bf16.gmra.mrb[0].mxu0 %v1037
      %v2289 = vpop.f32.mrb[0].mxu0
      %v2290 = vadd.f32 %v2241, %v2289
      %v2291 = vpop.f32.mrb[0].mxu0
      %v2292 = vpop.f32.mrb[0].mxu0
      %v2293 = vpop.f32.mrb[0].mxu0
      %2294 = vdwg.mxu0
      %s2295 = scalar_lea.vmem %s15, 48
      %v2296 = vld [vmem:[%s2295] sm:$0xf]
      %v2297 = vld [vmem:[%s2295 + $0x4] sm:$0xf]
      %v2298 = vld [vmem:[%s2295 + $0x8] sm:$0xf]
      %v2299 = vld [vmem:[%s2295 + $0xc] sm:$0xf]
      %s2300 = scalar_lea.vmem %s17, 3
      %v2301 = vld [vmem:[%s2300] sm:$0x1]
      %v2303 = vlaneseq
      %v2304 = vshrl.u32 %v2303, 7
      %v2305 = vsub.s32 0, %v2304
      %v2306 = vrot.slane %v2301, %v2305
      %v2312 = vunpack.c.l.b16 %v2296
      %v2313 = vunpack.c.l.b16 %v2297
      %v2314 = vunpack.c.l.b16 %v2298
      %v2315 = vunpack.c.l.b16 %v2299
      %v2316 = vpack.c.b16 %v2313, %v2312
      %v2317 = vpack.c.b16 %v2315, %v2314
      %2320 = vmatprep.subr.bf16.mxu0 0
      %2321 = vmatpush1.bf16.msra.mxu0 %v2316
      %2322 = vmatprep.subr.bf16.mxu0 0
      %2323 = vmatpush1.bf16.msra.mxu0 %v2317
      %2324 = vmatprep.subr.bf16.mxu0 0
      %2325 = vmatpush1.bf16.msra.mxu0 0
      %2326 = vmatprep.subr.bf16.mxu0 0
      %2327 = vmatpush1.bf16.msra.mxu0 0
      %2328 = vmatprep.subr.bf16.mxu0 0
      %2329 = vmatpush1.bf16.msra.mxu0 0
      %2330 = vmatprep.subr.bf16.mxu0 0
      %2331 = vmatpush1.bf16.msra.mxu0 0
      %2332 = vmatprep.subr.bf16.mxu0 0
      %2333 = vmatpush1.bf16.msra.mxu0 0
      %2334 = vmatprep.subr.bf16.mxu0 0
      %2335 = vmatpush1.bf16.msra.mxu0 0
      %2336 = vmatprep.subr.bf16.mxu0 0
      %2337 = vmatpush1.bf16.msra.mxu0 0
      %2338 = vmatprep.subr.bf16.mxu0 0
      %2339 = vmatpush1.bf16.msra.mxu0 0
      %2340 = vmatprep.subr.bf16.mxu0 0
      %2341 = vmatpush1.bf16.msra.mxu0 0
      %2342 = vmatprep.subr.bf16.mxu0 0
      %2343 = vmatpush1.bf16.msra.mxu0 0
      %2344 = vmatprep.subr.bf16.mxu0 0
      %2345 = vmatpush1.bf16.msra.mxu0 0
      %2346 = vmatprep.subr.bf16.mxu0 0
      %2347 = vmatpush1.bf16.msra.mxu0 0
      %2348 = vmatprep.subr.bf16.mxu0 0
      %2349 = vmatpush1.bf16.msra.mxu0 0
      %2350 = vmatprep.subr.bf16.mxu0 0
      %2351 = vmatpush1.bf16.msra.mxu0 0
      %2352 = vmatprep.mubr.bf16.mxu0 0
      %2353 = vmatmul.mubr.bf16.gmra.mrb[0].mxu0 %v1037
      %v2354 = vpop.f32.mrb[0].mxu0
      %v2355 = vadd.f32 %v2306, %v2354
      %v2356 = vpop.f32.mrb[0].mxu0
      %v2357 = vpop.f32.mrb[0].mxu0
      %v2358 = vpop.f32.mrb[0].mxu0
      %2359 = vdwg.mxu0
      %s2360 = scalar_lea.vmem %s19, 48
      %v2361 = vld [vmem:[%s2360] sm:$0xf]
      %v2362 = vld [vmem:[%s2360 + $0x4] sm:$0xf]
      %v2363 = vld [vmem:[%s2360 + $0x8] sm:$0xf]
      %v2364 = vld [vmem:[%s2360 + $0xc] sm:$0xf]
      %s2365 = scalar_lea.vmem %s21, 3
      %v2366 = vld [vmem:[%s2365] sm:$0x1]
      %v2368 = vlaneseq
      %v2369 = vshrl.u32 %v2368, 7
      %v2370 = vsub.s32 0, %v2369
      %v2371 = vrot.slane %v2366, %v2370
      %v2377 = vunpack.c.l.b16 %v2361
      %v2378 = vunpack.c.l.b16 %v2362
      %v2379 = vunpack.c.l.b16 %v2363
      %v2380 = vunpack.c.l.b16 %v2364
      %v2381 = vpack.c.b16 %v2378, %v2377
      %v2382 = vpack.c.b16 %v2380, %v2379
      %2385 = vmatprep.subr.bf16.mxu0 0
      %2386 = vmatpush1.bf16.msra.mxu0 %v2381
      %2387 = vmatprep.subr.bf16.mxu0 0
      %2388 = vmatpush1.bf16.msra.mxu0 %v2382
      %2389 = vmatprep.subr.bf16.mxu0 0
      %2390 = vmatpush1.bf16.msra.mxu0 0
      %2391 = vmatprep.subr.bf16.mxu0 0
      %2392 = vmatpush1.bf16.msra.mxu0 0
      %2393 = vmatprep.subr.bf16.mxu0 0
      %2394 = vmatpush1.bf16.msra.mxu0 0
      %2395 = vmatprep.subr.bf16.mxu0 0
      %2396 = vmatpush1.bf16.msra.mxu0 0
      %2397 = vmatprep.subr.bf16.mxu0 0
      %2398 = vmatpush1.bf16.msra.mxu0 0
      %2399 = vmatprep.subr.bf16.mxu0 0
      %2400 = vmatpush1.bf16.msra.mxu0 0
      %2401 = vmatprep.subr.bf16.mxu0 0
      %2402 = vmatpush1.bf16.msra.mxu0 0
      %2403 = vmatprep.subr.bf16.mxu0 0
      %2404 = vmatpush1.bf16.msra.mxu0 0
      %2405 = vmatprep.subr.bf16.mxu0 0
      %2406 = vmatpush1.bf16.msra.mxu0 0
      %2407 = vmatprep.subr.bf16.mxu0 0
      %2408 = vmatpush1.bf16.msra.mxu0 0
      %2409 = vmatprep.subr.bf16.mxu0 0
      %2410 = vmatpush1.bf16.msra.mxu0 0
      %2411 = vmatprep.subr.bf16.mxu0 0
      %2412 = vmatpush1.bf16.msra.mxu0 0
      %2413 = vmatprep.subr.bf16.mxu0 0
      %2414 = vmatpush1.bf16.msra.mxu0 0
      %2415 = vmatprep.subr.bf16.mxu0 0
      %2416 = vmatpush1.bf16.msra.mxu0 0
      %2417 = vmatprep.mubr.bf16.mxu0 0
      %2418 = vmatmul.mubr.bf16.gmra.mrb[0].mxu0 %v1037
      %v2419 = vpop.f32.mrb[0].mxu0
      %v2420 = vadd.f32 %v2371, %v2419
      %v2421 = vpop.f32.mrb[0].mxu0
      %v2422 = vpop.f32.mrb[0].mxu0
      %v2423 = vpop.f32.mrb[0].mxu0
      %2424 = vdwg.mxu0
      %v2426 = vsel %vm1205, %v2290, 0
      %v2429 = vsel %vm1205, %v2355, 0
      %2431 = vmatprep.subr.mxu0 0.0
      %2432 = vmatpush1.xpose.msra.mxu0 %v2429
      %2433 = vmatprep.subr.mxu0 0.0
      %2434 = vmatpush1.xpose.msra.mxu0 0.0
      %2435 = vmatprep.subr.mxu0 0.0
      %2436 = vmatpush1.xpose.msra.mxu0 0.0
      %2437 = vmatprep.subr.mxu0 0.0
      %2438 = vmatpush1.xpose.msra.mxu0 0.0
      %2439 = vmatprep.subr.mxu0 0.0
      %2440 = vmatpush1.xpose.msra.mxu0 0.0
      %2441 = vmatprep.subr.mxu0 0.0
      %2442 = vmatpush1.xpose.msra.mxu0 0.0
      %2443 = vmatprep.subr.mxu0 0.0
      %2444 = vmatpush1.xpose.msra.mxu0 0.0
      %2445 = vmatprep.subr.mxu0 0.0
      %2446 = vmatpush1.xpose.msra.mxu0 0.0
      %2447 = vmatprep.subr.mxu0 0.0
      %2448 = vmatpush1.xpose.msra.mxu0 0.0
      %2449 = vmatprep.subr.mxu0 0.0
      %2450 = vmatpush1.xpose.msra.mxu0 0.0
      %2451 = vmatprep.subr.mxu0 0.0
      %2452 = vmatpush1.xpose.msra.mxu0 0.0
      %2453 = vmatprep.subr.mxu0 0.0
      %2454 = vmatpush1.xpose.msra.mxu0 0.0
      %2455 = vmatprep.subr.mxu0 0.0
      %2456 = vmatpush1.xpose.msra.mxu0 0.0
      %2457 = vmatprep.subr.mxu0 0.0
      %2458 = vmatpush1.xpose.msra.mxu0 0.0
      %2459 = vmatprep.subr.mxu0 0.0
      %2460 = vmatpush1.xpose.msra.mxu0 0.0
      %2461 = vmatprep.subr.mxu0 0.0
      %2462 = vmatpush1.xpose.msra.mxu0 0.0
      %2463 = vmatprep.subr.mxu0 0.0
      %2464 = vmatpush1.xpose.msra.mxu0 0.0
      %2465 = vmatprep.subr.mxu0 0.0
      %2466 = vmatpush1.xpose.msra.mxu0 0.0
      %2467 = vmatprep.subr.mxu0 0.0
      %2468 = vmatpush1.xpose.msra.mxu0 0.0
      %2469 = vmatprep.subr.mxu0 0.0
      %2470 = vmatpush1.xpose.msra.mxu0 0.0
      %2471 = vmatprep.subr.mxu0 0.0
      %2472 = vmatpush1.xpose.msra.mxu0 0.0
      %2473 = vmatprep.subr.mxu0 0.0
      %2474 = vmatpush1.xpose.msra.mxu0 0.0
      %2475 = vmatprep.subr.mxu0 0.0
      %2476 = vmatpush1.xpose.msra.mxu0 0.0
      %2477 = vmatprep.subr.mxu0 0.0
      %2478 = vmatpush1.xpose.msra.mxu0 0.0
      %2479 = vmatprep.subr.mxu0 0.0
      %2480 = vmatpush1.xpose.msra.mxu0 0.0
      %2481 = vmatprep.subr.mxu0 0.0
      %2482 = vmatpush1.xpose.msra.mxu0 0.0
      %2483 = vmatprep.subr.mxu0 0.0
      %2484 = vmatpush1.xpose.msra.mxu0 0.0
      %2485 = vmatprep.subr.mxu0 0.0
      %2486 = vmatpush1.xpose.msra.mxu0 0.0
      %2487 = vmatprep.subr.mxu0 0.0
      %2488 = vmatpush1.xpose.msra.mxu0 0.0
      %2489 = vmatprep.subr.mxu0 0.0
      %2490 = vmatpush1.xpose.msra.mxu0 0.0
      %2491 = vmatprep.subr.mxu0 0.0
      %2492 = vmatpush1.xpose.msra.mxu0 0.0
      %2493 = vmatprep.subr.mxu0 0.0
      %2494 = vmatpush1.xpose.msra.mxu0 0.0
      %2495 = vmatprep.mubr.f32.mxu0 0.0
      %2496 = vmatmul.mubr.f32.gmra.mrb[0].mxu0 %v2426
      %v2497 = vpop.f32.mrb[0].mxu0
      %v2498 = vadd.f32 0.0, %v2497
      %v2499 = vpop.f32.mrb[0].mxu0
      %2500 = vdwg.mxu0
      %v2501 = vmul.f32 %v2498, 0.35355338
      %v2502 = vadd.f32 %v2501, %v1010
      %v2503 = vsel %vm1205, %v2502, -inf
      %2504 = vmax.xlane.f32.xlu0 %v2503
      %v2505 = vpop.xlane.xlu0 %2504
      %v2506 = vsub.f32 %v2502, %v2505
      %v2507 = vmul.f32 %v2506, 1.442695
      %v2508 = vpow.pop %v2507
      %v2509 = vsel %vm1205, %v2508, 0.0
      %2510 = vadd.xlane.f32.xlu0 %v2509
      %v2511 = vpop.xlane.xlu0 %2510
      %v2512 = vrcp.pop %v2511
      %v2513 = vmul.f32 %v2508, %v2512
      %v2515 = vsel %vm1205, %v2513, 0
      %2517 = vmatprep.subr.mxu0 0.0
      %2518 = vmatpush1.msra.mxu0 %v2420
      %2519 = vmatprep.subr.mxu0 0.0
      %2520 = vmatpush1.msra.mxu0 0.0
      %2521 = vmatprep.subr.mxu0 0.0
      %2522 = vmatpush1.msra.mxu0 0.0
      %2523 = vmatprep.subr.mxu0 0.0
      %2524 = vmatpush1.msra.mxu0 0.0
      %2525 = vmatprep.subr.mxu0 0.0
      %2526 = vmatpush1.msra.mxu0 0.0
      %2527 = vmatprep.subr.mxu0 0.0
      %2528 = vmatpush1.msra.mxu0 0.0
      %2529 = vmatprep.subr.mxu0 0.0
      %2530 = vmatpush1.msra.mxu0 0.0
      %2531 = vmatprep.subr.mxu0 0.0
      %2532 = vmatpush1.msra.mxu0 0.0
      %2533 = vmatprep.subr.mxu0 0.0
      %2534 = vmatpush1.msra.mxu0 0.0
      %2535 = vmatprep.subr.mxu0 0.0
      %2536 = vmatpush1.msra.mxu0 0.0
      %2537 = vmatprep.subr.mxu0 0.0
      %2538 = vmatpush1.msra.mxu0 0.0
      %2539 = vmatprep.subr.mxu0 0.0
      %2540 = vmatpush1.msra.mxu0 0.0
      %2541 = vmatprep.subr.mxu0 0.0
      %2542 = vmatpush1.msra.mxu0 0.0
      %2543 = vmatprep.subr.mxu0 0.0
      %2544 = vmatpush1.msra.mxu0 0.0
      %2545 = vmatprep.subr.mxu0 0.0
      %2546 = vmatpush1.msra.mxu0 0.0
      %2547 = vmatprep.subr.mxu0 0.0
      %2548 = vmatpush1.msra.mxu0 0.0
      %2549 = vmatprep.subr.mxu0 0.0
      %2550 = vmatpush1.msra.mxu0 0.0
      %2551 = vmatprep.subr.mxu0 0.0
      %2552 = vmatpush1.msra.mxu0 0.0
      %2553 = vmatprep.subr.mxu0 0.0
      %2554 = vmatpush1.msra.mxu0 0.0
      %2555 = vmatprep.subr.mxu0 0.0
      %2556 = vmatpush1.msra.mxu0 0.0
      %2557 = vmatprep.subr.mxu0 0.0
      %2558 = vmatpush1.msra.mxu0 0.0
      %2559 = vmatprep.subr.mxu0 0.0
      %2560 = vmatpush1.msra.mxu0 0.0
      %2561 = vmatprep.subr.mxu0 0.0
      %2562 = vmatpush1.msra.mxu0 0.0
      %2563 = vmatprep.subr.mxu0 0.0
      %2564 = vmatpush1.msra.mxu0 0.0
      %2565 = vmatprep.subr.mxu0 0.0
      %2566 = vmatpush1.msra.mxu0 0.0
      %2567 = vmatprep.subr.mxu0 0.0
      %2568 = vmatpush1.msra.mxu0 0.0
      %2569 = vmatprep.subr.mxu0 0.0
      %2570 = vmatpush1.msra.mxu0 0.0
      %2571 = vmatprep.subr.mxu0 0.0
      %2572 = vmatpush1.msra.mxu0 0.0
      %2573 = vmatprep.subr.mxu0 0.0
      %2574 = vmatpush1.msra.mxu0 0.0
      %2575 = vmatprep.subr.mxu0 0.0
      %2576 = vmatpush1.msra.mxu0 0.0
      %2577 = vmatprep.subr.mxu0 0.0
      %2578 = vmatpush1.msra.mxu0 0.0
      %2579 = vmatprep.subr.mxu0 0.0
      %2580 = vmatpush1.msra.mxu0 0.0
      %2581 = vmatprep.mubr.f32.mxu0 0.0
      %2582 = vmatmul.mubr.f32.gmra.mrb[0].mxu0 %v2515
      %v2583 = vpop.f32.mrb[0].mxu0
      %v2584 = vadd.f32 0.0, %v2583
      %v2585 = vpop.f32.mrb[0].mxu0
      %2586 = vdwg.mxu0
      %v2587 = vpack.c.bf16 %v2584, %v2584
      %s2588 = scalar_lea.vmem %s23, 12
      %v2589 = vld [vmem:[%s2588] sm:$0xf]
      %v2591 = vsel %vm1205, %v2587, 0
      %v2594 = vsel %vm1733, %v2589, 0
      %2596 = vmatprep.subr.bf16.mxu0 0
      %2597 = vmatpush1.bf16.msra.mxu0 %v2594
      %2598 = vmatprep.subr.bf16.mxu0 0
      %2599 = vmatpush1.bf16.msra.mxu0 0
      %2600 = vmatprep.subr.bf16.mxu0 0
      %2601 = vmatpush1.bf16.msra.mxu0 0
      %2602 = vmatprep.subr.bf16.mxu0 0
      %2603 = vmatpush1.bf16.msra.mxu0 0
      %2604 = vmatprep.subr.bf16.mxu0 0
      %2605 = vmatpush1.bf16.msra.mxu0 0
      %2606 = vmatprep.subr.bf16.mxu0 0
      %2607 = vmatpush1.bf16.msra.mxu0 0
      %2608 = vmatprep.subr.bf16.mxu0 0
      %2609 = vmatpush1.bf16.msra.mxu0 0
      %2610 = vmatprep.subr.bf16.mxu0 0
      %2611 = vmatpush1.bf16.msra.mxu0 0
      %2612 = vmatprep.subr.bf16.mxu0 0
      %2613 = vmatpush1.bf16.msra.mxu0 0
      %2614 = vmatprep.subr.bf16.mxu0 0
      %2615 = vmatpush1.bf16.msra.mxu0 0
      %2616 = vmatprep.subr.bf16.mxu0 0
      %2617 = vmatpush1.bf16.msra.mxu0 0
      %2618 = vmatprep.subr.bf16.mxu0 0
      %2619 = vmatpush1.bf16.msra.mxu0 0
      %2620 = vmatprep.subr.bf16.mxu0 0
      %2621 = vmatpush1.bf16.msra.mxu0 0
      %2622 = vmatprep.subr.bf16.mxu0 0
      %2623 = vmatpush1.bf16.msra.mxu0 0
      %2624 = vmatprep.subr.bf16.mxu0 0
      %2625 = vmatpush1.bf16.msra.mxu0 0
      %2626 = vmatprep.subr.bf16.mxu0 0
      %2627 = vmatpush1.bf16.msra.mxu0 0
      %2628 = vmatprep.mubr.bf16.mxu0 0
      %2629 = vmatmul.mubr.bf16.gmra.mrb[0].mxu0 %v2591
      %v2630 = vpop.f32.mrb[0].mxu0
      %v2631 = vadd.f32 0.0, %v2630
      %v2632 = vpop.f32.mrb[0].mxu0
      %v2633 = vpop.f32.mrb[0].mxu0
      %v2634 = vpop.f32.mrb[0].mxu0
      %2635 = vdwg.mxu0
      %v2636 = vadd.f32 %v2229, %v2631
      %v2637 = vld [vmem:[%s25] sm:$0x1]
      %v2639 = vlaneseq
      %v2640 = vshrl.u32 %v2639, 7
      %v2641 = vsub.s32 0, %v2640
      %v2642 = vrot.slane %v2637, %v2641
      %v2644 = vadd.f32 %v2636, %v2642
      %v2645 = vadd.f32 %v1000, %v2644
      %v2646 = vld [vmem:[%s27] sm:$0x1]
      %v2647 = vld [vmem:[%s29] sm:$0x1]
      %v2648 = vsel %vm1035, %v2645, 0.0
      %2649 = vadd.xlane.f32.xlu0 %v2648
      %v2650 = vpop.xlane.xlu0 %2649
      %v2651 = vrcp.pop 32.0
      %v2652 = vmul.f32 %v2650, %v2651
      %v2653 = vsub.f32 %v2645, %v2652
      %v2654 = vmul.f32 %v2653, %v2653
      %v2655 = vsel %vm1035, %v2654, 0.0
      %2656 = vadd.xlane.f32.xlu0 %v2655
      %v2657 = vpop.xlane.xlu0 %2656
      %v2658 = vmul.f32 %v2657, %v2651
      %v2659 = vadd.f32 %v2658, 1e-05
      %v2660 = vrsqrt.pop %v2659
      %v2661 = vmul.f32 %v2653, %v2660
      %v2663 = vlaneseq
      %v2664 = vshrl.u32 %v2663, 7
      %v2665 = vsub.s32 0, %v2664
      %v2666 = vrot.slane %v2646, %v2665
      %v2668 = vmul.f32 %v2661, %v2666
      %v2670 = vlaneseq
      %v2671 = vshrl.u32 %v2670, 7
      %v2672 = vsub.s32 0, %v2671
      %v2673 = vrot.slane %v2647, %v2672
      %v2675 = vadd.f32 %v2668, %v2673
      %v2676 = vld [vmem:[%s994] sm:$0x1]
      %v2677 = vpack.c.bf16 %v2675, %v2675
      %v2678 = vpack.c.bf16 %v1001, %v1001
      %v2679 = vld [vmem:[%s31] sm:$0xf]
      %v2680 = vld [vmem:[%s31 + $0x4] sm:$0xf]
      %v2681 = vld [vmem:[%s31 + $0x8] sm:$0xf]
      %v2682 = vld [vmem:[%s31 + $0xc] sm:$0xf]
      %v2683 = vld [vmem:[%s33] sm:$0x1]
      %v2685 = vlaneseq
      %v2686 = vshrl.u32 %v2685, 7
      %v2687 = vsub.s32 0, %v2686
      %v2688 = vrot.slane %v2683, %v2687
      %v2694 = vunpack.c.l.b16 %v2679
      %v2695 = vunpack.c.l.b16 %v2680
      %v2696 = vunpack.c.l.b16 %v2681
      %v2697 = vunpack.c.l.b16 %v2682
      %v2698 = vpack.c.b16 %v2695, %v2694
      %v2699 = vpack.c.b16 %v2697, %v2696
      %v2703 = vsel %vm1035, %v2677, 0
      %2705 = vmatprep.subr.bf16.mxu0 0
      %2706 = vmatpush1.bf16.msra.mxu0 %v2698
      %2707 = vmatprep.subr.bf16.mxu0 0
      %2708 = vmatpush1.bf16.msra.mxu0 %v2699
      %2709 = vmatprep.subr.bf16.mxu0 0
      %2710 = vmatpush1.bf16.msra.mxu0 0
      %2711 = vmatprep.subr.bf16.mxu0 0
      %2712 = vmatpush1.bf16.msra.mxu0 0
      %2713 = vmatprep.subr.bf16.mxu0 0
      %2714 = vmatpush1.bf16.msra.mxu0 0
      %2715 = vmatprep.subr.bf16.mxu0 0
      %2716 = vmatpush1.bf16.msra.mxu0 0
      %2717 = vmatprep.subr.bf16.mxu0 0
      %2718 = vmatpush1.bf16.msra.mxu0 0
      %2719 = vmatprep.subr.bf16.mxu0 0
      %2720 = vmatpush1.bf16.msra.mxu0 0
      %2721 = vmatprep.subr.bf16.mxu0 0
      %2722 = vmatpush1.bf16.msra.mxu0 0
      %2723 = vmatprep.subr.bf16.mxu0 0
      %2724 = vmatpush1.bf16.msra.mxu0 0
      %2725 = vmatprep.subr.bf16.mxu0 0
      %2726 = vmatpush1.bf16.msra.mxu0 0
      %2727 = vmatprep.subr.bf16.mxu0 0
      %2728 = vmatpush1.bf16.msra.mxu0 0
      %2729 = vmatprep.subr.bf16.mxu0 0
      %2730 = vmatpush1.bf16.msra.mxu0 0
      %2731 = vmatprep.subr.bf16.mxu0 0
      %2732 = vmatpush1.bf16.msra.mxu0 0
      %2733 = vmatprep.subr.bf16.mxu0 0
      %2734 = vmatpush1.bf16.msra.mxu0 0
      %2735 = vmatprep.subr.bf16.mxu0 0
      %2736 = vmatpush1.bf16.msra.mxu0 0
      %2737 = vmatprep.mubr.bf16.mxu0 0
      %2738 = vmatmul.mubr.bf16.gmra.mrb[0].mxu0 %v2703
      %v2739 = vpop.f32.mrb[0].mxu0
      %v2740 = vadd.f32 %v2688, %v2739
      %v2741 = vpop.f32.mrb[0].mxu0
      %v2742 = vpop.f32.mrb[0].mxu0
      %v2743 = vpop.f32.mrb[0].mxu0
      %2744 = vdwg.mxu0
      %v2745 = vld [vmem:[%s35] sm:$0xf]
      %v2746 = vld [vmem:[%s35 + $0x4] sm:$0xf]
      %v2747 = vld [vmem:[%s35 + $0x8] sm:$0xf]
      %v2748 = vld [vmem:[%s35 + $0xc] sm:$0xf]
      %v2749 = vld [vmem:[%s37] sm:$0x1]
      %v2751 = vlaneseq
      %v2752 = vshrl.u32 %v2751, 7
      %v2753 = vsub.s32 0, %v2752
      %v2754 = vrot.slane %v2749, %v2753
      %v2760 = vunpack.c.l.b16 %v2745
      %v2761 = vunpack.c.l.b16 %v2746
      %v2762 = vunpack.c.l.b16 %v2747
      %v2763 = vunpack.c.l.b16 %v2748
      %v2764 = vpack.c.b16 %v2761, %v2760
      %v2765 = vpack.c.b16 %v2763, %v2762
      %v2769 = vsel %vm1035, %v2678, 0
      %2771 = vmatprep.subr.bf16.mxu0 0
      %2772 = vmatpush1.bf16.msra.mxu0 %v2764
      %2773 = vmatprep.subr.bf16.mxu0 0
      %2774 = vmatpush1.bf16.msra.mxu0 %v2765
      %2775 = vmatprep.subr.bf16.mxu0 0
      %2776 = vmatpush1.bf16.msra.mxu0 0
      %2777 = vmatprep.subr.bf16.mxu0 0
      %2778 = vmatpush1.bf16.msra.mxu0 0
      %2779 = vmatprep.subr.bf16.mxu0 0
      %2780 = vmatpush1.bf16.msra.mxu0 0
      %2781 = vmatprep.subr.bf16.mxu0 0
      %2782 = vmatpush1.bf16.msra.mxu0 0
      %2783 = vmatprep.subr.bf16.mxu0 0
      %2784 = vmatpush1.bf16.msra.mxu0 0
      %2785 = vmatprep.subr.bf16.mxu0 0
      %2786 = vmatpush1.bf16.msra.mxu0 0
      %2787 = vmatprep.subr.bf16.mxu0 0
      %2788 = vmatpush1.bf16.msra.mxu0 0
      %2789 = vmatprep.subr.bf16.mxu0 0
      %2790 = vmatpush1.bf16.msra.mxu0 0
      %2791 = vmatprep.subr.bf16.mxu0 0
      %2792 = vmatpush1.bf16.msra.mxu0 0
      %2793 = vmatprep.subr.bf16.mxu0 0
      %2794 = vmatpush1.bf16.msra.mxu0 0
      %2795 = vmatprep.subr.bf16.mxu0 0
      %2796 = vmatpush1.bf16.msra.mxu0 0
      %2797 = vmatprep.subr.bf16.mxu0 0
      %2798 = vmatpush1.bf16.msra.mxu0 0
      %2799 = vmatprep.subr.bf16.mxu0 0
      %2800 = vmatpush1.bf16.msra.mxu0 0
      %2801 = vmatprep.subr.bf16.mxu0 0
      %2802 = vmatpush1.bf16.msra.mxu0 0
      %2803 = vmatprep.mubr.bf16.mxu0 0
      %2804 = vmatmul.mubr.bf16.gmra.mrb[0].mxu0 %v2769
      %v2805 = vpop.f32.mrb[0].mxu0
      %v2806 = vadd.f32 %v2754, %v2805
      %v2807 = vpop.f32.mrb[0].mxu0
      %v2808 = vpop.f32.mrb[0].mxu0
      %v2809 = vpop.f32.mrb[0].mxu0
      %2810 = vdwg.mxu0
      %v2811 = vld [vmem:[%s39] sm:$0xf]
      %v2812 = vld [vmem:[%s39 + $0x4] sm:$0xf]
      %v2813 = vld [vmem:[%s39 + $0x8] sm:$0xf]
      %v2814 = vld [vmem:[%s39 + $0xc] sm:$0xf]
      %v2815 = vld [vmem:[%s41] sm:$0x1]
      %v2817 = vlaneseq
      %v2818 = vshrl.u32 %v2817, 7
      %v2819 = vsub.s32 0, %v2818
      %v2820 = vrot.slane %v2815, %v2819
      %v2826 = vunpack.c.l.b16 %v2811
      %v2827 = vunpack.c.l.b16 %v2812
      %v2828 = vunpack.c.l.b16 %v2813
      %v2829 = vunpack.c.l.b16 %v2814
      %v2830 = vpack.c.b16 %v2827, %v2826
      %v2831 = vpack.c.b16 %v2829, %v2828
      %2834 = vmatprep.subr.bf16.mxu0 0
      %2835 = vmatpush1.bf16.msra.mxu0 %v2830
      %2836 = vmatprep.subr.bf16.mxu0 0
      %2837 = vmatpush1.bf16.msra.mxu0 %v2831
      %2838 = vmatprep.subr.bf16.mxu0 0
      %2839 = vmatpush1.bf16.msra.mxu0 0
      %2840 = vmatprep.subr.bf16.mxu0 0
      %2841 = vmatpush1.bf16.msra.mxu0 0
      %2842 = vmatprep.subr.bf16.mxu0 0
      %2843 = vmatpush1.bf16.msra.mxu0 0
      %2844 = vmatprep.subr.bf16.mxu0 0
      %2845 = vmatpush1.bf16.msra.mxu0 0
      %2846 = vmatprep.subr.bf16.mxu0 0
      %2847 = vmatpush1.bf16.msra.mxu0 0
      %2848 = vmatprep.subr.bf16.mxu0 0
      %2849 = vmatpush1.bf16.msra.mxu0 0
      %2850 = vmatprep.subr.bf16.mxu0 0
      %2851 = vmatpush1.bf16.msra.mxu0 0
      %2852 = vmatprep.subr.bf16.mxu0 0
      %2853 = vmatpush1.bf16.msra.mxu0 0
      %2854 = vmatprep.subr.bf16.mxu0 0
      %2855 = vmatpush1.bf16.msra.mxu0 0
      %2856 = vmatprep.subr.bf16.mxu0 0
      %2857 = vmatpush1.bf16.msra.mxu0 0
      %2858 = vmatprep.subr.bf16.mxu0 0
      %2859 = vmatpush1.bf16.msra.mxu0 0
      %2860 = vmatprep.subr.bf16.mxu0 0
      %2861 = vmatpush1.bf16.msra.mxu0 0
      %2862 = vmatprep.subr.bf16.mxu0 0
      %2863 = vmatpush1.bf16.msra.mxu0 0
      %2864 = vmatprep.subr.bf16.mxu0 0
      %2865 = vmatpush1.bf16.msra.mxu0 0
      %2866 = vmatprep.mubr.bf16.mxu0 0
      %2867 = vmatmul.mubr.bf16.gmra.mrb[0].mxu0 %v2769
      %v2868 = vpop.f32.mrb[0].mxu0
      %v2869 = vadd.f32 %v2820, %v2868
      %v2870 = vpop.f32.mrb[0].mxu0
      %v2871 = vpop.f32.mrb[0].mxu0
      %v2872 = vpop.f32.mrb[0].mxu0
      %2873 = vdwg.mxu0
      %v2875 = vsel %vm1205, %v2740, 0
      %v2878 = vsel %vm1205, %v2806, 0
      %2880 = vmatprep.subr.mxu0 0.0
      %2881 = vmatpush1.xpose.msra.mxu0 %v2878
      %2882 = vmatprep.subr.mxu0 0.0
      %2883 = vmatpush1.xpose.msra.mxu0 0.0
      %2884 = vmatprep.subr.mxu0 0.0
      %2885 = vmatpush1.xpose.msra.mxu0 0.0
      %2886 = vmatprep.subr.mxu0 0.0
      %2887 = vmatpush1.xpose.msra.mxu0 0.0
      %2888 = vmatprep.subr.mxu0 0.0
      %2889 = vmatpush1.xpose.msra.mxu0 0.0
      %2890 = vmatprep.subr.mxu0 0.0
      %2891 = vmatpush1.xpose.msra.mxu0 0.0
      %2892 = vmatprep.subr.mxu0 0.0
      %2893 = vmatpush1.xpose.msra.mxu0 0.0
      %2894 = vmatprep.subr.mxu0 0.0
      %2895 = vmatpush1.xpose.msra.mxu0 0.0
      %2896 = vmatprep.subr.mxu0 0.0
      %2897 = vmatpush1.xpose.msra.mxu0 0.0
      %2898 = vmatprep.subr.mxu0 0.0
      %2899 = vmatpush1.xpose.msra.mxu0 0.0
      %2900 = vmatprep.subr.mxu0 0.0
      %2901 = vmatpush1.xpose.msra.mxu0 0.0
      %2902 = vmatprep.subr.mxu0 0.0
      %2903 = vmatpush1.xpose.msra.mxu0 0.0
      %2904 = vmatprep.subr.mxu0 0.0
      %2905 = vmatpush1.xpose.msra.mxu0 0.0
      %2906 = vmatprep.subr.mxu0 0.0
      %2907 = vmatpush1.xpose.msra.mxu0 0.0
      %2908 = vmatprep.subr.mxu0 0.0
      %2909 = vmatpush1.xpose.msra.mxu0 0.0
      %2910 = vmatprep.subr.mxu0 0.0
      %2911 = vmatpush1.xpose.msra.mxu0 0.0
      %2912 = vmatprep.subr.mxu0 0.0
      %2913 = vmatpush1.xpose.msra.mxu0 0.0
      %2914 = vmatprep.subr.mxu0 0.0
      %2915 = vmatpush1.xpose.msra.mxu0 0.0
      %2916 = vmatprep.subr.mxu0 0.0
      %2917 = vmatpush1.xpose.msra.mxu0 0.0
      %2918 = vmatprep.subr.mxu0 0.0
      %2919 = vmatpush1.xpose.msra.mxu0 0.0
      %2920 = vmatprep.subr.mxu0 0.0
      %2921 = vmatpush1.xpose.msra.mxu0 0.0
      %2922 = vmatprep.subr.mxu0 0.0
      %2923 = vmatpush1.xpose.msra.mxu0 0.0
      %2924 = vmatprep.subr.mxu0 0.0
      %2925 = vmatpush1.xpose.msra.mxu0 0.0
      %2926 = vmatprep.subr.mxu0 0.0
      %2927 = vmatpush1.xpose.msra.mxu0 0.0
      %2928 = vmatprep.subr.mxu0 0.0
      %2929 = vmatpush1.xpose.msra.mxu0 0.0
      %2930 = vmatprep.subr.mxu0 0.0
      %2931 = vmatpush1.xpose.msra.mxu0 0.0
      %2932 = vmatprep.subr.mxu0 0.0
      %2933 = vmatpush1.xpose.msra.mxu0 0.0
      %2934 = vmatprep.subr.mxu0 0.0
      %2935 = vmatpush1.xpose.msra.mxu0 0.0
      %2936 = vmatprep.subr.mxu0 0.0
      %2937 = vmatpush1.xpose.msra.mxu0 0.0
      %2938 = vmatprep.subr.mxu0 0.0
      %2939 = vmatpush1.xpose.msra.mxu0 0.0
      %2940 = vmatprep.subr.mxu0 0.0
      %2941 = vmatpush1.xpose.msra.mxu0 0.0
      %2942 = vmatprep.subr.mxu0 0.0
      %2943 = vmatpush1.xpose.msra.mxu0 0.0
      %2944 = vmatprep.mubr.f32.mxu0 0.0
      %2945 = vmatmul.mubr.f32.gmra.mrb[0].mxu0 %v2875
      %v2946 = vpop.f32.mrb[0].mxu0
      %v2947 = vadd.f32 0.0, %v2946
      %v2948 = vpop.f32.mrb[0].mxu0
      %2949 = vdwg.mxu0
      %v2950 = vmul.f32 %v2947, 0.35355338
      %v2952 = vlaneseq
      %v2953 = vshrl.u32 %v2952, 7
      %v2954 = vsub.s32 0, %v2953
      %v2955 = vrot.slane %v2676, %v2954
      %v2957 = vadd.f32 %v2950, %v2955
      %v2958 = vsel %vm1205, %v2957, -inf
      %2959 = vmax.xlane.f32.xlu0 %v2958
      %v2960 = vpop.xlane.xlu0 %2959
      %v2961 = vsub.f32 %v2957, %v2960
      %v2962 = vmul.f32 %v2961, 1.442695
      %v2963 = vpow.pop %v2962
      %v2964 = vsel %vm1205, %v2963, 0.0
      %2965 = vadd.xlane.f32.xlu0 %v2964
      %v2966 = vpop.xlane.xlu0 %2965
      %v2967 = vrcp.pop %v2966
      %v2968 = vmul.f32 %v2963, %v2967
      %v2970 = vsel %vm1205, %v2968, 0
      %2972 = vmatprep.subr.mxu0 0.0
      %2973 = vmatpush1.msra.mxu0 %v2869
      %2974 = vmatprep.subr.mxu0 0.0
      %2975 = vmatpush1.msra.mxu0 0.0
      %2976 = vmatprep.subr.mxu0 0.0
      %2977 = vmatpush1.msra.mxu0 0.0
      %2978 = vmatprep.subr.mxu0 0.0
      %2979 = vmatpush1.msra.mxu0 0.0
      %2980 = vmatprep.subr.mxu0 0.0
      %2981 = vmatpush1.msra.mxu0 0.0
      %2982 = vmatprep.subr.mxu0 0.0
      %2983 = vmatpush1.msra.mxu0 0.0
      %2984 = vmatprep.subr.mxu0 0.0
      %2985 = vmatpush1.msra.mxu0 0.0
      %2986 = vmatprep.subr.mxu0 0.0
      %2987 = vmatpush1.msra.mxu0 0.0
      %2988 = vmatprep.subr.mxu0 0.0
      %2989 = vmatpush1.msra.mxu0 0.0
      %2990 = vmatprep.subr.mxu0 0.0
      %2991 = vmatpush1.msra.mxu0 0.0
      %2992 = vmatprep.subr.mxu0 0.0
      %2993 = vmatpush1.msra.mxu0 0.0
      %2994 = vmatprep.subr.mxu0 0.0
      %2995 = vmatpush1.msra.mxu0 0.0
      %2996 = vmatprep.subr.mxu0 0.0
      %2997 = vmatpush1.msra.mxu0 0.0
      %2998 = vmatprep.subr.mxu0 0.0
      %2999 = vmatpush1.msra.mxu0 0.0
      %3000 = vmatprep.subr.mxu0 0.0
      %3001 = vmatpush1.msra.mxu0 0.0
      %3002 = vmatprep.subr.mxu0 0.0
      %3003 = vmatpush1.msra.mxu0 0.0
      %3004 = vmatprep.subr.mxu0 0.0
      %3005 = vmatpush1.msra.mxu0 0.0
      %3006 = vmatprep.subr.mxu0 0.0
      %3007 = vmatpush1.msra.mxu0 0.0
      %3008 = vmatprep.subr.mxu0 0.0
      %3009 = vmatpush1.msra.mxu0 0.0
      %3010 = vmatprep.subr.mxu0 0.0
      %3011 = vmatpush1.msra.mxu0 0.0
      %3012 = vmatprep.subr.mxu0 0.0
      %3013 = vmatpush1.msra.mxu0 0.0
      %3014 = vmatprep.subr.mxu0 0.0
      %3015 = vmatpush1.msra.mxu0 0.0
      %3016 = vmatprep.subr.mxu0 0.0
      %3017 = vmatpush1.msra.mxu0 0.0
      %3018 = vmatprep.subr.mxu0 0.0
      %3019 = vmatpush1.msra.mxu0 0.0
      %3020 = vmatprep.subr.mxu0 0.0
      %3021 = vmatpush1.msra.mxu0 0.0
      %3022 = vmatprep.subr.mxu0 0.0
      %3023 = vmatpush1.msra.mxu0 0.0
      %3024 = vmatprep.subr.mxu0 0.0
      %3025 = vmatpush1.msra.mxu0 0.0
      %3026 = vmatprep.subr.mxu0 0.0
      %3027 = vmatpush1.msra.mxu0 0.0
      %3028 = vmatprep.subr.mxu0 0.0
      %3029 = vmatpush1.msra.mxu0 0.0
      %3030 = vmatprep.subr.mxu0 0.0
      %3031 = vmatpush1.msra.mxu0 0.0
      %3032 = vmatprep.subr.mxu0 0.0
      %3033 = vmatpush1.msra.mxu0 0.0
      %3034 = vmatprep.subr.mxu0 0.0
      %3035 = vmatpush1.msra.mxu0 0.0
      %3036 = vmatprep.mubr.f32.mxu0 0.0
      %3037 = vmatmul.mubr.f32.gmra.mrb[0].mxu0 %v2970
      %v3038 = vpop.f32.mrb[0].mxu0
      %v3039 = vadd.f32 0.0, %v3038
      %v3040 = vpop.f32.mrb[0].mxu0
      %3041 = vdwg.mxu0
      %v3042 = vpack.c.bf16 %v3039, %v3039
      %v3043 = vld [vmem:[%s43] sm:$0xf]
      %s3044 = scalar_lea.vmem %s31, 16
      %v3045 = vld [vmem:[%s3044] sm:$0xf]
      %v3046 = vld [vmem:[%s3044 + $0x4] sm:$0xf]
      %v3047 = vld [vmem:[%s3044 + $0x8] sm:$0xf]
      %v3048 = vld [vmem:[%s3044 + $0xc] sm:$0xf]
      %s3049 = scalar_lea.vmem %s33, 1
      %v3050 = vld [vmem:[%s3049] sm:$0x1]
      %v3052 = vlaneseq
      %v3053 = vshrl.u32 %v3052, 7
      %v3054 = vsub.s32 0, %v3053
      %v3055 = vrot.slane %v3050, %v3054
      %v3061 = vunpack.c.l.b16 %v3045
      %v3062 = vunpack.c.l.b16 %v3046
      %v3063 = vunpack.c.l.b16 %v3047
      %v3064 = vunpack.c.l.b16 %v3048
      %v3065 = vpack.c.b16 %v3062, %v3061
      %v3066 = vpack.c.b16 %v3064, %v3063
      %3069 = vmatprep.subr.bf16.mxu0 0
      %3070 = vmatpush1.bf16.msra.mxu0 %v3065
      %3071 = vmatprep.subr.bf16.mxu0 0
      %3072 = vmatpush1.bf16.msra.mxu0 %v3066
      %3073 = vmatprep.subr.bf16.mxu0 0
      %3074 = vmatpush1.bf16.msra.mxu0 0
      %3075 = vmatprep.subr.bf16.mxu0 0
      %3076 = vmatpush1.bf16.msra.mxu0 0
      %3077 = vmatprep.subr.bf16.mxu0 0
      %3078 = vmatpush1.bf16.msra.mxu0 0
      %3079 = vmatprep.subr.bf16.mxu0 0
      %3080 = vmatpush1.bf16.msra.mxu0 0
      %3081 = vmatprep.subr.bf16.mxu0 0
      %3082 = vmatpush1.bf16.msra.mxu0 0
      %3083 = vmatprep.subr.bf16.mxu0 0
      %3084 = vmatpush1.bf16.msra.mxu0 0
      %3085 = vmatprep.subr.bf16.mxu0 0
      %3086 = vmatpush1.bf16.msra.mxu0 0
      %3087 = vmatprep.subr.bf16.mxu0 0
      %3088 = vmatpush1.bf16.msra.mxu0 0
      %3089 = vmatprep.subr.bf16.mxu0 0
      %3090 = vmatpush1.bf16.msra.mxu0 0
      %3091 = vmatprep.subr.bf16.mxu0 0
      %3092 = vmatpush1.bf16.msra.mxu0 0
      %3093 = vmatprep.subr.bf16.mxu0 0
      %3094 = vmatpush1.bf16.msra.mxu0 0
      %3095 = vmatprep.subr.bf16.mxu0 0
      %3096 = vmatpush1.bf16.msra.mxu0 0
      %3097 = vmatprep.subr.bf16.mxu0 0
      %3098 = vmatpush1.bf16.msra.mxu0 0
      %3099 = vmatprep.subr.bf16.mxu0 0
      %3100 = vmatpush1.bf16.msra.mxu0 0
      %3101 = vmatprep.mubr.bf16.mxu0 0
      %3102 = vmatmul.mubr.bf16.gmra.mrb[0].mxu0 %v2703
      %v3103 = vpop.f32.mrb[0].mxu0
      %v3104 = vadd.f32 %v3055, %v3103
      %v3105 = vpop.f32.mrb[0].mxu0
      %v3106 = vpop.f32.mrb[0].mxu0
      %v3107 = vpop.f32.mrb[0].mxu0
      %3108 = vdwg.mxu0
      %s3109 = scalar_lea.vmem %s35, 16
      %v3110 = vld [vmem:[%s3109] sm:$0xf]
      %v3111 = vld [vmem:[%s3109 + $0x4] sm:$0xf]
      %v3112 = vld [vmem:[%s3109 + $0x8] sm:$0xf]
      %v3113 = vld [vmem:[%s3109 + $0xc] sm:$0xf]
      %s3114 = scalar_lea.vmem %s37, 1
      %v3115 = vld [vmem:[%s3114] sm:$0x1]
      %v3117 = vlaneseq
      %v3118 = vshrl.u32 %v3117, 7
      %v3119 = vsub.s32 0, %v3118
      %v3120 = vrot.slane %v3115, %v3119
      %v3126 = vunpack.c.l.b16 %v3110
      %v3127 = vunpack.c.l.b16 %v3111
      %v3128 = vunpack.c.l.b16 %v3112
      %v3129 = vunpack.c.l.b16 %v3113
      %v3130 = vpack.c.b16 %v3127, %v3126
      %v3131 = vpack.c.b16 %v3129, %v3128
      %3134 = vmatprep.subr.bf16.mxu0 0
      %3135 = vmatpush1.bf16.msra.mxu0 %v3130
      %3136 = vmatprep.subr.bf16.mxu0 0
      %3137 = vmatpush1.bf16.msra.mxu0 %v3131
      %3138 = vmatprep.subr.bf16.mxu0 0
      %3139 = vmatpush1.bf16.msra.mxu0 0
      %3140 = vmatprep.subr.bf16.mxu0 0
      %3141 = vmatpush1.bf16.msra.mxu0 0
      %3142 = vmatprep.subr.bf16.mxu0 0
      %3143 = vmatpush1.bf16.msra.mxu0 0
      %3144 = vmatprep.subr.bf16.mxu0 0
      %3145 = vmatpush1.bf16.msra.mxu0 0
      %3146 = vmatprep.subr.bf16.mxu0 0
      %3147 = vmatpush1.bf16.msra.mxu0 0
      %3148 = vmatprep.subr.bf16.mxu0 0
      %3149 = vmatpush1.bf16.msra.mxu0 0
      %3150 = vmatprep.subr.bf16.mxu0 0
      %3151 = vmatpush1.bf16.msra.mxu0 0
      %3152 = vmatprep.subr.bf16.mxu0 0
      %3153 = vmatpush1.bf16.msra.mxu0 0
      %3154 = vmatprep.subr.bf16.mxu0 0
      %3155 = vmatpush1.bf16.msra.mxu0 0
      %3156 = vmatprep.subr.bf16.mxu0 0
      %3157 = vmatpush1.bf16.msra.mxu0 0
      %3158 = vmatprep.subr.bf16.mxu0 0
      %3159 = vmatpush1.bf16.msra.mxu0 0
      %3160 = vmatprep.subr.bf16.mxu0 0
      %3161 = vmatpush1.bf16.msra.mxu0 0
      %3162 = vmatprep.subr.bf16.mxu0 0
      %3163 = vmatpush1.bf16.msra.mxu0 0
      %3164 = vmatprep.subr.bf16.mxu0 0
      %3165 = vmatpush1.bf16.msra.mxu0 0
      %3166 = vmatprep.mubr.bf16.mxu0 0
      %3167 = vmatmul.mubr.bf16.gmra.mrb[0].mxu0 %v2769
      %v3168 = vpop.f32.mrb[0].mxu0
      %v3169 = vadd.f32 %v3120, %v3168
      %v3170 = vpop.f32.mrb[0].mxu0
      %v3171 = vpop.f32.mrb[0].mxu0
      %v3172 = vpop.f32.mrb[0].mxu0
      %3173 = vdwg.mxu0
      %s3174 = scalar_lea.vmem %s39, 16
      %v3175 = vld [vmem:[%s3174] sm:$0xf]
      %v3176 = vld [vmem:[%s3174 + $0x4] sm:$0xf]
      %v3177 = vld [vmem:[%s3174 + $0x8] sm:$0xf]
      %v3178 = vld [vmem:[%s3174 + $0xc] sm:$0xf]
      %s3179 = scalar_lea.vmem %s41, 1
      %v3180 = vld [vmem:[%s3179] sm:$0x1]
      %v3182 = vlaneseq
      %v3183 = vshrl.u32 %v3182, 7
      %v3184 = vsub.s32 0, %v3183
      %v3185 = vrot.slane %v3180, %v3184
      %v3191 = vunpack.c.l.b16 %v3175
      %v3192 = vunpack.c.l.b16 %v3176
      %v3193 = vunpack.c.l.b16 %v3177
      %v3194 = vunpack.c.l.b16 %v3178
      %v3195 = vpack.c.b16 %v3192, %v3191
      %v3196 = vpack.c.b16 %v3194, %v3193
      %3199 = vmatprep.subr.bf16.mxu0 0
      %3200 = vmatpush1.bf16.msra.mxu0 %v3195
      %3201 = vmatprep.subr.bf16.mxu0 0
      %3202 = vmatpush1.bf16.msra.mxu0 %v3196
      %3203 = vmatprep.subr.bf16.mxu0 0
      %3204 = vmatpush1.bf16.msra.mxu0 0
      %3205 = vmatprep.subr.bf16.mxu0 0
      %3206 = vmatpush1.bf16.msra.mxu0 0
      %3207 = vmatprep.subr.bf16.mxu0 0
      %3208 = vmatpush1.bf16.msra.mxu0 0
      %3209 = vmatprep.subr.bf16.mxu0 0
      %3210 = vmatpush1.bf16.msra.mxu0 0
      %3211 = vmatprep.subr.bf16.mxu0 0
      %3212 = vmatpush1.bf16.msra.mxu0 0
      %3213 = vmatprep.subr.bf16.mxu0 0
      %3214 = vmatpush1.bf16.msra.mxu0 0
      %3215 = vmatprep.subr.bf16.mxu0 0
      %3216 = vmatpush1.bf16.msra.mxu0 0
      %3217 = vmatprep.subr.bf16.mxu0 0
      %3218 = vmatpush1.bf16.msra.mxu0 0
      %3219 = vmatprep.subr.bf16.mxu0 0
      %3220 = vmatpush1.bf16.msra.mxu0 0
      %3221 = vmatprep.subr.bf16.mxu0 0
      %3222 = vmatpush1.bf16.msra.mxu0 0
      %3223 = vmatprep.subr.bf16.mxu0 0
      %3224 = vmatpush1.bf16.msra.mxu0 0
      %3225 = vmatprep.subr.bf16.mxu0 0
      %3226 = vmatpush1.bf16.msra.mxu0 0
      %3227 = vmatprep.subr.bf16.mxu0 0
      %3228 = vmatpush1.bf16.msra.mxu0 0
      %3229 = vmatprep.subr.bf16.mxu0 0
      %3230 = vmatpush1.bf16.msra.mxu0 0
      %3231 = vmatprep.mubr.bf16.mxu0 0
      %3232 = vmatmul.mubr.bf16.gmra.mrb[0].mxu0 %v2769
      %v3233 = vpop.f32.mrb[0].mxu0
      %v3234 = vadd.f32 %v3185, %v3233
      %v3235 = vpop.f32.mrb[0].mxu0
      %v3236 = vpop.f32.mrb[0].mxu0
      %v3237 = vpop.f32.mrb[0].mxu0
      %3238 = vdwg.mxu0
      %v3240 = vsel %vm1205, %v3104, 0
      %v3243 = vsel %vm1205, %v3169, 0
      %3245 = vmatprep.subr.mxu0 0.0
      %3246 = vmatpush1.xpose.msra.mxu0 %v3243
      %3247 = vmatprep.subr.mxu0 0.0
      %3248 = vmatpush1.xpose.msra.mxu0 0.0
      %3249 = vmatprep.subr.mxu0 0.0
      %3250 = vmatpush1.xpose.msra.mxu0 0.0
      %3251 = vmatprep.subr.mxu0 0.0
      %3252 = vmatpush1.xpose.msra.mxu0 0.0
      %3253 = vmatprep.subr.mxu0 0.0
      %3254 = vmatpush1.xpose.msra.mxu0 0.0
      %3255 = vmatprep.subr.mxu0 0.0
      %3256 = vmatpush1.xpose.msra.mxu0 0.0
      %3257 = vmatprep.subr.mxu0 0.0
      %3258 = vmatpush1.xpose.msra.mxu0 0.0
      %3259 = vmatprep.subr.mxu0 0.0
      %3260 = vmatpush1.xpose.msra.mxu0 0.0
      %3261 = vmatprep.subr.mxu0 0.0
      %3262 = vmatpush1.xpose.msra.mxu0 0.0
      %3263 = vmatprep.subr.mxu0 0.0
      %3264 = vmatpush1.xpose.msra.mxu0 0.0
      %3265 = vmatprep.subr.mxu0 0.0
      %3266 = vmatpush1.xpose.msra.mxu0 0.0
      %3267 = vmatprep.subr.mxu0 0.0
      %3268 = vmatpush1.xpose.msra.mxu0 0.0
      %3269 = vmatprep.subr.mxu0 0.0
      %3270 = vmatpush1.xpose.msra.mxu0 0.0
      %3271 = vmatprep.subr.mxu0 0.0
      %3272 = vmatpush1.xpose.msra.mxu0 0.0
      %3273 = vmatprep.subr.mxu0 0.0
      %3274 = vmatpush1.xpose.msra.mxu0 0.0
      %3275 = vmatprep.subr.mxu0 0.0
      %3276 = vmatpush1.xpose.msra.mxu0 0.0
      %3277 = vmatprep.subr.mxu0 0.0
      %3278 = vmatpush1.xpose.msra.mxu0 0.0
      %3279 = vmatprep.subr.mxu0 0.0
      %3280 = vmatpush1.xpose.msra.mxu0 0.0
      %3281 = vmatprep.subr.mxu0 0.0
      %3282 = vmatpush1.xpose.msra.mxu0 0.0
      %3283 = vmatprep.subr.mxu0 0.0
      %3284 = vmatpush1.xpose.msra.mxu0 0.0
      %3285 = vmatprep.subr.mxu0 0.0
      %3286 = vmatpush1.xpose.msra.mxu0 0.0
      %3287 = vmatprep.subr.mxu0 0.0
      %3288 = vmatpush1.xpose.msra.mxu0 0.0
      %3289 = vmatprep.subr.mxu0 0.0
      %3290 = vmatpush1.xpose.msra.mxu0 0.0
      %3291 = vmatprep.subr.mxu0 0.0
      %3292 = vmatpush1.xpose.msra.mxu0 0.0
      %3293 = vmatprep.subr.mxu0 0.0
      %3294 = vmatpush1.xpose.msra.mxu0 0.0
      %3295 = vmatprep.subr.mxu0 0.0
      %3296 = vmatpush1.xpose.msra.mxu0 0.0
      %3297 = vmatprep.subr.mxu0 0.0
      %3298 = vmatpush1.xpose.msra.mxu0 0.0
      %3299 = vmatprep.subr.mxu0 0.0
      %3300 = vmatpush1.xpose.msra.mxu0 0.0
      %3301 = vmatprep.subr.mxu0 0.0
      %3302 = vmatpush1.xpose.msra.mxu0 0.0
      %3303 = vmatprep.subr.mxu0 0.0
      %3304 = vmatpush1.xpose.msra.mxu0 0.0
      %3305 = vmatprep.subr.mxu0 0.0
      %3306 = vmatpush1.xpose.msra.mxu0 0.0
      %3307 = vmatprep.subr.mxu0 0.0
      %3308 = vmatpush1.xpose.msra.mxu0 0.0
      %3309 = vmatprep.mubr.f32.mxu0 0.0
      %3310 = vmatmul.mubr.f32.gmra.mrb[0].mxu0 %v3240
      %v3311 = vpop.f32.mrb[0].mxu0
      %v3312 = vadd.f32 0.0, %v3311
      %v3313 = vpop.f32.mrb[0].mxu0
      %3314 = vdwg.mxu0
      %v3315 = vmul.f32 %v3312, 0.35355338
      %v3316 = vadd.f32 %v3315, %v2955
      %v3317 = vsel %vm1205, %v3316, -inf
      %3318 = vmax.xlane.f32.xlu0 %v3317
      %v3319 = vpop.xlane.xlu0 %3318
      %v3320 = vsub.f32 %v3316, %v3319
      %v3321 = vmul.f32 %v3320, 1.442695
      %v3322 = vpow.pop %v3321
      %v3323 = vsel %vm1205, %v3322, 0.0
      %3324 = vadd.xlane.f32.xlu0 %v3323
      %v3325 = vpop.xlane.xlu0 %3324
      %v3326 = vrcp.pop %v3325
      %v3327 = vmul.f32 %v3322, %v3326
      %v3329 = vsel %vm1205, %v3327, 0
      %3331 = vmatprep.subr.mxu0 0.0
      %3332 = vmatpush1.msra.mxu0 %v3234
      %3333 = vmatprep.subr.mxu0 0.0
      %3334 = vmatpush1.msra.mxu0 0.0
      %3335 = vmatprep.subr.mxu0 0.0
      %3336 = vmatpush1.msra.mxu0 0.0
      %3337 = vmatprep.subr.mxu0 0.0
      %3338 = vmatpush1.msra.mxu0 0.0
      %3339 = vmatprep.subr.mxu0 0.0
      %3340 = vmatpush1.msra.mxu0 0.0
      %3341 = vmatprep.subr.mxu0 0.0
      %3342 = vmatpush1.msra.mxu0 0.0
      %3343 = vmatprep.subr.mxu0 0.0
      %3344 = vmatpush1.msra.mxu0 0.0
      %3345 = vmatprep.subr.mxu0 0.0
      %3346 = vmatpush1.msra.mxu0 0.0
      %3347 = vmatprep.subr.mxu0 0.0
      %3348 = vmatpush1.msra.mxu0 0.0
      %3349 = vmatprep.subr.mxu0 0.0
      %3350 = vmatpush1.msra.mxu0 0.0
      %3351 = vmatprep.subr.mxu0 0.0
      %3352 = vmatpush1.msra.mxu0 0.0
      %3353 = vmatprep.subr.mxu0 0.0
      %3354 = vmatpush1.msra.mxu0 0.0
      %3355 = vmatprep.subr.mxu0 0.0
      %3356 = vmatpush1.msra.mxu0 0.0
      %3357 = vmatprep.subr.mxu0 0.0
      %3358 = vmatpush1.msra.mxu0 0.0
      %3359 = vmatprep.subr.mxu0 0.0
      %3360 = vmatpush1.msra.mxu0 0.0
      %3361 = vmatprep.subr.mxu0 0.0
      %3362 = vmatpush1.msra.mxu0 0.0
      %3363 = vmatprep.subr.mxu0 0.0
      %3364 = vmatpush1.msra.mxu0 0.0
      %3365 = vmatprep.subr.mxu0 0.0
      %3366 = vmatpush1.msra.mxu0 0.0
      %3367 = vmatprep.subr.mxu0 0.0
      %3368 = vmatpush1.msra.mxu0 0.0
      %3369 = vmatprep.subr.mxu0 0.0
      %3370 = vmatpush1.msra.mxu0 0.0
      %3371 = vmatprep.subr.mxu0 0.0
      %3372 = vmatpush1.msra.mxu0 0.0
      %3373 = vmatprep.subr.mxu0 0.0
      %3374 = vmatpush1.msra.mxu0 0.0
      %3375 = vmatprep.subr.mxu0 0.0
      %3376 = vmatpush1.msra.mxu0 0.0
      %3377 = vmatprep.subr.mxu0 0.0
      %3378 = vmatpush1.msra.mxu0 0.0
      %3379 = vmatprep.subr.mxu0 0.0
      %3380 = vmatpush1.msra.mxu0 0.0
      %3381 = vmatprep.subr.mxu0 0.0
      %3382 = vmatpush1.msra.mxu0 0.0
      %3383 = vmatprep.subr.mxu0 0.0
      %3384 = vmatpush1.msra.mxu0 0.0
      %3385 = vmatprep.subr.mxu0 0.0
      %3386 = vmatpush1.msra.mxu0 0.0
      %3387 = vmatprep.subr.mxu0 0.0
      %3388 = vmatpush1.msra.mxu0 0.0
      %3389 = vmatprep.subr.mxu0 0.0
      %3390 = vmatpush1.msra.mxu0 0.0
      %3391 = vmatprep.subr.mxu0 0.0
      %3392 = vmatpush1.msra.mxu0 0.0
      %3393 = vmatprep.subr.mxu0 0.0
      %3394 = vmatpush1.msra.mxu0 0.0
      %3395 = vmatprep.mubr.f32.mxu0 0.0
      %3396 = vmatmul.mubr.f32.gmra.mrb[0].mxu0 %v3329
      %v3397 = vpop.f32.mrb[0].mxu0
      %v3398 = vadd.f32 0.0, %v3397
      %v3399 = vpop.f32.mrb[0].mxu0
      %3400 = vdwg.mxu0
      %v3401 = vpack.c.bf16 %v3398, %v3398
      %s3402 = scalar_lea.vmem %s43, 4
      %v3403 = vld [vmem:[%s3402] sm:$0xf]
      %v3405 = vsel %vm1205, %v3401, 0
      %v3408 = vsel %vm1733, %v3403, 0
      %3410 = vmatprep.subr.bf16.mxu0 0
      %3411 = vmatpush1.bf16.msra.mxu0 %v3408
      %3412 = vmatprep.subr.bf16.mxu0 0
      %3413 = vmatpush1.bf16.msra.mxu0 0
      %3414 = vmatprep.subr.bf16.mxu0 0
      %3415 = vmatpush1.bf16.msra.mxu0 0
      %3416 = vmatprep.subr.bf16.mxu0 0
      %3417 = vmatpush1.bf16.msra.mxu0 0
      %3418 = vmatprep.subr.bf16.mxu0 0
      %3419 = vmatpush1.bf16.msra.mxu0 0
      %3420 = vmatprep.subr.bf16.mxu0 0
      %3421 = vmatpush1.bf16.msra.mxu0 0
      %3422 = vmatprep.subr.bf16.mxu0 0
      %3423 = vmatpush1.bf16.msra.mxu0 0
      %3424 = vmatprep.subr.bf16.mxu0 0
      %3425 = vmatpush1.bf16.msra.mxu0 0
      %3426 = vmatprep.subr.bf16.mxu0 0
      %3427 = vmatpush1.bf16.msra.mxu0 0
      %3428 = vmatprep.subr.bf16.mxu0 0
      %3429 = vmatpush1.bf16.msra.mxu0 0
      %3430 = vmatprep.subr.bf16.mxu0 0
      %3431 = vmatpush1.bf16.msra.mxu0 0
      %3432 = vmatprep.subr.bf16.mxu0 0
      %3433 = vmatpush1.bf16.msra.mxu0 0
      %3434 = vmatprep.subr.bf16.mxu0 0
      %3435 = vmatpush1.bf16.msra.mxu0 0
      %3436 = vmatprep.subr.bf16.mxu0 0
      %3437 = vmatpush1.bf16.msra.mxu0 0
      %3438 = vmatprep.subr.bf16.mxu0 0
      %3439 = vmatpush1.bf16.msra.mxu0 0
      %3440 = vmatprep.subr.bf16.mxu0 0
      %3441 = vmatpush1.bf16.msra.mxu0 0
      %3442 = vmatprep.mubr.bf16.mxu0 0
      %3443 = vmatmul.mubr.bf16.gmra.mrb[0].mxu0 %v3405
      %v3444 = vpop.f32.mrb[0].mxu0
      %v3445 = vadd.f32 0.0, %v3444
      %v3446 = vpop.f32.mrb[0].mxu0
      %v3447 = vpop.f32.mrb[0].mxu0
      %v3448 = vpop.f32.mrb[0].mxu0
      %3449 = vdwg.mxu0
      %v3451 = vsel %vm1205, %v3042, 0
      %v3454 = vsel %vm1733, %v3043, 0
      %3456 = vmatprep.subr.bf16.mxu0 0
      %3457 = vmatpush1.bf16.msra.mxu0 %v3454
      %3458 = vmatprep.subr.bf16.mxu0 0
      %3459 = vmatpush1.bf16.msra.mxu0 0
      %3460 = vmatprep.subr.bf16.mxu0 0
      %3461 = vmatpush1.bf16.msra.mxu0 0
      %3462 = vmatprep.subr.bf16.mxu0 0
      %3463 = vmatpush1.bf16.msra.mxu0 0
      %3464 = vmatprep.subr.bf16.mxu0 0
      %3465 = vmatpush1.bf16.msra.mxu0 0
      %3466 = vmatprep.subr.bf16.mxu0 0
      %3467 = vmatpush1.bf16.msra.mxu0 0
      %3468 = vmatprep.subr.bf16.mxu0 0
      %3469 = vmatpush1.bf16.msra.mxu0 0
      %3470 = vmatprep.subr.bf16.mxu0 0
      %3471 = vmatpush1.bf16.msra.mxu0 0
      %3472 = vmatprep.subr.bf16.mxu0 0
      %3473 = vmatpush1.bf16.msra.mxu0 0
      %3474 = vmatprep.subr.bf16.mxu0 0
      %3475 = vmatpush1.bf16.msra.mxu0 0
      %3476 = vmatprep.subr.bf16.mxu0 0
      %3477 = vmatpush1.bf16.msra.mxu0 0
      %3478 = vmatprep.subr.bf16.mxu0 0
      %3479 = vmatpush1.bf16.msra.mxu0 0
      %3480 = vmatprep.subr.bf16.mxu0 0
      %3481 = vmatpush1.bf16.msra.mxu0 0
      %3482 = vmatprep.subr.bf16.mxu0 0
      %3483 = vmatpush1.bf16.msra.mxu0 0
      %3484 = vmatprep.subr.bf16.mxu0 0
      %3485 = vmatpush1.bf16.msra.mxu0 0
      %3486 = vmatprep.subr.bf16.mxu0 0
      %3487 = vmatpush1.bf16.msra.mxu0 0
      %3488 = vmatprep.mubr.bf16.mxu0 0
      %3489 = vmatmul.mubr.bf16.gmra.mrb[0].mxu0 %v3451
      %v3490 = vpop.f32.mrb[0].mxu0
      %v3491 = vadd.f32 %v3445, %v3490
      %v3492 = vpop.f32.mrb[0].mxu0
      %v3493 = vpop.f32.mrb[0].mxu0
      %v3494 = vpop.f32.mrb[0].mxu0
      %3495 = vdwg.mxu0
      %s3496 = scalar_lea.vmem %s31, 32
      %v3497 = vld [vmem:[%s3496] sm:$0xf]
      %v3498 = vld [vmem:[%s3496 + $0x4] sm:$0xf]
      %v3499 = vld [vmem:[%s3496 + $0x8] sm:$0xf]
      %v3500 = vld [vmem:[%s3496 + $0xc] sm:$0xf]
      %s3501 = scalar_lea.vmem %s33, 2
      %v3502 = vld [vmem:[%s3501] sm:$0x1]
      %v3504 = vlaneseq
      %v3505 = vshrl.u32 %v3504, 7
      %v3506 = vsub.s32 0, %v3505
      %v3507 = vrot.slane %v3502, %v3506
      %v3513 = vunpack.c.l.b16 %v3497
      %v3514 = vunpack.c.l.b16 %v3498
      %v3515 = vunpack.c.l.b16 %v3499
      %v3516 = vunpack.c.l.b16 %v3500
      %v3517 = vpack.c.b16 %v3514, %v3513
      %v3518 = vpack.c.b16 %v3516, %v3515
      %3521 = vmatprep.subr.bf16.mxu0 0
      %3522 = vmatpush1.bf16.msra.mxu0 %v3517
      %3523 = vmatprep.subr.bf16.mxu0 0
      %3524 = vmatpush1.bf16.msra.mxu0 %v3518
      %3525 = vmatprep.subr.bf16.mxu0 0
      %3526 = vmatpush1.bf16.msra.mxu0 0
      %3527 = vmatprep.subr.bf16.mxu0 0
      %3528 = vmatpush1.bf16.msra.mxu0 0
      %3529 = vmatprep.subr.bf16.mxu0 0
      %3530 = vmatpush1.bf16.msra.mxu0 0
      %3531 = vmatprep.subr.bf16.mxu0 0
      %3532 = vmatpush1.bf16.msra.mxu0 0
      %3533 = vmatprep.subr.bf16.mxu0 0
      %3534 = vmatpush1.bf16.msra.mxu0 0
      %3535 = vmatprep.subr.bf16.mxu0 0
      %3536 = vmatpush1.bf16.msra.mxu0 0
      %3537 = vmatprep.subr.bf16.mxu0 0
      %3538 = vmatpush1.bf16.msra.mxu0 0
      %3539 = vmatprep.subr.bf16.mxu0 0
      %3540 = vmatpush1.bf16.msra.mxu0 0
      %3541 = vmatprep.subr.bf16.mxu0 0
      %3542 = vmatpush1.bf16.msra.mxu0 0
      %3543 = vmatprep.subr.bf16.mxu0 0
      %3544 = vmatpush1.bf16.msra.mxu0 0
      %3545 = vmatprep.subr.bf16.mxu0 0
      %3546 = vmatpush1.bf16.msra.mxu0 0
      %3547 = vmatprep.subr.bf16.mxu0 0
      %3548 = vmatpush1.bf16.msra.mxu0 0
      %3549 = vmatprep.subr.bf16.mxu0 0
      %3550 = vmatpush1.bf16.msra.mxu0 0
      %3551 = vmatprep.subr.bf16.mxu0 0
      %3552 = vmatpush1.bf16.msra.mxu0 0
      %3553 = vmatprep.mubr.bf16.mxu0 0
      %3554 = vmatmul.mubr.bf16.gmra.mrb[0].mxu0 %v2703
      %v3555 = vpop.f32.mrb[0].mxu0
      %v3556 = vadd.f32 %v3507, %v3555
      %v3557 = vpop.f32.mrb[0].mxu0
      %v3558 = vpop.f32.mrb[0].mxu0
      %v3559 = vpop.f32.mrb[0].mxu0
      %3560 = vdwg.mxu0
      %s3561 = scalar_lea.vmem %s35, 32
      %v3562 = vld [vmem:[%s3561] sm:$0xf]
      %v3563 = vld [vmem:[%s3561 + $0x4] sm:$0xf]
      %v3564 = vld [vmem:[%s3561 + $0x8] sm:$0xf]
      %v3565 = vld [vmem:[%s3561 + $0xc] sm:$0xf]
      %s3566 = scalar_lea.vmem %s37, 2
      %v3567 = vld [vmem:[%s3566] sm:$0x1]
      %v3569 = vlaneseq
      %v3570 = vshrl.u32 %v3569, 7
      %v3571 = vsub.s32 0, %v3570
      %v3572 = vrot.slane %v3567, %v3571
      %v3578 = vunpack.c.l.b16 %v3562
      %v3579 = vunpack.c.l.b16 %v3563
      %v3580 = vunpack.c.l.b16 %v3564
      %v3581 = vunpack.c.l.b16 %v3565
      %v3582 = vpack.c.b16 %v3579, %v3578
      %v3583 = vpack.c.b16 %v3581, %v3580
      %3586 = vmatprep.subr.bf16.mxu0 0
      %3587 = vmatpush1.bf16.msra.mxu0 %v3582
      %3588 = vmatprep.subr.bf16.mxu0 0
      %3589 = vmatpush1.bf16.msra.mxu0 %v3583
      %3590 = vmatprep.subr.bf16.mxu0 0
      %3591 = vmatpush1.bf16.msra.mxu0 0
      %3592 = vmatprep.subr.bf16.mxu0 0
      %3593 = vmatpush1.bf16.msra.mxu0 0
      %3594 = vmatprep.subr.bf16.mxu0 0
      %3595 = vmatpush1.bf16.msra.mxu0 0
      %3596 = vmatprep.subr.bf16.mxu0 0
      %3597 = vmatpush1.bf16.msra.mxu0 0
      %3598 = vmatprep.subr.bf16.mxu0 0
      %3599 = vmatpush1.bf16.msra.mxu0 0
      %3600 = vmatprep.subr.bf16.mxu0 0
      %3601 = vmatpush1.bf16.msra.mxu0 0
      %3602 = vmatprep.subr.bf16.mxu0 0
      %3603 = vmatpush1.bf16.msra.mxu0 0
      %3604 = vmatprep.subr.bf16.mxu0 0
      %3605 = vmatpush1.bf16.msra.mxu0 0
      %3606 = vmatprep.subr.bf16.mxu0 0
      %3607 = vmatpush1.bf16.msra.mxu0 0
      %3608 = vmatprep.subr.bf16.mxu0 0
      %3609 = vmatpush1.bf16.msra.mxu0 0
      %3610 = vmatprep.subr.bf16.mxu0 0
      %3611 = vmatpush1.bf16.msra.mxu0 0
      %3612 = vmatprep.subr.bf16.mxu0 0
      %3613 = vmatpush1.bf16.msra.mxu0 0
      %3614 = vmatprep.subr.bf16.mxu0 0
      %3615 = vmatpush1.bf16.msra.mxu0 0
      %3616 = vmatprep.subr.bf16.mxu0 0
      %3617 = vmatpush1.bf16.msra.mxu0 0
      %3618 = vmatprep.mubr.bf16.mxu0 0
      %3619 = vmatmul.mubr.bf16.gmra.mrb[0].mxu0 %v2769
      %v3620 = vpop.f32.mrb[0].mxu0
      %v3621 = vadd.f32 %v3572, %v3620
      %v3622 = vpop.f32.mrb[0].mxu0
      %v3623 = vpop.f32.mrb[0].mxu0
      %v3624 = vpop.f32.mrb[0].mxu0
      %3625 = vdwg.mxu0
      %s3626 = scalar_lea.vmem %s39, 32
      %v3627 = vld [vmem:[%s3626] sm:$0xf]
      %v3628 = vld [vmem:[%s3626 + $0x4] sm:$0xf]
      %v3629 = vld [vmem:[%s3626 + $0x8] sm:$0xf]
      %v3630 = vld [vmem:[%s3626 + $0xc] sm:$0xf]
      %s3631 = scalar_lea.vmem %s41, 2
      %v3632 = vld [vmem:[%s3631] sm:$0x1]
      %v3634 = vlaneseq
      %v3635 = vshrl.u32 %v3634, 7
      %v3636 = vsub.s32 0, %v3635
      %v3637 = vrot.slane %v3632, %v3636
      %v3643 = vunpack.c.l.b16 %v3627
      %v3644 = vunpack.c.l.b16 %v3628
      %v3645 = vunpack.c.l.b16 %v3629
      %v3646 = vunpack.c.l.b16 %v3630
      %v3647 = vpack.c.b16 %v3644, %v3643
      %v3648 = vpack.c.b16 %v3646, %v3645
      %3651 = vmatprep.subr.bf16.mxu0 0
      %3652 = vmatpush1.bf16.msra.mxu0 %v3647
      %3653 = vmatprep.subr.bf16.mxu0 0
      %3654 = vmatpush1.bf16.msra.mxu0 %v3648
      %3655 = vmatprep.subr.bf16.mxu0 0
      %3656 = vmatpush1.bf16.msra.mxu0 0
      %3657 = vmatprep.subr.bf16.mxu0 0
      %3658 = vmatpush1.bf16.msra.mxu0 0
      %3659 = vmatprep.subr.bf16.mxu0 0
      %3660 = vmatpush1.bf16.msra.mxu0 0
      %3661 = vmatprep.subr.bf16.mxu0 0
      %3662 = vmatpush1.bf16.msra.mxu0 0
      %3663 = vmatprep.subr.bf16.mxu0 0
      %3664 = vmatpush1.bf16.msra.mxu0 0
      %3665 = vmatprep.subr.bf16.mxu0 0
      %3666 = vmatpush1.bf16.msra.mxu0 0
      %3667 = vmatprep.subr.bf16.mxu0 0
      %3668 = vmatpush1.bf16.msra.mxu0 0
      %3669 = vmatprep.subr.bf16.mxu0 0
      %3670 = vmatpush1.bf16.msra.mxu0 0
      %3671 = vmatprep.subr.bf16.mxu0 0
      %3672 = vmatpush1.bf16.msra.mxu0 0
      %3673 = vmatprep.subr.bf16.mxu0 0
      %3674 = vmatpush1.bf16.msra.mxu0 0
      %3675 = vmatprep.subr.bf16.mxu0 0
      %3676 = vmatpush1.bf16.msra.mxu0 0
      %3677 = vmatprep.subr.bf16.mxu0 0
      %3678 = vmatpush1.bf16.msra.mxu0 0
      %3679 = vmatprep.subr.bf16.mxu0 0
      %3680 = vmatpush1.bf16.msra.mxu0 0
      %3681 = vmatprep.subr.bf16.mxu0 0
      %3682 = vmatpush1.bf16.msra.mxu0 0
      %3683 = vmatprep.mubr.bf16.mxu0 0
      %3684 = vmatmul.mubr.bf16.gmra.mrb[0].mxu0 %v2769
      %v3685 = vpop.f32.mrb[0].mxu0
      %v3686 = vadd.f32 %v3637, %v3685
      %v3687 = vpop.f32.mrb[0].mxu0
      %v3688 = vpop.f32.mrb[0].mxu0
      %v3689 = vpop.f32.mrb[0].mxu0
      %3690 = vdwg.mxu0
      %v3692 = vsel %vm1205, %v3556, 0
      %v3695 = vsel %vm1205, %v3621, 0
      %3697 = vmatprep.subr.mxu0 0.0
      %3698 = vmatpush1.xpose.msra.mxu0 %v3695
      %3699 = vmatprep.subr.mxu0 0.0
      %3700 = vmatpush1.xpose.msra.mxu0 0.0
      %3701 = vmatprep.subr.mxu0 0.0
      %3702 = vmatpush1.xpose.msra.mxu0 0.0
      %3703 = vmatprep.subr.mxu0 0.0
      %3704 = vmatpush1.xpose.msra.mxu0 0.0
      %3705 = vmatprep.subr.mxu0 0.0
      %3706 = vmatpush1.xpose.msra.mxu0 0.0
      %3707 = vmatprep.subr.mxu0 0.0
      %3708 = vmatpush1.xpose.msra.mxu0 0.0
      %3709 = vmatprep.subr.mxu0 0.0
      %3710 = vmatpush1.xpose.msra.mxu0 0.0
      %3711 = vmatprep.subr.mxu0 0.0
      %3712 = vmatpush1.xpose.msra.mxu0 0.0
      %3713 = vmatprep.subr.mxu0 0.0
      %3714 = vmatpush1.xpose.msra.mxu0 0.0
      %3715 = vmatprep.subr.mxu0 0.0
      %3716 = vmatpush1.xpose.msra.mxu0 0.0
      %3717 = vmatprep.subr.mxu0 0.0
      %3718 = vmatpush1.xpose.msra.mxu0 0.0
      %3719 = vmatprep.subr.mxu0 0.0
      %3720 = vmatpush1.xpose.msra.mxu0 0.0
      %3721 = vmatprep.subr.mxu0 0.0
      %3722 = vmatpush1.xpose.msra.mxu0 0.0
      %3723 = vmatprep.subr.mxu0 0.0
      %3724 = vmatpush1.xpose.msra.mxu0 0.0
      %3725 = vmatprep.subr.mxu0 0.0
      %3726 = vmatpush1.xpose.msra.mxu0 0.0
      %3727 = vmatprep.subr.mxu0 0.0
      %3728 = vmatpush1.xpose.msra.mxu0 0.0
      %3729 = vmatprep.subr.mxu0 0.0
      %3730 = vmatpush1.xpose.msra.mxu0 0.0
      %3731 = vmatprep.subr.mxu0 0.0
      %3732 = vmatpush1.xpose.msra.mxu0 0.0
      %3733 = vmatprep.subr.mxu0 0.0
      %3734 = vmatpush1.xpose.msra.mxu0 0.0
      %3735 = vmatprep.subr.mxu0 0.0
      %3736 = vmatpush1.xpose.msra.mxu0 0.0
      %3737 = vmatprep.subr.mxu0 0.0
      %3738 = vmatpush1.xpose.msra.mxu0 0.0
      %3739 = vmatprep.subr.mxu0 0.0
      %3740 = vmatpush1.xpose.msra.mxu0 0.0
      %3741 = vmatprep.subr.mxu0 0.0
      %3742 = vmatpush1.xpose.msra.mxu0 0.0
      %3743 = vmatprep.subr.mxu0 0.0
      %3744 = vmatpush1.xpose.msra.mxu0 0.0
      %3745 = vmatprep.subr.mxu0 0.0
      %3746 = vmatpush1.xpose.msra.mxu0 0.0
      %3747 = vmatprep.subr.mxu0 0.0
      %3748 = vmatpush1.xpose.msra.mxu0 0.0
      %3749 = vmatprep.subr.mxu0 0.0
      %3750 = vmatpush1.xpose.msra.mxu0 0.0
      %3751 = vmatprep.subr.mxu0 0.0
      %3752 = vmatpush1.xpose.msra.mxu0 0.0
      %3753 = vmatprep.subr.mxu0 0.0
      %3754 = vmatpush1.xpose.msra.mxu0 0.0
      %3755 = vmatprep.subr.mxu0 0.0
      %3756 = vmatpush1.xpose.msra.mxu0 0.0
      %3757 = vmatprep.subr.mxu0 0.0
      %3758 = vmatpush1.xpose.msra.mxu0 0.0
      %3759 = vmatprep.subr.mxu0 0.0
      %3760 = vmatpush1.xpose.msra.mxu0 0.0
      %3761 = vmatprep.mubr.f32.mxu0 0.0
      %3762 = vmatmul.mubr.f32.gmra.mrb[0].mxu0 %v3692
      %v3763 = vpop.f32.mrb[0].mxu0
      %v3764 = vadd.f32 0.0, %v3763
      %v3765 = vpop.f32.mrb[0].mxu0
      %3766 = vdwg.mxu0
      %v3767 = vmul.f32 %v3764, 0.35355338
      %v3768 = vadd.f32 %v3767, %v2955
      %v3769 = vsel %vm1205, %v3768, -inf
      %3770 = vmax.xlane.f32.xlu0 %v3769
      %v3771 = vpop.xlane.xlu0 %3770
      %v3772 = vsub.f32 %v3768, %v3771
      %v3773 = vmul.f32 %v3772, 1.442695
      %v3774 = vpow.pop %v3773
      %v3775 = vsel %vm1205, %v3774, 0.0
      %3776 = vadd.xlane.f32.xlu0 %v3775
      %v3777 = vpop.xlane.xlu0 %3776
      %v3778 = vrcp.pop %v3777
      %v3779 = vmul.f32 %v3774, %v3778
      %v3781 = vsel %vm1205, %v3779, 0
      %3783 = vmatprep.subr.mxu0 0.0
      %3784 = vmatpush1.msra.mxu0 %v3686
      %3785 = vmatprep.subr.mxu0 0.0
      %3786 = vmatpush1.msra.mxu0 0.0
      %3787 = vmatprep.subr.mxu0 0.0
      %3788 = vmatpush1.msra.mxu0 0.0
      %3789 = vmatprep.subr.mxu0 0.0
      %3790 = vmatpush1.msra.mxu0 0.0
      %3791 = vmatprep.subr.mxu0 0.0
      %3792 = vmatpush1.msra.mxu0 0.0
      %3793 = vmatprep.subr.mxu0 0.0
      %3794 = vmatpush1.msra.mxu0 0.0
      %3795 = vmatprep.subr.mxu0 0.0
      %3796 = vmatpush1.msra.mxu0 0.0
      %3797 = vmatprep.subr.mxu0 0.0
      %3798 = vmatpush1.msra.mxu0 0.0
      %3799 = vmatprep.subr.mxu0 0.0
      %3800 = vmatpush1.msra.mxu0 0.0
      %3801 = vmatprep.subr.mxu0 0.0
      %3802 = vmatpush1.msra.mxu0 0.0
      %3803 = vmatprep.subr.mxu0 0.0
      %3804 = vmatpush1.msra.mxu0 0.0
      %3805 = vmatprep.subr.mxu0 0.0
      %3806 = vmatpush1.msra.mxu0 0.0
      %3807 = vmatprep.subr.mxu0 0.0
      %3808 = vmatpush1.msra.mxu0 0.0
      %3809 = vmatprep.subr.mxu0 0.0
      %3810 = vmatpush1.msra.mxu0 0.0
      %3811 = vmatprep.subr.mxu0 0.0
      %3812 = vmatpush1.msra.mxu0 0.0
      %3813 = vmatprep.subr.mxu0 0.0
      %3814 = vmatpush1.msra.mxu0 0.0
      %3815 = vmatprep.subr.mxu0 0.0
      %3816 = vmatpush1.msra.mxu0 0.0
      %3817 = vmatprep.subr.mxu0 0.0
      %3818 = vmatpush1.msra.mxu0 0.0
      %3819 = vmatprep.subr.mxu0 0.0
      %3820 = vmatpush1.msra.mxu0 0.0
      %3821 = vmatprep.subr.mxu0 0.0
      %3822 = vmatpush1.msra.mxu0 0.0
      %3823 = vmatprep.subr.mxu0 0.0
      %3824 = vmatpush1.msra.mxu0 0.0
      %3825 = vmatprep.subr.mxu0 0.0
      %3826 = vmatpush1.msra.mxu0 0.0
      %3827 = vmatprep.subr.mxu0 0.0
      %3828 = vmatpush1.msra.mxu0 0.0
      %3829 = vmatprep.subr.mxu0 0.0
      %3830 = vmatpush1.msra.mxu0 0.0
      %3831 = vmatprep.subr.mxu0 0.0
      %3832 = vmatpush1.msra.mxu0 0.0
      %3833 = vmatprep.subr.mxu0 0.0
      %3834 = vmatpush1.msra.mxu0 0.0
      %3835 = vmatprep.subr.mxu0 0.0
      %3836 = vmatpush1.msra.mxu0 0.0
      %3837 = vmatprep.subr.mxu0 0.0
      %3838 = vmatpush1.msra.mxu0 0.0
      %3839 = vmatprep.subr.mxu0 0.0
      %3840 = vmatpush1.msra.mxu0 0.0
      %3841 = vmatprep.subr.mxu0 0.0
      %3842 = vmatpush1.msra.mxu0 0.0
      %3843 = vmatprep.subr.mxu0 0.0
      %3844 = vmatpush1.msra.mxu0 0.0
      %3845 = vmatprep.subr.mxu0 0.0
      %3846 = vmatpush1.msra.mxu0 0.0
      %3847 = vmatprep.mubr.f32.mxu0 0.0
      %3848 = vmatmul.mubr.f32.gmra.mrb[0].mxu0 %v3781
      %v3849 = vpop.f32.mrb[0].mxu0
      %v3850 = vadd.f32 0.0, %v3849
      %v3851 = vpop.f32.mrb[0].mxu0
      %3852 = vdwg.mxu0
      %v3853 = vpack.c.bf16 %v3850, %v3850
      %s3854 = scalar_lea.vmem %s43, 8
      %v3855 = vld [vmem:[%s3854] sm:$0xf]
      %v3857 = vsel %vm1205, %v3853, 0
      %v3860 = vsel %vm1733, %v3855, 0
      %3862 = vmatprep.subr.bf16.mxu0 0
      %3863 = vmatpush1.bf16.msra.mxu0 %v3860
      %3864 = vmatprep.subr.bf16.mxu0 0
      %3865 = vmatpush1.bf16.msra.mxu0 0
      %3866 = vmatprep.subr.bf16.mxu0 0
      %3867 = vmatpush1.bf16.msra.mxu0 0
      %3868 = vmatprep.subr.bf16.mxu0 0
      %3869 = vmatpush1.bf16.msra.mxu0 0
      %3870 = vmatprep.subr.bf16.mxu0 0
      %3871 = vmatpush1.bf16.msra.mxu0 0
      %3872 = vmatprep.subr.bf16.mxu0 0
      %3873 = vmatpush1.bf16.msra.mxu0 0
      %3874 = vmatprep.subr.bf16.mxu0 0
      %3875 = vmatpush1.bf16.msra.mxu0 0
      %3876 = vmatprep.subr.bf16.mxu0 0
      %3877 = vmatpush1.bf16.msra.mxu0 0
      %3878 = vmatprep.subr.bf16.mxu0 0
      %3879 = vmatpush1.bf16.msra.mxu0 0
      %3880 = vmatprep.subr.bf16.mxu0 0
      %3881 = vmatpush1.bf16.msra.mxu0 0
      %3882 = vmatprep.subr.bf16.mxu0 0
      %3883 = vmatpush1.bf16.msra.mxu0 0
      %3884 = vmatprep.subr.bf16.mxu0 0
      %3885 = vmatpush1.bf16.msra.mxu0 0
      %3886 = vmatprep.subr.bf16.mxu0 0
      %3887 = vmatpush1.bf16.msra.mxu0 0
      %3888 = vmatprep.subr.bf16.mxu0 0
      %3889 = vmatpush1.bf16.msra.mxu0 0
      %3890 = vmatprep.subr.bf16.mxu0 0
      %3891 = vmatpush1.bf16.msra.mxu0 0
      %3892 = vmatprep.subr.bf16.mxu0 0
      %3893 = vmatpush1.bf16.msra.mxu0 0
      %3894 = vmatprep.mubr.bf16.mxu0 0
      %3895 = vmatmul.mubr.bf16.gmra.mrb[0].mxu0 %v3857
      %v3896 = vpop.f32.mrb[0].mxu0
      %v3897 = vadd.f32 0.0, %v3896
      %v3898 = vpop.f32.mrb[0].mxu0
      %v3899 = vpop.f32.mrb[0].mxu0
      %v3900 = vpop.f32.mrb[0].mxu0
      %3901 = vdwg.mxu0
      %v3902 = vadd.f32 %v3491, %v3897
      %s3903 = scalar_lea.vmem %s31, 48
      %v3904 = vld [vmem:[%s3903] sm:$0xf]
      %v3905 = vld [vmem:[%s3903 + $0x4] sm:$0xf]
      %v3906 = vld [vmem:[%s3903 + $0x8] sm:$0xf]
      %v3907 = vld [vmem:[%s3903 + $0xc] sm:$0xf]
      %s3908 = scalar_lea.vmem %s33, 3
      %v3909 = vld [vmem:[%s3908] sm:$0x1]
      %v3911 = vlaneseq
      %v3912 = vshrl.u32 %v3911, 7
      %v3913 = vsub.s32 0, %v3912
      %v3914 = vrot.slane %v3909, %v3913
      %v3920 = vunpack.c.l.b16 %v3904
      %v3921 = vunpack.c.l.b16 %v3905
      %v3922 = vunpack.c.l.b16 %v3906
      %v3923 = vunpack.c.l.b16 %v3907
      %v3924 = vpack.c.b16 %v3921, %v3920
      %v3925 = vpack.c.b16 %v3923, %v3922
      %3928 = vmatprep.subr.bf16.mxu0 0
      %3929 = vmatpush1.bf16.msra.mxu0 %v3924
      %3930 = vmatprep.subr.bf16.mxu0 0
      %3931 = vmatpush1.bf16.msra.mxu0 %v3925
      %3932 = vmatprep.subr.bf16.mxu0 0
      %3933 = vmatpush1.bf16.msra.mxu0 0
      %3934 = vmatprep.subr.bf16.mxu0 0
      %3935 = vmatpush1.bf16.msra.mxu0 0
      %3936 = vmatprep.subr.bf16.mxu0 0
      %3937 = vmatpush1.bf16.msra.mxu0 0
      %3938 = vmatprep.subr.bf16.mxu0 0
      %3939 = vmatpush1.bf16.msra.mxu0 0
      %3940 = vmatprep.subr.bf16.mxu0 0
      %3941 = vmatpush1.bf16.msra.mxu0 0
      %3942 = vmatprep.subr.bf16.mxu0 0
      %3943 = vmatpush1.bf16.msra.mxu0 0
      %3944 = vmatprep.subr.bf16.mxu0 0
      %3945 = vmatpush1.bf16.msra.mxu0 0
      %3946 = vmatprep.subr.bf16.mxu0 0
      %3947 = vmatpush1.bf16.msra.mxu0 0
      %3948 = vmatprep.subr.bf16.mxu0 0
      %3949 = vmatpush1.bf16.msra.mxu0 0
      %3950 = vmatprep.subr.bf16.mxu0 0
      %3951 = vmatpush1.bf16.msra.mxu0 0
      %3952 = vmatprep.subr.bf16.mxu0 0
      %3953 = vmatpush1.bf16.msra.mxu0 0
      %3954 = vmatprep.subr.bf16.mxu0 0
      %3955 = vmatpush1.bf16.msra.mxu0 0
      %3956 = vmatprep.subr.bf16.mxu0 0
      %3957 = vmatpush1.bf16.msra.mxu0 0
      %3958 = vmatprep.subr.bf16.mxu0 0
      %3959 = vmatpush1.bf16.msra.mxu0 0
      %3960 = vmatprep.mubr.bf16.mxu0 0
      %3961 = vmatmul.mubr.bf16.gmra.mrb[0].mxu0 %v2703
      %v3962 = vpop.f32.mrb[0].mxu0
      %v3963 = vadd.f32 %v3914, %v3962
      %v3964 = vpop.f32.mrb[0].mxu0
      %v3965 = vpop.f32.mrb[0].mxu0
      %v3966 = vpop.f32.mrb[0].mxu0
      %3967 = vdwg.mxu0
      %s3968 = scalar_lea.vmem %s35, 48
      %v3969 = vld [vmem:[%s3968] sm:$0xf]
      %v3970 = vld [vmem:[%s3968 + $0x4] sm:$0xf]
      %v3971 = vld [vmem:[%s3968 + $0x8] sm:$0xf]
      %v3972 = vld [vmem:[%s3968 + $0xc] sm:$0xf]
      %s3973 = scalar_lea.vmem %s37, 3
      %v3974 = vld [vmem:[%s3973] sm:$0x1]
      %v3976 = vlaneseq
      %v3977 = vshrl.u32 %v3976, 7
      %v3978 = vsub.s32 0, %v3977
      %v3979 = vrot.slane %v3974, %v3978
      %v3985 = vunpack.c.l.b16 %v3969
      %v3986 = vunpack.c.l.b16 %v3970
      %v3987 = vunpack.c.l.b16 %v3971
      %v3988 = vunpack.c.l.b16 %v3972
      %v3989 = vpack.c.b16 %v3986, %v3985
      %v3990 = vpack.c.b16 %v3988, %v3987
      %3993 = vmatprep.subr.bf16.mxu0 0
      %3994 = vmatpush1.bf16.msra.mxu0 %v3989
      %3995 = vmatprep.subr.bf16.mxu0 0
      %3996 = vmatpush1.bf16.msra.mxu0 %v3990
      %3997 = vmatprep.subr.bf16.mxu0 0
      %3998 = vmatpush1.bf16.msra.mxu0 0
      %3999 = vmatprep.subr.bf16.mxu0 0
      %4000 = vmatpush1.bf16.msra.mxu0 0
      %4001 = vmatprep.subr.bf16.mxu0 0
      %4002 = vmatpush1.bf16.msra.mxu0 0
      %4003 = vmatprep.subr.bf16.mxu0 0
      %4004 = vmatpush1.bf16.msra.mxu0 0
      %4005 = vmatprep.subr.bf16.mxu0 0
      %4006 = vmatpush1.bf16.msra.mxu0 0
      %4007 = vmatprep.subr.bf16.mxu0 0
      %4008 = vmatpush1.bf16.msra.mxu0 0
      %4009 = vmatprep.subr.bf16.mxu0 0
      %4010 = vmatpush1.bf16.msra.mxu0 0
      %4011 = vmatprep.subr.bf16.mxu0 0
      %4012 = vmatpush1.bf16.msra.mxu0 0
      %4013 = vmatprep.subr.bf16.mxu0 0
      %4014 = vmatpush1.bf16.msra.mxu0 0
      %4015 = vmatprep.subr.bf16.mxu0 0
      %4016 = vmatpush1.bf16.msra.mxu0 0
      %4017 = vmatprep.subr.bf16.mxu0 0
      %4018 = vmatpush1.bf16.msra.mxu0 0
      %4019 = vmatprep.subr.bf16.mxu0 0
      %4020 = vmatpush1.bf16.msra.mxu0 0
      %4021 = vmatprep.subr.bf16.mxu0 0
      %4022 = vmatpush1.bf16.msra.mxu0 0
      %4023 = vmatprep.subr.bf16.mxu0 0
      %4024 = vmatpush1.bf16.msra.mxu0 0
      %4025 = vmatprep.mubr.bf16.mxu0 0
      %4026 = vmatmul.mubr.bf16.gmra.mrb[0].mxu0 %v2769
      %v4027 = vpop.f32.mrb[0].mxu0
      %v4028 = vadd.f32 %v3979, %v4027
      %v4029 = vpop.f32.mrb[0].mxu0
      %v4030 = vpop.f32.mrb[0].mxu0
      %v4031 = vpop.f32.mrb[0].mxu0
      %4032 = vdwg.mxu0
      %s4033 = scalar_lea.vmem %s39, 48
      %v4034 = vld [vmem:[%s4033] sm:$0xf]
      %v4035 = vld [vmem:[%s4033 + $0x4] sm:$0xf]
      %v4036 = vld [vmem:[%s4033 + $0x8] sm:$0xf]
      %v4037 = vld [vmem:[%s4033 + $0xc] sm:$0xf]
      %s4038 = scalar_lea.vmem %s41, 3
      %v4039 = vld [vmem:[%s4038] sm:$0x1]
      %v4041 = vlaneseq
      %v4042 = vshrl.u32 %v4041, 7
      %v4043 = vsub.s32 0, %v4042
      %v4044 = vrot.slane %v4039, %v4043
      %v4050 = vunpack.c.l.b16 %v4034
      %v4051 = vunpack.c.l.b16 %v4035
      %v4052 = vunpack.c.l.b16 %v4036
      %v4053 = vunpack.c.l.b16 %v4037
      %v4054 = vpack.c.b16 %v4051, %v4050
      %v4055 = vpack.c.b16 %v4053, %v4052
      %4058 = vmatprep.subr.bf16.mxu0 0
      %4059 = vmatpush1.bf16.msra.mxu0 %v4054
      %4060 = vmatprep.subr.bf16.mxu0 0
      %4061 = vmatpush1.bf16.msra.mxu0 %v4055
      %4062 = vmatprep.subr.bf16.mxu0 0
      %4063 = vmatpush1.bf16.msra.mxu0 0
      %4064 = vmatprep.subr.bf16.mxu0 0
      %4065 = vmatpush1.bf16.msra.mxu0 0
      %4066 = vmatprep.subr.bf16.mxu0 0
      %4067 = vmatpush1.bf16.msra.mxu0 0
      %4068 = vmatprep.subr.bf16.mxu0 0
      %4069 = vmatpush1.bf16.msra.mxu0 0
      %4070 = vmatprep.subr.bf16.mxu0 0
      %4071 = vmatpush1.bf16.msra.mxu0 0
      %4072 = vmatprep.subr.bf16.mxu0 0
      %4073 = vmatpush1.bf16.msra.mxu0 0
      %4074 = vmatprep.subr.bf16.mxu0 0
      %4075 = vmatpush1.bf16.msra.mxu0 0
      %4076 = vmatprep.subr.bf16.mxu0 0
      %4077 = vmatpush1.bf16.msra.mxu0 0
      %4078 = vmatprep.subr.bf16.mxu0 0
      %4079 = vmatpush1.bf16.msra.mxu0 0
      %4080 = vmatprep.subr.bf16.mxu0 0
      %4081 = vmatpush1.bf16.msra.mxu0 0
      %4082 = vmatprep.subr.bf16.mxu0 0
      %4083 = vmatpush1.bf16.msra.mxu0 0
      %4084 = vmatprep.subr.bf16.mxu0 0
      %4085 = vmatpush1.bf16.msra.mxu0 0
      %4086 = vmatprep.subr.bf16.mxu0 0
      %4087 = vmatpush1.bf16.msra.mxu0 0
      %4088 = vmatprep.subr.bf16.mxu0 0
      %4089 = vmatpush1.bf16.msra.mxu0 0
      %4090 = vmatprep.mubr.bf16.mxu0 0
      %4091 = vmatmul.mubr.bf16.gmra.mrb[0].mxu0 %v2769
      %v4092 = vpop.f32.mrb[0].mxu0
      %v4093 = vadd.f32 %v4044, %v4092
      %v4094 = vpop.f32.mrb[0].mxu0
      %v4095 = vpop.f32.mrb[0].mxu0
      %v4096 = vpop.f32.mrb[0].mxu0
      %4097 = vdwg.mxu0
      %v4099 = vsel %vm1205, %v3963, 0
      %v4102 = vsel %vm1205, %v4028, 0
      %4104 = vmatprep.subr.mxu0 0.0
      %4105 = vmatpush1.xpose.msra.mxu0 %v4102
      %4106 = vmatprep.subr.mxu0 0.0
      %4107 = vmatpush1.xpose.msra.mxu0 0.0
      %4108 = vmatprep.subr.mxu0 0.0
      %4109 = vmatpush1.xpose.msra.mxu0 0.0
      %4110 = vmatprep.subr.mxu0 0.0
      %4111 = vmatpush1.xpose.msra.mxu0 0.0
      %4112 = vmatprep.subr.mxu0 0.0
      %4113 = vmatpush1.xpose.msra.mxu0 0.0
      %4114 = vmatprep.subr.mxu0 0.0
      %4115 = vmatpush1.xpose.msra.mxu0 0.0
      %4116 = vmatprep.subr.mxu0 0.0
      %4117 = vmatpush1.xpose.msra.mxu0 0.0
      %4118 = vmatprep.subr.mxu0 0.0
      %4119 = vmatpush1.xpose.msra.mxu0 0.0
      %4120 = vmatprep.subr.mxu0 0.0
      %4121 = vmatpush1.xpose.msra.mxu0 0.0
      %4122 = vmatprep.subr.mxu0 0.0
      %4123 = vmatpush1.xpose.msra.mxu0 0.0
      %4124 = vmatprep.subr.mxu0 0.0
      %4125 = vmatpush1.xpose.msra.mxu0 0.0
      %4126 = vmatprep.subr.mxu0 0.0
      %4127 = vmatpush1.xpose.msra.mxu0 0.0
      %4128 = vmatprep.subr.mxu0 0.0
      %4129 = vmatpush1.xpose.msra.mxu0 0.0
      %4130 = vmatprep.subr.mxu0 0.0
      %4131 = vmatpush1.xpose.msra.mxu0 0.0
      %4132 = vmatprep.subr.mxu0 0.0
      %4133 = vmatpush1.xpose.msra.mxu0 0.0
      %4134 = vmatprep.subr.mxu0 0.0
      %4135 = vmatpush1.xpose.msra.mxu0 0.0
      %4136 = vmatprep.subr.mxu0 0.0
      %4137 = vmatpush1.xpose.msra.mxu0 0.0
      %4138 = vmatprep.subr.mxu0 0.0
      %4139 = vmatpush1.xpose.msra.mxu0 0.0
      %4140 = vmatprep.subr.mxu0 0.0
      %4141 = vmatpush1.xpose.msra.mxu0 0.0
      %4142 = vmatprep.subr.mxu0 0.0
      %4143 = vmatpush1.xpose.msra.mxu0 0.0
      %4144 = vmatprep.subr.mxu0 0.0
      %4145 = vmatpush1.xpose.msra.mxu0 0.0
      %4146 = vmatprep.subr.mxu0 0.0
      %4147 = vmatpush1.xpose.msra.mxu0 0.0
      %4148 = vmatprep.subr.mxu0 0.0
      %4149 = vmatpush1.xpose.msra.mxu0 0.0
      %4150 = vmatprep.subr.mxu0 0.0
      %4151 = vmatpush1.xpose.msra.mxu0 0.0
      %4152 = vmatprep.subr.mxu0 0.0
      %4153 = vmatpush1.xpose.msra.mxu0 0.0
      %4154 = vmatprep.subr.mxu0 0.0
      %4155 = vmatpush1.xpose.msra.mxu0 0.0
      %4156 = vmatprep.subr.mxu0 0.0
      %4157 = vmatpush1.xpose.msra.mxu0 0.0
      %4158 = vmatprep.subr.mxu0 0.0
      %4159 = vmatpush1.xpose.msra.mxu0 0.0
      %4160 = vmatprep.subr.mxu0 0.0
      %4161 = vmatpush1.xpose.msra.mxu0 0.0
      %4162 = vmatprep.subr.mxu0 0.0
      %4163 = vmatpush1.xpose.msra.mxu0 0.0
      %4164 = vmatprep.subr.mxu0 0.0
      %4165 = vmatpush1.xpose.msra.mxu0 0.0
      %4166 = vmatprep.subr.mxu0 0.0
      %4167 = vmatpush1.xpose.msra.mxu0 0.0
      %4168 = vmatprep.mubr.f32.mxu0 0.0
      %4169 = vmatmul.mubr.f32.gmra.mrb[0].mxu0 %v4099
      %v4170 = vpop.f32.mrb[0].mxu0
      %v4171 = vadd.f32 0.0, %v4170
      %v4172 = vpop.f32.mrb[0].mxu0
      %4173 = vdwg.mxu0
      %v4174 = vmul.f32 %v4171, 0.35355338
      %v4175 = vadd.f32 %v4174, %v2955
      %v4176 = vsel %vm1205, %v4175, -inf
      %4177 = vmax.xlane.f32.xlu0 %v4176
      %v4178 = vpop.xlane.xlu0 %4177
      %v4179 = vsub.f32 %v4175, %v4178
      %v4180 = vmul.f32 %v4179, 1.442695
      %v4181 = vpow.pop %v4180
      %v4182 = vsel %vm1205, %v4181, 0.0
      %4183 = vadd.xlane.f32.xlu0 %v4182
      %v4184 = vpop.xlane.xlu0 %4183
      %v4185 = vrcp.pop %v4184
      %v4186 = vmul.f32 %v4181, %v4185
      %v4188 = vsel %vm1205, %v4186, 0
      %4190 = vmatprep.subr.mxu0 0.0
      %4191 = vmatpush1.msra.mxu0 %v4093
      %4192 = vmatprep.subr.mxu0 0.0
      %4193 = vmatpush1.msra.mxu0 0.0
      %4194 = vmatprep.subr.mxu0 0.0
      %4195 = vmatpush1.msra.mxu0 0.0
      %4196 = vmatprep.subr.mxu0 0.0
      %4197 = vmatpush1.msra.mxu0 0.0
      %4198 = vmatprep.subr.mxu0 0.0
      %4199 = vmatpush1.msra.mxu0 0.0
      %4200 = vmatprep.subr.mxu0 0.0
      %4201 = vmatpush1.msra.mxu0 0.0
      %4202 = vmatprep.subr.mxu0 0.0
      %4203 = vmatpush1.msra.mxu0 0.0
      %4204 = vmatprep.subr.mxu0 0.0
      %4205 = vmatpush1.msra.mxu0 0.0
      %4206 = vmatprep.subr.mxu0 0.0
      %4207 = vmatpush1.msra.mxu0 0.0
      %4208 = vmatprep.subr.mxu0 0.0
      %4209 = vmatpush1.msra.mxu0 0.0
      %4210 = vmatprep.subr.mxu0 0.0
      %4211 = vmatpush1.msra.mxu0 0.0
      %4212 = vmatprep.subr.mxu0 0.0
      %4213 = vmatpush1.msra.mxu0 0.0
      %4214 = vmatprep.subr.mxu0 0.0
      %4215 = vmatpush1.msra.mxu0 0.0
      %4216 = vmatprep.subr.mxu0 0.0
      %4217 = vmatpush1.msra.mxu0 0.0
      %4218 = vmatprep.subr.mxu0 0.0
      %4219 = vmatpush1.msra.mxu0 0.0
      %4220 = vmatprep.subr.mxu0 0.0
      %4221 = vmatpush1.msra.mxu0 0.0
      %4222 = vmatprep.subr.mxu0 0.0
      %4223 = vmatpush1.msra.mxu0 0.0
      %4224 = vmatprep.subr.mxu0 0.0
      %4225 = vmatpush1.msra.mxu0 0.0
      %4226 = vmatprep.subr.mxu0 0.0
      %4227 = vmatpush1.msra.mxu0 0.0
      %4228 = vmatprep.subr.mxu0 0.0
      %4229 = vmatpush1.msra.mxu0 0.0
      %4230 = vmatprep.subr.mxu0 0.0
      %4231 = vmatpush1.msra.mxu0 0.0
      %4232 = vmatprep.subr.mxu0 0.0
      %4233 = vmatpush1.msra.mxu0 0.0
      %4234 = vmatprep.subr.mxu0 0.0
      %4235 = vmatpush1.msra.mxu0 0.0
      %4236 = vmatprep.subr.mxu0 0.0
      %4237 = vmatpush1.msra.mxu0 0.0
      %4238 = vmatprep.subr.mxu0 0.0
      %4239 = vmatpush1.msra.mxu0 0.0
      %4240 = vmatprep.subr.mxu0 0.0
      %4241 = vmatpush1.msra.mxu0 0.0
      %4242 = vmatprep.subr.mxu0 0.0
      %4243 = vmatpush1.msra.mxu0 0.0
      %4244 = vmatprep.subr.mxu0 0.0
      %4245 = vmatpush1.msra.mxu0 0.0
      %4246 = vmatprep.subr.mxu0 0.0
      %4247 = vmatpush1.msra.mxu0 0.0
      %4248 = vmatprep.subr.mxu0 0.0
      %4249 = vmatpush1.msra.mxu0 0.0
      %4250 = vmatprep.subr.mxu0 0.0
      %4251 = vmatpush1.msra.mxu0 0.0
      %4252 = vmatprep.subr.mxu0 0.0
      %4253 = vmatpush1.msra.mxu0 0.0
      %4254 = vmatprep.mubr.f32.mxu0 0.0
      %4255 = vmatmul.mubr.f32.gmra.mrb[0].mxu0 %v4188
      %v4256 = vpop.f32.mrb[0].mxu0
      %v4257 = vadd.f32 0.0, %v4256
      %v4258 = vpop.f32.mrb[0].mxu0
      %4259 = vdwg.mxu0
      %v4260 = vpack.c.bf16 %v4257, %v4257
      %s4261 = scalar_lea.vmem %s43, 12
      %v4262 = vld [vmem:[%s4261] sm:$0xf]
      %v4264 = vsel %vm1205, %v4260, 0
      %v4267 = vsel %vm1733, %v4262, 0
      %4269 = vmatprep.subr.bf16.mxu0 0
      %4270 = vmatpush1.bf16.msra.mxu0 %v4267
      %4271 = vmatprep.subr.bf16.mxu0 0
      %4272 = vmatpush1.bf16.msra.mxu0 0
      %4273 = vmatprep.subr.bf16.mxu0 0
      %4274 = vmatpush1.bf16.msra.mxu0 0
      %4275 = vmatprep.subr.bf16.mxu0 0
      %4276 = vmatpush1.bf16.msra.mxu0 0
      %4277 = vmatprep.subr.bf16.mxu0 0
      %4278 = vmatpush1.bf16.msra.mxu0 0
      %4279 = vmatprep.subr.bf16.mxu0 0
      %4280 = vmatpush1.bf16.msra.mxu0 0
      %4281 = vmatprep.subr.bf16.mxu0 0
      %4282 = vmatpush1.bf16.msra.mxu0 0
      %4283 = vmatprep.subr.bf16.mxu0 0
      %4284 = vmatpush1.bf16.msra.mxu0 0
      %4285 = vmatprep.subr.bf16.mxu0 0
      %4286 = vmatpush1.bf16.msra.mxu0 0
      %4287 = vmatprep.subr.bf16.mxu0 0
      %4288 = vmatpush1.bf16.msra.mxu0 0
      %4289 = vmatprep.subr.bf16.mxu0 0
      %4290 = vmatpush1.bf16.msra.mxu0 0
      %4291 = vmatprep.subr.bf16.mxu0 0
      %4292 = vmatpush1.bf16.msra.mxu0 0
      %4293 = vmatprep.subr.bf16.mxu0 0
      %4294 = vmatpush1.bf16.msra.mxu0 0
      %4295 = vmatprep.subr.bf16.mxu0 0
      %4296 = vmatpush1.bf16.msra.mxu0 0
      %4297 = vmatprep.subr.bf16.mxu0 0
      %4298 = vmatpush1.bf16.msra.mxu0 0
      %4299 = vmatprep.subr.bf16.mxu0 0
      %4300 = vmatpush1.bf16.msra.mxu0 0
      %4301 = vmatprep.mubr.bf16.mxu0 0
      %4302 = vmatmul.mubr.bf16.gmra.mrb[0].mxu0 %v4264
      %v4303 = vpop.f32.mrb[0].mxu0
      %v4304 = vadd.f32 0.0, %v4303
      %v4305 = vpop.f32.mrb[0].mxu0
      %v4306 = vpop.f32.mrb[0].mxu0
      %v4307 = vpop.f32.mrb[0].mxu0
      %4308 = vdwg.mxu0
      %v4309 = vadd.f32 %v3902, %v4304
      %v4310 = vld [vmem:[%s45] sm:$0x1]
      %v4312 = vlaneseq
      %v4313 = vshrl.u32 %v4312, 7
      %v4314 = vsub.s32 0, %v4313
      %v4315 = vrot.slane %v4310, %v4314
      %v4317 = vadd.f32 %v4309, %v4315
      %v4318 = vadd.f32 %v2675, %v4317
      %v4319 = vld [vmem:[%s47] sm:$0x1]
      %v4320 = vld [vmem:[%s49] sm:$0x1]
      %v4321 = vsel %vm1035, %v4318, 0.0
      %4322 = vadd.xlane.f32.xlu0 %v4321
      %v4323 = vpop.xlane.xlu0 %4322
      %v4324 = vmul.f32 %v4323, %v2651
      %v4325 = vsub.f32 %v4318, %v4324
      %v4326 = vmul.f32 %v4325, %v4325
      %v4327 = vsel %vm1035, %v4326, 0.0
      %4328 = vadd.xlane.f32.xlu0 %v4327
      %v4329 = vpop.xlane.xlu0 %4328
      %v4330 = vmul.f32 %v4329, %v2651
      %v4331 = vadd.f32 %v4330, 1e-05
      %v4332 = vrsqrt.pop %v4331
      %v4333 = vmul.f32 %v4325, %v4332
      %v4335 = vlaneseq
      %v4336 = vshrl.u32 %v4335, 7
      %v4337 = vsub.s32 0, %v4336
      %v4338 = vrot.slane %v4319, %v4337
      %v4340 = vmul.f32 %v4333, %v4338
      %v4342 = vlaneseq
      %v4343 = vshrl.u32 %v4342, 7
      %v4344 = vsub.s32 0, %v4343
      %v4345 = vrot.slane %v4320, %v4344
      %v4347 = vadd.f32 %v4340, %v4345
      %v4348 = vpack.c.bf16 %v4347, %v4347
      %v4349 = vld [vmem:[%s51] sm:$0xf]
      %v4350 = vld [vmem:[%s51 + $0x4] sm:$0xf]
      %v4351 = vld [vmem:[%s51 + $0x8] sm:$0xf]
      %v4352 = vld [vmem:[%s51 + $0xc] sm:$0xf]
      %v4353 = vld [vmem:[%s53] sm:$0x1]
      %v4355 = vlaneseq
      %v4356 = vshrl.u32 %v4355, 7
      %v4357 = vsub.s32 0, %v4356
      %v4358 = vrot.slane %v4353, %v4357
      %v4364 = vunpack.c.l.b16 %v4349
      %v4365 = vunpack.c.l.b16 %v4350
      %v4366 = vunpack.c.l.b16 %v4351
      %v4367 = vunpack.c.l.b16 %v4352
      %v4368 = vpack.c.b16 %v4365, %v4364
      %v4369 = vpack.c.b16 %v4367, %v4366
      %v4373 = vsel %vm1035, %v4348, 0
      %4375 = vmatprep.subr.bf16.mxu0 0
      %4376 = vmatpush1.bf16.msra.mxu0 %v4368
      %4377 = vmatprep.subr.bf16.mxu0 0
      %4378 = vmatpush1.bf16.msra.mxu0 %v4369
      %4379 = vmatprep.subr.bf16.mxu0 0
      %4380 = vmatpush1.bf16.msra.mxu0 0
      %4381 = vmatprep.subr.bf16.mxu0 0
      %4382 = vmatpush1.bf16.msra.mxu0 0
      %4383 = vmatprep.subr.bf16.mxu0 0
      %4384 = vmatpush1.bf16.msra.mxu0 0
      %4385 = vmatprep.subr.bf16.mxu0 0
      %4386 = vmatpush1.bf16.msra.mxu0 0
      %4387 = vmatprep.subr.bf16.mxu0 0
      %4388 = vmatpush1.bf16.msra.mxu0 0
      %4389 = vmatprep.subr.bf16.mxu0 0
      %4390 = vmatpush1.bf16.msra.mxu0 0
      %4391 = vmatprep.subr.bf16.mxu0 0
      %4392 = vmatpush1.bf16.msra.mxu0 0
      %4393 = vmatprep.subr.bf16.mxu0 0
      %4394 = vmatpush1.bf16.msra.mxu0 0
      %4395 = vmatprep.subr.bf16.mxu0 0
      %4396 = vmatpush1.bf16.msra.mxu0 0
      %4397 = vmatprep.subr.bf16.mxu0 0
      %4398 = vmatpush1.bf16.msra.mxu0 0
      %4399 = vmatprep.subr.bf16.mxu0 0
      %4400 = vmatpush1.bf16.msra.mxu0 0
      %4401 = vmatprep.subr.bf16.mxu0 0
      %4402 = vmatpush1.bf16.msra.mxu0 0
      %4403 = vmatprep.subr.bf16.mxu0 0
      %4404 = vmatpush1.bf16.msra.mxu0 0
      %4405 = vmatprep.subr.bf16.mxu0 0
      %4406 = vmatpush1.bf16.msra.mxu0 0
      %4407 = vmatprep.mubr.bf16.mxu0 0
      %4408 = vmatmul.mubr.bf16.gmra.mrb[0].mxu0 %v4373
      %v4409 = vpop.f32.mrb[0].mxu0
      %v4410 = vadd.f32 %v4358, %v4409
      %v4411 = vpop.f32.mrb[0].mxu0
      %v4412 = vpop.f32.mrb[0].mxu0
      %v4413 = vpop.f32.mrb[0].mxu0
      %4414 = vdwg.mxu0
      %v4415 = vmax.f32 %v4410, 0.0
      %v4416 = vpack.c.bf16 %v4415, %v4415
      %v4417 = vld [vmem:[%s55] sm:$0xf]
      %v4418 = vld [vmem:[%s55 + $0x4] sm:$0xf]
      %v4419 = vld [vmem:[%s55 + $0x8] sm:$0xf]
      %v4420 = vld [vmem:[%s55 + $0xc] sm:$0xf]
      %v4421 = vld [vmem:[%s55 + $0x10] sm:$0xf]
      %v4422 = vld [vmem:[%s55 + $0x14] sm:$0xf]
      %v4423 = vld [vmem:[%s55 + $0x18] sm:$0xf]
      %v4424 = vld [vmem:[%s55 + $0x1c] sm:$0xf]
      %v4425 = vld [vmem:[%s57] sm:$0x1]
      %v4427 = vlaneseq
      %v4428 = vshrl.u32 %v4427, 7
      %v4429 = vsub.s32 0, %v4428
      %v4430 = vrot.slane %v4425, %v4429
      %v4440 = vunpack.c.l.b16 %v4417
      %v4441 = vunpack.c.l.b16 %v4418
      %v4442 = vunpack.c.l.b16 %v4419
      %v4443 = vunpack.c.l.b16 %v4420
      %v4444 = vunpack.c.l.b16 %v4421
      %v4445 = vunpack.c.l.b16 %v4422
      %v4446 = vunpack.c.l.b16 %v4423
      %v4447 = vunpack.c.l.b16 %v4424
      %v4448 = vpack.c.b16 %v4441, %v4440
      %v4449 = vpack.c.b16 %v4443, %v4442
      %v4450 = vpack.c.b16 %v4445, %v4444
      %v4451 = vpack.c.b16 %v4447, %v4446
      %vm4456 = vcmask 523264
      %v4458 = vsel %vm4456, %v4416, 0
      %4460 = vmatprep.subr.bf16.mxu0 0
      %4461 = vmatpush1.bf16.msra.mxu0 %v4448
      %4462 = vmatprep.subr.bf16.mxu0 0
      %4463 = vmatpush1.bf16.msra.mxu0 %v4449
      %4464 = vmatprep.subr.bf16.mxu0 0
      %4465 = vmatpush1.bf16.msra.mxu0 %v4450
      %4466 = vmatprep.subr.bf16.mxu0 0
      %4467 = vmatpush1.bf16.msra.mxu0 %v4451
      %4468 = vmatprep.subr.bf16.mxu0 0
      %4469 = vmatpush1.bf16.msra.mxu0 0
      %4470 = vmatprep.subr.bf16.mxu0 0
      %4471 = vmatpush1.bf16.msra.mxu0 0
      %4472 = vmatprep.subr.bf16.mxu0 0
      %4473 = vmatpush1.bf16.msra.mxu0 0
      %4474 = vmatprep.subr.bf16.mxu0 0
      %4475 = vmatpush1.bf16.msra.mxu0 0
      %4476 = vmatprep.subr.bf16.mxu0 0
      %4477 = vmatpush1.bf16.msra.mxu0 0
      %4478 = vmatprep.subr.bf16.mxu0 0
      %4479 = vmatpush1.bf16.msra.mxu0 0
      %4480 = vmatprep.subr.bf16.mxu0 0
      %4481 = vmatpush1.bf16.msra.mxu0 0
      %4482 = vmatprep.subr.bf16.mxu0 0
      %4483 = vmatpush1.bf16.msra.mxu0 0
      %4484 = vmatprep.subr.bf16.mxu0 0
      %4485 = vmatpush1.bf16.msra.mxu0 0
      %4486 = vmatprep.subr.bf16.mxu0 0
      %4487 = vmatpush1.bf16.msra.mxu0 0
      %4488 = vmatprep.subr.bf16.mxu0 0
      %4489 = vmatpush1.bf16.msra.mxu0 0
      %4490 = vmatprep.subr.bf16.mxu0 0
      %4491 = vmatpush1.bf16.msra.mxu0 0
      %4492 = vmatprep.mubr.bf16.mxu0 0
      %4493 = vmatmul.mubr.bf16.gmra.mrb[0].mxu0 %v4458
      %v4494 = vpop.f32.mrb[0].mxu0
      %v4495 = vadd.f32 %v4430, %v4494
      %v4496 = vpop.f32.mrb[0].mxu0
      %v4497 = vpop.f32.mrb[0].mxu0
      %v4498 = vpop.f32.mrb[0].mxu0
      %4499 = vdwg.mxu0
      %v4500 = vadd.f32 %v4347, %v4495
      %v4501 = vld [vmem:[%s59] sm:$0x1]
      %v4502 = vld [vmem:[%s61] sm:$0x1]
      %v4503 = vsel %vm1035, %v4500, 0.0
      %4504 = vadd.xlane.f32.xlu0 %v4503
      %v4505 = vpop.xlane.xlu0 %4504
      %v4506 = vmul.f32 %v4505, %v2651
      %v4507 = vsub.f32 %v4500, %v4506
      %v4508 = vmul.f32 %v4507, %v4507
      %v4509 = vsel %vm1035, %v4508, 0.0
      %4510 = vadd.xlane.f32.xlu0 %v4509
      %v4511 = vpop.xlane.xlu0 %4510
      %v4512 = vmul.f32 %v4511, %v2651
      %v4513 = vadd.f32 %v4512, 1e-05
      %v4514 = vrsqrt.pop %v4513
      %v4515 = vmul.f32 %v4507, %v4514
      %v4517 = vlaneseq
      %v4518 = vshrl.u32 %v4517, 7
      %v4519 = vsub.s32 0, %v4518
      %v4520 = vrot.slane %v4501, %v4519
      %v4522 = vmul.f32 %v4515, %v4520
      %v4524 = vlaneseq
      %v4525 = vshrl.u32 %v4524, 7
      %v4526 = vsub.s32 0, %v4525
      %v4527 = vrot.slane %v4502, %v4526
      %v4529 = vadd.f32 %v4522, %v4527
      %4530 = vst.msk [vmem:[%s998] sm:$0xff] %vm1035, %v4529
      %p4531 = scmp.lt.s32.totalorder %s74, 1
      %s4532 = scalar_select %p4531, %s74, 1
      %s4533 = smul.addr %s4532, 8
      %s4534 = scalar_lea.vmem %s63, %s4533
      // Predicated region
      $region145: #{seq2seq_forward.10} parent=143 // pred_check
        %p4535 = pneg %p763
      $region146: #{seq2seq_forward.10} parent=143 // pred_check_branch
        %4537 = sbr.rel (%p4535) target = $region148
      $region147: #{seq2seq_forward.10} parent=143 // pred_region
        _
      $region148: #{seq2seq_forward.10} parent=143 // pred_fallthru
        _
    $region144: #{seq2seq_forward.10} parent=5 // pred_fallthru
      _
    %p4538 = scmp.le.s32.totalorder 2, %s69
    // Predicated region
    $region149: #{seq2seq_forward.10} parent=5 // pred_check
      %p4539 = pneg %p4538
    $region150: #{seq2seq_forward.10} parent=5 // pred_check_branch
      %4541 = sbr.rel (%p4539) target = $region152
    $region151: #{seq2seq_forward.10} parent=5 // pred_region
      %s4542 = ssub.s32 %s69, 2
      // Predicated region
      $region153: #{seq2seq_forward.10} parent=151 // pred_check
        %p4543 = pneg %p769
      $region154: #{seq2seq_forward.10} parent=151 // pred_check_branch
        %4545 = sbr.rel (%p4543) target = $region156
      $region155: #{seq2seq_forward.10} parent=151 // pred_region
        %p4546 = scmp.lt.s32.totalorder %s75, 1
        %s4547 = scalar_select %p4546, %s75, 1
        %s4548 = smul.addr %s4547, 8
        %s4549 = scalar_lea.vmem %s63, %s4548
      $region156: #{seq2seq_forward.10} parent=151 // pred_fallthru
        _
    $region152: #{seq2seq_forward.10} parent=5 // pred_fallthru
      _
  $region6: #{seq2seq_forward.10} parent=0 // loop_footer
    %s73 = sadd.s32 1, %s69
  $region7: #{seq2seq_forward.10} parent=0 // loop_footer_branch
    %68 = sbr.rel target = $region3
  $region8: #{seq2seq_forward.10} parent=0 // loop_exit
    _

</llo_original>
